<compile_context>
chip_gen: v7x
topology: tpu7x:2x2x1
jax: 0.10.0
libtpu: 0.0.40
codegen_flags: <defaults>
</compile_context>

<pallas_src>
import functools

import numpy as np

import jax
import jax.numpy as jnp
from jax.experimental import pallas as pl
from jax.experimental.pallas import tpu as pltpu


# ------------------------------ fused kernel --------------------------------

def _encoder_kernel(p1_ref, w1_ref,
                    w2_ref, s2_ref, g2_ref, b2_ref,
                    w3_ref, s3_ref, g3_ref, b3_ref,
                    w4_ref, s4_ref, g4_ref, b4_ref,
                    wmu_ref, wlv_ref, bmu_ref, blv_ref, eps_ref,
                    z_ref, mu_ref, lv_ref):
    f32 = jnp.float32
    bf16 = jnp.bfloat16

    def conv(act_bf16, w_all_ref, s_ref):
        # act_bf16 : [Mi, Cin_pad] bf16
        # w_all_ref: [Cin_pad, 16*Cout_pad] bf16 (tap j = ki*4+kj as lane block j)
        # s_ref    : [16, Mo, Mi] f32 0/1 stride-2 gather matrices
        cpad = w_all_ref.shape[1] // 16
        y = jnp.dot(act_bf16, w_all_ref[...], preferred_element_type=f32)
        out = jnp.dot(s_ref[0], y[:, :cpad], preferred_element_type=f32)
        for j in range(1, 16):
            out = out + jnp.dot(s_ref[j], y[:, j * cpad:(j + 1) * cpad],
                                preferred_element_type=f32)
        return out  # [Mo, Cout_pad] f32

    def bn_relu(y, g_ref, b_ref):
        # BatchNorm2d training-mode batch stats over all (B,H,W) rows, eps=1e-5,
        # folded into a single scale/shift; f32 throughout.
        mean = jnp.mean(y, axis=0, keepdims=True)
        var = jnp.maximum(jnp.mean(y * y, axis=0, keepdims=True) - mean * mean, 0.0)
        scale = g_ref[...] * jax.lax.rsqrt(var + 1e-5)
        shift = b_ref[...] - mean * scale
        return jnp.maximum(y * scale + shift, 0.0)

    # layer 1: Conv(1->32, lanes padded to 128) + ReLU  (patches prepared outside)
    h = jnp.maximum(
        jnp.dot(p1_ref[...], w1_ref[...], preferred_element_type=f32), 0.0
    ).astype(bf16)                                                    # [B*64, 128]

    # layers 2..4: Conv + BN(batch stats) + ReLU
    h = bn_relu(conv(h, w2_ref, s2_ref), g2_ref, b2_ref).astype(bf16)  # [B*16, 128]
    h = bn_relu(conv(h, w3_ref, s3_ref), g3_ref, b3_ref).astype(bf16)  # [B*4, 128]
    flat = bn_relu(conv(h, w4_ref, s4_ref), g4_ref, b4_ref)            # [B, 256] == Flatten

    # head: Linear(256 -> 2D) pre-split into mu / logvar halves + reparameterize
    fb = flat.astype(bf16)
    mu = jnp.dot(fb, wmu_ref[...], preferred_element_type=f32) + bmu_ref[...]
    lv = jnp.dot(fb, wlv_ref[...], preferred_element_type=f32) + blv_ref[...]
    z_ref[...] = eps_ref[...] * jnp.exp(0.5 * lv) + mu
    mu_ref[...] = mu
    lv_ref[...] = lv


_VMEM = functools.partial(pl.BlockSpec, memory_space=pltpu.MemorySpace.VMEM)


def _build_pallas_fn(B, D):
    out_shapes = (
        jax.ShapeDtypeStruct((B, D), jnp.float32),  # z
        jax.ShapeDtypeStruct((B, D), jnp.float32),  # mu
        jax.ShapeDtypeStruct((B, D), jnp.float32),  # log_var
    )
    return pl.pallas_call(
        _encoder_kernel,
        out_shape=out_shapes,
        in_specs=[_VMEM()] * 19,
        out_specs=(_VMEM(), _VMEM(), _VMEM()),
        cost_estimate=pl.CostEstimate(
            flops=120_000_000, transcendentals=600, bytes_accessed=3_000_000),
    )


# ------------------------------ host-side prep ------------------------------

def _im2col_input(x_nchw):
    """[B,1,16,16] -> layer-1 patch matrix [B*64, 128] bf16 (cols (ki,kj), K padded)."""
    B = x_nchw.shape[0]
    xp = jnp.pad(x_nchw[:, 0], ((0, 0), (1, 1), (1, 1)))          # [B, 18, 18]
    cols = [xp[:, ki:ki + 16:2, kj:kj + 16:2]
            for ki in range(4) for kj in range(4)]                # each [B, 8, 8]
    p = jnp.stack(cols, axis=-1).reshape(B * 64, 16)              # rows (b, ho, wo)
    p = jnp.pad(p, ((0, 0), (0, 112)))                            # lane-dense K = 128
    return p.astype(jnp.bfloat16)


def _selection_matrices(B, h_in, w_in):
    """0/1 gather matrices for a k=4,s=2,p=1 conv: [16, B*ho*wo, B*h_in*w_in]."""
    h_out, w_out = h_in // 2, w_in // 2
    S = np.zeros((16, B * h_out * w_out, B * h_in * w_in), np.float32)
    for b in range(B):
        for ho in range(h_out):
            for wo in range(w_out):
                r = (b * h_out + ho) * w_out + wo
                for ki in range(4):
                    for kj in range(4):
                        hi, wi = 2 * ho + ki - 1, 2 * wo + kj - 1
                        if 0 <= hi < h_in and 0 <= wi < w_in:
                            S[ki * 4 + kj, r, (b * h_in + hi) * w_in + wi] = 1.0
    return jnp.asarray(S)


def _pack_conv_weight(w, cin_pad, cout_pad):
    """Torch conv weight [Cout,Cin,4,4] -> [cin_pad, 16*cout_pad] bf16 (tap-major blocks)."""
    cout, cin = w.shape[0], w.shape[1]
    wt = jnp.transpose(w, (1, 2, 3, 0)).reshape(cin, 16, cout)    # [Cin, ki*4+kj, Cout]
    wt = jnp.pad(wt, ((0, cin_pad - cin), (0, 0), (0, cout_pad - cout)))
    return wt.reshape(cin_pad, 16 * cout_pad).astype(jnp.bfloat16)


def init_params(B, dim_latent, oc=32, key=jax.random.PRNGKey(42)):
    ks = jax.random.split(key, 6)
    raw = {
        "w1": 0.05 * jax.random.normal(ks[0], (oc, 1, 4, 4), jnp.float32),
        "w2": 0.05 * jax.random.normal(ks[1], (2 * oc, oc, 4, 4), jnp.float32),
        "w3": 0.05 * jax.random.normal(ks[2], (4 * oc, 2 * oc, 4, 4), jnp.float32),
        "w4": 0.05 * jax.random.normal(ks[3], (8 * oc, 4 * oc, 4, 4), jnp.float32),
        "wl": 0.05 * jax.random.normal(ks[4], (256, 2 * dim_latent), jnp.float32),
        "bl": 0.05 * jax.random.normal(ks[5], (2 * dim_latent,), jnp.float32),
    }
    D = dim_latent
    p = {}
    # conv weights packed/padded/cast ONCE here (hoisted out of the jitted forward)
    w1m = raw["w1"].reshape(oc, 16).T                               # [16, 32] rows=(ki,kj)
    p["w1"] = jnp.pad(w1m, ((0, 112), (0, 128 - oc))).astype(jnp.bfloat16)   # [128, 128]
    p["w2"] = _pack_conv_weight(raw["w2"], 128, 128)                # [128, 2048]
    p["w3"] = _pack_conv_weight(raw["w3"], 128, 128)                # [128, 2048]
    p["w4"] = _pack_conv_weight(raw["w4"], 128, 256)                # [128, 4096]
    # BatchNorm affine at torch default init (gamma=1, beta=0); padded lanes = 0.
    p["g2"] = jnp.pad(jnp.ones((1, 2 * oc), jnp.float32), ((0, 0), (0, 128 - 2 * oc)))
    p["b2"] = jnp.zeros((1, 128), jnp.float32)
    p["g3"] = jnp.ones((1, 4 * oc), jnp.float32)
    p["b3"] = jnp.zeros((1, 4 * oc), jnp.float32)
    p["g4"] = jnp.ones((1, 8 * oc), jnp.float32)
    p["b4"] = jnp.zeros((1, 8 * oc), jnp.float32)
    # stride-2 / pad-1 gather matrices (static; depend only on shapes)
    p["s2"] = _selection_matrices(B, 8, 8)    # [16, B*16, B*64]
    p["s3"] = _selection_matrices(B, 4, 4)    # [16, B*4,  B*16]
    p["s4"] = _selection_matrices(B, 2, 2)    # [16, B,    B*4]
    # Linear head pre-split into mu / logvar halves
    p["wmu"] = raw["wl"][:, :D].astype(jnp.bfloat16)
    p["wlv"] = raw["wl"][:, D:].astype(jnp.bfloat16)
    p["bmu"] = raw["bl"][:D].reshape(1, D)
    p["blv"] = raw["bl"][D:].reshape(1, D)
    return p, raw


def random_cnn_encoder_forward(x_nchw, params, eps):
    """x_nchw: [B,1,16,16] f32 -> (z, mu, log_var), each [B, dim_latent] f32."""
    B = x_nchw.shape[0]
    D = eps.shape[1]
    p1 = _im2col_input(x_nchw)
    return _build_pallas_fn(B, D)(
        p1, params["w1"],
        params["w2"], params["s2"], params["g2"], params["b2"],
        params["w3"], params["s3"], params["g3"], params["b3"],
        params["w4"], params["s4"], params["g4"], params["b4"],
        params["wmu"], params["wlv"], params["bmu"], params["blv"],
        eps,
    )


# ------------------------- pure-JAX reference check -------------------------

def _reference_forward(x, raw, eps, dim_latent):
    bf16, f32 = jnp.bfloat16, jnp.float32

    def conv(h, w):
        return jax.lax.conv_general_dilated(
            h.astype(bf16), w.astype(bf16), window_strides=(2, 2),
            padding=((1, 1), (1, 1)),
            dimension_numbers=("NCHW", "OIHW", "NCHW"),
            preferred_element_type=f32)

    def bn(h):
        mean = jnp.mean(h, axis=(0, 2, 3), keepdims=True)
        var = jnp.mean(jnp.square(h - mean), axis=(0, 2, 3), keepdims=True)
        return (h - mean) * jax.lax.rsqrt(var + 1e-5)

    h = jax.nn.relu(conv(x, raw["w1"]))
    h = jax.nn.relu(bn(conv(h, raw["w2"])))
    h = jax.nn.relu(bn(conv(h, raw["w3"])))
    h = jax.nn.relu(bn(conv(h, raw["w4"])))
    flat = h.reshape(h.shape[0], -1)
    y = jnp.dot(flat.astype(bf16), raw["wl"].astype(bf16),
                preferred_element_type=f32) + raw["bl"]
    mu, lv = y[:, :dim_latent], y[:, dim_latent:]
    return eps * jnp.exp(0.5 * lv) + mu, mu, lv


# ----------------------------------- main ------------------------------------

if __name__ == "__main__":
    B = 2
    DIM_LATENT = 8   # 16x16 single-channel input so Flatten() == 256 == Linear in-features

    key = jax.random.PRNGKey(0)
    kx, keps = jax.random.split(key)
    x = jax.random.normal(kx, (B, 1, 16, 16), jnp.float32)         # NCHW like PyTorch
    eps = jax.random.normal(keps, (B, DIM_LATENT), jnp.float32)    # torch.randn_like(std)

    params, raw = init_params(B, DIM_LATENT, oc=32)

    fwd = jax.jit(random_cnn_encoder_forward)
    z, mu, log_var = fwd(x, params, eps)
    jax.block_until_ready((z, mu, log_var))

    assert z.shape == (B, DIM_LATENT)
    assert mu.shape == (B, DIM_LATENT)
    assert log_var.shape == (B, DIM_LATENT)

    # sanity check against a pure-JAX reference (same bf16-matmul / f32-accumulate recipe)
    z_r, mu_r, lv_r = _reference_forward(x, raw, eps, DIM_LATENT)
    np.testing.assert_allclose(np.asarray(mu), np.asarray(mu_r), rtol=2e-2, atol=2e-2)
    np.testing.assert_allclose(np.asarray(log_var), np.asarray(lv_r), rtol=2e-2, atol=2e-2)
    np.testing.assert_allclose(np.asarray(z), np.asarray(z_r), rtol=2e-2, atol=2e-2)

    print("KERNEL_OK")
</pallas_src>

<mosaic_0001>
module attributes {stable_mosaic.version = 11 : i64} {
  func.func @_encoder_kernel(%arg0: memref<128x128xbf16, #tpu.memory_space<vmem>>, %arg1: memref<128x128xbf16, #tpu.memory_space<vmem>>, %arg2: memref<128x2048xbf16, #tpu.memory_space<vmem>>, %arg3: memref<16x32x128xf32, #tpu.memory_space<vmem>>, %arg4: memref<1x128xf32, #tpu.memory_space<vmem>>, %arg5: memref<1x128xf32, #tpu.memory_space<vmem>>, %arg6: memref<128x2048xbf16, #tpu.memory_space<vmem>>, %arg7: memref<16x8x32xf32, #tpu.memory_space<vmem>>, %arg8: memref<1x128xf32, #tpu.memory_space<vmem>>, %arg9: memref<1x128xf32, #tpu.memory_space<vmem>>, %arg10: memref<128x4096xbf16, #tpu.memory_space<vmem>>, %arg11: memref<16x2x8xf32, #tpu.memory_space<vmem>>, %arg12: memref<1x256xf32, #tpu.memory_space<vmem>>, %arg13: memref<1x256xf32, #tpu.memory_space<vmem>>, %arg14: memref<256x8xbf16, #tpu.memory_space<vmem>>, %arg15: memref<256x8xbf16, #tpu.memory_space<vmem>>, %arg16: memref<1x8xf32, #tpu.memory_space<vmem>>, %arg17: memref<1x8xf32, #tpu.memory_space<vmem>>, %arg18: memref<2x8xf32, #tpu.memory_space<vmem>>, %arg19: memref<2x8xf32, #tpu.memory_space<vmem>>, %arg20: memref<2x8xf32, #tpu.memory_space<vmem>>, %arg21: memref<2x8xf32, #tpu.memory_space<vmem>>) attributes {dimension_semantics = [], scalar_prefetch = 0 : i64, scratch_operands = 0 : i64, tpu.core_type = #tpu.core_type<tc>} {
    %c0 = arith.constant 0 : index
    %c0_0 = arith.constant 0 : index
    %0 = vector.load %arg0[%c0, %c0_0] : memref<128x128xbf16, #tpu.memory_space<vmem>>, vector<128x128xbf16>
    %c0_1 = arith.constant 0 : index
    %c0_2 = arith.constant 0 : index
    %1 = vector.load %arg1[%c0_1, %c0_2] : memref<128x128xbf16, #tpu.memory_space<vmem>>, vector<128x128xbf16>
    %cst = arith.constant dense<0.000000e+00> : vector<128x128xf32>
    %2 = tpu.matmul %0, %1, %cst {dimension_numbers = #tpu.dot_dimension_numbers<[1], [0], [0], [1], [0, 0, 1, 1], [], []>} : vector<128x128xbf16>, vector<128x128xbf16>, vector<128x128xf32> -> vector<128x128xf32>
    %cst_3 = arith.constant 0.000000e+00 : f32
    %3 = vector.broadcast %cst_3 : f32 to vector<128x128xf32>
    %4 = arith.maximumf %2, %3 : vector<128x128xf32>
    %5 = arith.truncf %4 : vector<128x128xf32> to vector<128x128xbf16>
    %c0_4 = arith.constant 0 : index
    %c0_5 = arith.constant 0 : index
    %6 = vector.load %arg2[%c0_4, %c0_5] : memref<128x2048xbf16, #tpu.memory_space<vmem>>, vector<128x2048xbf16>
    %cst_6 = arith.constant dense<0.000000e+00> : vector<128x2048xf32>
    %7 = tpu.matmul %5, %6, %cst_6 {dimension_numbers = #tpu.dot_dimension_numbers<[1], [0], [0], [1], [0, 0, 1, 1], [], []>} : vector<128x128xbf16>, vector<128x2048xbf16>, vector<128x2048xf32> -> vector<128x2048xf32>
    %c0_7 = arith.constant 0 : index
    %c0_8 = arith.constant 0 : index
    %c0_9 = arith.constant 0 : index
    %8 = vector.load %arg3[%c0_7, %c0_8, %c0_9] : memref<16x32x128xf32, #tpu.memory_space<vmem>>, vector<1x32x128xf32>
    %9 = vector.shape_cast %8 : vector<1x32x128xf32> to vector<32x128xf32>
    %10 = vector.extract_strided_slice %7 {offsets = [0, 0], sizes = [128, 128], strides = [1, 1]} : vector<128x2048xf32> to vector<128x128xf32>
    %cst_10 = arith.constant dense<0.000000e+00> : vector<32x128xf32>
    %11 = tpu.matmul %9, %10, %cst_10 {dimension_numbers = #tpu.dot_dimension_numbers<[1], [0], [0], [1], [0, 0, 1, 1], [], []>} : vector<32x128xf32>, vector<128x128xf32>, vector<32x128xf32> -> vector<32x128xf32>
    %c1 = arith.constant 1 : index
    %c0_11 = arith.constant 0 : index
    %c0_12 = arith.constant 0 : index
    %12 = vector.load %arg3[%c1, %c0_11, %c0_12] : memref<16x32x128xf32, #tpu.memory_space<vmem>>, vector<1x32x128xf32>
    %13 = vector.shape_cast %12 : vector<1x32x128xf32> to vector<32x128xf32>
    %14 = vector.extract_strided_slice %7 {offsets = [0, 128], sizes = [128, 128], strides = [1, 1]} : vector<128x2048xf32> to vector<128x128xf32>
    %cst_13 = arith.constant dense<0.000000e+00> : vector<32x128xf32>
    %15 = tpu.matmul %13, %14, %cst_13 {dimension_numbers = #tpu.dot_dimension_numbers<[1], [0], [0], [1], [0, 0, 1, 1], [], []>} : vector<32x128xf32>, vector<128x128xf32>, vector<32x128xf32> -> vector<32x128xf32>
    %16 = arith.addf %11, %15 : vector<32x128xf32>
    %c2 = arith.constant 2 : index
    %c0_14 = arith.constant 0 : index
    %c0_15 = arith.constant 0 : index
    %17 = vector.load %arg3[%c2, %c0_14, %c0_15] : memref<16x32x128xf32, #tpu.memory_space<vmem>>, vector<1x32x128xf32>
    %18 = vector.shape_cast %17 : vector<1x32x128xf32> to vector<32x128xf32>
    %19 = vector.extract_strided_slice %7 {offsets = [0, 256], sizes = [128, 128], strides = [1, 1]} : vector<128x2048xf32> to vector<128x128xf32>
    %cst_16 = arith.constant dense<0.000000e+00> : vector<32x128xf32>
    %20 = tpu.matmul %18, %19, %cst_16 {dimension_numbers = #tpu.dot_dimension_numbers<[1], [0], [0], [1], [0, 0, 1, 1], [], []>} : vector<32x128xf32>, vector<128x128xf32>, vector<32x128xf32> -> vector<32x128xf32>
    %21 = arith.addf %16, %20 : vector<32x128xf32>
    %c3 = arith.constant 3 : index
    %c0_17 = arith.constant 0 : index
    %c0_18 = arith.constant 0 : index
    %22 = vector.load %arg3[%c3, %c0_17, %c0_18] : memref<16x32x128xf32, #tpu.memory_space<vmem>>, vector<1x32x128xf32>
    %23 = vector.shape_cast %22 : vector<1x32x128xf32> to vector<32x128xf32>
    %24 = vector.extract_strided_slice %7 {offsets = [0, 384], sizes = [128, 128], strides = [1, 1]} : vector<128x2048xf32> to vector<128x128xf32>
    %cst_19 = arith.constant dense<0.000000e+00> : vector<32x128xf32>
    %25 = tpu.matmul %23, %24, %cst_19 {dimension_numbers = #tpu.dot_dimension_numbers<[1], [0], [0], [1], [0, 0, 1, 1], [], []>} : vector<32x128xf32>, vector<128x128xf32>, vector<32x128xf32> -> vector<32x128xf32>
    %26 = arith.addf %21, %25 : vector<32x128xf32>
    %c4 = arith.constant 4 : index
    %c0_20 = arith.constant 0 : index
    %c0_21 = arith.constant 0 : index
    %27 = vector.load %arg3[%c4, %c0_20, %c0_21] : memref<16x32x128xf32, #tpu.memory_space<vmem>>, vector<1x32x128xf32>
    %28 = vector.shape_cast %27 : vector<1x32x128xf32> to vector<32x128xf32>
    %29 = vector.extract_strided_slice %7 {offsets = [0, 512], sizes = [128, 128], strides = [1, 1]} : vector<128x2048xf32> to vector<128x128xf32>
    %cst_22 = arith.constant dense<0.000000e+00> : vector<32x128xf32>
    %30 = tpu.matmul %28, %29, %cst_22 {dimension_numbers = #tpu.dot_dimension_numbers<[1], [0], [0], [1], [0, 0, 1, 1], [], []>} : vector<32x128xf32>, vector<128x128xf32>, vector<32x128xf32> -> vector<32x128xf32>
    %31 = arith.addf %26, %30 : vector<32x128xf32>
    %c5 = arith.constant 5 : index
    %c0_23 = arith.constant 0 : index
    %c0_24 = arith.constant 0 : index
    %32 = vector.load %arg3[%c5, %c0_23, %c0_24] : memref<16x32x128xf32, #tpu.memory_space<vmem>>, vector<1x32x128xf32>
    %33 = vector.shape_cast %32 : vector<1x32x128xf32> to vector<32x128xf32>
    %34 = vector.extract_strided_slice %7 {offsets = [0, 640], sizes = [128, 128], strides = [1, 1]} : vector<128x2048xf32> to vector<128x128xf32>
    %cst_25 = arith.constant dense<0.000000e+00> : vector<32x128xf32>
    %35 = tpu.matmul %33, %34, %cst_25 {dimension_numbers = #tpu.dot_dimension_numbers<[1], [0], [0], [1], [0, 0, 1, 1], [], []>} : vector<32x128xf32>, vector<128x128xf32>, vector<32x128xf32> -> vector<32x128xf32>
    %36 = arith.addf %31, %35 : vector<32x128xf32>
    %c6 = arith.constant 6 : index
    %c0_26 = arith.constant 0 : index
    %c0_27 = arith.constant 0 : index
    %37 = vector.load %arg3[%c6, %c0_26, %c0_27] : memref<16x32x128xf32, #tpu.memory_space<vmem>>, vector<1x32x128xf32>
    %38 = vector.shape_cast %37 : vector<1x32x128xf32> to vector<32x128xf32>
    %39 = vector.extract_strided_slice %7 {offsets = [0, 768], sizes = [128, 128], strides = [1, 1]} : vector<128x2048xf32> to vector<128x128xf32>
    %cst_28 = arith.constant dense<0.000000e+00> : vector<32x128xf32>
    %40 = tpu.matmul %38, %39, %cst_28 {dimension_numbers = #tpu.dot_dimension_numbers<[1], [0], [0], [1], [0, 0, 1, 1], [], []>} : vector<32x128xf32>, vector<128x128xf32>, vector<32x128xf32> -> vector<32x128xf32>
    %41 = arith.addf %36, %40 : vector<32x128xf32>
    %c7 = arith.constant 7 : index
    %c0_29 = arith.constant 0 : index
    %c0_30 = arith.constant 0 : index
    %42 = vector.load %arg3[%c7, %c0_29, %c0_30] : memref<16x32x128xf32, #tpu.memory_space<vmem>>, vector<1x32x128xf32>
    %43 = vector.shape_cast %42 : vector<1x32x128xf32> to vector<32x128xf32>
    %44 = vector.extract_strided_slice %7 {offsets = [0, 896], sizes = [128, 128], strides = [1, 1]} : vector<128x2048xf32> to vector<128x128xf32>
    %cst_31 = arith.constant dense<0.000000e+00> : vector<32x128xf32>
    %45 = tpu.matmul %43, %44, %cst_31 {dimension_numbers = #tpu.dot_dimension_numbers<[1], [0], [0], [1], [0, 0, 1, 1], [], []>} : vector<32x128xf32>, vector<128x128xf32>, vector<32x128xf32> -> vector<32x128xf32>
    %46 = arith.addf %41, %45 : vector<32x128xf32>
    %c8 = arith.constant 8 : index
    %c0_32 = arith.constant 0 : index
    %c0_33 = arith.constant 0 : index
    %47 = vector.load %arg3[%c8, %c0_32, %c0_33] : memref<16x32x128xf32, #tpu.memory_space<vmem>>, vector<1x32x128xf32>
    %48 = vector.shape_cast %47 : vector<1x32x128xf32> to vector<32x128xf32>
    %49 = vector.extract_strided_slice %7 {offsets = [0, 1024], sizes = [128, 128], strides = [1, 1]} : vector<128x2048xf32> to vector<128x128xf32>
    %cst_34 = arith.constant dense<0.000000e+00> : vector<32x128xf32>
    %50 = tpu.matmul %48, %49, %cst_34 {dimension_numbers = #tpu.dot_dimension_numbers<[1], [0], [0], [1], [0, 0, 1, 1], [], []>} : vector<32x128xf32>, vector<128x128xf32>, vector<32x128xf32> -> vector<32x128xf32>
    %51 = arith.addf %46, %50 : vector<32x128xf32>
    %c9 = arith.constant 9 : index
    %c0_35 = arith.constant 0 : index
    %c0_36 = arith.constant 0 : index
    %52 = vector.load %arg3[%c9, %c0_35, %c0_36] : memref<16x32x128xf32, #tpu.memory_space<vmem>>, vector<1x32x128xf32>
    %53 = vector.shape_cast %52 : vector<1x32x128xf32> to vector<32x128xf32>
    %54 = vector.extract_strided_slice %7 {offsets = [0, 1152], sizes = [128, 128], strides = [1, 1]} : vector<128x2048xf32> to vector<128x128xf32>
    %cst_37 = arith.constant dense<0.000000e+00> : vector<32x128xf32>
    %55 = tpu.matmul %53, %54, %cst_37 {dimension_numbers = #tpu.dot_dimension_numbers<[1], [0], [0], [1], [0, 0, 1, 1], [], []>} : vector<32x128xf32>, vector<128x128xf32>, vector<32x128xf32> -> vector<32x128xf32>
    %56 = arith.addf %51, %55 : vector<32x128xf32>
    %c10 = arith.constant 10 : index
    %c0_38 = arith.constant 0 : index
    %c0_39 = arith.constant 0 : index
    %57 = vector.load %arg3[%c10, %c0_38, %c0_39] : memref<16x32x128xf32, #tpu.memory_space<vmem>>, vector<1x32x128xf32>
    %58 = vector.shape_cast %57 : vector<1x32x128xf32> to vector<32x128xf32>
    %59 = vector.extract_strided_slice %7 {offsets = [0, 1280], sizes = [128, 128], strides = [1, 1]} : vector<128x2048xf32> to vector<128x128xf32>
    %cst_40 = arith.constant dense<0.000000e+00> : vector<32x128xf32>
    %60 = tpu.matmul %58, %59, %cst_40 {dimension_numbers = #tpu.dot_dimension_numbers<[1], [0], [0], [1], [0, 0, 1, 1], [], []>} : vector<32x128xf32>, vector<128x128xf32>, vector<32x128xf32> -> vector<32x128xf32>
    %61 = arith.addf %56, %60 : vector<32x128xf32>
    %c11 = arith.constant 11 : index
    %c0_41 = arith.constant 0 : index
    %c0_42 = arith.constant 0 : index
    %62 = vector.load %arg3[%c11, %c0_41, %c0_42] : memref<16x32x128xf32, #tpu.memory_space<vmem>>, vector<1x32x128xf32>
    %63 = vector.shape_cast %62 : vector<1x32x128xf32> to vector<32x128xf32>
    %64 = vector.extract_strided_slice %7 {offsets = [0, 1408], sizes = [128, 128], strides = [1, 1]} : vector<128x2048xf32> to vector<128x128xf32>
    %cst_43 = arith.constant dense<0.000000e+00> : vector<32x128xf32>
    %65 = tpu.matmul %63, %64, %cst_43 {dimension_numbers = #tpu.dot_dimension_numbers<[1], [0], [0], [1], [0, 0, 1, 1], [], []>} : vector<32x128xf32>, vector<128x128xf32>, vector<32x128xf32> -> vector<32x128xf32>
    %66 = arith.addf %61, %65 : vector<32x128xf32>
    %c12 = arith.constant 12 : index
    %c0_44 = arith.constant 0 : index
    %c0_45 = arith.constant 0 : index
    %67 = vector.load %arg3[%c12, %c0_44, %c0_45] : memref<16x32x128xf32, #tpu.memory_space<vmem>>, vector<1x32x128xf32>
    %68 = vector.shape_cast %67 : vector<1x32x128xf32> to vector<32x128xf32>
    %69 = vector.extract_strided_slice %7 {offsets = [0, 1536], sizes = [128, 128], strides = [1, 1]} : vector<128x2048xf32> to vector<128x128xf32>
    %cst_46 = arith.constant dense<0.000000e+00> : vector<32x128xf32>
    %70 = tpu.matmul %68, %69, %cst_46 {dimension_numbers = #tpu.dot_dimension_numbers<[1], [0], [0], [1], [0, 0, 1, 1], [], []>} : vector<32x128xf32>, vector<128x128xf32>, vector<32x128xf32> -> vector<32x128xf32>
    %71 = arith.addf %66, %70 : vector<32x128xf32>
    %c13 = arith.constant 13 : index
    %c0_47 = arith.constant 0 : index
    %c0_48 = arith.constant 0 : index
    %72 = vector.load %arg3[%c13, %c0_47, %c0_48] : memref<16x32x128xf32, #tpu.memory_space<vmem>>, vector<1x32x128xf32>
    %73 = vector.shape_cast %72 : vector<1x32x128xf32> to vector<32x128xf32>
    %74 = vector.extract_strided_slice %7 {offsets = [0, 1664], sizes = [128, 128], strides = [1, 1]} : vector<128x2048xf32> to vector<128x128xf32>
    %cst_49 = arith.constant dense<0.000000e+00> : vector<32x128xf32>
    %75 = tpu.matmul %73, %74, %cst_49 {dimension_numbers = #tpu.dot_dimension_numbers<[1], [0], [0], [1], [0, 0, 1, 1], [], []>} : vector<32x128xf32>, vector<128x128xf32>, vector<32x128xf32> -> vector<32x128xf32>
    %76 = arith.addf %71, %75 : vector<32x128xf32>
    %c14 = arith.constant 14 : index
    %c0_50 = arith.constant 0 : index
    %c0_51 = arith.constant 0 : index
    %77 = vector.load %arg3[%c14, %c0_50, %c0_51] : memref<16x32x128xf32, #tpu.memory_space<vmem>>, vector<1x32x128xf32>
    %78 = vector.shape_cast %77 : vector<1x32x128xf32> to vector<32x128xf32>
    %79 = vector.extract_strided_slice %7 {offsets = [0, 1792], sizes = [128, 128], strides = [1, 1]} : vector<128x2048xf32> to vector<128x128xf32>
    %cst_52 = arith.constant dense<0.000000e+00> : vector<32x128xf32>
    %80 = tpu.matmul %78, %79, %cst_52 {dimension_numbers = #tpu.dot_dimension_numbers<[1], [0], [0], [1], [0, 0, 1, 1], [], []>} : vector<32x128xf32>, vector<128x128xf32>, vector<32x128xf32> -> vector<32x128xf32>
    %81 = arith.addf %76, %80 : vector<32x128xf32>
    %c15 = arith.constant 15 : index
    %c0_53 = arith.constant 0 : index
    %c0_54 = arith.constant 0 : index
    %82 = vector.load %arg3[%c15, %c0_53, %c0_54] : memref<16x32x128xf32, #tpu.memory_space<vmem>>, vector<1x32x128xf32>
    %83 = vector.shape_cast %82 : vector<1x32x128xf32> to vector<32x128xf32>
    %84 = vector.extract_strided_slice %7 {offsets = [0, 1920], sizes = [128, 128], strides = [1, 1]} : vector<128x2048xf32> to vector<128x128xf32>
    %cst_55 = arith.constant dense<0.000000e+00> : vector<32x128xf32>
    %85 = tpu.matmul %83, %84, %cst_55 {dimension_numbers = #tpu.dot_dimension_numbers<[1], [0], [0], [1], [0, 0, 1, 1], [], []>} : vector<32x128xf32>, vector<128x128xf32>, vector<32x128xf32> -> vector<32x128xf32>
    %86 = arith.addf %81, %85 : vector<32x128xf32>
    %cst_56 = arith.constant dense<0.000000e+00> : vector<128xf32>
    %87 = vector.multi_reduction <add>, %86, %cst_56 [0] : vector<32x128xf32> to vector<128xf32>
    %88 = vector.shape_cast %87 : vector<128xf32> to vector<1x128xf32>
    %cst_57 = arith.constant 3.200000e+01 : f32
    %89 = vector.broadcast %cst_57 : f32 to vector<1x128xf32>
    %90 = arith.divf %88, %89 : vector<1x128xf32>
    %91 = arith.mulf %86, %86 : vector<32x128xf32>
    %cst_58 = arith.constant dense<0.000000e+00> : vector<128xf32>
    %92 = vector.multi_reduction <add>, %91, %cst_58 [0] : vector<32x128xf32> to vector<128xf32>
    %93 = vector.shape_cast %92 : vector<128xf32> to vector<1x128xf32>
    %cst_59 = arith.constant 3.200000e+01 : f32
    %94 = vector.broadcast %cst_59 : f32 to vector<1x128xf32>
    %95 = arith.divf %93, %94 : vector<1x128xf32>
    %96 = arith.mulf %90, %90 : vector<1x128xf32>
    %97 = arith.subf %95, %96 : vector<1x128xf32>
    %cst_60 = arith.constant 0.000000e+00 : f32
    %98 = vector.broadcast %cst_60 : f32 to vector<1x128xf32>
    %99 = arith.maximumf %97, %98 : vector<1x128xf32>
    %c0_61 = arith.constant 0 : index
    %c0_62 = arith.constant 0 : index
    %100 = vector.load %arg4[%c0_61, %c0_62] : memref<1x128xf32, #tpu.memory_space<vmem>>, vector<1x128xf32>
    %cst_63 = arith.constant 9.99999974E-6 : f32
    %101 = vector.broadcast %cst_63 : f32 to vector<1x128xf32>
    %102 = arith.addf %99, %101 : vector<1x128xf32>
    %103 = math.rsqrt %102 : vector<1x128xf32>
    %104 = arith.mulf %100, %103 : vector<1x128xf32>
    %c0_64 = arith.constant 0 : index
    %c0_65 = arith.constant 0 : index
    %105 = vector.load %arg5[%c0_64, %c0_65] : memref<1x128xf32, #tpu.memory_space<vmem>>, vector<1x128xf32>
    %106 = arith.mulf %90, %104 : vector<1x128xf32>
    %107 = arith.subf %105, %106 : vector<1x128xf32>
    %108 = vector.broadcast %104 : vector<1x128xf32> to vector<32x128xf32>
    %109 = arith.mulf %86, %108 : vector<32x128xf32>
    %110 = vector.broadcast %107 : vector<1x128xf32> to vector<32x128xf32>
    %111 = arith.addf %109, %110 : vector<32x128xf32>
    %cst_66 = arith.constant 0.000000e+00 : f32
    %112 = vector.broadcast %cst_66 : f32 to vector<32x128xf32>
    %113 = arith.maximumf %111, %112 : vector<32x128xf32>
    %114 = arith.truncf %113 : vector<32x128xf32> to vector<32x128xbf16>
    %c0_67 = arith.constant 0 : index
    %c0_68 = arith.constant 0 : index
    %115 = vector.load %arg6[%c0_67, %c0_68] : memref<128x2048xbf16, #tpu.memory_space<vmem>>, vector<128x2048xbf16>
    %cst_69 = arith.constant dense<0.000000e+00> : vector<32x2048xf32>
    %116 = tpu.matmul %114, %115, %cst_69 {dimension_numbers = #tpu.dot_dimension_numbers<[1], [0], [0], [1], [0, 0, 1, 1], [], []>} : vector<32x128xbf16>, vector<128x2048xbf16>, vector<32x2048xf32> -> vector<32x2048xf32>
    %c0_70 = arith.constant 0 : index
    %c0_71 = arith.constant 0 : index
    %c0_72 = arith.constant 0 : index
    %117 = vector.load %arg7[%c0_70, %c0_71, %c0_72] : memref<16x8x32xf32, #tpu.memory_space<vmem>>, vector<1x8x32xf32>
    %118 = vector.shape_cast %117 : vector<1x8x32xf32> to vector<8x32xf32>
    %119 = vector.extract_strided_slice %116 {offsets = [0, 0], sizes = [32, 128], strides = [1, 1]} : vector<32x2048xf32> to vector<32x128xf32>
    %cst_73 = arith.constant dense<0.000000e+00> : vector<8x128xf32>
    %120 = tpu.matmul %118, %119, %cst_73 {dimension_numbers = #tpu.dot_dimension_numbers<[1], [0], [0], [1], [0, 0, 1, 1], [], []>} : vector<8x32xf32>, vector<32x128xf32>, vector<8x128xf32> -> vector<8x128xf32>
    %c1_74 = arith.constant 1 : index
    %c0_75 = arith.constant 0 : index
    %c0_76 = arith.constant 0 : index
    %121 = vector.load %arg7[%c1_74, %c0_75, %c0_76] : memref<16x8x32xf32, #tpu.memory_space<vmem>>, vector<1x8x32xf32>
    %122 = vector.shape_cast %121 : vector<1x8x32xf32> to vector<8x32xf32>
    %123 = vector.extract_strided_slice %116 {offsets = [0, 128], sizes = [32, 128], strides = [1, 1]} : vector<32x2048xf32> to vector<32x128xf32>
    %cst_77 = arith.constant dense<0.000000e+00> : vector<8x128xf32>
    %124 = tpu.matmul %122, %123, %cst_77 {dimension_numbers = #tpu.dot_dimension_numbers<[1], [0], [0], [1], [0, 0, 1, 1], [], []>} : vector<8x32xf32>, vector<32x128xf32>, vector<8x128xf32> -> vector<8x128xf32>
    %125 = arith.addf %120, %124 : vector<8x128xf32>
    %c2_78 = arith.constant 2 : index
    %c0_79 = arith.constant 0 : index
    %c0_80 = arith.constant 0 : index
    %126 = vector.load %arg7[%c2_78, %c0_79, %c0_80] : memref<16x8x32xf32, #tpu.memory_space<vmem>>, vector<1x8x32xf32>
    %127 = vector.shape_cast %126 : vector<1x8x32xf32> to vector<8x32xf32>
    %128 = vector.extract_strided_slice %116 {offsets = [0, 256], sizes = [32, 128], strides = [1, 1]} : vector<32x2048xf32> to vector<32x128xf32>
    %cst_81 = arith.constant dense<0.000000e+00> : vector<8x128xf32>
    %129 = tpu.matmul %127, %128, %cst_81 {dimension_numbers = #tpu.dot_dimension_numbers<[1], [0], [0], [1], [0, 0, 1, 1], [], []>} : vector<8x32xf32>, vector<32x128xf32>, vector<8x128xf32> -> vector<8x128xf32>
    %130 = arith.addf %125, %129 : vector<8x128xf32>
    %c3_82 = arith.constant 3 : index
    %c0_83 = arith.constant 0 : index
    %c0_84 = arith.constant 0 : index
    %131 = vector.load %arg7[%c3_82, %c0_83, %c0_84] : memref<16x8x32xf32, #tpu.memory_space<vmem>>, vector<1x8x32xf32>
    %132 = vector.shape_cast %131 : vector<1x8x32xf32> to vector<8x32xf32>
    %133 = vector.extract_strided_slice %116 {offsets = [0, 384], sizes = [32, 128], strides = [1, 1]} : vector<32x2048xf32> to vector<32x128xf32>
    %cst_85 = arith.constant dense<0.000000e+00> : vector<8x128xf32>
    %134 = tpu.matmul %132, %133, %cst_85 {dimension_numbers = #tpu.dot_dimension_numbers<[1], [0], [0], [1], [0, 0, 1, 1], [], []>} : vector<8x32xf32>, vector<32x128xf32>, vector<8x128xf32> -> vector<8x128xf32>
    %135 = arith.addf %130, %134 : vector<8x128xf32>
    %c4_86 = arith.constant 4 : index
    %c0_87 = arith.constant 0 : index
    %c0_88 = arith.constant 0 : index
    %136 = vector.load %arg7[%c4_86, %c0_87, %c0_88] : memref<16x8x32xf32, #tpu.memory_space<vmem>>, vector<1x8x32xf32>
    %137 = vector.shape_cast %136 : vector<1x8x32xf32> to vector<8x32xf32>
    %138 = vector.extract_strided_slice %116 {offsets = [0, 512], sizes = [32, 128], strides = [1, 1]} : vector<32x2048xf32> to vector<32x128xf32>
    %cst_89 = arith.constant dense<0.000000e+00> : vector<8x128xf32>
    %139 = tpu.matmul %137, %138, %cst_89 {dimension_numbers = #tpu.dot_dimension_numbers<[1], [0], [0], [1], [0, 0, 1, 1], [], []>} : vector<8x32xf32>, vector<32x128xf32>, vector<8x128xf32> -> vector<8x128xf32>
    %140 = arith.addf %135, %139 : vector<8x128xf32>
    %c5_90 = arith.constant 5 : index
    %c0_91 = arith.constant 0 : index
    %c0_92 = arith.constant 0 : index
    %141 = vector.load %arg7[%c5_90, %c0_91, %c0_92] : memref<16x8x32xf32, #tpu.memory_space<vmem>>, vector<1x8x32xf32>
    %142 = vector.shape_cast %141 : vector<1x8x32xf32> to vector<8x32xf32>
    %143 = vector.extract_strided_slice %116 {offsets = [0, 640], sizes = [32, 128], strides = [1, 1]} : vector<32x2048xf32> to vector<32x128xf32>
    %cst_93 = arith.constant dense<0.000000e+00> : vector<8x128xf32>
    %144 = tpu.matmul %142, %143, %cst_93 {dimension_numbers = #tpu.dot_dimension_numbers<[1], [0], [0], [1], [0, 0, 1, 1], [], []>} : vector<8x32xf32>, vector<32x128xf32>, vector<8x128xf32> -> vector<8x128xf32>
    %145 = arith.addf %140, %144 : vector<8x128xf32>
    %c6_94 = arith.constant 6 : index
    %c0_95 = arith.constant 0 : index
    %c0_96 = arith.constant 0 : index
    %146 = vector.load %arg7[%c6_94, %c0_95, %c0_96] : memref<16x8x32xf32, #tpu.memory_space<vmem>>, vector<1x8x32xf32>
    %147 = vector.shape_cast %146 : vector<1x8x32xf32> to vector<8x32xf32>
    %148 = vector.extract_strided_slice %116 {offsets = [0, 768], sizes = [32, 128], strides = [1, 1]} : vector<32x2048xf32> to vector<32x128xf32>
    %cst_97 = arith.constant dense<0.000000e+00> : vector<8x128xf32>
    %149 = tpu.matmul %147, %148, %cst_97 {dimension_numbers = #tpu.dot_dimension_numbers<[1], [0], [0], [1], [0, 0, 1, 1], [], []>} : vector<8x32xf32>, vector<32x128xf32>, vector<8x128xf32> -> vector<8x128xf32>
    %150 = arith.addf %145, %149 : vector<8x128xf32>
    %c7_98 = arith.constant 7 : index
    %c0_99 = arith.constant 0 : index
    %c0_100 = arith.constant 0 : index
    %151 = vector.load %arg7[%c7_98, %c0_99, %c0_100] : memref<16x8x32xf32, #tpu.memory_space<vmem>>, vector<1x8x32xf32>
    %152 = vector.shape_cast %151 : vector<1x8x32xf32> to vector<8x32xf32>
    %153 = vector.extract_strided_slice %116 {offsets = [0, 896], sizes = [32, 128], strides = [1, 1]} : vector<32x2048xf32> to vector<32x128xf32>
    %cst_101 = arith.constant dense<0.000000e+00> : vector<8x128xf32>
    %154 = tpu.matmul %152, %153, %cst_101 {dimension_numbers = #tpu.dot_dimension_numbers<[1], [0], [0], [1], [0, 0, 1, 1], [], []>} : vector<8x32xf32>, vector<32x128xf32>, vector<8x128xf32> -> vector<8x128xf32>
    %155 = arith.addf %150, %154 : vector<8x128xf32>
    %c8_102 = arith.constant 8 : index
    %c0_103 = arith.constant 0 : index
    %c0_104 = arith.constant 0 : index
    %156 = vector.load %arg7[%c8_102, %c0_103, %c0_104] : memref<16x8x32xf32, #tpu.memory_space<vmem>>, vector<1x8x32xf32>
    %157 = vector.shape_cast %156 : vector<1x8x32xf32> to vector<8x32xf32>
    %158 = vector.extract_strided_slice %116 {offsets = [0, 1024], sizes = [32, 128], strides = [1, 1]} : vector<32x2048xf32> to vector<32x128xf32>
    %cst_105 = arith.constant dense<0.000000e+00> : vector<8x128xf32>
    %159 = tpu.matmul %157, %158, %cst_105 {dimension_numbers = #tpu.dot_dimension_numbers<[1], [0], [0], [1], [0, 0, 1, 1], [], []>} : vector<8x32xf32>, vector<32x128xf32>, vector<8x128xf32> -> vector<8x128xf32>
    %160 = arith.addf %155, %159 : vector<8x128xf32>
    %c9_106 = arith.constant 9 : index
    %c0_107 = arith.constant 0 : index
    %c0_108 = arith.constant 0 : index
    %161 = vector.load %arg7[%c9_106, %c0_107, %c0_108] : memref<16x8x32xf32, #tpu.memory_space<vmem>>, vector<1x8x32xf32>
    %162 = vector.shape_cast %161 : vector<1x8x32xf32> to vector<8x32xf32>
    %163 = vector.extract_strided_slice %116 {offsets = [0, 1152], sizes = [32, 128], strides = [1, 1]} : vector<32x2048xf32> to vector<32x128xf32>
    %cst_109 = arith.constant dense<0.000000e+00> : vector<8x128xf32>
    %164 = tpu.matmul %162, %163, %cst_109 {dimension_numbers = #tpu.dot_dimension_numbers<[1], [0], [0], [1], [0, 0, 1, 1], [], []>} : vector<8x32xf32>, vector<32x128xf32>, vector<8x128xf32> -> vector<8x128xf32>
    %165 = arith.addf %160, %164 : vector<8x128xf32>
    %c10_110 = arith.constant 10 : index
    %c0_111 = arith.constant 0 : index
    %c0_112 = arith.constant 0 : index
    %166 = vector.load %arg7[%c10_110, %c0_111, %c0_112] : memref<16x8x32xf32, #tpu.memory_space<vmem>>, vector<1x8x32xf32>
    %167 = vector.shape_cast %166 : vector<1x8x32xf32> to vector<8x32xf32>
    %168 = vector.extract_strided_slice %116 {offsets = [0, 1280], sizes = [32, 128], strides = [1, 1]} : vector<32x2048xf32> to vector<32x128xf32>
    %cst_113 = arith.constant dense<0.000000e+00> : vector<8x128xf32>
    %169 = tpu.matmul %167, %168, %cst_113 {dimension_numbers = #tpu.dot_dimension_numbers<[1], [0], [0], [1], [0, 0, 1, 1], [], []>} : vector<8x32xf32>, vector<32x128xf32>, vector<8x128xf32> -> vector<8x128xf32>
    %170 = arith.addf %165, %169 : vector<8x128xf32>
    %c11_114 = arith.constant 11 : index
    %c0_115 = arith.constant 0 : index
    %c0_116 = arith.constant 0 : index
    %171 = vector.load %arg7[%c11_114, %c0_115, %c0_116] : memref<16x8x32xf32, #tpu.memory_space<vmem>>, vector<1x8x32xf32>
    %172 = vector.shape_cast %171 : vector<1x8x32xf32> to vector<8x32xf32>
    %173 = vector.extract_strided_slice %116 {offsets = [0, 1408], sizes = [32, 128], strides = [1, 1]} : vector<32x2048xf32> to vector<32x128xf32>
    %cst_117 = arith.constant dense<0.000000e+00> : vector<8x128xf32>
    %174 = tpu.matmul %172, %173, %cst_117 {dimension_numbers = #tpu.dot_dimension_numbers<[1], [0], [0], [1], [0, 0, 1, 1], [], []>} : vector<8x32xf32>, vector<32x128xf32>, vector<8x128xf32> -> vector<8x128xf32>
    %175 = arith.addf %170, %174 : vector<8x128xf32>
    %c12_118 = arith.constant 12 : index
    %c0_119 = arith.constant 0 : index
    %c0_120 = arith.constant 0 : index
    %176 = vector.load %arg7[%c12_118, %c0_119, %c0_120] : memref<16x8x32xf32, #tpu.memory_space<vmem>>, vector<1x8x32xf32>
    %177 = vector.shape_cast %176 : vector<1x8x32xf32> to vector<8x32xf32>
    %178 = vector.extract_strided_slice %116 {offsets = [0, 1536], sizes = [32, 128], strides = [1, 1]} : vector<32x2048xf32> to vector<32x128xf32>
    %cst_121 = arith.constant dense<0.000000e+00> : vector<8x128xf32>
    %179 = tpu.matmul %177, %178, %cst_121 {dimension_numbers = #tpu.dot_dimension_numbers<[1], [0], [0], [1], [0, 0, 1, 1], [], []>} : vector<8x32xf32>, vector<32x128xf32>, vector<8x128xf32> -> vector<8x128xf32>
    %180 = arith.addf %175, %179 : vector<8x128xf32>
    %c13_122 = arith.constant 13 : index
    %c0_123 = arith.constant 0 : index
    %c0_124 = arith.constant 0 : index
    %181 = vector.load %arg7[%c13_122, %c0_123, %c0_124] : memref<16x8x32xf32, #tpu.memory_space<vmem>>, vector<1x8x32xf32>
    %182 = vector.shape_cast %181 : vector<1x8x32xf32> to vector<8x32xf32>
    %183 = vector.extract_strided_slice %116 {offsets = [0, 1664], sizes = [32, 128], strides = [1, 1]} : vector<32x2048xf32> to vector<32x128xf32>
    %cst_125 = arith.constant dense<0.000000e+00> : vector<8x128xf32>
    %184 = tpu.matmul %182, %183, %cst_125 {dimension_numbers = #tpu.dot_dimension_numbers<[1], [0], [0], [1], [0, 0, 1, 1], [], []>} : vector<8x32xf32>, vector<32x128xf32>, vector<8x128xf32> -> vector<8x128xf32>
    %185 = arith.addf %180, %184 : vector<8x128xf32>
    %c14_126 = arith.constant 14 : index
    %c0_127 = arith.constant 0 : index
    %c0_128 = arith.constant 0 : index
    %186 = vector.load %arg7[%c14_126, %c0_127, %c0_128] : memref<16x8x32xf32, #tpu.memory_space<vmem>>, vector<1x8x32xf32>
    %187 = vector.shape_cast %186 : vector<1x8x32xf32> to vector<8x32xf32>
    %188 = vector.extract_strided_slice %116 {offsets = [0, 1792], sizes = [32, 128], strides = [1, 1]} : vector<32x2048xf32> to vector<32x128xf32>
    %cst_129 = arith.constant dense<0.000000e+00> : vector<8x128xf32>
    %189 = tpu.matmul %187, %188, %cst_129 {dimension_numbers = #tpu.dot_dimension_numbers<[1], [0], [0], [1], [0, 0, 1, 1], [], []>} : vector<8x32xf32>, vector<32x128xf32>, vector<8x128xf32> -> vector<8x128xf32>
    %190 = arith.addf %185, %189 : vector<8x128xf32>
    %c15_130 = arith.constant 15 : index
    %c0_131 = arith.constant 0 : index
    %c0_132 = arith.constant 0 : index
    %191 = vector.load %arg7[%c15_130, %c0_131, %c0_132] : memref<16x8x32xf32, #tpu.memory_space<vmem>>, vector<1x8x32xf32>
    %192 = vector.shape_cast %191 : vector<1x8x32xf32> to vector<8x32xf32>
    %193 = vector.extract_strided_slice %116 {offsets = [0, 1920], sizes = [32, 128], strides = [1, 1]} : vector<32x2048xf32> to vector<32x128xf32>
    %cst_133 = arith.constant dense<0.000000e+00> : vector<8x128xf32>
    %194 = tpu.matmul %192, %193, %cst_133 {dimension_numbers = #tpu.dot_dimension_numbers<[1], [0], [0], [1], [0, 0, 1, 1], [], []>} : vector<8x32xf32>, vector<32x128xf32>, vector<8x128xf32> -> vector<8x128xf32>
    %195 = arith.addf %190, %194 : vector<8x128xf32>
    %cst_134 = arith.constant dense<0.000000e+00> : vector<128xf32>
    %196 = vector.multi_reduction <add>, %195, %cst_134 [0] : vector<8x128xf32> to vector<128xf32>
    %197 = vector.shape_cast %196 : vector<128xf32> to vector<1x128xf32>
    %cst_135 = arith.constant 8.000000e+00 : f32
    %198 = vector.broadcast %cst_135 : f32 to vector<1x128xf32>
    %199 = arith.divf %197, %198 : vector<1x128xf32>
    %200 = arith.mulf %195, %195 : vector<8x128xf32>
    %cst_136 = arith.constant dense<0.000000e+00> : vector<128xf32>
    %201 = vector.multi_reduction <add>, %200, %cst_136 [0] : vector<8x128xf32> to vector<128xf32>
    %202 = vector.shape_cast %201 : vector<128xf32> to vector<1x128xf32>
    %cst_137 = arith.constant 8.000000e+00 : f32
    %203 = vector.broadcast %cst_137 : f32 to vector<1x128xf32>
    %204 = arith.divf %202, %203 : vector<1x128xf32>
    %205 = arith.mulf %199, %199 : vector<1x128xf32>
    %206 = arith.subf %204, %205 : vector<1x128xf32>
    %cst_138 = arith.constant 0.000000e+00 : f32
    %207 = vector.broadcast %cst_138 : f32 to vector<1x128xf32>
    %208 = arith.maximumf %206, %207 : vector<1x128xf32>
    %c0_139 = arith.constant 0 : index
    %c0_140 = arith.constant 0 : index
    %209 = vector.load %arg8[%c0_139, %c0_140] : memref<1x128xf32, #tpu.memory_space<vmem>>, vector<1x128xf32>
    %cst_141 = arith.constant 9.99999974E-6 : f32
    %210 = vector.broadcast %cst_141 : f32 to vector<1x128xf32>
    %211 = arith.addf %208, %210 : vector<1x128xf32>
    %212 = math.rsqrt %211 : vector<1x128xf32>
    %213 = arith.mulf %209, %212 : vector<1x128xf32>
    %c0_142 = arith.constant 0 : index
    %c0_143 = arith.constant 0 : index
    %214 = vector.load %arg9[%c0_142, %c0_143] : memref<1x128xf32, #tpu.memory_space<vmem>>, vector<1x128xf32>
    %215 = arith.mulf %199, %213 : vector<1x128xf32>
    %216 = arith.subf %214, %215 : vector<1x128xf32>
    %217 = vector.broadcast %213 : vector<1x128xf32> to vector<8x128xf32>
    %218 = arith.mulf %195, %217 : vector<8x128xf32>
    %219 = vector.broadcast %216 : vector<1x128xf32> to vector<8x128xf32>
    %220 = arith.addf %218, %219 : vector<8x128xf32>
    %cst_144 = arith.constant 0.000000e+00 : f32
    %221 = vector.broadcast %cst_144 : f32 to vector<8x128xf32>
    %222 = arith.maximumf %220, %221 : vector<8x128xf32>
    %223 = arith.truncf %222 : vector<8x128xf32> to vector<8x128xbf16>
    %c0_145 = arith.constant 0 : index
    %c0_146 = arith.constant 0 : index
    %224 = vector.load %arg10[%c0_145, %c0_146] : memref<128x4096xbf16, #tpu.memory_space<vmem>>, vector<128x4096xbf16>
    %cst_147 = arith.constant dense<0.000000e+00> : vector<8x4096xf32>
    %225 = tpu.matmul %223, %224, %cst_147 {dimension_numbers = #tpu.dot_dimension_numbers<[1], [0], [0], [1], [0, 0, 1, 1], [], []>} : vector<8x128xbf16>, vector<128x4096xbf16>, vector<8x4096xf32> -> vector<8x4096xf32>
    %c0_148 = arith.constant 0 : index
    %c0_149 = arith.constant 0 : index
    %c0_150 = arith.constant 0 : index
    %226 = vector.load %arg11[%c0_148, %c0_149, %c0_150] : memref<16x2x8xf32, #tpu.memory_space<vmem>>, vector<1x2x8xf32>
    %227 = vector.shape_cast %226 : vector<1x2x8xf32> to vector<2x8xf32>
    %228 = vector.extract_strided_slice %225 {offsets = [0, 0], sizes = [8, 256], strides = [1, 1]} : vector<8x4096xf32> to vector<8x256xf32>
    %cst_151 = arith.constant dense<0.000000e+00> : vector<2x256xf32>
    %229 = tpu.matmul %227, %228, %cst_151 {dimension_numbers = #tpu.dot_dimension_numbers<[1], [0], [0], [1], [0, 0, 1, 1], [], []>} : vector<2x8xf32>, vector<8x256xf32>, vector<2x256xf32> -> vector<2x256xf32>
    %c1_152 = arith.constant 1 : index
    %c0_153 = arith.constant 0 : index
    %c0_154 = arith.constant 0 : index
    %230 = vector.load %arg11[%c1_152, %c0_153, %c0_154] : memref<16x2x8xf32, #tpu.memory_space<vmem>>, vector<1x2x8xf32>
    %231 = vector.shape_cast %230 : vector<1x2x8xf32> to vector<2x8xf32>
    %232 = vector.extract_strided_slice %225 {offsets = [0, 256], sizes = [8, 256], strides = [1, 1]} : vector<8x4096xf32> to vector<8x256xf32>
    %cst_155 = arith.constant dense<0.000000e+00> : vector<2x256xf32>
    %233 = tpu.matmul %231, %232, %cst_155 {dimension_numbers = #tpu.dot_dimension_numbers<[1], [0], [0], [1], [0, 0, 1, 1], [], []>} : vector<2x8xf32>, vector<8x256xf32>, vector<2x256xf32> -> vector<2x256xf32>
    %234 = arith.addf %229, %233 : vector<2x256xf32>
    %c2_156 = arith.constant 2 : index
    %c0_157 = arith.constant 0 : index
    %c0_158 = arith.constant 0 : index
    %235 = vector.load %arg11[%c2_156, %c0_157, %c0_158] : memref<16x2x8xf32, #tpu.memory_space<vmem>>, vector<1x2x8xf32>
    %236 = vector.shape_cast %235 : vector<1x2x8xf32> to vector<2x8xf32>
    %237 = vector.extract_strided_slice %225 {offsets = [0, 512], sizes = [8, 256], strides = [1, 1]} : vector<8x4096xf32> to vector<8x256xf32>
    %cst_159 = arith.constant dense<0.000000e+00> : vector<2x256xf32>
    %238 = tpu.matmul %236, %237, %cst_159 {dimension_numbers = #tpu.dot_dimension_numbers<[1], [0], [0], [1], [0, 0, 1, 1], [], []>} : vector<2x8xf32>, vector<8x256xf32>, vector<2x256xf32> -> vector<2x256xf32>
    %239 = arith.addf %234, %238 : vector<2x256xf32>
    %c3_160 = arith.constant 3 : index
    %c0_161 = arith.constant 0 : index
    %c0_162 = arith.constant 0 : index
    %240 = vector.load %arg11[%c3_160, %c0_161, %c0_162] : memref<16x2x8xf32, #tpu.memory_space<vmem>>, vector<1x2x8xf32>
    %241 = vector.shape_cast %240 : vector<1x2x8xf32> to vector<2x8xf32>
    %242 = vector.extract_strided_slice %225 {offsets = [0, 768], sizes = [8, 256], strides = [1, 1]} : vector<8x4096xf32> to vector<8x256xf32>
    %cst_163 = arith.constant dense<0.000000e+00> : vector<2x256xf32>
    %243 = tpu.matmul %241, %242, %cst_163 {dimension_numbers = #tpu.dot_dimension_numbers<[1], [0], [0], [1], [0, 0, 1, 1], [], []>} : vector<2x8xf32>, vector<8x256xf32>, vector<2x256xf32> -> vector<2x256xf32>
    %244 = arith.addf %239, %243 : vector<2x256xf32>
    %c4_164 = arith.constant 4 : index
    %c0_165 = arith.constant 0 : index
    %c0_166 = arith.constant 0 : index
    %245 = vector.load %arg11[%c4_164, %c0_165, %c0_166] : memref<16x2x8xf32, #tpu.memory_space<vmem>>, vector<1x2x8xf32>
    %246 = vector.shape_cast %245 : vector<1x2x8xf32> to vector<2x8xf32>
    %247 = vector.extract_strided_slice %225 {offsets = [0, 1024], sizes = [8, 256], strides = [1, 1]} : vector<8x4096xf32> to vector<8x256xf32>
    %cst_167 = arith.constant dense<0.000000e+00> : vector<2x256xf32>
    %248 = tpu.matmul %246, %247, %cst_167 {dimension_numbers = #tpu.dot_dimension_numbers<[1], [0], [0], [1], [0, 0, 1, 1], [], []>} : vector<2x8xf32>, vector<8x256xf32>, vector<2x256xf32> -> vector<2x256xf32>
    %249 = arith.addf %244, %248 : vector<2x256xf32>
    %c5_168 = arith.constant 5 : index
    %c0_169 = arith.constant 0 : index
    %c0_170 = arith.constant 0 : index
    %250 = vector.load %arg11[%c5_168, %c0_169, %c0_170] : memref<16x2x8xf32, #tpu.memory_space<vmem>>, vector<1x2x8xf32>
    %251 = vector.shape_cast %250 : vector<1x2x8xf32> to vector<2x8xf32>
    %252 = vector.extract_strided_slice %225 {offsets = [0, 1280], sizes = [8, 256], strides = [1, 1]} : vector<8x4096xf32> to vector<8x256xf32>
    %cst_171 = arith.constant dense<0.000000e+00> : vector<2x256xf32>
    %253 = tpu.matmul %251, %252, %cst_171 {dimension_numbers = #tpu.dot_dimension_numbers<[1], [0], [0], [1], [0, 0, 1, 1], [], []>} : vector<2x8xf32>, vector<8x256xf32>, vector<2x256xf32> -> vector<2x256xf32>
    %254 = arith.addf %249, %253 : vector<2x256xf32>
    %c6_172 = arith.constant 6 : index
    %c0_173 = arith.constant 0 : index
    %c0_174 = arith.constant 0 : index
    %255 = vector.load %arg11[%c6_172, %c0_173, %c0_174] : memref<16x2x8xf32, #tpu.memory_space<vmem>>, vector<1x2x8xf32>
    %256 = vector.shape_cast %255 : vector<1x2x8xf32> to vector<2x8xf32>
    %257 = vector.extract_strided_slice %225 {offsets = [0, 1536], sizes = [8, 256], strides = [1, 1]} : vector<8x4096xf32> to vector<8x256xf32>
    %cst_175 = arith.constant dense<0.000000e+00> : vector<2x256xf32>
    %258 = tpu.matmul %256, %257, %cst_175 {dimension_numbers = #tpu.dot_dimension_numbers<[1], [0], [0], [1], [0, 0, 1, 1], [], []>} : vector<2x8xf32>, vector<8x256xf32>, vector<2x256xf32> -> vector<2x256xf32>
    %259 = arith.addf %254, %258 : vector<2x256xf32>
    %c7_176 = arith.constant 7 : index
    %c0_177 = arith.constant 0 : index
    %c0_178 = arith.constant 0 : index
    %260 = vector.load %arg11[%c7_176, %c0_177, %c0_178] : memref<16x2x8xf32, #tpu.memory_space<vmem>>, vector<1x2x8xf32>
    %261 = vector.shape_cast %260 : vector<1x2x8xf32> to vector<2x8xf32>
    %262 = vector.extract_strided_slice %225 {offsets = [0, 1792], sizes = [8, 256], strides = [1, 1]} : vector<8x4096xf32> to vector<8x256xf32>
    %cst_179 = arith.constant dense<0.000000e+00> : vector<2x256xf32>
    %263 = tpu.matmul %261, %262, %cst_179 {dimension_numbers = #tpu.dot_dimension_numbers<[1], [0], [0], [1], [0, 0, 1, 1], [], []>} : vector<2x8xf32>, vector<8x256xf32>, vector<2x256xf32> -> vector<2x256xf32>
    %264 = arith.addf %259, %263 : vector<2x256xf32>
    %c8_180 = arith.constant 8 : index
    %c0_181 = arith.constant 0 : index
    %c0_182 = arith.constant 0 : index
    %265 = vector.load %arg11[%c8_180, %c0_181, %c0_182] : memref<16x2x8xf32, #tpu.memory_space<vmem>>, vector<1x2x8xf32>
    %266 = vector.shape_cast %265 : vector<1x2x8xf32> to vector<2x8xf32>
    %267 = vector.extract_strided_slice %225 {offsets = [0, 2048], sizes = [8, 256], strides = [1, 1]} : vector<8x4096xf32> to vector<8x256xf32>
    %cst_183 = arith.constant dense<0.000000e+00> : vector<2x256xf32>
    %268 = tpu.matmul %266, %267, %cst_183 {dimension_numbers = #tpu.dot_dimension_numbers<[1], [0], [0], [1], [0, 0, 1, 1], [], []>} : vector<2x8xf32>, vector<8x256xf32>, vector<2x256xf32> -> vector<2x256xf32>
    %269 = arith.addf %264, %268 : vector<2x256xf32>
    %c9_184 = arith.constant 9 : index
    %c0_185 = arith.constant 0 : index
    %c0_186 = arith.constant 0 : index
    %270 = vector.load %arg11[%c9_184, %c0_185, %c0_186] : memref<16x2x8xf32, #tpu.memory_space<vmem>>, vector<1x2x8xf32>
    %271 = vector.shape_cast %270 : vector<1x2x8xf32> to vector<2x8xf32>
    %272 = vector.extract_strided_slice %225 {offsets = [0, 2304], sizes = [8, 256], strides = [1, 1]} : vector<8x4096xf32> to vector<8x256xf32>
    %cst_187 = arith.constant dense<0.000000e+00> : vector<2x256xf32>
    %273 = tpu.matmul %271, %272, %cst_187 {dimension_numbers = #tpu.dot_dimension_numbers<[1], [0], [0], [1], [0, 0, 1, 1], [], []>} : vector<2x8xf32>, vector<8x256xf32>, vector<2x256xf32> -> vector<2x256xf32>
    %274 = arith.addf %269, %273 : vector<2x256xf32>
    %c10_188 = arith.constant 10 : index
    %c0_189 = arith.constant 0 : index
    %c0_190 = arith.constant 0 : index
    %275 = vector.load %arg11[%c10_188, %c0_189, %c0_190] : memref<16x2x8xf32, #tpu.memory_space<vmem>>, vector<1x2x8xf32>
    %276 = vector.shape_cast %275 : vector<1x2x8xf32> to vector<2x8xf32>
    %277 = vector.extract_strided_slice %225 {offsets = [0, 2560], sizes = [8, 256], strides = [1, 1]} : vector<8x4096xf32> to vector<8x256xf32>
    %cst_191 = arith.constant dense<0.000000e+00> : vector<2x256xf32>
    %278 = tpu.matmul %276, %277, %cst_191 {dimension_numbers = #tpu.dot_dimension_numbers<[1], [0], [0], [1], [0, 0, 1, 1], [], []>} : vector<2x8xf32>, vector<8x256xf32>, vector<2x256xf32> -> vector<2x256xf32>
    %279 = arith.addf %274, %278 : vector<2x256xf32>
    %c11_192 = arith.constant 11 : index
    %c0_193 = arith.constant 0 : index
    %c0_194 = arith.constant 0 : index
    %280 = vector.load %arg11[%c11_192, %c0_193, %c0_194] : memref<16x2x8xf32, #tpu.memory_space<vmem>>, vector<1x2x8xf32>
    %281 = vector.shape_cast %280 : vector<1x2x8xf32> to vector<2x8xf32>
    %282 = vector.extract_strided_slice %225 {offsets = [0, 2816], sizes = [8, 256], strides = [1, 1]} : vector<8x4096xf32> to vector<8x256xf32>
    %cst_195 = arith.constant dense<0.000000e+00> : vector<2x256xf32>
    %283 = tpu.matmul %281, %282, %cst_195 {dimension_numbers = #tpu.dot_dimension_numbers<[1], [0], [0], [1], [0, 0, 1, 1], [], []>} : vector<2x8xf32>, vector<8x256xf32>, vector<2x256xf32> -> vector<2x256xf32>
    %284 = arith.addf %279, %283 : vector<2x256xf32>
    %c12_196 = arith.constant 12 : index
    %c0_197 = arith.constant 0 : index
    %c0_198 = arith.constant 0 : index
    %285 = vector.load %arg11[%c12_196, %c0_197, %c0_198] : memref<16x2x8xf32, #tpu.memory_space<vmem>>, vector<1x2x8xf32>
    %286 = vector.shape_cast %285 : vector<1x2x8xf32> to vector<2x8xf32>
    %287 = vector.extract_strided_slice %225 {offsets = [0, 3072], sizes = [8, 256], strides = [1, 1]} : vector<8x4096xf32> to vector<8x256xf32>
    %cst_199 = arith.constant dense<0.000000e+00> : vector<2x256xf32>
    %288 = tpu.matmul %286, %287, %cst_199 {dimension_numbers = #tpu.dot_dimension_numbers<[1], [0], [0], [1], [0, 0, 1, 1], [], []>} : vector<2x8xf32>, vector<8x256xf32>, vector<2x256xf32> -> vector<2x256xf32>
    %289 = arith.addf %284, %288 : vector<2x256xf32>
    %c13_200 = arith.constant 13 : index
    %c0_201 = arith.constant 0 : index
    %c0_202 = arith.constant 0 : index
    %290 = vector.load %arg11[%c13_200, %c0_201, %c0_202] : memref<16x2x8xf32, #tpu.memory_space<vmem>>, vector<1x2x8xf32>
    %291 = vector.shape_cast %290 : vector<1x2x8xf32> to vector<2x8xf32>
    %292 = vector.extract_strided_slice %225 {offsets = [0, 3328], sizes = [8, 256], strides = [1, 1]} : vector<8x4096xf32> to vector<8x256xf32>
    %cst_203 = arith.constant dense<0.000000e+00> : vector<2x256xf32>
    %293 = tpu.matmul %291, %292, %cst_203 {dimension_numbers = #tpu.dot_dimension_numbers<[1], [0], [0], [1], [0, 0, 1, 1], [], []>} : vector<2x8xf32>, vector<8x256xf32>, vector<2x256xf32> -> vector<2x256xf32>
    %294 = arith.addf %289, %293 : vector<2x256xf32>
    %c14_204 = arith.constant 14 : index
    %c0_205 = arith.constant 0 : index
    %c0_206 = arith.constant 0 : index
    %295 = vector.load %arg11[%c14_204, %c0_205, %c0_206] : memref<16x2x8xf32, #tpu.memory_space<vmem>>, vector<1x2x8xf32>
    %296 = vector.shape_cast %295 : vector<1x2x8xf32> to vector<2x8xf32>
    %297 = vector.extract_strided_slice %225 {offsets = [0, 3584], sizes = [8, 256], strides = [1, 1]} : vector<8x4096xf32> to vector<8x256xf32>
    %cst_207 = arith.constant dense<0.000000e+00> : vector<2x256xf32>
    %298 = tpu.matmul %296, %297, %cst_207 {dimension_numbers = #tpu.dot_dimension_numbers<[1], [0], [0], [1], [0, 0, 1, 1], [], []>} : vector<2x8xf32>, vector<8x256xf32>, vector<2x256xf32> -> vector<2x256xf32>
    %299 = arith.addf %294, %298 : vector<2x256xf32>
    %c15_208 = arith.constant 15 : index
    %c0_209 = arith.constant 0 : index
    %c0_210 = arith.constant 0 : index
    %300 = vector.load %arg11[%c15_208, %c0_209, %c0_210] : memref<16x2x8xf32, #tpu.memory_space<vmem>>, vector<1x2x8xf32>
    %301 = vector.shape_cast %300 : vector<1x2x8xf32> to vector<2x8xf32>
    %302 = vector.extract_strided_slice %225 {offsets = [0, 3840], sizes = [8, 256], strides = [1, 1]} : vector<8x4096xf32> to vector<8x256xf32>
    %cst_211 = arith.constant dense<0.000000e+00> : vector<2x256xf32>
    %303 = tpu.matmul %301, %302, %cst_211 {dimension_numbers = #tpu.dot_dimension_numbers<[1], [0], [0], [1], [0, 0, 1, 1], [], []>} : vector<2x8xf32>, vector<8x256xf32>, vector<2x256xf32> -> vector<2x256xf32>
    %304 = arith.addf %299, %303 : vector<2x256xf32>
    %cst_212 = arith.constant dense<0.000000e+00> : vector<256xf32>
    %305 = vector.multi_reduction <add>, %304, %cst_212 [0] : vector<2x256xf32> to vector<256xf32>
    %306 = vector.shape_cast %305 : vector<256xf32> to vector<1x256xf32>
    %cst_213 = arith.constant 2.000000e+00 : f32
    %307 = vector.broadcast %cst_213 : f32 to vector<1x256xf32>
    %308 = arith.divf %306, %307 : vector<1x256xf32>
    %309 = arith.mulf %304, %304 : vector<2x256xf32>
    %cst_214 = arith.constant dense<0.000000e+00> : vector<256xf32>
    %310 = vector.multi_reduction <add>, %309, %cst_214 [0] : vector<2x256xf32> to vector<256xf32>
    %311 = vector.shape_cast %310 : vector<256xf32> to vector<1x256xf32>
    %cst_215 = arith.constant 2.000000e+00 : f32
    %312 = vector.broadcast %cst_215 : f32 to vector<1x256xf32>
    %313 = arith.divf %311, %312 : vector<1x256xf32>
    %314 = arith.mulf %308, %308 : vector<1x256xf32>
    %315 = arith.subf %313, %314 : vector<1x256xf32>
    %cst_216 = arith.constant 0.000000e+00 : f32
    %316 = vector.broadcast %cst_216 : f32 to vector<1x256xf32>
    %317 = arith.maximumf %315, %316 : vector<1x256xf32>
    %c0_217 = arith.constant 0 : index
    %c0_218 = arith.constant 0 : index
    %318 = vector.load %arg12[%c0_217, %c0_218] : memref<1x256xf32, #tpu.memory_space<vmem>>, vector<1x256xf32>
    %cst_219 = arith.constant 9.99999974E-6 : f32
    %319 = vector.broadcast %cst_219 : f32 to vector<1x256xf32>
    %320 = arith.addf %317, %319 : vector<1x256xf32>
    %321 = math.rsqrt %320 : vector<1x256xf32>
    %322 = arith.mulf %318, %321 : vector<1x256xf32>
    %c0_220 = arith.constant 0 : index
    %c0_221 = arith.constant 0 : index
    %323 = vector.load %arg13[%c0_220, %c0_221] : memref<1x256xf32, #tpu.memory_space<vmem>>, vector<1x256xf32>
    %324 = arith.mulf %308, %322 : vector<1x256xf32>
    %325 = arith.subf %323, %324 : vector<1x256xf32>
    %326 = vector.broadcast %322 : vector<1x256xf32> to vector<2x256xf32>
    %327 = arith.mulf %304, %326 : vector<2x256xf32>
    %328 = vector.broadcast %325 : vector<1x256xf32> to vector<2x256xf32>
    %329 = arith.addf %327, %328 : vector<2x256xf32>
    %cst_222 = arith.constant 0.000000e+00 : f32
    %330 = vector.broadcast %cst_222 : f32 to vector<2x256xf32>
    %331 = arith.maximumf %329, %330 : vector<2x256xf32>
    %332 = arith.truncf %331 : vector<2x256xf32> to vector<2x256xbf16>
    %c0_223 = arith.constant 0 : index
    %c0_224 = arith.constant 0 : index
    %333 = vector.load %arg14[%c0_223, %c0_224] : memref<256x8xbf16, #tpu.memory_space<vmem>>, vector<256x8xbf16>
    %cst_225 = arith.constant dense<0.000000e+00> : vector<2x8xf32>
    %334 = tpu.matmul %332, %333, %cst_225 {dimension_numbers = #tpu.dot_dimension_numbers<[1], [0], [0], [1], [0, 0, 1, 1], [], []>} : vector<2x256xbf16>, vector<256x8xbf16>, vector<2x8xf32> -> vector<2x8xf32>
    %c0_226 = arith.constant 0 : index
    %c0_227 = arith.constant 0 : index
    %335 = vector.load %arg16[%c0_226, %c0_227] : memref<1x8xf32, #tpu.memory_space<vmem>>, vector<1x8xf32>
    %336 = vector.broadcast %335 : vector<1x8xf32> to vector<2x8xf32>
    %337 = arith.addf %334, %336 : vector<2x8xf32>
    %c0_228 = arith.constant 0 : index
    %c0_229 = arith.constant 0 : index
    %338 = vector.load %arg15[%c0_228, %c0_229] : memref<256x8xbf16, #tpu.memory_space<vmem>>, vector<256x8xbf16>
    %cst_230 = arith.constant dense<0.000000e+00> : vector<2x8xf32>
    %339 = tpu.matmul %332, %338, %cst_230 {dimension_numbers = #tpu.dot_dimension_numbers<[1], [0], [0], [1], [0, 0, 1, 1], [], []>} : vector<2x256xbf16>, vector<256x8xbf16>, vector<2x8xf32> -> vector<2x8xf32>
    %c0_231 = arith.constant 0 : index
    %c0_232 = arith.constant 0 : index
    %340 = vector.load %arg17[%c0_231, %c0_232] : memref<1x8xf32, #tpu.memory_space<vmem>>, vector<1x8xf32>
    %341 = vector.broadcast %340 : vector<1x8xf32> to vector<2x8xf32>
    %342 = arith.addf %339, %341 : vector<2x8xf32>
    %c0_233 = arith.constant 0 : index
    %c0_234 = arith.constant 0 : index
    %343 = vector.load %arg18[%c0_233, %c0_234] : memref<2x8xf32, #tpu.memory_space<vmem>>, vector<2x8xf32>
    %cst_235 = arith.constant 5.000000e-01 : f32
    %344 = vector.broadcast %cst_235 : f32 to vector<2x8xf32>
    %345 = arith.mulf %344, %342 : vector<2x8xf32>
    %346 = math.exp %345 : vector<2x8xf32>
    %347 = arith.mulf %343, %346 : vector<2x8xf32>
    %348 = arith.addf %347, %337 : vector<2x8xf32>
    %c0_236 = arith.constant 0 : index
    %c0_237 = arith.constant 0 : index
    %349 = vector.load %arg19[%c0_236, %c0_237] : memref<2x8xf32, #tpu.memory_space<vmem>>, vector<2x8xf32>
    tpu.vector_store %arg19[%c0_236, %c0_237], %348 {strides = array<i32>} : memref<2x8xf32, #tpu.memory_space<vmem>>, vector<2x8xf32>,
    %c0_238 = arith.constant 0 : index
    %c0_239 = arith.constant 0 : index
    %350 = vector.load %arg20[%c0_238, %c0_239] : memref<2x8xf32, #tpu.memory_space<vmem>>, vector<2x8xf32>
    tpu.vector_store %arg20[%c0_238, %c0_239], %337 {strides = array<i32>} : memref<2x8xf32, #tpu.memory_space<vmem>>, vector<2x8xf32>,
    %c0_240 = arith.constant 0 : index
    %c0_241 = arith.constant 0 : index
    %351 = vector.load %arg21[%c0_240, %c0_241] : memref<2x8xf32, #tpu.memory_space<vmem>>, vector<2x8xf32>
    tpu.vector_store %arg21[%c0_240, %c0_241], %342 {strides = array<i32>} : memref<2x8xf32, #tpu.memory_space<vmem>>, vector<2x8xf32>,
    return
  }
}

</mosaic_0001>

<llo_original>
// kernel: random_cnn_encoder_forward.1
$region0: #{random_cnn_encoder_forward.1}
  #allocation0 [shape = 'u32[]', space=smem, size = 0x4, offset = 0x4, fixed_abs, tag = 'smem constant byte address 0x4 - core index']
  #allocation1 [shape = 'u32[144,128]{1,0:T(1,128)}', space=vmem, size = 0x12000, scoped, tag = 'internal scratch']
  %s0 = inlined_call_operand.vmem [shape: bf16[128,128], index: 0, kind: input, shape index: {}]
  %s1 = inlined_call_operand.hbm [shape: bf16[128,128], index: 1, kind: input, shape index: {}]
  %s2 = inlined_call_operand.vmem [shape: bf16[128,2048], index: 2, kind: input, shape index: {}]
  %s3 = inlined_call_operand.hbm [shape: f32[16,32,128], index: 3, kind: input, shape index: {}]
  %s4 = inlined_call_operand.vmem [shape: f32[1,128], index: 4, kind: input, shape index: {}]
  %s5 = inlined_call_operand.vmem [shape: f32[1,128], index: 5, kind: input, shape index: {}]
  %s6 = inlined_call_operand.hbm [shape: bf16[128,2048], index: 6, kind: input, shape index: {}]
  %s7 = inlined_call_operand.hbm [shape: f32[16,8,32], index: 7, kind: input, shape index: {}]
  %s8 = inlined_call_operand.vmem [shape: f32[1,128], index: 8, kind: input, shape index: {}]
  %s9 = inlined_call_operand.vmem [shape: f32[1,128], index: 9, kind: input, shape index: {}]
  %s10 = inlined_call_operand.hbm [shape: bf16[128,4096], index: 10, kind: input, shape index: {}]
  %s11 = inlined_call_operand.vmem [shape: f32[16,2,8], index: 11, kind: input, shape index: {}]
  %s12 = inlined_call_operand.vmem [shape: f32[1,256], index: 12, kind: input, shape index: {}]
  %s13 = inlined_call_operand.vmem [shape: f32[1,256], index: 13, kind: input, shape index: {}]
  %s14 = inlined_call_operand.vmem [shape: bf16[256,8], index: 14, kind: input, shape index: {}]
  %s15 = inlined_call_operand.vmem [shape: bf16[256,8], index: 15, kind: input, shape index: {}]
  %s16 = inlined_call_operand.vmem [shape: f32[1,8], index: 16, kind: input, shape index: {}]
  %s17 = inlined_call_operand.vmem [shape: f32[1,8], index: 17, kind: input, shape index: {}]
  %s18 = inlined_call_operand.vmem [shape: f32[2,8], index: 18, kind: input, shape index: {}]
  %s19 = inlined_call_operand.hbm [shape: f32[2,8], index: 19, kind: output, shape index: {0}]
  %s20 = inlined_call_operand.hbm [shape: f32[2,8], index: 20, kind: output, shape index: {1}]
  %s21 = inlined_call_operand.hbm [shape: f32[2,8], index: 21, kind: output, shape index: {2}]
  %22 = xla_tuple %s19, %s20, %s21
  %s23 = sld [smem:[#allocation0]]
  $region122: #{random_cnn_encoder_forward.1} parent=0
    _
  %s25 = ssub.s32 1, %s23
  %s26 = scalar_select 0, %s25, %s23
  $region1: #{random_cnn_encoder_forward.1} parent=0
    #allocation2 [shape = 'u8[32768]{0}', space=vmem, size = 0x8000, scoped, tag = 'input window, operand 1, single buffered']
    #allocation3 [shape = 's32[1]{0}', space=sflag, size = 0x4, scoped, tag = 'scoped memory for random_cnn_encoder_forward.1']
    #allocation4 [shape = 's32[1]{0}', space=sflag, size = 0x4, scoped, tag = 'scoped memory for random_cnn_encoder_forward.1']
    #allocation5 [shape = 'u8[262144]{0}', space=vmem, size = 0x40000, scoped, tag = 'input window, operand 3, single buffered']
    #allocation6 [shape = 's32[1]{0}', space=sflag, size = 0x4, scoped, tag = 'scoped memory for random_cnn_encoder_forward.1']
    #allocation7 [shape = 'u8[524288]{0}', space=vmem, size = 0x80000, scoped, tag = 'input window, operand 6, single buffered']
    #allocation8 [shape = 'u8[65536]{0}', space=vmem, size = 0x10000, scoped, tag = 'input window, operand 7, single buffered']
    #allocation9 [shape = 's32[1]{0}', space=sflag, size = 0x4, scoped, tag = 'scoped memory for random_cnn_encoder_forward.1']
    #allocation10 [shape = 'u8[1048576]{0}', space=vmem, size = 0x100000, scoped, tag = 'input window, operand 10, single buffered']
    #allocation11 [shape = 'u8[1024]{0}', space=vmem, size = 0x400, scoped, tag = 'output window, operand 0, single buffered']
    #allocation12 [shape = 'u8[1024]{0}', space=vmem, size = 0x400, scoped, tag = 'output window, operand 1, single buffered']
    #allocation13 [shape = 's32[1]{0}', space=sflag, size = 0x4, scoped, tag = 'scoped memory for random_cnn_encoder_forward.1']
    #allocation14 [shape = 'u8[1024]{0}', space=vmem, size = 0x400, scoped, tag = 'output window, operand 2, single buffered']
    %27 = vsyncpa [#allocation3], 0
    %28 = vsyncpa [#allocation6], 0
    %29 = vsyncpa [#allocation9], 0
    %30 = vsyncpa [#allocation4], 0
    %31 = vsyncpa [#allocation13], 0
    // Predicated region
    $region2: #{random_cnn_encoder_forward.1} parent=1 // pred_check
      _
    $region3: #{random_cnn_encoder_forward.1} parent=1 // pred_check_branch
      %33 = sbr.rel (0) target = $region5
    $region4: #{random_cnn_encoder_forward.1} parent=1 // pred_region
      _
    $region5: #{random_cnn_encoder_forward.1} parent=1 // pred_fallthru
      _
    // Predicated region
    $region6: #{random_cnn_encoder_forward.1} parent=1 // pred_check
      _
    $region7: #{random_cnn_encoder_forward.1} parent=1 // pred_check_branch
      %35 = sbr.rel (0) target = $region9
    $region8: #{random_cnn_encoder_forward.1} parent=1 // pred_region
      %s37 = ssub.s32 1024, 1024
      %38 = vsyncadd [#allocation3], %s37
      %s39 = sshll.u32 [#allocation2], 4
      %s40 = int_to_ptr.vmem [resolvable:$true] %s39
      %45 = dma.hbm_to_vmem [thread:$0]  %s1, 1024, %s40, [#allocation3], 64, 64, 4
    $region9: #{random_cnn_encoder_forward.1} parent=1 // pred_fallthru
      _
    // Predicated region
    $region10: #{random_cnn_encoder_forward.1} parent=1 // pred_check
      _
    $region11: #{random_cnn_encoder_forward.1} parent=1 // pred_check_branch
      %47 = sbr.rel (0) target = $region13
    $region12: #{random_cnn_encoder_forward.1} parent=1 // pred_region
      _
    $region13: #{random_cnn_encoder_forward.1} parent=1 // pred_fallthru
      _
    // Predicated region
    $region14: #{random_cnn_encoder_forward.1} parent=1 // pred_check
      _
    $region15: #{random_cnn_encoder_forward.1} parent=1 // pred_check_branch
      %49 = sbr.rel (0) target = $region17
    $region16: #{random_cnn_encoder_forward.1} parent=1 // pred_region
      %s51 = ssub.s32 8192, 8192
      %52 = vsyncadd [#allocation6], %s51
      %s53 = sshll.u32 [#allocation5], 4
      %s54 = int_to_ptr.vmem [resolvable:$true] %s53
      %59 = dma.hbm_to_vmem [thread:$0]  %s3, 8192, %s54, [#allocation6], 128, 128, 8
    $region17: #{random_cnn_encoder_forward.1} parent=1 // pred_fallthru
      _
    // Predicated region
    $region18: #{random_cnn_encoder_forward.1} parent=1 // pred_check
      _
    $region19: #{random_cnn_encoder_forward.1} parent=1 // pred_check_branch
      %61 = sbr.rel (0) target = $region21
    $region20: #{random_cnn_encoder_forward.1} parent=1 // pred_region
      _
    $region21: #{random_cnn_encoder_forward.1} parent=1 // pred_fallthru
      _
    // Predicated region
    $region22: #{random_cnn_encoder_forward.1} parent=1 // pred_check
      _
    $region23: #{random_cnn_encoder_forward.1} parent=1 // pred_check_branch
      %63 = sbr.rel (0) target = $region25
    $region24: #{random_cnn_encoder_forward.1} parent=1 // pred_region
      _
    $region25: #{random_cnn_encoder_forward.1} parent=1 // pred_fallthru
      _
    // Predicated region
    $region26: #{random_cnn_encoder_forward.1} parent=1 // pred_check
      _
    $region27: #{random_cnn_encoder_forward.1} parent=1 // pred_check_branch
      %65 = sbr.rel (0) target = $region29
    $region28: #{random_cnn_encoder_forward.1} parent=1 // pred_region
      %s67 = ssub.s32 16384, 16384
      %68 = vsyncadd [#allocation6], %s67
      %s69 = sshll.u32 [#allocation7], 4
      %s70 = int_to_ptr.vmem [resolvable:$true] %s69
      %75 = dma.hbm_to_vmem [thread:$0]  %s6, 16384, %s70, [#allocation6], 1024, 1024, 64
    $region29: #{random_cnn_encoder_forward.1} parent=1 // pred_fallthru
      _
    // Predicated region
    $region30: #{random_cnn_encoder_forward.1} parent=1 // pred_check
      _
    $region31: #{random_cnn_encoder_forward.1} parent=1 // pred_check_branch
      %77 = sbr.rel (0) target = $region33
    $region32: #{random_cnn_encoder_forward.1} parent=1 // pred_region
      %s79 = ssub.s32 2048, 2048
      %80 = vsyncadd [#allocation9], %s79
      %s81 = sshll.u32 [#allocation8], 4
      %s82 = int_to_ptr.vmem [resolvable:$true] %s81
      %87 = dma.hbm_to_vmem [thread:$0]  %s7, 2048, %s82, [#allocation9], 128, 128, 8
    $region33: #{random_cnn_encoder_forward.1} parent=1 // pred_fallthru
      _
    // Predicated region
    $region34: #{random_cnn_encoder_forward.1} parent=1 // pred_check
      _
    $region35: #{random_cnn_encoder_forward.1} parent=1 // pred_check_branch
      %89 = sbr.rel (0) target = $region37
    $region36: #{random_cnn_encoder_forward.1} parent=1 // pred_region
      _
    $region37: #{random_cnn_encoder_forward.1} parent=1 // pred_fallthru
      _
    // Predicated region
    $region38: #{random_cnn_encoder_forward.1} parent=1 // pred_check
      _
    $region39: #{random_cnn_encoder_forward.1} parent=1 // pred_check_branch
      %91 = sbr.rel (0) target = $region41
    $region40: #{random_cnn_encoder_forward.1} parent=1 // pred_region
      _
    $region41: #{random_cnn_encoder_forward.1} parent=1 // pred_fallthru
      _
    // Predicated region
    $region42: #{random_cnn_encoder_forward.1} parent=1 // pred_check
      _
    $region43: #{random_cnn_encoder_forward.1} parent=1 // pred_check_branch
      %93 = sbr.rel (0) target = $region45
    $region44: #{random_cnn_encoder_forward.1} parent=1 // pred_region
      %s95 = ssub.s32 32768, 32768
      %96 = vsyncadd [#allocation9], %s95
      %s97 = sshll.u32 [#allocation10], 4
      %s98 = int_to_ptr.vmem [resolvable:$true] %s97
      %103 = dma.hbm_to_vmem [thread:$0]  %s10, 32768, %s98, [#allocation9], 2048, 2048, 128
    $region45: #{random_cnn_encoder_forward.1} parent=1 // pred_fallthru
      _
    // Predicated region
    $region46: #{random_cnn_encoder_forward.1} parent=1 // pred_check
      _
    $region47: #{random_cnn_encoder_forward.1} parent=1 // pred_check_branch
      %105 = sbr.rel (0) target = $region49
    $region48: #{random_cnn_encoder_forward.1} parent=1 // pred_region
      _
    $region49: #{random_cnn_encoder_forward.1} parent=1 // pred_fallthru
      _
    // Predicated region
    $region50: #{random_cnn_encoder_forward.1} parent=1 // pred_check
      _
    $region51: #{random_cnn_encoder_forward.1} parent=1 // pred_check_branch
      %107 = sbr.rel (0) target = $region53
    $region52: #{random_cnn_encoder_forward.1} parent=1 // pred_region
      _
    $region53: #{random_cnn_encoder_forward.1} parent=1 // pred_fallthru
      _
    // Predicated region
    $region54: #{random_cnn_encoder_forward.1} parent=1 // pred_check
      _
    $region55: #{random_cnn_encoder_forward.1} parent=1 // pred_check_branch
      %109 = sbr.rel (0) target = $region57
    $region56: #{random_cnn_encoder_forward.1} parent=1 // pred_region
      _
    $region57: #{random_cnn_encoder_forward.1} parent=1 // pred_fallthru
      _
    // Predicated region
    $region58: #{random_cnn_encoder_forward.1} parent=1 // pred_check
      _
    $region59: #{random_cnn_encoder_forward.1} parent=1 // pred_check_branch
      %111 = sbr.rel (0) target = $region61
    $region60: #{random_cnn_encoder_forward.1} parent=1 // pred_region
      _
    $region61: #{random_cnn_encoder_forward.1} parent=1 // pred_fallthru
      _
    // Predicated region
    $region62: #{random_cnn_encoder_forward.1} parent=1 // pred_check
      _
    $region63: #{random_cnn_encoder_forward.1} parent=1 // pred_check_branch
      %113 = sbr.rel (0) target = $region65
    $region64: #{random_cnn_encoder_forward.1} parent=1 // pred_region
      _
    $region65: #{random_cnn_encoder_forward.1} parent=1 // pred_fallthru
      _
    // Predicated region
    $region66: #{random_cnn_encoder_forward.1} parent=1 // pred_check
      _
    $region67: #{random_cnn_encoder_forward.1} parent=1 // pred_check_branch
      %115 = sbr.rel (0) target = $region69
    $region68: #{random_cnn_encoder_forward.1} parent=1 // pred_region
      _
    $region69: #{random_cnn_encoder_forward.1} parent=1 // pred_fallthru
      _
    // Predicated region
    $region70: #{random_cnn_encoder_forward.1} parent=1 // pred_check
      _
    $region71: #{random_cnn_encoder_forward.1} parent=1 // pred_check_branch
      %117 = sbr.rel (0) target = $region73
    $region72: #{random_cnn_encoder_forward.1} parent=1 // pred_region
      _
    $region73: #{random_cnn_encoder_forward.1} parent=1 // pred_fallthru
      _
    // Predicated region
    $region74: #{random_cnn_encoder_forward.1} parent=1 // pred_check
      _
    $region75: #{random_cnn_encoder_forward.1} parent=1 // pred_check_branch
      %119 = sbr.rel (0) target = $region77
    $region76: #{random_cnn_encoder_forward.1} parent=1 // pred_region
      _
    $region77: #{random_cnn_encoder_forward.1} parent=1 // pred_fallthru
      _
    // Predicated region
    $region78: #{random_cnn_encoder_forward.1} parent=1 // pred_check
      _
    $region79: #{random_cnn_encoder_forward.1} parent=1 // pred_check_branch
      %121 = sbr.rel (0) target = $region81
    $region80: #{random_cnn_encoder_forward.1} parent=1 // pred_region
      %122 = dma.done [#allocation3], 1024
    $region81: #{random_cnn_encoder_forward.1} parent=1 // pred_fallthru
      _
    // Predicated region
    $region82: #{random_cnn_encoder_forward.1} parent=1 // pred_check
      _
    $region83: #{random_cnn_encoder_forward.1} parent=1 // pred_check_branch
      %124 = sbr.rel (0) target = $region85
    $region84: #{random_cnn_encoder_forward.1} parent=1 // pred_region
      %125 = dma.done [#allocation6], 8192
    $region85: #{random_cnn_encoder_forward.1} parent=1 // pred_fallthru
      _
    // Predicated region
    $region86: #{random_cnn_encoder_forward.1} parent=1 // pred_check
      _
    $region87: #{random_cnn_encoder_forward.1} parent=1 // pred_check_branch
      %127 = sbr.rel (0) target = $region89
    $region88: #{random_cnn_encoder_forward.1} parent=1 // pred_region
      %128 = dma.done [#allocation6], 16384
    $region89: #{random_cnn_encoder_forward.1} parent=1 // pred_fallthru
      _
    // Predicated region
    $region90: #{random_cnn_encoder_forward.1} parent=1 // pred_check
      _
    $region91: #{random_cnn_encoder_forward.1} parent=1 // pred_check_branch
      %130 = sbr.rel (0) target = $region93
    $region92: #{random_cnn_encoder_forward.1} parent=1 // pred_region
      %131 = dma.done [#allocation9], 2048
    $region93: #{random_cnn_encoder_forward.1} parent=1 // pred_fallthru
      _
    // Predicated region
    $region94: #{random_cnn_encoder_forward.1} parent=1 // pred_check
      _
    $region95: #{random_cnn_encoder_forward.1} parent=1 // pred_check_branch
      %133 = sbr.rel (0) target = $region97
    $region96: #{random_cnn_encoder_forward.1} parent=1 // pred_region
      %134 = dma.done [#allocation9], 32768
    $region97: #{random_cnn_encoder_forward.1} parent=1 // pred_fallthru
      _
    %v136 = vld [vmem:[%s0] sm:$0xf]
    %v137 = vld [vmem:[%s0 + $0x4] sm:$0xf]
    %v138 = vld [vmem:[%s0 + $0x8] sm:$0xf]
    %v139 = vld [vmem:[%s0 + $0xc] sm:$0xf]
    %v140 = vld [vmem:[%s0 + $0x10] sm:$0xf]
    %v141 = vld [vmem:[%s0 + $0x14] sm:$0xf]
    %v142 = vld [vmem:[%s0 + $0x18] sm:$0xf]
    %v143 = vld [vmem:[%s0 + $0x1c] sm:$0xf]
    %v144 = vld [vmem:[%s0 + $0x20] sm:$0xf]
    %v145 = vld [vmem:[%s0 + $0x24] sm:$0xf]
    %v146 = vld [vmem:[%s0 + $0x28] sm:$0xf]
    %v147 = vld [vmem:[%s0 + $0x2c] sm:$0xf]
    %v148 = vld [vmem:[%s0 + $0x30] sm:$0xf]
    %v149 = vld [vmem:[%s0 + $0x34] sm:$0xf]
    %v150 = vld [vmem:[%s0 + $0x38] sm:$0xf]
    %v151 = vld [vmem:[%s0 + $0x3c] sm:$0xf]
    %v152 = vld [vmem:[#allocation2] sm:$0xf]
    %v153 = vld [vmem:[#allocation2 + $0x4] sm:$0xf]
    %v154 = vld [vmem:[#allocation2 + $0x8] sm:$0xf]
    %v155 = vld [vmem:[#allocation2 + $0xc] sm:$0xf]
    %v156 = vld [vmem:[#allocation2 + $0x10] sm:$0xf]
    %v157 = vld [vmem:[#allocation2 + $0x14] sm:$0xf]
    %v158 = vld [vmem:[#allocation2 + $0x18] sm:$0xf]
    %v159 = vld [vmem:[#allocation2 + $0x1c] sm:$0xf]
    %v160 = vld [vmem:[#allocation2 + $0x20] sm:$0xf]
    %v161 = vld [vmem:[#allocation2 + $0x24] sm:$0xf]
    %v162 = vld [vmem:[#allocation2 + $0x28] sm:$0xf]
    %v163 = vld [vmem:[#allocation2 + $0x2c] sm:$0xf]
    %v164 = vld [vmem:[#allocation2 + $0x30] sm:$0xf]
    %v165 = vld [vmem:[#allocation2 + $0x34] sm:$0xf]
    %v166 = vld [vmem:[#allocation2 + $0x38] sm:$0xf]
    %v167 = vld [vmem:[#allocation2 + $0x3c] sm:$0xf]
    %v184 = vunpack.c.l.b16 %v136
    %v185 = vunpack.c.l.b16 %v137
    %v186 = vunpack.c.l.b16 %v138
    %v187 = vunpack.c.l.b16 %v139
    %v188 = vunpack.c.l.b16 %v140
    %v189 = vunpack.c.l.b16 %v141
    %v190 = vunpack.c.l.b16 %v142
    %v191 = vunpack.c.l.b16 %v143
    %v192 = vunpack.c.l.b16 %v144
    %v193 = vunpack.c.l.b16 %v145
    %v194 = vunpack.c.l.b16 %v146
    %v195 = vunpack.c.l.b16 %v147
    %v196 = vunpack.c.l.b16 %v148
    %v197 = vunpack.c.l.b16 %v149
    %v198 = vunpack.c.l.b16 %v150
    %v199 = vunpack.c.l.b16 %v151
    %v200 = vpack.c.b16 %v185, %v184
    %v201 = vpack.c.b16 %v187, %v186
    %v202 = vpack.c.b16 %v189, %v188
    %v203 = vpack.c.b16 %v191, %v190
    %v204 = vpack.c.b16 %v193, %v192
    %v205 = vpack.c.b16 %v195, %v194
    %v206 = vpack.c.b16 %v197, %v196
    %v207 = vpack.c.b16 %v199, %v198
    %v232 = vunpack.c.l.b16 %v152
    %v233 = vunpack.c.l.b16 %v153
    %v234 = vunpack.c.l.b16 %v154
    %v235 = vunpack.c.l.b16 %v155
    %v236 = vunpack.c.l.b16 %v156
    %v237 = vunpack.c.l.b16 %v157
    %v238 = vunpack.c.l.b16 %v158
    %v239 = vunpack.c.l.b16 %v159
    %v240 = vunpack.c.l.b16 %v160
    %v241 = vunpack.c.l.b16 %v161
    %v242 = vunpack.c.l.b16 %v162
    %v243 = vunpack.c.l.b16 %v163
    %v244 = vunpack.c.l.b16 %v164
    %v245 = vunpack.c.l.b16 %v165
    %v246 = vunpack.c.l.b16 %v166
    %v247 = vunpack.c.l.b16 %v167
    %v248 = vpack.c.b16 %v233, %v232
    %v249 = vpack.c.b16 %v235, %v234
    %v250 = vpack.c.b16 %v237, %v236
    %v251 = vpack.c.b16 %v239, %v238
    %v252 = vpack.c.b16 %v241, %v240
    %v253 = vpack.c.b16 %v243, %v242
    %v254 = vpack.c.b16 %v245, %v244
    %v255 = vpack.c.b16 %v247, %v246
    %264 = vmatprep.subr.bf16.mxu0 0
    %265 = vmatpush1.bf16.msra.mxu0 %v248
    %266 = vmatprep.subr.bf16.mxu0 0
    %267 = vmatpush1.bf16.msra.mxu0 %v249
    %268 = vmatprep.subr.bf16.mxu0 0
    %269 = vmatpush1.bf16.msra.mxu0 %v250
    %270 = vmatprep.subr.bf16.mxu0 0
    %271 = vmatpush1.bf16.msra.mxu0 %v251
    %272 = vmatprep.subr.bf16.mxu0 0
    %273 = vmatpush1.bf16.msra.mxu0 %v252
    %274 = vmatprep.subr.bf16.mxu0 0
    %275 = vmatpush1.bf16.msra.mxu0 %v253
    %276 = vmatprep.subr.bf16.mxu0 0
    %277 = vmatpush1.bf16.msra.mxu0 %v254
    %278 = vmatprep.subr.bf16.mxu0 0
    %279 = vmatpush1.bf16.msra.mxu0 %v255
    %280 = vmatprep.subr.bf16.mxu0 0
    %281 = vmatpush1.bf16.msra.mxu0 0
    %282 = vmatprep.subr.bf16.mxu0 0
    %283 = vmatpush1.bf16.msra.mxu0 0
    %284 = vmatprep.subr.bf16.mxu0 0
    %285 = vmatpush1.bf16.msra.mxu0 0
    %286 = vmatprep.subr.bf16.mxu0 0
    %287 = vmatpush1.bf16.msra.mxu0 0
    %288 = vmatprep.subr.bf16.mxu0 0
    %289 = vmatpush1.bf16.msra.mxu0 0
    %290 = vmatprep.subr.bf16.mxu0 0
    %291 = vmatpush1.bf16.msra.mxu0 0
    %292 = vmatprep.subr.bf16.mxu0 0
    %293 = vmatpush1.bf16.msra.mxu0 0
    %294 = vmatprep.subr.bf16.mxu0 0
    %295 = vmatpush1.bf16.msra.mxu0 0
    %296 = vmatprep.mubr.bf16.mxu0 0
    %297 = vmatmul.mubr.bf16.gmra.mrb[0].mxu0 %v200
    %v298 = vpop.f32.mrb[0].mxu0
    %v299 = vadd.f32 0.0, %v298
    %v300 = vpop.f32.mrb[0].mxu0
    %v301 = vpop.f32.mrb[0].mxu0
    %v302 = vadd.f32 0.0, %v301
    %v303 = vpop.f32.mrb[0].mxu0
    %304 = vmatprep.mubr.bf16.mxu0 0
    %305 = vmatmul.mubr.bf16.gmra.mrb[0].mxu0 %v201
    %v306 = vpop.f32.mrb[0].mxu0
    %v307 = vadd.f32 0.0, %v306
    %v308 = vpop.f32.mrb[0].mxu0
    %v309 = vpop.f32.mrb[0].mxu0
    %v310 = vadd.f32 0.0, %v309
    %v311 = vpop.f32.mrb[0].mxu0
    %312 = vmatprep.mubr.bf16.mxu0 0
    %313 = vmatmul.mubr.bf16.gmra.mrb[0].mxu0 %v202
    %v314 = vpop.f32.mrb[0].mxu0
    %v315 = vadd.f32 0.0, %v314
    %v316 = vpop.f32.mrb[0].mxu0
    %v317 = vpop.f32.mrb[0].mxu0
    %v318 = vadd.f32 0.0, %v317
    %v319 = vpop.f32.mrb[0].mxu0
    %320 = vmatprep.mubr.bf16.mxu0 0
    %321 = vmatmul.mubr.bf16.gmra.mrb[0].mxu0 %v203
    %v322 = vpop.f32.mrb[0].mxu0
    %v323 = vadd.f32 0.0, %v322
    %v324 = vpop.f32.mrb[0].mxu0
    %v325 = vpop.f32.mrb[0].mxu0
    %v326 = vadd.f32 0.0, %v325
    %v327 = vpop.f32.mrb[0].mxu0
    %328 = vmatprep.mubr.bf16.mxu0 0
    %329 = vmatmul.mubr.bf16.gmra.mrb[0].mxu0 %v204
    %v330 = vpop.f32.mrb[0].mxu0
    %v331 = vadd.f32 0.0, %v330
    %v332 = vpop.f32.mrb[0].mxu0
    %v333 = vpop.f32.mrb[0].mxu0
    %v334 = vadd.f32 0.0, %v333
    %v335 = vpop.f32.mrb[0].mxu0
    %336 = vmatprep.mubr.bf16.mxu0 0
    %337 = vmatmul.mubr.bf16.gmra.mrb[0].mxu0 %v205
    %v338 = vpop.f32.mrb[0].mxu0
    %v339 = vadd.f32 0.0, %v338
    %v340 = vpop.f32.mrb[0].mxu0
    %v341 = vpop.f32.mrb[0].mxu0
    %v342 = vadd.f32 0.0, %v341
    %v343 = vpop.f32.mrb[0].mxu0
    %344 = vmatprep.mubr.bf16.mxu0 0
    %345 = vmatmul.mubr.bf16.gmra.mrb[0].mxu0 %v206
    %v346 = vpop.f32.mrb[0].mxu0
    %v347 = vadd.f32 0.0, %v346
    %v348 = vpop.f32.mrb[0].mxu0
    %v349 = vpop.f32.mrb[0].mxu0
    %v350 = vadd.f32 0.0, %v349
    %v351 = vpop.f32.mrb[0].mxu0
    %352 = vmatprep.mubr.bf16.mxu0 0
    %353 = vmatmul.mubr.bf16.gmra.mrb[0].mxu0 %v207
    %v354 = vpop.f32.mrb[0].mxu0
    %v355 = vadd.f32 0.0, %v354
    %v356 = vpop.f32.mrb[0].mxu0
    %v357 = vpop.f32.mrb[0].mxu0
    %v358 = vadd.f32 0.0, %v357
    %v359 = vpop.f32.mrb[0].mxu0
    %360 = vdwg.mxu0
    %v361 = vmax.f32 %v299, 0.0
    %v362 = vmax.f32 %v302, 0.0
    %v363 = vmax.f32 %v307, 0.0
    %v364 = vmax.f32 %v310, 0.0
    %v365 = vmax.f32 %v315, 0.0
    %v366 = vmax.f32 %v318, 0.0
    %v367 = vmax.f32 %v323, 0.0
    %v368 = vmax.f32 %v326, 0.0
    %v369 = vmax.f32 %v331, 0.0
    %v370 = vmax.f32 %v334, 0.0
    %v371 = vmax.f32 %v339, 0.0
    %v372 = vmax.f32 %v342, 0.0
    %v373 = vmax.f32 %v347, 0.0
    %v374 = vmax.f32 %v350, 0.0
    %v375 = vmax.f32 %v355, 0.0
    %v376 = vmax.f32 %v358, 0.0
    %v377 = vpack.c.bf16 %v362, %v361
    %v378 = vpack.c.bf16 %v364, %v363
    %v379 = vpack.c.bf16 %v366, %v365
    %v380 = vpack.c.bf16 %v368, %v367
    %v381 = vpack.c.bf16 %v370, %v369
    %v382 = vpack.c.bf16 %v372, %v371
    %v383 = vpack.c.bf16 %v374, %v373
    %v384 = vpack.c.bf16 %v376, %v375
    %v385 = vld [vmem:[%s2] sm:$0xff]
    %v386 = vld [vmem:[%s2 + $0x8] sm:$0xff]
    %v387 = vld [vmem:[%s2 + $0x10] sm:$0xff]
    %v388 = vld [vmem:[%s2 + $0x18] sm:$0xff]
    %v389 = vld [vmem:[%s2 + $0x20] sm:$0xff]
    %v390 = vld [vmem:[%s2 + $0x28] sm:$0xff]
    %v391 = vld [vmem:[%s2 + $0x30] sm:$0xff]
    %v392 = vld [vmem:[%s2 + $0x38] sm:$0xff]
    %v393 = vld [vmem:[%s2 + $0x40] sm:$0xff]
    %v394 = vld [vmem:[%s2 + $0x48] sm:$0xff]
    %v395 = vld [vmem:[%s2 + $0x50] sm:$0xff]
    %v396 = vld [vmem:[%s2 + $0x58] sm:$0xff]
    %v397 = vld [vmem:[%s2 + $0x60] sm:$0xff]
    %v398 = vld [vmem:[%s2 + $0x68] sm:$0xff]
    %v399 = vld [vmem:[%s2 + $0x70] sm:$0xff]
    %v400 = vld [vmem:[%s2 + $0x78] sm:$0xff]
    %v401 = vld [vmem:[%s2 + $0x80] sm:$0xff]
    %v402 = vld [vmem:[%s2 + $0x88] sm:$0xff]
    %v403 = vld [vmem:[%s2 + $0x90] sm:$0xff]
    %v404 = vld [vmem:[%s2 + $0x98] sm:$0xff]
    %v405 = vld [vmem:[%s2 + $0xa0] sm:$0xff]
    %v406 = vld [vmem:[%s2 + $0xa8] sm:$0xff]
    %v407 = vld [vmem:[%s2 + $0xb0] sm:$0xff]
    %v408 = vld [vmem:[%s2 + $0xb8] sm:$0xff]
    %v409 = vld [vmem:[%s2 + $0xc0] sm:$0xff]
    %v410 = vld [vmem:[%s2 + $0xc8] sm:$0xff]
    %v411 = vld [vmem:[%s2 + $0xd0] sm:$0xff]
    %v412 = vld [vmem:[%s2 + $0xd8] sm:$0xff]
    %v413 = vld [vmem:[%s2 + $0xe0] sm:$0xff]
    %v414 = vld [vmem:[%s2 + $0xe8] sm:$0xff]
    %v415 = vld [vmem:[%s2 + $0xf0] sm:$0xff]
    %v416 = vld [vmem:[%s2 + $0xf8] sm:$0xff]
    %v417 = vld [vmem:[%s2 + $0x100] sm:$0xff]
    %v418 = vld [vmem:[%s2 + $0x108] sm:$0xff]
    %v419 = vld [vmem:[%s2 + $0x110] sm:$0xff]
    %v420 = vld [vmem:[%s2 + $0x118] sm:$0xff]
    %v421 = vld [vmem:[%s2 + $0x120] sm:$0xff]
    %v422 = vld [vmem:[%s2 + $0x128] sm:$0xff]
    %v423 = vld [vmem:[%s2 + $0x130] sm:$0xff]
    %v424 = vld [vmem:[%s2 + $0x138] sm:$0xff]
    %v425 = vld [vmem:[%s2 + $0x140] sm:$0xff]
    %v426 = vld [vmem:[%s2 + $0x148] sm:$0xff]
    %v427 = vld [vmem:[%s2 + $0x150] sm:$0xff]
    %v428 = vld [vmem:[%s2 + $0x158] sm:$0xff]
    %v429 = vld [vmem:[%s2 + $0x160] sm:$0xff]
    %v430 = vld [vmem:[%s2 + $0x168] sm:$0xff]
    %v431 = vld [vmem:[%s2 + $0x170] sm:$0xff]
    %v432 = vld [vmem:[%s2 + $0x178] sm:$0xff]
    %v433 = vld [vmem:[%s2 + $0x180] sm:$0xff]
    %v434 = vld [vmem:[%s2 + $0x188] sm:$0xff]
    %v435 = vld [vmem:[%s2 + $0x190] sm:$0xff]
    %v436 = vld [vmem:[%s2 + $0x198] sm:$0xff]
    %v437 = vld [vmem:[%s2 + $0x1a0] sm:$0xff]
    %v438 = vld [vmem:[%s2 + $0x1a8] sm:$0xff]
    %v439 = vld [vmem:[%s2 + $0x1b0] sm:$0xff]
    %v440 = vld [vmem:[%s2 + $0x1b8] sm:$0xff]
    %v441 = vld [vmem:[%s2 + $0x1c0] sm:$0xff]
    %v442 = vld [vmem:[%s2 + $0x1c8] sm:$0xff]
    %v443 = vld [vmem:[%s2 + $0x1d0] sm:$0xff]
    %v444 = vld [vmem:[%s2 + $0x1d8] sm:$0xff]
    %v445 = vld [vmem:[%s2 + $0x1e0] sm:$0xff]
    %v446 = vld [vmem:[%s2 + $0x1e8] sm:$0xff]
    %v447 = vld [vmem:[%s2 + $0x1f0] sm:$0xff]
    %v448 = vld [vmem:[%s2 + $0x1f8] sm:$0xff]
    %v449 = vld [vmem:[%s2 + $0x200] sm:$0xff]
    %v450 = vld [vmem:[%s2 + $0x208] sm:$0xff]
    %v451 = vld [vmem:[%s2 + $0x210] sm:$0xff]
    %v452 = vld [vmem:[%s2 + $0x218] sm:$0xff]
    %v453 = vld [vmem:[%s2 + $0x220] sm:$0xff]
    %v454 = vld [vmem:[%s2 + $0x228] sm:$0xff]
    %v455 = vld [vmem:[%s2 + $0x230] sm:$0xff]
    %v456 = vld [vmem:[%s2 + $0x238] sm:$0xff]
    %v457 = vld [vmem:[%s2 + $0x240] sm:$0xff]
    %v458 = vld [vmem:[%s2 + $0x248] sm:$0xff]
    %v459 = vld [vmem:[%s2 + $0x250] sm:$0xff]
    %v460 = vld [vmem:[%s2 + $0x258] sm:$0xff]
    %v461 = vld [vmem:[%s2 + $0x260] sm:$0xff]
    %v462 = vld [vmem:[%s2 + $0x268] sm:$0xff]
    %v463 = vld [vmem:[%s2 + $0x270] sm:$0xff]
    %v464 = vld [vmem:[%s2 + $0x278] sm:$0xff]
    %v465 = vld [vmem:[%s2 + $0x280] sm:$0xff]
    %v466 = vld [vmem:[%s2 + $0x288] sm:$0xff]
    %v467 = vld [vmem:[%s2 + $0x290] sm:$0xff]
    %v468 = vld [vmem:[%s2 + $0x298] sm:$0xff]
    %v469 = vld [vmem:[%s2 + $0x2a0] sm:$0xff]
    %v470 = vld [vmem:[%s2 + $0x2a8] sm:$0xff]
    %v471 = vld [vmem:[%s2 + $0x2b0] sm:$0xff]
    %v472 = vld [vmem:[%s2 + $0x2b8] sm:$0xff]
    %v473 = vld [vmem:[%s2 + $0x2c0] sm:$0xff]
    %v474 = vld [vmem:[%s2 + $0x2c8] sm:$0xff]
    %v475 = vld [vmem:[%s2 + $0x2d0] sm:$0xff]
    %v476 = vld [vmem:[%s2 + $0x2d8] sm:$0xff]
    %v477 = vld [vmem:[%s2 + $0x2e0] sm:$0xff]
    %v478 = vld [vmem:[%s2 + $0x2e8] sm:$0xff]
    %v479 = vld [vmem:[%s2 + $0x2f0] sm:$0xff]
    %v480 = vld [vmem:[%s2 + $0x2f8] sm:$0xff]
    %v481 = vld [vmem:[%s2 + $0x300] sm:$0xff]
    %v482 = vld [vmem:[%s2 + $0x308] sm:$0xff]
    %v483 = vld [vmem:[%s2 + $0x310] sm:$0xff]
    %v484 = vld [vmem:[%s2 + $0x318] sm:$0xff]
    %v485 = vld [vmem:[%s2 + $0x320] sm:$0xff]
    %v486 = vld [vmem:[%s2 + $0x328] sm:$0xff]
    %v487 = vld [vmem:[%s2 + $0x330] sm:$0xff]
    %v488 = vld [vmem:[%s2 + $0x338] sm:$0xff]
    %v489 = vld [vmem:[%s2 + $0x340] sm:$0xff]
    %v490 = vld [vmem:[%s2 + $0x348] sm:$0xff]
    %v491 = vld [vmem:[%s2 + $0x350] sm:$0xff]
    %v492 = vld [vmem:[%s2 + $0x358] sm:$0xff]
    %v493 = vld [vmem:[%s2 + $0x360] sm:$0xff]
    %v494 = vld [vmem:[%s2 + $0x368] sm:$0xff]
    %v495 = vld [vmem:[%s2 + $0x370] sm:$0xff]
    %v496 = vld [vmem:[%s2 + $0x378] sm:$0xff]
    %v497 = vld [vmem:[%s2 + $0x380] sm:$0xff]
    %v498 = vld [vmem:[%s2 + $0x388] sm:$0xff]
    %v499 = vld [vmem:[%s2 + $0x390] sm:$0xff]
    %v500 = vld [vmem:[%s2 + $0x398] sm:$0xff]
    %v501 = vld [vmem:[%s2 + $0x3a0] sm:$0xff]
    %v502 = vld [vmem:[%s2 + $0x3a8] sm:$0xff]
    %v503 = vld [vmem:[%s2 + $0x3b0] sm:$0xff]
    %v504 = vld [vmem:[%s2 + $0x3b8] sm:$0xff]
    %v505 = vld [vmem:[%s2 + $0x3c0] sm:$0xff]
    %v506 = vld [vmem:[%s2 + $0x3c8] sm:$0xff]
    %v507 = vld [vmem:[%s2 + $0x3d0] sm:$0xff]
    %v508 = vld [vmem:[%s2 + $0x3d8] sm:$0xff]
    %v509 = vld [vmem:[%s2 + $0x3e0] sm:$0xff]
    %v510 = vld [vmem:[%s2 + $0x3e8] sm:$0xff]
    %v511 = vld [vmem:[%s2 + $0x3f0] sm:$0xff]
    %v512 = vld [vmem:[%s2 + $0x3f8] sm:$0xff]
    %v641 = vunpack.c.l.b16 %v385
    %v642 = vunpack.c.h.b16 %v385
    %v643 = vunpack.c.l.b16 %v386
    %v644 = vunpack.c.h.b16 %v386
    %v645 = vunpack.c.l.b16 %v387
    %v646 = vunpack.c.h.b16 %v387
    %v647 = vunpack.c.l.b16 %v388
    %v648 = vunpack.c.h.b16 %v388
    %v649 = vunpack.c.l.b16 %v389
    %v650 = vunpack.c.h.b16 %v389
    %v651 = vunpack.c.l.b16 %v390
    %v652 = vunpack.c.h.b16 %v390
    %v653 = vunpack.c.l.b16 %v391
    %v654 = vunpack.c.h.b16 %v391
    %v655 = vunpack.c.l.b16 %v392
    %v656 = vunpack.c.h.b16 %v392
    %v657 = vunpack.c.l.b16 %v393
    %v658 = vunpack.c.h.b16 %v393
    %v659 = vunpack.c.l.b16 %v394
    %v660 = vunpack.c.h.b16 %v394
    %v661 = vunpack.c.l.b16 %v395
    %v662 = vunpack.c.h.b16 %v395
    %v663 = vunpack.c.l.b16 %v396
    %v664 = vunpack.c.h.b16 %v396
    %v665 = vunpack.c.l.b16 %v397
    %v666 = vunpack.c.h.b16 %v397
    %v667 = vunpack.c.l.b16 %v398
    %v668 = vunpack.c.h.b16 %v398
    %v669 = vunpack.c.l.b16 %v399
    %v670 = vunpack.c.h.b16 %v399
    %v671 = vunpack.c.l.b16 %v400
    %v672 = vunpack.c.h.b16 %v400
    %v673 = vunpack.c.l.b16 %v401
    %v674 = vunpack.c.h.b16 %v401
    %v675 = vunpack.c.l.b16 %v402
    %v676 = vunpack.c.h.b16 %v402
    %v677 = vunpack.c.l.b16 %v403
    %v678 = vunpack.c.h.b16 %v403
    %v679 = vunpack.c.l.b16 %v404
    %v680 = vunpack.c.h.b16 %v404
    %v681 = vunpack.c.l.b16 %v405
    %v682 = vunpack.c.h.b16 %v405
    %v683 = vunpack.c.l.b16 %v406
    %v684 = vunpack.c.h.b16 %v406
    %v685 = vunpack.c.l.b16 %v407
    %v686 = vunpack.c.h.b16 %v407
    %v687 = vunpack.c.l.b16 %v408
    %v688 = vunpack.c.h.b16 %v408
    %v689 = vunpack.c.l.b16 %v409
    %v690 = vunpack.c.h.b16 %v409
    %v691 = vunpack.c.l.b16 %v410
    %v692 = vunpack.c.h.b16 %v410
    %v693 = vunpack.c.l.b16 %v411
    %v694 = vunpack.c.h.b16 %v411
    %v695 = vunpack.c.l.b16 %v412
    %v696 = vunpack.c.h.b16 %v412
    %v697 = vunpack.c.l.b16 %v413
    %v698 = vunpack.c.h.b16 %v413
    %v699 = vunpack.c.l.b16 %v414
    %v700 = vunpack.c.h.b16 %v414
    %v701 = vunpack.c.l.b16 %v415
    %v702 = vunpack.c.h.b16 %v415
    %v703 = vunpack.c.l.b16 %v416
    %v704 = vunpack.c.h.b16 %v416
    %v705 = vunpack.c.l.b16 %v417
    %v706 = vunpack.c.h.b16 %v417
    %v707 = vunpack.c.l.b16 %v418
    %v708 = vunpack.c.h.b16 %v418
    %v709 = vunpack.c.l.b16 %v419
    %v710 = vunpack.c.h.b16 %v419
    %v711 = vunpack.c.l.b16 %v420
    %v712 = vunpack.c.h.b16 %v420
    %v713 = vunpack.c.l.b16 %v421
    %v714 = vunpack.c.h.b16 %v421
    %v715 = vunpack.c.l.b16 %v422
    %v716 = vunpack.c.h.b16 %v422
    %v717 = vunpack.c.l.b16 %v423
    %v718 = vunpack.c.h.b16 %v423
    %v719 = vunpack.c.l.b16 %v424
    %v720 = vunpack.c.h.b16 %v424
    %v721 = vunpack.c.l.b16 %v425
    %v722 = vunpack.c.h.b16 %v425
    %v723 = vunpack.c.l.b16 %v426
    %v724 = vunpack.c.h.b16 %v426
    %v725 = vunpack.c.l.b16 %v427
    %v726 = vunpack.c.h.b16 %v427
    %v727 = vunpack.c.l.b16 %v428
    %v728 = vunpack.c.h.b16 %v428
    %v729 = vunpack.c.l.b16 %v429
    %v730 = vunpack.c.h.b16 %v429
    %v731 = vunpack.c.l.b16 %v430
    %v732 = vunpack.c.h.b16 %v430
    %v733 = vunpack.c.l.b16 %v431
    %v734 = vunpack.c.h.b16 %v431
    %v735 = vunpack.c.l.b16 %v432
    %v736 = vunpack.c.h.b16 %v432
    %v737 = vunpack.c.l.b16 %v433
    %v738 = vunpack.c.h.b16 %v433
    %v739 = vunpack.c.l.b16 %v434
    %v740 = vunpack.c.h.b16 %v434
    %v741 = vunpack.c.l.b16 %v435
    %v742 = vunpack.c.h.b16 %v435
    %v743 = vunpack.c.l.b16 %v436
    %v744 = vunpack.c.h.b16 %v436
    %v745 = vunpack.c.l.b16 %v437
    %v746 = vunpack.c.h.b16 %v437
    %v747 = vunpack.c.l.b16 %v438
    %v748 = vunpack.c.h.b16 %v438
    %v749 = vunpack.c.l.b16 %v439
    %v750 = vunpack.c.h.b16 %v439
    %v751 = vunpack.c.l.b16 %v440
    %v752 = vunpack.c.h.b16 %v440
    %v753 = vunpack.c.l.b16 %v441
    %v754 = vunpack.c.h.b16 %v441
    %v755 = vunpack.c.l.b16 %v442
    %v756 = vunpack.c.h.b16 %v442
    %v757 = vunpack.c.l.b16 %v443
    %v758 = vunpack.c.h.b16 %v443
    %v759 = vunpack.c.l.b16 %v444
    %v760 = vunpack.c.h.b16 %v444
    %v761 = vunpack.c.l.b16 %v445
    %v762 = vunpack.c.h.b16 %v445
    %v763 = vunpack.c.l.b16 %v446
    %v764 = vunpack.c.h.b16 %v446
    %v765 = vunpack.c.l.b16 %v447
    %v766 = vunpack.c.h.b16 %v447
    %v767 = vunpack.c.l.b16 %v448
    %v768 = vunpack.c.h.b16 %v448
    %v769 = vunpack.c.l.b16 %v449
    %v770 = vunpack.c.h.b16 %v449
    %v771 = vunpack.c.l.b16 %v450
    %v772 = vunpack.c.h.b16 %v450
    %v773 = vunpack.c.l.b16 %v451
    %v774 = vunpack.c.h.b16 %v451
    %v775 = vunpack.c.l.b16 %v452
    %v776 = vunpack.c.h.b16 %v452
    %v777 = vunpack.c.l.b16 %v453
    %v778 = vunpack.c.h.b16 %v453
    %v779 = vunpack.c.l.b16 %v454
    %v780 = vunpack.c.h.b16 %v454
    %v781 = vunpack.c.l.b16 %v455
    %v782 = vunpack.c.h.b16 %v455
    %v783 = vunpack.c.l.b16 %v456
    %v784 = vunpack.c.h.b16 %v456
    %v785 = vunpack.c.l.b16 %v457
    %v786 = vunpack.c.h.b16 %v457
    %v787 = vunpack.c.l.b16 %v458
    %v788 = vunpack.c.h.b16 %v458
    %v789 = vunpack.c.l.b16 %v459
    %v790 = vunpack.c.h.b16 %v459
    %v791 = vunpack.c.l.b16 %v460
    %v792 = vunpack.c.h.b16 %v460
    %v793 = vunpack.c.l.b16 %v461
    %v794 = vunpack.c.h.b16 %v461
    %v795 = vunpack.c.l.b16 %v462
    %v796 = vunpack.c.h.b16 %v462
    %v797 = vunpack.c.l.b16 %v463
    %v798 = vunpack.c.h.b16 %v463
    %v799 = vunpack.c.l.b16 %v464
    %v800 = vunpack.c.h.b16 %v464
    %v801 = vunpack.c.l.b16 %v465
    %v802 = vunpack.c.h.b16 %v465
    %v803 = vunpack.c.l.b16 %v466
    %v804 = vunpack.c.h.b16 %v466
    %v805 = vunpack.c.l.b16 %v467
    %v806 = vunpack.c.h.b16 %v467
    %v807 = vunpack.c.l.b16 %v468
    %v808 = vunpack.c.h.b16 %v468
    %v809 = vunpack.c.l.b16 %v469
    %v810 = vunpack.c.h.b16 %v469
    %v811 = vunpack.c.l.b16 %v470
    %v812 = vunpack.c.h.b16 %v470
    %v813 = vunpack.c.l.b16 %v471
    %v814 = vunpack.c.h.b16 %v471
    %v815 = vunpack.c.l.b16 %v472
    %v816 = vunpack.c.h.b16 %v472
    %v817 = vunpack.c.l.b16 %v473
    %v818 = vunpack.c.h.b16 %v473
    %v819 = vunpack.c.l.b16 %v474
    %v820 = vunpack.c.h.b16 %v474
    %v821 = vunpack.c.l.b16 %v475
    %v822 = vunpack.c.h.b16 %v475
    %v823 = vunpack.c.l.b16 %v476
    %v824 = vunpack.c.h.b16 %v476
    %v825 = vunpack.c.l.b16 %v477
    %v826 = vunpack.c.h.b16 %v477
    %v827 = vunpack.c.l.b16 %v478
    %v828 = vunpack.c.h.b16 %v478
    %v829 = vunpack.c.l.b16 %v479
    %v830 = vunpack.c.h.b16 %v479
    %v831 = vunpack.c.l.b16 %v480
    %v832 = vunpack.c.h.b16 %v480
    %v833 = vunpack.c.l.b16 %v481
    %v834 = vunpack.c.h.b16 %v481
    %v835 = vunpack.c.l.b16 %v482
    %v836 = vunpack.c.h.b16 %v482
    %v837 = vunpack.c.l.b16 %v483
    %v838 = vunpack.c.h.b16 %v483
    %v839 = vunpack.c.l.b16 %v484
    %v840 = vunpack.c.h.b16 %v484
    %v841 = vunpack.c.l.b16 %v485
    %v842 = vunpack.c.h.b16 %v485
    %v843 = vunpack.c.l.b16 %v486
    %v844 = vunpack.c.h.b16 %v486
    %v845 = vunpack.c.l.b16 %v487
    %v846 = vunpack.c.h.b16 %v487
    %v847 = vunpack.c.l.b16 %v488
    %v848 = vunpack.c.h.b16 %v488
    %v849 = vunpack.c.l.b16 %v489
    %v850 = vunpack.c.h.b16 %v489
    %v851 = vunpack.c.l.b16 %v490
    %v852 = vunpack.c.h.b16 %v490
    %v853 = vunpack.c.l.b16 %v491
    %v854 = vunpack.c.h.b16 %v491
    %v855 = vunpack.c.l.b16 %v492
    %v856 = vunpack.c.h.b16 %v492
    %v857 = vunpack.c.l.b16 %v493
    %v858 = vunpack.c.h.b16 %v493
    %v859 = vunpack.c.l.b16 %v494
    %v860 = vunpack.c.h.b16 %v494
    %v861 = vunpack.c.l.b16 %v495
    %v862 = vunpack.c.h.b16 %v495
    %v863 = vunpack.c.l.b16 %v496
    %v864 = vunpack.c.h.b16 %v496
    %v865 = vunpack.c.l.b16 %v497
    %v866 = vunpack.c.h.b16 %v497
    %v867 = vunpack.c.l.b16 %v498
    %v868 = vunpack.c.h.b16 %v498
    %v869 = vunpack.c.l.b16 %v499
    %v870 = vunpack.c.h.b16 %v499
    %v871 = vunpack.c.l.b16 %v500
    %v872 = vunpack.c.h.b16 %v500
    %v873 = vunpack.c.l.b16 %v501
    %v874 = vunpack.c.h.b16 %v501
    %v875 = vunpack.c.l.b16 %v502
    %v876 = vunpack.c.h.b16 %v502
    %v877 = vunpack.c.l.b16 %v503
    %v878 = vunpack.c.h.b16 %v503
    %v879 = vunpack.c.l.b16 %v504
    %v880 = vunpack.c.h.b16 %v504
    %v881 = vunpack.c.l.b16 %v505
    %v882 = vunpack.c.h.b16 %v505
    %v883 = vunpack.c.l.b16 %v506
    %v884 = vunpack.c.h.b16 %v506
    %v885 = vunpack.c.l.b16 %v507
    %v886 = vunpack.c.h.b16 %v507
    %v887 = vunpack.c.l.b16 %v508
    %v888 = vunpack.c.h.b16 %v508
    %v889 = vunpack.c.l.b16 %v509
    %v890 = vunpack.c.h.b16 %v509
    %v891 = vunpack.c.l.b16 %v510
    %v892 = vunpack.c.h.b16 %v510
    %v893 = vunpack.c.l.b16 %v511
    %v894 = vunpack.c.h.b16 %v511
    %v895 = vunpack.c.l.b16 %v512
    %v896 = vunpack.c.h.b16 %v512
    %v897 = vpack.c.b16 %v657, %v641
    %v898 = vpack.c.b16 %v658, %v642
    %v899 = vpack.c.b16 %v659, %v643
    %v900 = vpack.c.b16 %v660, %v644
    %v901 = vpack.c.b16 %v661, %v645
    %v902 = vpack.c.b16 %v662, %v646
    %v903 = vpack.c.b16 %v663, %v647
    %v904 = vpack.c.b16 %v664, %v648
    %v905 = vpack.c.b16 %v665, %v649
    %v906 = vpack.c.b16 %v666, %v650
    %v907 = vpack.c.b16 %v667, %v651
    %v908 = vpack.c.b16 %v668, %v652
    %v909 = vpack.c.b16 %v669, %v653
    %v910 = vpack.c.b16 %v670, %v654
    %v911 = vpack.c.b16 %v671, %v655
    %v912 = vpack.c.b16 %v672, %v656
    %v913 = vpack.c.b16 %v689, %v673
    %v914 = vpack.c.b16 %v690, %v674
    %v915 = vpack.c.b16 %v691, %v675
    %v916 = vpack.c.b16 %v692, %v676
    %v917 = vpack.c.b16 %v693, %v677
    %v918 = vpack.c.b16 %v694, %v678
    %v919 = vpack.c.b16 %v695, %v679
    %v920 = vpack.c.b16 %v696, %v680
    %v921 = vpack.c.b16 %v697, %v681
    %v922 = vpack.c.b16 %v698, %v682
    %v923 = vpack.c.b16 %v699, %v683
    %v924 = vpack.c.b16 %v700, %v684
    %v925 = vpack.c.b16 %v701, %v685
    %v926 = vpack.c.b16 %v702, %v686
    %v927 = vpack.c.b16 %v703, %v687
    %v928 = vpack.c.b16 %v704, %v688
    %v929 = vpack.c.b16 %v721, %v705
    %v930 = vpack.c.b16 %v722, %v706
    %v931 = vpack.c.b16 %v723, %v707
    %v932 = vpack.c.b16 %v724, %v708
    %v933 = vpack.c.b16 %v725, %v709
    %v934 = vpack.c.b16 %v726, %v710
    %v935 = vpack.c.b16 %v727, %v711
    %v936 = vpack.c.b16 %v728, %v712
    %v937 = vpack.c.b16 %v729, %v713
    %v938 = vpack.c.b16 %v730, %v714
    %v939 = vpack.c.b16 %v731, %v715
    %v940 = vpack.c.b16 %v732, %v716
    %v941 = vpack.c.b16 %v733, %v717
    %v942 = vpack.c.b16 %v734, %v718
    %v943 = vpack.c.b16 %v735, %v719
    %v944 = vpack.c.b16 %v736, %v720
    %v945 = vpack.c.b16 %v753, %v737
    %v946 = vpack.c.b16 %v754, %v738
    %v947 = vpack.c.b16 %v755, %v739
    %v948 = vpack.c.b16 %v756, %v740
    %v949 = vpack.c.b16 %v757, %v741
    %v950 = vpack.c.b16 %v758, %v742
    %v951 = vpack.c.b16 %v759, %v743
    %v952 = vpack.c.b16 %v760, %v744
    %v953 = vpack.c.b16 %v761, %v745
    %v954 = vpack.c.b16 %v762, %v746
    %v955 = vpack.c.b16 %v763, %v747
    %v956 = vpack.c.b16 %v764, %v748
    %v957 = vpack.c.b16 %v765, %v749
    %v958 = vpack.c.b16 %v766, %v750
    %v959 = vpack.c.b16 %v767, %v751
    %v960 = vpack.c.b16 %v768, %v752
    %v961 = vpack.c.b16 %v785, %v769
    %v962 = vpack.c.b16 %v786, %v770
    %v963 = vpack.c.b16 %v787, %v771
    %v964 = vpack.c.b16 %v788, %v772
    %v965 = vpack.c.b16 %v789, %v773
    %v966 = vpack.c.b16 %v790, %v774
    %v967 = vpack.c.b16 %v791, %v775
    %v968 = vpack.c.b16 %v792, %v776
    %v969 = vpack.c.b16 %v793, %v777
    %v970 = vpack.c.b16 %v794, %v778
    %v971 = vpack.c.b16 %v795, %v779
    %v972 = vpack.c.b16 %v796, %v780
    %v973 = vpack.c.b16 %v797, %v781
    %v974 = vpack.c.b16 %v798, %v782
    %v975 = vpack.c.b16 %v799, %v783
    %v976 = vpack.c.b16 %v800, %v784
    %v977 = vpack.c.b16 %v817, %v801
    %v978 = vpack.c.b16 %v818, %v802
    %v979 = vpack.c.b16 %v819, %v803
    %v980 = vpack.c.b16 %v820, %v804
    %v981 = vpack.c.b16 %v821, %v805
    %v982 = vpack.c.b16 %v822, %v806
    %v983 = vpack.c.b16 %v823, %v807
    %v984 = vpack.c.b16 %v824, %v808
    %v985 = vpack.c.b16 %v825, %v809
    %v986 = vpack.c.b16 %v826, %v810
    %v987 = vpack.c.b16 %v827, %v811
    %v988 = vpack.c.b16 %v828, %v812
    %v989 = vpack.c.b16 %v829, %v813
    %v990 = vpack.c.b16 %v830, %v814
    %v991 = vpack.c.b16 %v831, %v815
    %v992 = vpack.c.b16 %v832, %v816
    %v993 = vpack.c.b16 %v849, %v833
    %v994 = vpack.c.b16 %v850, %v834
    %v995 = vpack.c.b16 %v851, %v835
    %v996 = vpack.c.b16 %v852, %v836
    %v997 = vpack.c.b16 %v853, %v837
    %v998 = vpack.c.b16 %v854, %v838
    %v999 = vpack.c.b16 %v855, %v839
    %v1000 = vpack.c.b16 %v856, %v840
    %v1001 = vpack.c.b16 %v857, %v841
    %v1002 = vpack.c.b16 %v858, %v842
    %v1003 = vpack.c.b16 %v859, %v843
    %v1004 = vpack.c.b16 %v860, %v844
    %v1005 = vpack.c.b16 %v861, %v845
    %v1006 = vpack.c.b16 %v862, %v846
    %v1007 = vpack.c.b16 %v863, %v847
    %v1008 = vpack.c.b16 %v864, %v848
    %v1009 = vpack.c.b16 %v881, %v865
    %v1010 = vpack.c.b16 %v882, %v866
    %v1011 = vpack.c.b16 %v883, %v867
    %v1012 = vpack.c.b16 %v884, %v868
    %v1013 = vpack.c.b16 %v885, %v869
    %v1014 = vpack.c.b16 %v886, %v870
    %v1015 = vpack.c.b16 %v887, %v871
    %v1016 = vpack.c.b16 %v888, %v872
    %v1017 = vpack.c.b16 %v889, %v873
    %v1018 = vpack.c.b16 %v890, %v874
    %v1019 = vpack.c.b16 %v891, %v875
    %v1020 = vpack.c.b16 %v892, %v876
    %v1021 = vpack.c.b16 %v893, %v877
    %v1022 = vpack.c.b16 %v894, %v878
    %v1023 = vpack.c.b16 %v895, %v879
    %v1024 = vpack.c.b16 %v896, %v880
    %1153 = vmatprep.subr.bf16.mxu0 %v898
    %1154 = vmatpush1.bf16.msra.mxu0 %v897
    %1155 = vmatprep.subr.bf16.mxu0 %v914
    %1156 = vmatpush1.bf16.msra.mxu0 %v913
    %1157 = vmatprep.subr.bf16.mxu0 %v930
    %1158 = vmatpush1.bf16.msra.mxu0 %v929
    %1159 = vmatprep.subr.bf16.mxu0 %v946
    %1160 = vmatpush1.bf16.msra.mxu0 %v945
    %1161 = vmatprep.subr.bf16.mxu0 %v962
    %1162 = vmatpush1.bf16.msra.mxu0 %v961
    %1163 = vmatprep.subr.bf16.mxu0 %v978
    %1164 = vmatpush1.bf16.msra.mxu0 %v977
    %1165 = vmatprep.subr.bf16.mxu0 %v994
    %1166 = vmatpush1.bf16.msra.mxu0 %v993
    %1167 = vmatprep.subr.bf16.mxu0 %v1010
    %1168 = vmatpush1.bf16.msra.mxu0 %v1009
    %1169 = vmatprep.subr.bf16.mxu0 0
    %1170 = vmatpush1.bf16.msra.mxu0 0
    %1171 = vmatprep.subr.bf16.mxu0 0
    %1172 = vmatpush1.bf16.msra.mxu0 0
    %1173 = vmatprep.subr.bf16.mxu0 0
    %1174 = vmatpush1.bf16.msra.mxu0 0
    %1175 = vmatprep.subr.bf16.mxu0 0
    %1176 = vmatpush1.bf16.msra.mxu0 0
    %1177 = vmatprep.subr.bf16.mxu0 0
    %1178 = vmatpush1.bf16.msra.mxu0 0
    %1179 = vmatprep.subr.bf16.mxu0 0
    %1180 = vmatpush1.bf16.msra.mxu0 0
    %1181 = vmatprep.subr.bf16.mxu0 0
    %1182 = vmatpush1.bf16.msra.mxu0 0
    %1183 = vmatprep.subr.bf16.mxu0 0
    %1184 = vmatpush1.bf16.msra.mxu0 0
    %1185 = vmatprep.mubr.bf16.mxu0 0
    %1186 = vmatmul.mubr.bf16.gmra.mrb[0].mxu0 %v377
    %v1187 = vpop.f32.mrb[0].mxu0
    %v1188 = vadd.f32 0.0, %v1187
    %v1189 = vpop.f32.mrb[0].mxu0
    %v1190 = vadd.f32 0.0, %v1189
    %v1191 = vpop.f32.mrb[0].mxu0
    %v1192 = vadd.f32 0.0, %v1191
    %v1193 = vpop.f32.mrb[0].mxu0
    %v1194 = vadd.f32 0.0, %v1193
    %1195 = vmatprep.mubr.bf16.mxu0 0
    %1196 = vmatmul.mubr.bf16.gmra.mrb[0].mxu0 %v378
    %v1197 = vpop.f32.mrb[0].mxu0
    %v1198 = vadd.f32 0.0, %v1197
    %v1199 = vpop.f32.mrb[0].mxu0
    %v1200 = vadd.f32 0.0, %v1199
    %v1201 = vpop.f32.mrb[0].mxu0
    %v1202 = vadd.f32 0.0, %v1201
    %v1203 = vpop.f32.mrb[0].mxu0
    %v1204 = vadd.f32 0.0, %v1203
    %1205 = vmatprep.mubr.bf16.mxu0 0
    %1206 = vmatmul.mubr.bf16.gmra.mrb[0].mxu0 %v379
    %v1207 = vpop.f32.mrb[0].mxu0
    %v1208 = vadd.f32 0.0, %v1207
    %v1209 = vpop.f32.mrb[0].mxu0
    %v1210 = vadd.f32 0.0, %v1209
    %v1211 = vpop.f32.mrb[0].mxu0
    %v1212 = vadd.f32 0.0, %v1211
    %v1213 = vpop.f32.mrb[0].mxu0
    %v1214 = vadd.f32 0.0, %v1213
    %1215 = vmatprep.mubr.bf16.mxu0 0
    %1216 = vmatmul.mubr.bf16.gmra.mrb[0].mxu0 %v380
    %v1217 = vpop.f32.mrb[0].mxu0
    %v1218 = vadd.f32 0.0, %v1217
    %v1219 = vpop.f32.mrb[0].mxu0
    %v1220 = vadd.f32 0.0, %v1219
    %v1221 = vpop.f32.mrb[0].mxu0
    %v1222 = vadd.f32 0.0, %v1221
    %v1223 = vpop.f32.mrb[0].mxu0
    %v1224 = vadd.f32 0.0, %v1223
    %1225 = vmatprep.mubr.bf16.mxu0 0
    %1226 = vmatmul.mubr.bf16.gmra.mrb[0].mxu0 %v381
    %v1227 = vpop.f32.mrb[0].mxu0
    %v1228 = vadd.f32 0.0, %v1227
    %v1229 = vpop.f32.mrb[0].mxu0
    %v1230 = vadd.f32 0.0, %v1229
    %v1231 = vpop.f32.mrb[0].mxu0
    %v1232 = vadd.f32 0.0, %v1231
    %v1233 = vpop.f32.mrb[0].mxu0
    %v1234 = vadd.f32 0.0, %v1233
    %1235 = vmatprep.mubr.bf16.mxu0 0
    %1236 = vmatmul.mubr.bf16.gmra.mrb[0].mxu0 %v382
    %v1237 = vpop.f32.mrb[0].mxu0
    %v1238 = vadd.f32 0.0, %v1237
    %v1239 = vpop.f32.mrb[0].mxu0
    %v1240 = vadd.f32 0.0, %v1239
    %v1241 = vpop.f32.mrb[0].mxu0
    %v1242 = vadd.f32 0.0, %v1241
    %v1243 = vpop.f32.mrb[0].mxu0
    %v1244 = vadd.f32 0.0, %v1243
    %1245 = vmatprep.mubr.bf16.mxu0 0
    %1246 = vmatmul.mubr.bf16.gmra.mrb[0].mxu0 %v383
    %v1247 = vpop.f32.mrb[0].mxu0
    %v1248 = vadd.f32 0.0, %v1247
    %v1249 = vpop.f32.mrb[0].mxu0
    %v1250 = vadd.f32 0.0, %v1249
    %v1251 = vpop.f32.mrb[0].mxu0
    %v1252 = vadd.f32 0.0, %v1251
    %v1253 = vpop.f32.mrb[0].mxu0
    %v1254 = vadd.f32 0.0, %v1253
    %1255 = vmatprep.mubr.bf16.mxu0 0
    %1256 = vmatmul.mubr.bf16.gmra.mrb[0].mxu0 %v384
    %v1257 = vpop.f32.mrb[0].mxu0
    %v1258 = vadd.f32 0.0, %v1257
    %v1259 = vpop.f32.mrb[0].mxu0
    %v1260 = vadd.f32 0.0, %v1259
    %v1261 = vpop.f32.mrb[0].mxu0
    %v1262 = vadd.f32 0.0, %v1261
    %v1263 = vpop.f32.mrb[0].mxu0
    %v1264 = vadd.f32 0.0, %v1263
    %1265 = vdwg.mxu0
    %1266 = vmatprep.subr.bf16.mxu0 %v900
    %1267 = vmatpush1.bf16.msra.mxu0 %v899
    %1268 = vmatprep.subr.bf16.mxu0 %v916
    %1269 = vmatpush1.bf16.msra.mxu0 %v915
    %1270 = vmatprep.subr.bf16.mxu0 %v932
    %1271 = vmatpush1.bf16.msra.mxu0 %v931
    %1272 = vmatprep.subr.bf16.mxu0 %v948
    %1273 = vmatpush1.bf16.msra.mxu0 %v947
    %1274 = vmatprep.subr.bf16.mxu0 %v964
    %1275 = vmatpush1.bf16.msra.mxu0 %v963
    %1276 = vmatprep.subr.bf16.mxu0 %v980
    %1277 = vmatpush1.bf16.msra.mxu0 %v979
    %1278 = vmatprep.subr.bf16.mxu0 %v996
    %1279 = vmatpush1.bf16.msra.mxu0 %v995
    %1280 = vmatprep.subr.bf16.mxu0 %v1012
    %1281 = vmatpush1.bf16.msra.mxu0 %v1011
    %1282 = vmatprep.subr.bf16.mxu0 0
    %1283 = vmatpush1.bf16.msra.mxu0 0
    %1284 = vmatprep.subr.bf16.mxu0 0
    %1285 = vmatpush1.bf16.msra.mxu0 0
    %1286 = vmatprep.subr.bf16.mxu0 0
    %1287 = vmatpush1.bf16.msra.mxu0 0
    %1288 = vmatprep.subr.bf16.mxu0 0
    %1289 = vmatpush1.bf16.msra.mxu0 0
    %1290 = vmatprep.subr.bf16.mxu0 0
    %1291 = vmatpush1.bf16.msra.mxu0 0
    %1292 = vmatprep.subr.bf16.mxu0 0
    %1293 = vmatpush1.bf16.msra.mxu0 0
    %1294 = vmatprep.subr.bf16.mxu0 0
    %1295 = vmatpush1.bf16.msra.mxu0 0
    %1296 = vmatprep.subr.bf16.mxu0 0
    %1297 = vmatpush1.bf16.msra.mxu0 0
    %1298 = vmatprep.mubr.bf16.mxu0 0
    %1299 = vmatmul.mubr.bf16.gmra.mrb[0].mxu0 %v377
    %v1300 = vpop.f32.mrb[0].mxu0
    %v1301 = vadd.f32 0.0, %v1300
    %v1302 = vpop.f32.mrb[0].mxu0
    %v1303 = vadd.f32 0.0, %v1302
    %v1304 = vpop.f32.mrb[0].mxu0
    %v1305 = vadd.f32 0.0, %v1304
    %v1306 = vpop.f32.mrb[0].mxu0
    %v1307 = vadd.f32 0.0, %v1306
    %1308 = vmatprep.mubr.bf16.mxu0 0
    %1309 = vmatmul.mubr.bf16.gmra.mrb[0].mxu0 %v378
    %v1310 = vpop.f32.mrb[0].mxu0
    %v1311 = vadd.f32 0.0, %v1310
    %v1312 = vpop.f32.mrb[0].mxu0
    %v1313 = vadd.f32 0.0, %v1312
    %v1314 = vpop.f32.mrb[0].mxu0
    %v1315 = vadd.f32 0.0, %v1314
    %v1316 = vpop.f32.mrb[0].mxu0
    %v1317 = vadd.f32 0.0, %v1316
    %1318 = vmatprep.mubr.bf16.mxu0 0
    %1319 = vmatmul.mubr.bf16.gmra.mrb[0].mxu0 %v379
    %v1320 = vpop.f32.mrb[0].mxu0
    %v1321 = vadd.f32 0.0, %v1320
    %v1322 = vpop.f32.mrb[0].mxu0
    %v1323 = vadd.f32 0.0, %v1322
    %v1324 = vpop.f32.mrb[0].mxu0
    %v1325 = vadd.f32 0.0, %v1324
    %v1326 = vpop.f32.mrb[0].mxu0
    %v1327 = vadd.f32 0.0, %v1326
    %1328 = vmatprep.mubr.bf16.mxu0 0
    %1329 = vmatmul.mubr.bf16.gmra.mrb[0].mxu0 %v380
    %v1330 = vpop.f32.mrb[0].mxu0
    %v1331 = vadd.f32 0.0, %v1330
    %v1332 = vpop.f32.mrb[0].mxu0
    %v1333 = vadd.f32 0.0, %v1332
    %v1334 = vpop.f32.mrb[0].mxu0
    %v1335 = vadd.f32 0.0, %v1334
    %v1336 = vpop.f32.mrb[0].mxu0
    %v1337 = vadd.f32 0.0, %v1336
    %1338 = vmatprep.mubr.bf16.mxu0 0
    %1339 = vmatmul.mubr.bf16.gmra.mrb[0].mxu0 %v381
    %v1340 = vpop.f32.mrb[0].mxu0
    %v1341 = vadd.f32 0.0, %v1340
    %v1342 = vpop.f32.mrb[0].mxu0
    %v1343 = vadd.f32 0.0, %v1342
    %v1344 = vpop.f32.mrb[0].mxu0
    %v1345 = vadd.f32 0.0, %v1344
    %v1346 = vpop.f32.mrb[0].mxu0
    %v1347 = vadd.f32 0.0, %v1346
    %1348 = vmatprep.mubr.bf16.mxu0 0
    %1349 = vmatmul.mubr.bf16.gmra.mrb[0].mxu0 %v382
    %v1350 = vpop.f32.mrb[0].mxu0
    %v1351 = vadd.f32 0.0, %v1350
    %v1352 = vpop.f32.mrb[0].mxu0
    %v1353 = vadd.f32 0.0, %v1352
    %v1354 = vpop.f32.mrb[0].mxu0
    %v1355 = vadd.f32 0.0, %v1354
    %v1356 = vpop.f32.mrb[0].mxu0
    %v1357 = vadd.f32 0.0, %v1356
    %1358 = vmatprep.mubr.bf16.mxu0 0
    %1359 = vmatmul.mubr.bf16.gmra.mrb[0].mxu0 %v383
    %v1360 = vpop.f32.mrb[0].mxu0
    %v1361 = vadd.f32 0.0, %v1360
    %v1362 = vpop.f32.mrb[0].mxu0
    %v1363 = vadd.f32 0.0, %v1362
    %v1364 = vpop.f32.mrb[0].mxu0
    %v1365 = vadd.f32 0.0, %v1364
    %v1366 = vpop.f32.mrb[0].mxu0
    %v1367 = vadd.f32 0.0, %v1366
    %1368 = vmatprep.mubr.bf16.mxu0 0
    %1369 = vmatmul.mubr.bf16.gmra.mrb[0].mxu0 %v384
    %v1370 = vpop.f32.mrb[0].mxu0
    %v1371 = vadd.f32 0.0, %v1370
    %v1372 = vpop.f32.mrb[0].mxu0
    %v1373 = vadd.f32 0.0, %v1372
    %v1374 = vpop.f32.mrb[0].mxu0
    %v1375 = vadd.f32 0.0, %v1374
    %v1376 = vpop.f32.mrb[0].mxu0
    %v1377 = vadd.f32 0.0, %v1376
    %1378 = vdwg.mxu0
    %1379 = vmatprep.subr.bf16.mxu0 %v902
    %1380 = vmatpush1.bf16.msra.mxu0 %v901
    %1381 = vmatprep.subr.bf16.mxu0 %v918
    %1382 = vmatpush1.bf16.msra.mxu0 %v917
    %1383 = vmatprep.subr.bf16.mxu0 %v934
    %1384 = vmatpush1.bf16.msra.mxu0 %v933
    %1385 = vmatprep.subr.bf16.mxu0 %v950
    %1386 = vmatpush1.bf16.msra.mxu0 %v949
    %1387 = vmatprep.subr.bf16.mxu0 %v966
    %1388 = vmatpush1.bf16.msra.mxu0 %v965
    %1389 = vmatprep.subr.bf16.mxu0 %v982
    %1390 = vmatpush1.bf16.msra.mxu0 %v981
    %1391 = vmatprep.subr.bf16.mxu0 %v998
    %1392 = vmatpush1.bf16.msra.mxu0 %v997
    %1393 = vmatprep.subr.bf16.mxu0 %v1014
    %1394 = vmatpush1.bf16.msra.mxu0 %v1013
    %1395 = vmatprep.subr.bf16.mxu0 0
    %1396 = vmatpush1.bf16.msra.mxu0 0
    %1397 = vmatprep.subr.bf16.mxu0 0
    %1398 = vmatpush1.bf16.msra.mxu0 0
    %1399 = vmatprep.subr.bf16.mxu0 0
    %1400 = vmatpush1.bf16.msra.mxu0 0
    %1401 = vmatprep.subr.bf16.mxu0 0
    %1402 = vmatpush1.bf16.msra.mxu0 0
    %1403 = vmatprep.subr.bf16.mxu0 0
    %1404 = vmatpush1.bf16.msra.mxu0 0
    %1405 = vmatprep.subr.bf16.mxu0 0
    %1406 = vmatpush1.bf16.msra.mxu0 0
    %1407 = vmatprep.subr.bf16.mxu0 0
    %1408 = vmatpush1.bf16.msra.mxu0 0
    %1409 = vmatprep.subr.bf16.mxu0 0
    %1410 = vmatpush1.bf16.msra.mxu0 0
    %1411 = vmatprep.mubr.bf16.mxu0 0
    %1412 = vmatmul.mubr.bf16.gmra.mrb[0].mxu0 %v377
    %v1413 = vpop.f32.mrb[0].mxu0
    %v1414 = vadd.f32 0.0, %v1413
    %v1415 = vpop.f32.mrb[0].mxu0
    %v1416 = vadd.f32 0.0, %v1415
    %v1417 = vpop.f32.mrb[0].mxu0
    %v1418 = vadd.f32 0.0, %v1417
    %v1419 = vpop.f32.mrb[0].mxu0
    %v1420 = vadd.f32 0.0, %v1419
    %1421 = vmatprep.mubr.bf16.mxu0 0
    %1422 = vmatmul.mubr.bf16.gmra.mrb[0].mxu0 %v378
    %v1423 = vpop.f32.mrb[0].mxu0
    %v1424 = vadd.f32 0.0, %v1423
    %v1425 = vpop.f32.mrb[0].mxu0
    %v1426 = vadd.f32 0.0, %v1425
    %v1427 = vpop.f32.mrb[0].mxu0
    %v1428 = vadd.f32 0.0, %v1427
    %v1429 = vpop.f32.mrb[0].mxu0
    %v1430 = vadd.f32 0.0, %v1429
    %1431 = vmatprep.mubr.bf16.mxu0 0
    %1432 = vmatmul.mubr.bf16.gmra.mrb[0].mxu0 %v379
    %v1433 = vpop.f32.mrb[0].mxu0
    %v1434 = vadd.f32 0.0, %v1433
    %v1435 = vpop.f32.mrb[0].mxu0
    %v1436 = vadd.f32 0.0, %v1435
    %v1437 = vpop.f32.mrb[0].mxu0
    %v1438 = vadd.f32 0.0, %v1437
    %v1439 = vpop.f32.mrb[0].mxu0
    %v1440 = vadd.f32 0.0, %v1439
    %1441 = vmatprep.mubr.bf16.mxu0 0
    %1442 = vmatmul.mubr.bf16.gmra.mrb[0].mxu0 %v380
    %v1443 = vpop.f32.mrb[0].mxu0
    %v1444 = vadd.f32 0.0, %v1443
    %v1445 = vpop.f32.mrb[0].mxu0
    %v1446 = vadd.f32 0.0, %v1445
    %v1447 = vpop.f32.mrb[0].mxu0
    %v1448 = vadd.f32 0.0, %v1447
    %v1449 = vpop.f32.mrb[0].mxu0
    %v1450 = vadd.f32 0.0, %v1449
    %1451 = vmatprep.mubr.bf16.mxu0 0
    %1452 = vmatmul.mubr.bf16.gmra.mrb[0].mxu0 %v381
    %v1453 = vpop.f32.mrb[0].mxu0
    %v1454 = vadd.f32 0.0, %v1453
    %v1455 = vpop.f32.mrb[0].mxu0
    %v1456 = vadd.f32 0.0, %v1455
    %v1457 = vpop.f32.mrb[0].mxu0
    %v1458 = vadd.f32 0.0, %v1457
    %v1459 = vpop.f32.mrb[0].mxu0
    %v1460 = vadd.f32 0.0, %v1459
    %1461 = vmatprep.mubr.bf16.mxu0 0
    %1462 = vmatmul.mubr.bf16.gmra.mrb[0].mxu0 %v382
    %v1463 = vpop.f32.mrb[0].mxu0
    %v1464 = vadd.f32 0.0, %v1463
    %v1465 = vpop.f32.mrb[0].mxu0
    %v1466 = vadd.f32 0.0, %v1465
    %v1467 = vpop.f32.mrb[0].mxu0
    %v1468 = vadd.f32 0.0, %v1467
    %v1469 = vpop.f32.mrb[0].mxu0
    %v1470 = vadd.f32 0.0, %v1469
    %1471 = vmatprep.mubr.bf16.mxu0 0
    %1472 = vmatmul.mubr.bf16.gmra.mrb[0].mxu0 %v383
    %v1473 = vpop.f32.mrb[0].mxu0
    %v1474 = vadd.f32 0.0, %v1473
    %v1475 = vpop.f32.mrb[0].mxu0
    %v1476 = vadd.f32 0.0, %v1475
    %v1477 = vpop.f32.mrb[0].mxu0
    %v1478 = vadd.f32 0.0, %v1477
    %v1479 = vpop.f32.mrb[0].mxu0
    %v1480 = vadd.f32 0.0, %v1479
    %1481 = vmatprep.mubr.bf16.mxu0 0
    %1482 = vmatmul.mubr.bf16.gmra.mrb[0].mxu0 %v384
    %v1483 = vpop.f32.mrb[0].mxu0
    %v1484 = vadd.f32 0.0, %v1483
    %v1485 = vpop.f32.mrb[0].mxu0
    %v1486 = vadd.f32 0.0, %v1485
    %v1487 = vpop.f32.mrb[0].mxu0
    %v1488 = vadd.f32 0.0, %v1487
    %v1489 = vpop.f32.mrb[0].mxu0
    %v1490 = vadd.f32 0.0, %v1489
    %1491 = vdwg.mxu0
    %1492 = vmatprep.subr.bf16.mxu0 %v904
    %1493 = vmatpush1.bf16.msra.mxu0 %v903
    %1494 = vmatprep.subr.bf16.mxu0 %v920
    %1495 = vmatpush1.bf16.msra.mxu0 %v919
    %1496 = vmatprep.subr.bf16.mxu0 %v936
    %1497 = vmatpush1.bf16.msra.mxu0 %v935
    %1498 = vmatprep.subr.bf16.mxu0 %v952
    %1499 = vmatpush1.bf16.msra.mxu0 %v951
    %1500 = vmatprep.subr.bf16.mxu0 %v968
    %1501 = vmatpush1.bf16.msra.mxu0 %v967
    %1502 = vmatprep.subr.bf16.mxu0 %v984
    %1503 = vmatpush1.bf16.msra.mxu0 %v983
    %1504 = vmatprep.subr.bf16.mxu0 %v1000
    %1505 = vmatpush1.bf16.msra.mxu0 %v999
    %1506 = vmatprep.subr.bf16.mxu0 %v1016
    %1507 = vmatpush1.bf16.msra.mxu0 %v1015
    %1508 = vmatprep.subr.bf16.mxu0 0
    %1509 = vmatpush1.bf16.msra.mxu0 0
    %1510 = vmatprep.subr.bf16.mxu0 0
    %1511 = vmatpush1.bf16.msra.mxu0 0
    %1512 = vmatprep.subr.bf16.mxu0 0
    %1513 = vmatpush1.bf16.msra.mxu0 0
    %1514 = vmatprep.subr.bf16.mxu0 0
    %1515 = vmatpush1.bf16.msra.mxu0 0
    %1516 = vmatprep.subr.bf16.mxu0 0
    %1517 = vmatpush1.bf16.msra.mxu0 0
    %1518 = vmatprep.subr.bf16.mxu0 0
    %1519 = vmatpush1.bf16.msra.mxu0 0
    %1520 = vmatprep.subr.bf16.mxu0 0
    %1521 = vmatpush1.bf16.msra.mxu0 0
    %1522 = vmatprep.subr.bf16.mxu0 0
    %1523 = vmatpush1.bf16.msra.mxu0 0
    %1524 = vmatprep.mubr.bf16.mxu0 0
    %1525 = vmatmul.mubr.bf16.gmra.mrb[0].mxu0 %v377
    %v1526 = vpop.f32.mrb[0].mxu0
    %v1527 = vadd.f32 0.0, %v1526
    %v1528 = vpop.f32.mrb[0].mxu0
    %v1529 = vadd.f32 0.0, %v1528
    %v1530 = vpop.f32.mrb[0].mxu0
    %v1531 = vadd.f32 0.0, %v1530
    %v1532 = vpop.f32.mrb[0].mxu0
    %v1533 = vadd.f32 0.0, %v1532
    %1534 = vmatprep.mubr.bf16.mxu0 0
    %1535 = vmatmul.mubr.bf16.gmra.mrb[0].mxu0 %v378
    %v1536 = vpop.f32.mrb[0].mxu0
    %v1537 = vadd.f32 0.0, %v1536
    %v1538 = vpop.f32.mrb[0].mxu0
    %v1539 = vadd.f32 0.0, %v1538
    %v1540 = vpop.f32.mrb[0].mxu0
    %v1541 = vadd.f32 0.0, %v1540
    %v1542 = vpop.f32.mrb[0].mxu0
    %v1543 = vadd.f32 0.0, %v1542
    %1544 = vmatprep.mubr.bf16.mxu0 0
    %1545 = vmatmul.mubr.bf16.gmra.mrb[0].mxu0 %v379
    %v1546 = vpop.f32.mrb[0].mxu0
    %v1547 = vadd.f32 0.0, %v1546
    %v1548 = vpop.f32.mrb[0].mxu0
    %v1549 = vadd.f32 0.0, %v1548
    %v1550 = vpop.f32.mrb[0].mxu0
    %v1551 = vadd.f32 0.0, %v1550
    %v1552 = vpop.f32.mrb[0].mxu0
    %v1553 = vadd.f32 0.0, %v1552
    %1554 = vmatprep.mubr.bf16.mxu0 0
    %1555 = vmatmul.mubr.bf16.gmra.mrb[0].mxu0 %v380
    %v1556 = vpop.f32.mrb[0].mxu0
    %v1557 = vadd.f32 0.0, %v1556
    %v1558 = vpop.f32.mrb[0].mxu0
    %v1559 = vadd.f32 0.0, %v1558
    %v1560 = vpop.f32.mrb[0].mxu0
    %v1561 = vadd.f32 0.0, %v1560
    %v1562 = vpop.f32.mrb[0].mxu0
    %v1563 = vadd.f32 0.0, %v1562
    %1564 = vmatprep.mubr.bf16.mxu0 0
    %1565 = vmatmul.mubr.bf16.gmra.mrb[0].mxu0 %v381
    %v1566 = vpop.f32.mrb[0].mxu0
    %v1567 = vadd.f32 0.0, %v1566
    %v1568 = vpop.f32.mrb[0].mxu0
    %v1569 = vadd.f32 0.0, %v1568
    %v1570 = vpop.f32.mrb[0].mxu0
    %v1571 = vadd.f32 0.0, %v1570
    %v1572 = vpop.f32.mrb[0].mxu0
    %v1573 = vadd.f32 0.0, %v1572
    %1574 = vmatprep.mubr.bf16.mxu0 0
    %1575 = vmatmul.mubr.bf16.gmra.mrb[0].mxu0 %v382
    %v1576 = vpop.f32.mrb[0].mxu0
    %v1577 = vadd.f32 0.0, %v1576
    %v1578 = vpop.f32.mrb[0].mxu0
    %v1579 = vadd.f32 0.0, %v1578
    %v1580 = vpop.f32.mrb[0].mxu0
    %v1581 = vadd.f32 0.0, %v1580
    %v1582 = vpop.f32.mrb[0].mxu0
    %v1583 = vadd.f32 0.0, %v1582
    %1584 = vmatprep.mubr.bf16.mxu0 0
    %1585 = vmatmul.mubr.bf16.gmra.mrb[0].mxu0 %v383
    %v1586 = vpop.f32.mrb[0].mxu0
    %v1587 = vadd.f32 0.0, %v1586
    %v1588 = vpop.f32.mrb[0].mxu0
    %v1589 = vadd.f32 0.0, %v1588
    %v1590 = vpop.f32.mrb[0].mxu0
    %v1591 = vadd.f32 0.0, %v1590
    %v1592 = vpop.f32.mrb[0].mxu0
    %v1593 = vadd.f32 0.0, %v1592
    %1594 = vmatprep.mubr.bf16.mxu0 0
    %1595 = vmatmul.mubr.bf16.gmra.mrb[0].mxu0 %v384
    %v1596 = vpop.f32.mrb[0].mxu0
    %v1597 = vadd.f32 0.0, %v1596
    %v1598 = vpop.f32.mrb[0].mxu0
    %v1599 = vadd.f32 0.0, %v1598
    %v1600 = vpop.f32.mrb[0].mxu0
    %v1601 = vadd.f32 0.0, %v1600
    %v1602 = vpop.f32.mrb[0].mxu0
    %v1603 = vadd.f32 0.0, %v1602
    %1604 = vdwg.mxu0
    %1605 = vmatprep.subr.bf16.mxu0 %v906
    %1606 = vmatpush1.bf16.msra.mxu0 %v905
    %1607 = vmatprep.subr.bf16.mxu0 %v922
    %1608 = vmatpush1.bf16.msra.mxu0 %v921
    %1609 = vmatprep.subr.bf16.mxu0 %v938
    %1610 = vmatpush1.bf16.msra.mxu0 %v937
    %1611 = vmatprep.subr.bf16.mxu0 %v954
    %1612 = vmatpush1.bf16.msra.mxu0 %v953
    %1613 = vmatprep.subr.bf16.mxu0 %v970
    %1614 = vmatpush1.bf16.msra.mxu0 %v969
    %1615 = vmatprep.subr.bf16.mxu0 %v986
    %1616 = vmatpush1.bf16.msra.mxu0 %v985
    %1617 = vmatprep.subr.bf16.mxu0 %v1002
    %1618 = vmatpush1.bf16.msra.mxu0 %v1001
    %1619 = vmatprep.subr.bf16.mxu0 %v1018
    %1620 = vmatpush1.bf16.msra.mxu0 %v1017
    %1621 = vmatprep.subr.bf16.mxu0 0
    %1622 = vmatpush1.bf16.msra.mxu0 0
    %1623 = vmatprep.subr.bf16.mxu0 0
    %1624 = vmatpush1.bf16.msra.mxu0 0
    %1625 = vmatprep.subr.bf16.mxu0 0
    %1626 = vmatpush1.bf16.msra.mxu0 0
    %1627 = vmatprep.subr.bf16.mxu0 0
    %1628 = vmatpush1.bf16.msra.mxu0 0
    %1629 = vmatprep.subr.bf16.mxu0 0
    %1630 = vmatpush1.bf16.msra.mxu0 0
    %1631 = vmatprep.subr.bf16.mxu0 0
    %1632 = vmatpush1.bf16.msra.mxu0 0
    %1633 = vmatprep.subr.bf16.mxu0 0
    %1634 = vmatpush1.bf16.msra.mxu0 0
    %1635 = vmatprep.subr.bf16.mxu0 0
    %1636 = vmatpush1.bf16.msra.mxu0 0
    %1637 = vmatprep.mubr.bf16.mxu0 0
    %1638 = vmatmul.mubr.bf16.gmra.mrb[0].mxu0 %v377
    %v1639 = vpop.f32.mrb[0].mxu0
    %v1640 = vadd.f32 0.0, %v1639
    %v1641 = vpop.f32.mrb[0].mxu0
    %v1642 = vadd.f32 0.0, %v1641
    %v1643 = vpop.f32.mrb[0].mxu0
    %v1644 = vadd.f32 0.0, %v1643
    %v1645 = vpop.f32.mrb[0].mxu0
    %v1646 = vadd.f32 0.0, %v1645
    %1647 = vmatprep.mubr.bf16.mxu0 0
    %1648 = vmatmul.mubr.bf16.gmra.mrb[0].mxu0 %v378
    %v1649 = vpop.f32.mrb[0].mxu0
    %v1650 = vadd.f32 0.0, %v1649
    %v1651 = vpop.f32.mrb[0].mxu0
    %v1652 = vadd.f32 0.0, %v1651
    %v1653 = vpop.f32.mrb[0].mxu0
    %v1654 = vadd.f32 0.0, %v1653
    %v1655 = vpop.f32.mrb[0].mxu0
    %v1656 = vadd.f32 0.0, %v1655
    %1657 = vmatprep.mubr.bf16.mxu0 0
    %1658 = vmatmul.mubr.bf16.gmra.mrb[0].mxu0 %v379
    %v1659 = vpop.f32.mrb[0].mxu0
    %v1660 = vadd.f32 0.0, %v1659
    %v1661 = vpop.f32.mrb[0].mxu0
    %v1662 = vadd.f32 0.0, %v1661
    %v1663 = vpop.f32.mrb[0].mxu0
    %v1664 = vadd.f32 0.0, %v1663
    %v1665 = vpop.f32.mrb[0].mxu0
    %v1666 = vadd.f32 0.0, %v1665
    %1667 = vmatprep.mubr.bf16.mxu0 0
    %1668 = vmatmul.mubr.bf16.gmra.mrb[0].mxu0 %v380
    %v1669 = vpop.f32.mrb[0].mxu0
    %v1670 = vadd.f32 0.0, %v1669
    %v1671 = vpop.f32.mrb[0].mxu0
    %v1672 = vadd.f32 0.0, %v1671
    %v1673 = vpop.f32.mrb[0].mxu0
    %v1674 = vadd.f32 0.0, %v1673
    %v1675 = vpop.f32.mrb[0].mxu0
    %v1676 = vadd.f32 0.0, %v1675
    %1677 = vmatprep.mubr.bf16.mxu0 0
    %1678 = vmatmul.mubr.bf16.gmra.mrb[0].mxu0 %v381
    %v1679 = vpop.f32.mrb[0].mxu0
    %v1680 = vadd.f32 0.0, %v1679
    %v1681 = vpop.f32.mrb[0].mxu0
    %v1682 = vadd.f32 0.0, %v1681
    %v1683 = vpop.f32.mrb[0].mxu0
    %v1684 = vadd.f32 0.0, %v1683
    %v1685 = vpop.f32.mrb[0].mxu0
    %v1686 = vadd.f32 0.0, %v1685
    %1687 = vmatprep.mubr.bf16.mxu0 0
    %1688 = vmatmul.mubr.bf16.gmra.mrb[0].mxu0 %v382
    %v1689 = vpop.f32.mrb[0].mxu0
    %v1690 = vadd.f32 0.0, %v1689
    %v1691 = vpop.f32.mrb[0].mxu0
    %v1692 = vadd.f32 0.0, %v1691
    %v1693 = vpop.f32.mrb[0].mxu0
    %v1694 = vadd.f32 0.0, %v1693
    %v1695 = vpop.f32.mrb[0].mxu0
    %v1696 = vadd.f32 0.0, %v1695
    %1697 = vmatprep.mubr.bf16.mxu0 0
    %1698 = vmatmul.mubr.bf16.gmra.mrb[0].mxu0 %v383
    %v1699 = vpop.f32.mrb[0].mxu0
    %v1700 = vadd.f32 0.0, %v1699
    %v1701 = vpop.f32.mrb[0].mxu0
    %v1702 = vadd.f32 0.0, %v1701
    %v1703 = vpop.f32.mrb[0].mxu0
    %v1704 = vadd.f32 0.0, %v1703
    %v1705 = vpop.f32.mrb[0].mxu0
    %v1706 = vadd.f32 0.0, %v1705
    %1707 = vmatprep.mubr.bf16.mxu0 0
    %1708 = vmatmul.mubr.bf16.gmra.mrb[0].mxu0 %v384
    %v1709 = vpop.f32.mrb[0].mxu0
    %v1710 = vadd.f32 0.0, %v1709
    %v1711 = vpop.f32.mrb[0].mxu0
    %v1712 = vadd.f32 0.0, %v1711
    %v1713 = vpop.f32.mrb[0].mxu0
    %v1714 = vadd.f32 0.0, %v1713
    %v1715 = vpop.f32.mrb[0].mxu0
    %v1716 = vadd.f32 0.0, %v1715
    %1717 = vdwg.mxu0
    %1718 = vmatprep.subr.bf16.mxu0 %v908
    %1719 = vmatpush1.bf16.msra.mxu0 %v907
    %1720 = vmatprep.subr.bf16.mxu0 %v924
    %1721 = vmatpush1.bf16.msra.mxu0 %v923
    %1722 = vmatprep.subr.bf16.mxu0 %v940
    %1723 = vmatpush1.bf16.msra.mxu0 %v939
    %1724 = vmatprep.subr.bf16.mxu0 %v956
    %1725 = vmatpush1.bf16.msra.mxu0 %v955
    %1726 = vmatprep.subr.bf16.mxu0 %v972
    %1727 = vmatpush1.bf16.msra.mxu0 %v971
    %1728 = vmatprep.subr.bf16.mxu0 %v988
    %1729 = vmatpush1.bf16.msra.mxu0 %v987
    %1730 = vmatprep.subr.bf16.mxu0 %v1004
    %1731 = vmatpush1.bf16.msra.mxu0 %v1003
    %1732 = vmatprep.subr.bf16.mxu0 %v1020
    %1733 = vmatpush1.bf16.msra.mxu0 %v1019
    %1734 = vmatprep.subr.bf16.mxu0 0
    %1735 = vmatpush1.bf16.msra.mxu0 0
    %1736 = vmatprep.subr.bf16.mxu0 0
    %1737 = vmatpush1.bf16.msra.mxu0 0
    %1738 = vmatprep.subr.bf16.mxu0 0
    %1739 = vmatpush1.bf16.msra.mxu0 0
    %1740 = vmatprep.subr.bf16.mxu0 0
    %1741 = vmatpush1.bf16.msra.mxu0 0
    %1742 = vmatprep.subr.bf16.mxu0 0
    %1743 = vmatpush1.bf16.msra.mxu0 0
    %1744 = vmatprep.subr.bf16.mxu0 0
    %1745 = vmatpush1.bf16.msra.mxu0 0
    %1746 = vmatprep.subr.bf16.mxu0 0
    %1747 = vmatpush1.bf16.msra.mxu0 0
    %1748 = vmatprep.subr.bf16.mxu0 0
    %1749 = vmatpush1.bf16.msra.mxu0 0
    %1750 = vmatprep.mubr.bf16.mxu0 0
    %1751 = vmatmul.mubr.bf16.gmra.mrb[0].mxu0 %v377
    %v1752 = vpop.f32.mrb[0].mxu0
    %v1753 = vadd.f32 0.0, %v1752
    %v1754 = vpop.f32.mrb[0].mxu0
    %v1755 = vadd.f32 0.0, %v1754
    %v1756 = vpop.f32.mrb[0].mxu0
    %v1757 = vadd.f32 0.0, %v1756
    %v1758 = vpop.f32.mrb[0].mxu0
    %v1759 = vadd.f32 0.0, %v1758
    %1760 = vmatprep.mubr.bf16.mxu0 0
    %1761 = vmatmul.mubr.bf16.gmra.mrb[0].mxu0 %v378
    %v1762 = vpop.f32.mrb[0].mxu0
    %v1763 = vadd.f32 0.0, %v1762
    %v1764 = vpop.f32.mrb[0].mxu0
    %v1765 = vadd.f32 0.0, %v1764
    %v1766 = vpop.f32.mrb[0].mxu0
    %v1767 = vadd.f32 0.0, %v1766
    %v1768 = vpop.f32.mrb[0].mxu0
    %v1769 = vadd.f32 0.0, %v1768
    %1770 = vmatprep.mubr.bf16.mxu0 0
    %1771 = vmatmul.mubr.bf16.gmra.mrb[0].mxu0 %v379
    %v1772 = vpop.f32.mrb[0].mxu0
    %v1773 = vadd.f32 0.0, %v1772
    %v1774 = vpop.f32.mrb[0].mxu0
    %v1775 = vadd.f32 0.0, %v1774
    %v1776 = vpop.f32.mrb[0].mxu0
    %v1777 = vadd.f32 0.0, %v1776
    %v1778 = vpop.f32.mrb[0].mxu0
    %v1779 = vadd.f32 0.0, %v1778
    %1780 = vmatprep.mubr.bf16.mxu0 0
    %1781 = vmatmul.mubr.bf16.gmra.mrb[0].mxu0 %v380
    %v1782 = vpop.f32.mrb[0].mxu0
    %v1783 = vadd.f32 0.0, %v1782
    %v1784 = vpop.f32.mrb[0].mxu0
    %v1785 = vadd.f32 0.0, %v1784
    %v1786 = vpop.f32.mrb[0].mxu0
    %v1787 = vadd.f32 0.0, %v1786
    %v1788 = vpop.f32.mrb[0].mxu0
    %v1789 = vadd.f32 0.0, %v1788
    %1790 = vmatprep.mubr.bf16.mxu0 0
    %1791 = vmatmul.mubr.bf16.gmra.mrb[0].mxu0 %v381
    %v1792 = vpop.f32.mrb[0].mxu0
    %v1793 = vadd.f32 0.0, %v1792
    %v1794 = vpop.f32.mrb[0].mxu0
    %v1795 = vadd.f32 0.0, %v1794
    %v1796 = vpop.f32.mrb[0].mxu0
    %v1797 = vadd.f32 0.0, %v1796
    %v1798 = vpop.f32.mrb[0].mxu0
    %v1799 = vadd.f32 0.0, %v1798
    %1800 = vmatprep.mubr.bf16.mxu0 0
    %1801 = vmatmul.mubr.bf16.gmra.mrb[0].mxu0 %v382
    %v1802 = vpop.f32.mrb[0].mxu0
    %v1803 = vadd.f32 0.0, %v1802
    %v1804 = vpop.f32.mrb[0].mxu0
    %v1805 = vadd.f32 0.0, %v1804
    %v1806 = vpop.f32.mrb[0].mxu0
    %v1807 = vadd.f32 0.0, %v1806
    %v1808 = vpop.f32.mrb[0].mxu0
    %v1809 = vadd.f32 0.0, %v1808
    %1810 = vmatprep.mubr.bf16.mxu0 0
    %1811 = vmatmul.mubr.bf16.gmra.mrb[0].mxu0 %v383
    %v1812 = vpop.f32.mrb[0].mxu0
    %v1813 = vadd.f32 0.0, %v1812
    %v1814 = vpop.f32.mrb[0].mxu0
    %v1815 = vadd.f32 0.0, %v1814
    %v1816 = vpop.f32.mrb[0].mxu0
    %v1817 = vadd.f32 0.0, %v1816
    %v1818 = vpop.f32.mrb[0].mxu0
    %v1819 = vadd.f32 0.0, %v1818
    %1820 = vmatprep.mubr.bf16.mxu0 0
    %1821 = vmatmul.mubr.bf16.gmra.mrb[0].mxu0 %v384
    %v1822 = vpop.f32.mrb[0].mxu0
    %v1823 = vadd.f32 0.0, %v1822
    %v1824 = vpop.f32.mrb[0].mxu0
    %v1825 = vadd.f32 0.0, %v1824
    %v1826 = vpop.f32.mrb[0].mxu0
    %v1827 = vadd.f32 0.0, %v1826
    %v1828 = vpop.f32.mrb[0].mxu0
    %v1829 = vadd.f32 0.0, %v1828
    %1830 = vdwg.mxu0
    %1831 = vmatprep.subr.bf16.mxu0 %v910
    %1832 = vmatpush1.bf16.msra.mxu0 %v909
    %1833 = vmatprep.subr.bf16.mxu0 %v926
    %1834 = vmatpush1.bf16.msra.mxu0 %v925
    %1835 = vmatprep.subr.bf16.mxu0 %v942
    %1836 = vmatpush1.bf16.msra.mxu0 %v941
    %1837 = vmatprep.subr.bf16.mxu0 %v958
    %1838 = vmatpush1.bf16.msra.mxu0 %v957
    %1839 = vmatprep.subr.bf16.mxu0 %v974
    %1840 = vmatpush1.bf16.msra.mxu0 %v973
    %1841 = vmatprep.subr.bf16.mxu0 %v990
    %1842 = vmatpush1.bf16.msra.mxu0 %v989
    %1843 = vmatprep.subr.bf16.mxu0 %v1006
    %1844 = vmatpush1.bf16.msra.mxu0 %v1005
    %1845 = vmatprep.subr.bf16.mxu0 %v1022
    %1846 = vmatpush1.bf16.msra.mxu0 %v1021
    %1847 = vmatprep.subr.bf16.mxu0 0
    %1848 = vmatpush1.bf16.msra.mxu0 0
    %1849 = vmatprep.subr.bf16.mxu0 0
    %1850 = vmatpush1.bf16.msra.mxu0 0
    %1851 = vmatprep.subr.bf16.mxu0 0
    %1852 = vmatpush1.bf16.msra.mxu0 0
    %1853 = vmatprep.subr.bf16.mxu0 0
    %1854 = vmatpush1.bf16.msra.mxu0 0
    %1855 = vmatprep.subr.bf16.mxu0 0
    %1856 = vmatpush1.bf16.msra.mxu0 0
    %1857 = vmatprep.subr.bf16.mxu0 0
    %1858 = vmatpush1.bf16.msra.mxu0 0
    %1859 = vmatprep.subr.bf16.mxu0 0
    %1860 = vmatpush1.bf16.msra.mxu0 0
    %1861 = vmatprep.subr.bf16.mxu0 0
    %1862 = vmatpush1.bf16.msra.mxu0 0
    %1863 = vmatprep.mubr.bf16.mxu0 0
    %1864 = vmatmul.mubr.bf16.gmra.mrb[0].mxu0 %v377
    %v1865 = vpop.f32.mrb[0].mxu0
    %v1866 = vadd.f32 0.0, %v1865
    %v1867 = vpop.f32.mrb[0].mxu0
    %v1868 = vadd.f32 0.0, %v1867
    %v1869 = vpop.f32.mrb[0].mxu0
    %v1870 = vadd.f32 0.0, %v1869
    %v1871 = vpop.f32.mrb[0].mxu0
    %v1872 = vadd.f32 0.0, %v1871
    %1873 = vmatprep.mubr.bf16.mxu0 0
    %1874 = vmatmul.mubr.bf16.gmra.mrb[0].mxu0 %v378
    %v1875 = vpop.f32.mrb[0].mxu0
    %v1876 = vadd.f32 0.0, %v1875
    %v1877 = vpop.f32.mrb[0].mxu0
    %v1878 = vadd.f32 0.0, %v1877
    %v1879 = vpop.f32.mrb[0].mxu0
    %v1880 = vadd.f32 0.0, %v1879
    %v1881 = vpop.f32.mrb[0].mxu0
    %v1882 = vadd.f32 0.0, %v1881
    %1883 = vmatprep.mubr.bf16.mxu0 0
    %1884 = vmatmul.mubr.bf16.gmra.mrb[0].mxu0 %v379
    %v1885 = vpop.f32.mrb[0].mxu0
    %v1886 = vadd.f32 0.0, %v1885
    %v1887 = vpop.f32.mrb[0].mxu0
    %v1888 = vadd.f32 0.0, %v1887
    %v1889 = vpop.f32.mrb[0].mxu0
    %v1890 = vadd.f32 0.0, %v1889
    %v1891 = vpop.f32.mrb[0].mxu0
    %v1892 = vadd.f32 0.0, %v1891
    %1893 = vmatprep.mubr.bf16.mxu0 0
    %1894 = vmatmul.mubr.bf16.gmra.mrb[0].mxu0 %v380
    %v1895 = vpop.f32.mrb[0].mxu0
    %v1896 = vadd.f32 0.0, %v1895
    %v1897 = vpop.f32.mrb[0].mxu0
    %v1898 = vadd.f32 0.0, %v1897
    %v1899 = vpop.f32.mrb[0].mxu0
    %v1900 = vadd.f32 0.0, %v1899
    %v1901 = vpop.f32.mrb[0].mxu0
    %v1902 = vadd.f32 0.0, %v1901
    %1903 = vmatprep.mubr.bf16.mxu0 0
    %1904 = vmatmul.mubr.bf16.gmra.mrb[0].mxu0 %v381
    %v1905 = vpop.f32.mrb[0].mxu0
    %v1906 = vadd.f32 0.0, %v1905
    %v1907 = vpop.f32.mrb[0].mxu0
    %v1908 = vadd.f32 0.0, %v1907
    %v1909 = vpop.f32.mrb[0].mxu0
    %v1910 = vadd.f32 0.0, %v1909
    %v1911 = vpop.f32.mrb[0].mxu0
    %v1912 = vadd.f32 0.0, %v1911
    %1913 = vmatprep.mubr.bf16.mxu0 0
    %1914 = vmatmul.mubr.bf16.gmra.mrb[0].mxu0 %v382
    %v1915 = vpop.f32.mrb[0].mxu0
    %v1916 = vadd.f32 0.0, %v1915
    %v1917 = vpop.f32.mrb[0].mxu0
    %v1918 = vadd.f32 0.0, %v1917
    %v1919 = vpop.f32.mrb[0].mxu0
    %v1920 = vadd.f32 0.0, %v1919
    %v1921 = vpop.f32.mrb[0].mxu0
    %v1922 = vadd.f32 0.0, %v1921
    %1923 = vmatprep.mubr.bf16.mxu0 0
    %1924 = vmatmul.mubr.bf16.gmra.mrb[0].mxu0 %v383
    %v1925 = vpop.f32.mrb[0].mxu0
    %v1926 = vadd.f32 0.0, %v1925
    %v1927 = vpop.f32.mrb[0].mxu0
    %v1928 = vadd.f32 0.0, %v1927
    %v1929 = vpop.f32.mrb[0].mxu0
    %v1930 = vadd.f32 0.0, %v1929
    %v1931 = vpop.f32.mrb[0].mxu0
    %v1932 = vadd.f32 0.0, %v1931
    %1933 = vmatprep.mubr.bf16.mxu0 0
    %1934 = vmatmul.mubr.bf16.gmra.mrb[0].mxu0 %v384
    %v1935 = vpop.f32.mrb[0].mxu0
    %v1936 = vadd.f32 0.0, %v1935
    %v1937 = vpop.f32.mrb[0].mxu0
    %v1938 = vadd.f32 0.0, %v1937
    %v1939 = vpop.f32.mrb[0].mxu0
    %v1940 = vadd.f32 0.0, %v1939
    %v1941 = vpop.f32.mrb[0].mxu0
    %v1942 = vadd.f32 0.0, %v1941
    %1943 = vdwg.mxu0
    %1944 = vmatprep.subr.bf16.mxu0 %v912
    %1945 = vmatpush1.bf16.msra.mxu0 %v911
    %1946 = vmatprep.subr.bf16.mxu0 %v928
    %1947 = vmatpush1.bf16.msra.mxu0 %v927
    %1948 = vmatprep.subr.bf16.mxu0 %v944
    %1949 = vmatpush1.bf16.msra.mxu0 %v943
    %1950 = vmatprep.subr.bf16.mxu0 %v960
    %1951 = vmatpush1.bf16.msra.mxu0 %v959
    %1952 = vmatprep.subr.bf16.mxu0 %v976
    %1953 = vmatpush1.bf16.msra.mxu0 %v975
    %1954 = vmatprep.subr.bf16.mxu0 %v992
    %1955 = vmatpush1.bf16.msra.mxu0 %v991
    %1956 = vmatprep.subr.bf16.mxu0 %v1008
    %1957 = vmatpush1.bf16.msra.mxu0 %v1007
    %1958 = vmatprep.subr.bf16.mxu0 %v1024
    %1959 = vmatpush1.bf16.msra.mxu0 %v1023
    %1960 = vmatprep.subr.bf16.mxu0 0
    %1961 = vmatpush1.bf16.msra.mxu0 0
    %1962 = vmatprep.subr.bf16.mxu0 0
    %1963 = vmatpush1.bf16.msra.mxu0 0
    %1964 = vmatprep.subr.bf16.mxu0 0
    %1965 = vmatpush1.bf16.msra.mxu0 0
    %1966 = vmatprep.subr.bf16.mxu0 0
    %1967 = vmatpush1.bf16.msra.mxu0 0
    %1968 = vmatprep.subr.bf16.mxu0 0
    %1969 = vmatpush1.bf16.msra.mxu0 0
    %1970 = vmatprep.subr.bf16.mxu0 0
    %1971 = vmatpush1.bf16.msra.mxu0 0
    %1972 = vmatprep.subr.bf16.mxu0 0
    %1973 = vmatpush1.bf16.msra.mxu0 0
    %1974 = vmatprep.subr.bf16.mxu0 0
    %1975 = vmatpush1.bf16.msra.mxu0 0
    %1976 = vmatprep.mubr.bf16.mxu0 0
    %1977 = vmatmul.mubr.bf16.gmra.mrb[0].mxu0 %v377
    %v1978 = vpop.f32.mrb[0].mxu0
    %v1979 = vadd.f32 0.0, %v1978
    %v1980 = vpop.f32.mrb[0].mxu0
    %v1981 = vadd.f32 0.0, %v1980
    %v1982 = vpop.f32.mrb[0].mxu0
    %v1983 = vadd.f32 0.0, %v1982
    %v1984 = vpop.f32.mrb[0].mxu0
    %v1985 = vadd.f32 0.0, %v1984
    %1986 = vmatprep.mubr.bf16.mxu0 0
    %1987 = vmatmul.mubr.bf16.gmra.mrb[0].mxu0 %v378
    %v1988 = vpop.f32.mrb[0].mxu0
    %v1989 = vadd.f32 0.0, %v1988
    %v1990 = vpop.f32.mrb[0].mxu0
    %v1991 = vadd.f32 0.0, %v1990
    %v1992 = vpop.f32.mrb[0].mxu0
    %v1993 = vadd.f32 0.0, %v1992
    %v1994 = vpop.f32.mrb[0].mxu0
    %v1995 = vadd.f32 0.0, %v1994
    %1996 = vmatprep.mubr.bf16.mxu0 0
    %1997 = vmatmul.mubr.bf16.gmra.mrb[0].mxu0 %v379
    %v1998 = vpop.f32.mrb[0].mxu0
    %v1999 = vadd.f32 0.0, %v1998
    %v2000 = vpop.f32.mrb[0].mxu0
    %v2001 = vadd.f32 0.0, %v2000
    %v2002 = vpop.f32.mrb[0].mxu0
    %v2003 = vadd.f32 0.0, %v2002
    %v2004 = vpop.f32.mrb[0].mxu0
    %v2005 = vadd.f32 0.0, %v2004
    %2006 = vmatprep.mubr.bf16.mxu0 0
    %2007 = vmatmul.mubr.bf16.gmra.mrb[0].mxu0 %v380
    %v2008 = vpop.f32.mrb[0].mxu0
    %v2009 = vadd.f32 0.0, %v2008
    %v2010 = vpop.f32.mrb[0].mxu0
    %v2011 = vadd.f32 0.0, %v2010
    %v2012 = vpop.f32.mrb[0].mxu0
    %v2013 = vadd.f32 0.0, %v2012
    %v2014 = vpop.f32.mrb[0].mxu0
    %v2015 = vadd.f32 0.0, %v2014
    %2016 = vmatprep.mubr.bf16.mxu0 0
    %2017 = vmatmul.mubr.bf16.gmra.mrb[0].mxu0 %v381
    %v2018 = vpop.f32.mrb[0].mxu0
    %v2019 = vadd.f32 0.0, %v2018
    %v2020 = vpop.f32.mrb[0].mxu0
    %v2021 = vadd.f32 0.0, %v2020
    %v2022 = vpop.f32.mrb[0].mxu0
    %v2023 = vadd.f32 0.0, %v2022
    %v2024 = vpop.f32.mrb[0].mxu0
    %v2025 = vadd.f32 0.0, %v2024
    %2026 = vmatprep.mubr.bf16.mxu0 0
    %2027 = vmatmul.mubr.bf16.gmra.mrb[0].mxu0 %v382
    %v2028 = vpop.f32.mrb[0].mxu0
    %v2029 = vadd.f32 0.0, %v2028
    %v2030 = vpop.f32.mrb[0].mxu0
    %v2031 = vadd.f32 0.0, %v2030
    %v2032 = vpop.f32.mrb[0].mxu0
    %v2033 = vadd.f32 0.0, %v2032
    %v2034 = vpop.f32.mrb[0].mxu0
    %v2035 = vadd.f32 0.0, %v2034
    %2036 = vmatprep.mubr.bf16.mxu0 0
    %2037 = vmatmul.mubr.bf16.gmra.mrb[0].mxu0 %v383
    %v2038 = vpop.f32.mrb[0].mxu0
    %v2039 = vadd.f32 0.0, %v2038
    %v2040 = vpop.f32.mrb[0].mxu0
    %v2041 = vadd.f32 0.0, %v2040
    %v2042 = vpop.f32.mrb[0].mxu0
    %v2043 = vadd.f32 0.0, %v2042
    %v2044 = vpop.f32.mrb[0].mxu0
    %v2045 = vadd.f32 0.0, %v2044
    %2046 = vmatprep.mubr.bf16.mxu0 0
    %2047 = vmatmul.mubr.bf16.gmra.mrb[0].mxu0 %v384
    %v2048 = vpop.f32.mrb[0].mxu0
    %v2049 = vadd.f32 0.0, %v2048
    %v2050 = vpop.f32.mrb[0].mxu0
    %v2051 = vadd.f32 0.0, %v2050
    %v2052 = vpop.f32.mrb[0].mxu0
    %v2053 = vadd.f32 0.0, %v2052
    %v2054 = vpop.f32.mrb[0].mxu0
    %v2055 = vadd.f32 0.0, %v2054
    %2056 = vdwg.mxu0
    %v2057 = vld [vmem:[#allocation5] sm:$0xff]
    %v2058 = vld [vmem:[#allocation5 + $0x8] sm:$0xff]
    %v2059 = vld [vmem:[#allocation5 + $0x10] sm:$0xff]
    %v2060 = vld [vmem:[#allocation5 + $0x18] sm:$0xff]
    %s2061 = scalar_lea.vmem [#allocation5], 32
    %v2062 = vld [vmem:[%s2061] sm:$0xff]
    %v2063 = vld [vmem:[%s2061 + $0x8] sm:$0xff]
    %v2064 = vld [vmem:[%s2061 + $0x10] sm:$0xff]
    %v2065 = vld [vmem:[%s2061 + $0x18] sm:$0xff]
    %2066 = vmatprep.subr.mxu0 0.0
    %2067 = vmatpush1.msra.mxu0 %v1190
    %2068 = vmatprep.subr.mxu0 0.0
    %2069 = vmatpush1.msra.mxu0 %v1194
    %2070 = vmatprep.subr.mxu0 0.0
    %2071 = vmatpush1.msra.mxu0 %v1200
    %2072 = vmatprep.subr.mxu0 0.0
    %2073 = vmatpush1.msra.mxu0 %v1204
    %2074 = vmatprep.subr.mxu0 0.0
    %2075 = vmatpush1.msra.mxu0 %v1210
    %2076 = vmatprep.subr.mxu0 0.0
    %2077 = vmatpush1.msra.mxu0 %v1214
    %2078 = vmatprep.subr.mxu0 0.0
    %2079 = vmatpush1.msra.mxu0 %v1220
    %2080 = vmatprep.subr.mxu0 0.0
    %2081 = vmatpush1.msra.mxu0 %v1224
    %2082 = vmatprep.subr.mxu0 0.0
    %2083 = vmatpush1.msra.mxu0 %v1230
    %2084 = vmatprep.subr.mxu0 0.0
    %2085 = vmatpush1.msra.mxu0 %v1234
    %2086 = vmatprep.subr.mxu0 0.0
    %2087 = vmatpush1.msra.mxu0 %v1240
    %2088 = vmatprep.subr.mxu0 0.0
    %2089 = vmatpush1.msra.mxu0 %v1244
    %2090 = vmatprep.subr.mxu0 0.0
    %2091 = vmatpush1.msra.mxu0 %v1250
    %2092 = vmatprep.subr.mxu0 0.0
    %2093 = vmatpush1.msra.mxu0 %v1254
    %2094 = vmatprep.subr.mxu0 0.0
    %2095 = vmatpush1.msra.mxu0 %v1260
    %2096 = vmatprep.subr.mxu0 0.0
    %2097 = vmatpush1.msra.mxu0 %v1264
    %2098 = vmatprep.subr.mxu0 0.0
    %2099 = vmatpush1.msra.mxu0 0.0
    %2100 = vmatprep.subr.mxu0 0.0
    %2101 = vmatpush1.msra.mxu0 0.0
    %2102 = vmatprep.subr.mxu0 0.0
    %2103 = vmatpush1.msra.mxu0 0.0
    %2104 = vmatprep.subr.mxu0 0.0
    %2105 = vmatpush1.msra.mxu0 0.0
    %2106 = vmatprep.subr.mxu0 0.0
    %2107 = vmatpush1.msra.mxu0 0.0
    %2108 = vmatprep.subr.mxu0 0.0
    %2109 = vmatpush1.msra.mxu0 0.0
    %2110 = vmatprep.subr.mxu0 0.0
    %2111 = vmatpush1.msra.mxu0 0.0
    %2112 = vmatprep.subr.mxu0 0.0
    %2113 = vmatpush1.msra.mxu0 0.0
    %2114 = vmatprep.subr.mxu0 0.0
    %2115 = vmatpush1.msra.mxu0 0.0
    %2116 = vmatprep.subr.mxu0 0.0
    %2117 = vmatpush1.msra.mxu0 0.0
    %2118 = vmatprep.subr.mxu0 0.0
    %2119 = vmatpush1.msra.mxu0 0.0
    %2120 = vmatprep.subr.mxu0 0.0
    %2121 = vmatpush1.msra.mxu0 0.0
    %2122 = vmatprep.subr.mxu0 0.0
    %2123 = vmatpush1.msra.mxu0 0.0
    %2124 = vmatprep.subr.mxu0 0.0
    %2125 = vmatpush1.msra.mxu0 0.0
    %2126 = vmatprep.subr.mxu0 0.0
    %2127 = vmatpush1.msra.mxu0 0.0
    %2128 = vmatprep.subr.mxu0 0.0
    %2129 = vmatpush1.msra.mxu0 0.0
    %2130 = vmatprep.mubr.f32.mxu0 0.0
    %2131 = vmatmul.mubr.f32.gmra.mrb[0].mxu0 %v2062
    %v2132 = vpop.f32.mrb[0].mxu0
    %v2133 = vadd.f32 0.0, %v2132
    %v2134 = vpop.f32.mrb[0].mxu0
    %2135 = vmatprep.mubr.f32.mxu0 0.0
    %2136 = vmatmul.mubr.f32.gmra.mrb[0].mxu0 %v2063
    %v2137 = vpop.f32.mrb[0].mxu0
    %v2138 = vadd.f32 0.0, %v2137
    %v2139 = vpop.f32.mrb[0].mxu0
    %2140 = vmatprep.mubr.f32.mxu0 0.0
    %2141 = vmatmul.mubr.f32.gmra.mrb[0].mxu0 %v2064
    %v2142 = vpop.f32.mrb[0].mxu0
    %v2143 = vadd.f32 0.0, %v2142
    %v2144 = vpop.f32.mrb[0].mxu0
    %2145 = vmatprep.mubr.f32.mxu0 0.0
    %2146 = vmatmul.mubr.f32.gmra.mrb[0].mxu0 %v2065
    %v2147 = vpop.f32.mrb[0].mxu0
    %v2148 = vadd.f32 0.0, %v2147
    %v2149 = vpop.f32.mrb[0].mxu0
    %2150 = vdwg.mxu0
    %2151 = vmatprep.subr.mxu0 0.0
    %2152 = vmatpush1.msra.mxu0 %v1188
    %2153 = vmatprep.subr.mxu0 0.0
    %2154 = vmatpush1.msra.mxu0 %v1192
    %2155 = vmatprep.subr.mxu0 0.0
    %2156 = vmatpush1.msra.mxu0 %v1198
    %2157 = vmatprep.subr.mxu0 0.0
    %2158 = vmatpush1.msra.mxu0 %v1202
    %2159 = vmatprep.subr.mxu0 0.0
    %2160 = vmatpush1.msra.mxu0 %v1208
    %2161 = vmatprep.subr.mxu0 0.0
    %2162 = vmatpush1.msra.mxu0 %v1212
    %2163 = vmatprep.subr.mxu0 0.0
    %2164 = vmatpush1.msra.mxu0 %v1218
    %2165 = vmatprep.subr.mxu0 0.0
    %2166 = vmatpush1.msra.mxu0 %v1222
    %2167 = vmatprep.subr.mxu0 0.0
    %2168 = vmatpush1.msra.mxu0 %v1228
    %2169 = vmatprep.subr.mxu0 0.0
    %2170 = vmatpush1.msra.mxu0 %v1232
    %2171 = vmatprep.subr.mxu0 0.0
    %2172 = vmatpush1.msra.mxu0 %v1238
    %2173 = vmatprep.subr.mxu0 0.0
    %2174 = vmatpush1.msra.mxu0 %v1242
    %2175 = vmatprep.subr.mxu0 0.0
    %2176 = vmatpush1.msra.mxu0 %v1248
    %2177 = vmatprep.subr.mxu0 0.0
    %2178 = vmatpush1.msra.mxu0 %v1252
    %2179 = vmatprep.subr.mxu0 0.0
    %2180 = vmatpush1.msra.mxu0 %v1258
    %2181 = vmatprep.subr.mxu0 0.0
    %2182 = vmatpush1.msra.mxu0 %v1262
    %2183 = vmatprep.subr.mxu0 0.0
    %2184 = vmatpush1.msra.mxu0 0.0
    %2185 = vmatprep.subr.mxu0 0.0
    %2186 = vmatpush1.msra.mxu0 0.0
    %2187 = vmatprep.subr.mxu0 0.0
    %2188 = vmatpush1.msra.mxu0 0.0
    %2189 = vmatprep.subr.mxu0 0.0
    %2190 = vmatpush1.msra.mxu0 0.0
    %2191 = vmatprep.subr.mxu0 0.0
    %2192 = vmatpush1.msra.mxu0 0.0
    %2193 = vmatprep.subr.mxu0 0.0
    %2194 = vmatpush1.msra.mxu0 0.0
    %2195 = vmatprep.subr.mxu0 0.0
    %2196 = vmatpush1.msra.mxu0 0.0
    %2197 = vmatprep.subr.mxu0 0.0
    %2198 = vmatpush1.msra.mxu0 0.0
    %2199 = vmatprep.subr.mxu0 0.0
    %2200 = vmatpush1.msra.mxu0 0.0
    %2201 = vmatprep.subr.mxu0 0.0
    %2202 = vmatpush1.msra.mxu0 0.0
    %2203 = vmatprep.subr.mxu0 0.0
    %2204 = vmatpush1.msra.mxu0 0.0
    %2205 = vmatprep.subr.mxu0 0.0
    %2206 = vmatpush1.msra.mxu0 0.0
    %2207 = vmatprep.subr.mxu0 0.0
    %2208 = vmatpush1.msra.mxu0 0.0
    %2209 = vmatprep.subr.mxu0 0.0
    %2210 = vmatpush1.msra.mxu0 0.0
    %2211 = vmatprep.subr.mxu0 0.0
    %2212 = vmatpush1.msra.mxu0 0.0
    %2213 = vmatprep.subr.mxu0 0.0
    %2214 = vmatpush1.msra.mxu0 0.0
    %2215 = vmatprep.mubr.f32.mxu0 0.0
    %2216 = vmatmul.mubr.f32.gmra.mrb[0].mxu0 %v2057
    %v2217 = vpop.f32.mrb[0].mxu0
    %v2218 = vadd.f32 %v2133, %v2217
    %v2219 = vpop.f32.mrb[0].mxu0
    %2220 = vmatprep.mubr.f32.mxu0 0.0
    %2221 = vmatmul.mubr.f32.gmra.mrb[0].mxu0 %v2058
    %v2222 = vpop.f32.mrb[0].mxu0
    %v2223 = vadd.f32 %v2138, %v2222
    %v2224 = vpop.f32.mrb[0].mxu0
    %2225 = vmatprep.mubr.f32.mxu0 0.0
    %2226 = vmatmul.mubr.f32.gmra.mrb[0].mxu0 %v2059
    %v2227 = vpop.f32.mrb[0].mxu0
    %v2228 = vadd.f32 %v2143, %v2227
    %v2229 = vpop.f32.mrb[0].mxu0
    %2230 = vmatprep.mubr.f32.mxu0 0.0
    %2231 = vmatmul.mubr.f32.gmra.mrb[0].mxu0 %v2060
    %v2232 = vpop.f32.mrb[0].mxu0
    %v2233 = vadd.f32 %v2148, %v2232
    %v2234 = vpop.f32.mrb[0].mxu0
    %2235 = vdwg.mxu0
    %s2236 = scalar_lea.vmem [#allocation5], 64
    %v2237 = vld [vmem:[%s2236] sm:$0xff]
    %v2238 = vld [vmem:[%s2236 + $0x8] sm:$0xff]
    %v2239 = vld [vmem:[%s2236 + $0x10] sm:$0xff]
    %v2240 = vld [vmem:[%s2236 + $0x18] sm:$0xff]
    %2241 = vmatprep.subr.mxu0 0.0
    %2242 = vmatpush1.msra.mxu0 %v1301
    %2243 = vmatprep.subr.mxu0 0.0
    %2244 = vmatpush1.msra.mxu0 %v1305
    %2245 = vmatprep.subr.mxu0 0.0
    %2246 = vmatpush1.msra.mxu0 %v1311
    %2247 = vmatprep.subr.mxu0 0.0
    %2248 = vmatpush1.msra.mxu0 %v1315
    %2249 = vmatprep.subr.mxu0 0.0
    %2250 = vmatpush1.msra.mxu0 %v1321
    %2251 = vmatprep.subr.mxu0 0.0
    %2252 = vmatpush1.msra.mxu0 %v1325
    %2253 = vmatprep.subr.mxu0 0.0
    %2254 = vmatpush1.msra.mxu0 %v1331
    %2255 = vmatprep.subr.mxu0 0.0
    %2256 = vmatpush1.msra.mxu0 %v1335
    %2257 = vmatprep.subr.mxu0 0.0
    %2258 = vmatpush1.msra.mxu0 %v1341
    %2259 = vmatprep.subr.mxu0 0.0
    %2260 = vmatpush1.msra.mxu0 %v1345
    %2261 = vmatprep.subr.mxu0 0.0
    %2262 = vmatpush1.msra.mxu0 %v1351
    %2263 = vmatprep.subr.mxu0 0.0
    %2264 = vmatpush1.msra.mxu0 %v1355
    %2265 = vmatprep.subr.mxu0 0.0
    %2266 = vmatpush1.msra.mxu0 %v1361
    %2267 = vmatprep.subr.mxu0 0.0
    %2268 = vmatpush1.msra.mxu0 %v1365
    %2269 = vmatprep.subr.mxu0 0.0
    %2270 = vmatpush1.msra.mxu0 %v1371
    %2271 = vmatprep.subr.mxu0 0.0
    %2272 = vmatpush1.msra.mxu0 %v1375
    %2273 = vmatprep.subr.mxu0 0.0
    %2274 = vmatpush1.msra.mxu0 0.0
    %2275 = vmatprep.subr.mxu0 0.0
    %2276 = vmatpush1.msra.mxu0 0.0
    %2277 = vmatprep.subr.mxu0 0.0
    %2278 = vmatpush1.msra.mxu0 0.0
    %2279 = vmatprep.subr.mxu0 0.0
    %2280 = vmatpush1.msra.mxu0 0.0
    %2281 = vmatprep.subr.mxu0 0.0
    %2282 = vmatpush1.msra.mxu0 0.0
    %2283 = vmatprep.subr.mxu0 0.0
    %2284 = vmatpush1.msra.mxu0 0.0
    %2285 = vmatprep.subr.mxu0 0.0
    %2286 = vmatpush1.msra.mxu0 0.0
    %2287 = vmatprep.subr.mxu0 0.0
    %2288 = vmatpush1.msra.mxu0 0.0
    %2289 = vmatprep.subr.mxu0 0.0
    %2290 = vmatpush1.msra.mxu0 0.0
    %2291 = vmatprep.subr.mxu0 0.0
    %2292 = vmatpush1.msra.mxu0 0.0
    %2293 = vmatprep.subr.mxu0 0.0
    %2294 = vmatpush1.msra.mxu0 0.0
    %2295 = vmatprep.subr.mxu0 0.0
    %2296 = vmatpush1.msra.mxu0 0.0
    %2297 = vmatprep.subr.mxu0 0.0
    %2298 = vmatpush1.msra.mxu0 0.0
    %2299 = vmatprep.subr.mxu0 0.0
    %2300 = vmatpush1.msra.mxu0 0.0
    %2301 = vmatprep.subr.mxu0 0.0
    %2302 = vmatpush1.msra.mxu0 0.0
    %2303 = vmatprep.subr.mxu0 0.0
    %2304 = vmatpush1.msra.mxu0 0.0
    %2305 = vmatprep.mubr.f32.mxu0 0.0
    %2306 = vmatmul.mubr.f32.gmra.mrb[0].mxu0 %v2237
    %v2307 = vpop.f32.mrb[0].mxu0
    %v2308 = vadd.f32 0.0, %v2307
    %v2309 = vpop.f32.mrb[0].mxu0
    %2310 = vmatprep.mubr.f32.mxu0 0.0
    %2311 = vmatmul.mubr.f32.gmra.mrb[0].mxu0 %v2238
    %v2312 = vpop.f32.mrb[0].mxu0
    %v2313 = vadd.f32 0.0, %v2312
    %v2314 = vpop.f32.mrb[0].mxu0
    %2315 = vmatprep.mubr.f32.mxu0 0.0
    %2316 = vmatmul.mubr.f32.gmra.mrb[0].mxu0 %v2239
    %v2317 = vpop.f32.mrb[0].mxu0
    %v2318 = vadd.f32 0.0, %v2317
    %v2319 = vpop.f32.mrb[0].mxu0
    %2320 = vmatprep.mubr.f32.mxu0 0.0
    %2321 = vmatmul.mubr.f32.gmra.mrb[0].mxu0 %v2240
    %v2322 = vpop.f32.mrb[0].mxu0
    %v2323 = vadd.f32 0.0, %v2322
    %v2324 = vpop.f32.mrb[0].mxu0
    %2325 = vdwg.mxu0
    %v2326 = vadd.f32 %v2218, %v2308
    %v2327 = vadd.f32 %v2223, %v2313
    %v2328 = vadd.f32 %v2228, %v2318
    %v2329 = vadd.f32 %v2233, %v2323
    %s2330 = scalar_lea.vmem [#allocation5], 96
    %v2331 = vld [vmem:[%s2330] sm:$0xff]
    %v2332 = vld [vmem:[%s2330 + $0x8] sm:$0xff]
    %v2333 = vld [vmem:[%s2330 + $0x10] sm:$0xff]
    %v2334 = vld [vmem:[%s2330 + $0x18] sm:$0xff]
    %2335 = vmatprep.subr.mxu0 0.0
    %2336 = vmatpush1.msra.mxu0 %v1303
    %2337 = vmatprep.subr.mxu0 0.0
    %2338 = vmatpush1.msra.mxu0 %v1307
    %2339 = vmatprep.subr.mxu0 0.0
    %2340 = vmatpush1.msra.mxu0 %v1313
    %2341 = vmatprep.subr.mxu0 0.0
    %2342 = vmatpush1.msra.mxu0 %v1317
    %2343 = vmatprep.subr.mxu0 0.0
    %2344 = vmatpush1.msra.mxu0 %v1323
    %2345 = vmatprep.subr.mxu0 0.0
    %2346 = vmatpush1.msra.mxu0 %v1327
    %2347 = vmatprep.subr.mxu0 0.0
    %2348 = vmatpush1.msra.mxu0 %v1333
    %2349 = vmatprep.subr.mxu0 0.0
    %2350 = vmatpush1.msra.mxu0 %v1337
    %2351 = vmatprep.subr.mxu0 0.0
    %2352 = vmatpush1.msra.mxu0 %v1343
    %2353 = vmatprep.subr.mxu0 0.0
    %2354 = vmatpush1.msra.mxu0 %v1347
    %2355 = vmatprep.subr.mxu0 0.0
    %2356 = vmatpush1.msra.mxu0 %v1353
    %2357 = vmatprep.subr.mxu0 0.0
    %2358 = vmatpush1.msra.mxu0 %v1357
    %2359 = vmatprep.subr.mxu0 0.0
    %2360 = vmatpush1.msra.mxu0 %v1363
    %2361 = vmatprep.subr.mxu0 0.0
    %2362 = vmatpush1.msra.mxu0 %v1367
    %2363 = vmatprep.subr.mxu0 0.0
    %2364 = vmatpush1.msra.mxu0 %v1373
    %2365 = vmatprep.subr.mxu0 0.0
    %2366 = vmatpush1.msra.mxu0 %v1377
    %2367 = vmatprep.subr.mxu0 0.0
    %2368 = vmatpush1.msra.mxu0 0.0
    %2369 = vmatprep.subr.mxu0 0.0
    %2370 = vmatpush1.msra.mxu0 0.0
    %2371 = vmatprep.subr.mxu0 0.0
    %2372 = vmatpush1.msra.mxu0 0.0
    %2373 = vmatprep.subr.mxu0 0.0
    %2374 = vmatpush1.msra.mxu0 0.0
    %2375 = vmatprep.subr.mxu0 0.0
    %2376 = vmatpush1.msra.mxu0 0.0
    %2377 = vmatprep.subr.mxu0 0.0
    %2378 = vmatpush1.msra.mxu0 0.0
    %2379 = vmatprep.subr.mxu0 0.0
    %2380 = vmatpush1.msra.mxu0 0.0
    %2381 = vmatprep.subr.mxu0 0.0
    %2382 = vmatpush1.msra.mxu0 0.0
    %2383 = vmatprep.subr.mxu0 0.0
    %2384 = vmatpush1.msra.mxu0 0.0
    %2385 = vmatprep.subr.mxu0 0.0
    %2386 = vmatpush1.msra.mxu0 0.0
    %2387 = vmatprep.subr.mxu0 0.0
    %2388 = vmatpush1.msra.mxu0 0.0
    %2389 = vmatprep.subr.mxu0 0.0
    %2390 = vmatpush1.msra.mxu0 0.0
    %2391 = vmatprep.subr.mxu0 0.0
    %2392 = vmatpush1.msra.mxu0 0.0
    %2393 = vmatprep.subr.mxu0 0.0
    %2394 = vmatpush1.msra.mxu0 0.0
    %2395 = vmatprep.subr.mxu0 0.0
    %2396 = vmatpush1.msra.mxu0 0.0
    %2397 = vmatprep.subr.mxu0 0.0
    %2398 = vmatpush1.msra.mxu0 0.0
    %2399 = vmatprep.mubr.f32.mxu0 0.0
    %2400 = vmatmul.mubr.f32.gmra.mrb[0].mxu0 %v2331
    %v2401 = vpop.f32.mrb[0].mxu0
    %v2402 = vadd.f32 0.0, %v2401
    %v2403 = vpop.f32.mrb[0].mxu0
    %2404 = vmatprep.mubr.f32.mxu0 0.0
    %2405 = vmatmul.mubr.f32.gmra.mrb[0].mxu0 %v2332
    %v2406 = vpop.f32.mrb[0].mxu0
    %v2407 = vadd.f32 0.0, %v2406
    %v2408 = vpop.f32.mrb[0].mxu0
    %2409 = vmatprep.mubr.f32.mxu0 0.0
    %2410 = vmatmul.mubr.f32.gmra.mrb[0].mxu0 %v2333
    %v2411 = vpop.f32.mrb[0].mxu0
    %v2412 = vadd.f32 0.0, %v2411
    %v2413 = vpop.f32.mrb[0].mxu0
    %2414 = vmatprep.mubr.f32.mxu0 0.0
    %2415 = vmatmul.mubr.f32.gmra.mrb[0].mxu0 %v2334
    %v2416 = vpop.f32.mrb[0].mxu0
    %v2417 = vadd.f32 0.0, %v2416
    %v2418 = vpop.f32.mrb[0].mxu0
    %2419 = vdwg.mxu0
    %v2420 = vadd.f32 %v2326, %v2402
    %v2421 = vadd.f32 %v2327, %v2407
    %v2422 = vadd.f32 %v2328, %v2412
    %v2423 = vadd.f32 %v2329, %v2417
    %s2424 = scalar_lea.vmem [#allocation5], 128
    %v2425 = vld [vmem:[%s2424] sm:$0xff]
    %v2426 = vld [vmem:[%s2424 + $0x8] sm:$0xff]
    %v2427 = vld [vmem:[%s2424 + $0x10] sm:$0xff]
    %v2428 = vld [vmem:[%s2424 + $0x18] sm:$0xff]
    %2429 = vmatprep.subr.mxu0 0.0
    %2430 = vmatpush1.msra.mxu0 %v1414
    %2431 = vmatprep.subr.mxu0 0.0
    %2432 = vmatpush1.msra.mxu0 %v1418
    %2433 = vmatprep.subr.mxu0 0.0
    %2434 = vmatpush1.msra.mxu0 %v1424
    %2435 = vmatprep.subr.mxu0 0.0
    %2436 = vmatpush1.msra.mxu0 %v1428
    %2437 = vmatprep.subr.mxu0 0.0
    %2438 = vmatpush1.msra.mxu0 %v1434
    %2439 = vmatprep.subr.mxu0 0.0
    %2440 = vmatpush1.msra.mxu0 %v1438
    %2441 = vmatprep.subr.mxu0 0.0
    %2442 = vmatpush1.msra.mxu0 %v1444
    %2443 = vmatprep.subr.mxu0 0.0
    %2444 = vmatpush1.msra.mxu0 %v1448
    %2445 = vmatprep.subr.mxu0 0.0
    %2446 = vmatpush1.msra.mxu0 %v1454
    %2447 = vmatprep.subr.mxu0 0.0
    %2448 = vmatpush1.msra.mxu0 %v1458
    %2449 = vmatprep.subr.mxu0 0.0
    %2450 = vmatpush1.msra.mxu0 %v1464
    %2451 = vmatprep.subr.mxu0 0.0
    %2452 = vmatpush1.msra.mxu0 %v1468
    %2453 = vmatprep.subr.mxu0 0.0
    %2454 = vmatpush1.msra.mxu0 %v1474
    %2455 = vmatprep.subr.mxu0 0.0
    %2456 = vmatpush1.msra.mxu0 %v1478
    %2457 = vmatprep.subr.mxu0 0.0
    %2458 = vmatpush1.msra.mxu0 %v1484
    %2459 = vmatprep.subr.mxu0 0.0
    %2460 = vmatpush1.msra.mxu0 %v1488
    %2461 = vmatprep.subr.mxu0 0.0
    %2462 = vmatpush1.msra.mxu0 0.0
    %2463 = vmatprep.subr.mxu0 0.0
    %2464 = vmatpush1.msra.mxu0 0.0
    %2465 = vmatprep.subr.mxu0 0.0
    %2466 = vmatpush1.msra.mxu0 0.0
    %2467 = vmatprep.subr.mxu0 0.0
    %2468 = vmatpush1.msra.mxu0 0.0
    %2469 = vmatprep.subr.mxu0 0.0
    %2470 = vmatpush1.msra.mxu0 0.0
    %2471 = vmatprep.subr.mxu0 0.0
    %2472 = vmatpush1.msra.mxu0 0.0
    %2473 = vmatprep.subr.mxu0 0.0
    %2474 = vmatpush1.msra.mxu0 0.0
    %2475 = vmatprep.subr.mxu0 0.0
    %2476 = vmatpush1.msra.mxu0 0.0
    %2477 = vmatprep.subr.mxu0 0.0
    %2478 = vmatpush1.msra.mxu0 0.0
    %2479 = vmatprep.subr.mxu0 0.0
    %2480 = vmatpush1.msra.mxu0 0.0
    %2481 = vmatprep.subr.mxu0 0.0
    %2482 = vmatpush1.msra.mxu0 0.0
    %2483 = vmatprep.subr.mxu0 0.0
    %2484 = vmatpush1.msra.mxu0 0.0
    %2485 = vmatprep.subr.mxu0 0.0
    %2486 = vmatpush1.msra.mxu0 0.0
    %2487 = vmatprep.subr.mxu0 0.0
    %2488 = vmatpush1.msra.mxu0 0.0
    %2489 = vmatprep.subr.mxu0 0.0
    %2490 = vmatpush1.msra.mxu0 0.0
    %2491 = vmatprep.subr.mxu0 0.0
    %2492 = vmatpush1.msra.mxu0 0.0
    %2493 = vmatprep.mubr.f32.mxu0 0.0
    %2494 = vmatmul.mubr.f32.gmra.mrb[0].mxu0 %v2425
    %v2495 = vpop.f32.mrb[0].mxu0
    %v2496 = vadd.f32 0.0, %v2495
    %v2497 = vpop.f32.mrb[0].mxu0
    %2498 = vmatprep.mubr.f32.mxu0 0.0
    %2499 = vmatmul.mubr.f32.gmra.mrb[0].mxu0 %v2426
    %v2500 = vpop.f32.mrb[0].mxu0
    %v2501 = vadd.f32 0.0, %v2500
    %v2502 = vpop.f32.mrb[0].mxu0
    %2503 = vmatprep.mubr.f32.mxu0 0.0
    %2504 = vmatmul.mubr.f32.gmra.mrb[0].mxu0 %v2427
    %v2505 = vpop.f32.mrb[0].mxu0
    %v2506 = vadd.f32 0.0, %v2505
    %v2507 = vpop.f32.mrb[0].mxu0
    %2508 = vmatprep.mubr.f32.mxu0 0.0
    %2509 = vmatmul.mubr.f32.gmra.mrb[0].mxu0 %v2428
    %v2510 = vpop.f32.mrb[0].mxu0
    %v2511 = vadd.f32 0.0, %v2510
    %v2512 = vpop.f32.mrb[0].mxu0
    %2513 = vdwg.mxu0
    %v2514 = vadd.f32 %v2420, %v2496
    %v2515 = vadd.f32 %v2421, %v2501
    %v2516 = vadd.f32 %v2422, %v2506
    %v2517 = vadd.f32 %v2423, %v2511
    %s2518 = scalar_lea.vmem [#allocation5], 160
    %v2519 = vld [vmem:[%s2518] sm:$0xff]
    %v2520 = vld [vmem:[%s2518 + $0x8] sm:$0xff]
    %v2521 = vld [vmem:[%s2518 + $0x10] sm:$0xff]
    %v2522 = vld [vmem:[%s2518 + $0x18] sm:$0xff]
    %2523 = vmatprep.subr.mxu0 0.0
    %2524 = vmatpush1.msra.mxu0 %v1416
    %2525 = vmatprep.subr.mxu0 0.0
    %2526 = vmatpush1.msra.mxu0 %v1420
    %2527 = vmatprep.subr.mxu0 0.0
    %2528 = vmatpush1.msra.mxu0 %v1426
    %2529 = vmatprep.subr.mxu0 0.0
    %2530 = vmatpush1.msra.mxu0 %v1430
    %2531 = vmatprep.subr.mxu0 0.0
    %2532 = vmatpush1.msra.mxu0 %v1436
    %2533 = vmatprep.subr.mxu0 0.0
    %2534 = vmatpush1.msra.mxu0 %v1440
    %2535 = vmatprep.subr.mxu0 0.0
    %2536 = vmatpush1.msra.mxu0 %v1446
    %2537 = vmatprep.subr.mxu0 0.0
    %2538 = vmatpush1.msra.mxu0 %v1450
    %2539 = vmatprep.subr.mxu0 0.0
    %2540 = vmatpush1.msra.mxu0 %v1456
    %2541 = vmatprep.subr.mxu0 0.0
    %2542 = vmatpush1.msra.mxu0 %v1460
    %2543 = vmatprep.subr.mxu0 0.0
    %2544 = vmatpush1.msra.mxu0 %v1466
    %2545 = vmatprep.subr.mxu0 0.0
    %2546 = vmatpush1.msra.mxu0 %v1470
    %2547 = vmatprep.subr.mxu0 0.0
    %2548 = vmatpush1.msra.mxu0 %v1476
    %2549 = vmatprep.subr.mxu0 0.0
    %2550 = vmatpush1.msra.mxu0 %v1480
    %2551 = vmatprep.subr.mxu0 0.0
    %2552 = vmatpush1.msra.mxu0 %v1486
    %2553 = vmatprep.subr.mxu0 0.0
    %2554 = vmatpush1.msra.mxu0 %v1490
    %2555 = vmatprep.subr.mxu0 0.0
    %2556 = vmatpush1.msra.mxu0 0.0
    %2557 = vmatprep.subr.mxu0 0.0
    %2558 = vmatpush1.msra.mxu0 0.0
    %2559 = vmatprep.subr.mxu0 0.0
    %2560 = vmatpush1.msra.mxu0 0.0
    %2561 = vmatprep.subr.mxu0 0.0
    %2562 = vmatpush1.msra.mxu0 0.0
    %2563 = vmatprep.subr.mxu0 0.0
    %2564 = vmatpush1.msra.mxu0 0.0
    %2565 = vmatprep.subr.mxu0 0.0
    %2566 = vmatpush1.msra.mxu0 0.0
    %2567 = vmatprep.subr.mxu0 0.0
    %2568 = vmatpush1.msra.mxu0 0.0
    %2569 = vmatprep.subr.mxu0 0.0
    %2570 = vmatpush1.msra.mxu0 0.0
    %2571 = vmatprep.subr.mxu0 0.0
    %2572 = vmatpush1.msra.mxu0 0.0
    %2573 = vmatprep.subr.mxu0 0.0
    %2574 = vmatpush1.msra.mxu0 0.0
    %2575 = vmatprep.subr.mxu0 0.0
    %2576 = vmatpush1.msra.mxu0 0.0
    %2577 = vmatprep.subr.mxu0 0.0
    %2578 = vmatpush1.msra.mxu0 0.0
    %2579 = vmatprep.subr.mxu0 0.0
    %2580 = vmatpush1.msra.mxu0 0.0
    %2581 = vmatprep.subr.mxu0 0.0
    %2582 = vmatpush1.msra.mxu0 0.0
    %2583 = vmatprep.subr.mxu0 0.0
    %2584 = vmatpush1.msra.mxu0 0.0
    %2585 = vmatprep.subr.mxu0 0.0
    %2586 = vmatpush1.msra.mxu0 0.0
    %2587 = vmatprep.mubr.f32.mxu0 0.0
    %2588 = vmatmul.mubr.f32.gmra.mrb[0].mxu0 %v2519
    %v2589 = vpop.f32.mrb[0].mxu0
    %v2590 = vadd.f32 0.0, %v2589
    %v2591 = vpop.f32.mrb[0].mxu0
    %2592 = vmatprep.mubr.f32.mxu0 0.0
    %2593 = vmatmul.mubr.f32.gmra.mrb[0].mxu0 %v2520
    %v2594 = vpop.f32.mrb[0].mxu0
    %v2595 = vadd.f32 0.0, %v2594
    %v2596 = vpop.f32.mrb[0].mxu0
    %2597 = vmatprep.mubr.f32.mxu0 0.0
    %2598 = vmatmul.mubr.f32.gmra.mrb[0].mxu0 %v2521
    %v2599 = vpop.f32.mrb[0].mxu0
    %v2600 = vadd.f32 0.0, %v2599
    %v2601 = vpop.f32.mrb[0].mxu0
    %2602 = vmatprep.mubr.f32.mxu0 0.0
    %2603 = vmatmul.mubr.f32.gmra.mrb[0].mxu0 %v2522
    %v2604 = vpop.f32.mrb[0].mxu0
    %v2605 = vadd.f32 0.0, %v2604
    %v2606 = vpop.f32.mrb[0].mxu0
    %2607 = vdwg.mxu0
    %v2608 = vadd.f32 %v2514, %v2590
    %v2609 = vadd.f32 %v2515, %v2595
    %v2610 = vadd.f32 %v2516, %v2600
    %v2611 = vadd.f32 %v2517, %v2605
    %s2612 = scalar_lea.vmem [#allocation5], 192
    %v2613 = vld [vmem:[%s2612] sm:$0xff]
    %v2614 = vld [vmem:[%s2612 + $0x8] sm:$0xff]
    %v2615 = vld [vmem:[%s2612 + $0x10] sm:$0xff]
    %v2616 = vld [vmem:[%s2612 + $0x18] sm:$0xff]
    %2617 = vmatprep.subr.mxu0 0.0
    %2618 = vmatpush1.msra.mxu0 %v1527
    %2619 = vmatprep.subr.mxu0 0.0
    %2620 = vmatpush1.msra.mxu0 %v1531
    %2621 = vmatprep.subr.mxu0 0.0
    %2622 = vmatpush1.msra.mxu0 %v1537
    %2623 = vmatprep.subr.mxu0 0.0
    %2624 = vmatpush1.msra.mxu0 %v1541
    %2625 = vmatprep.subr.mxu0 0.0
    %2626 = vmatpush1.msra.mxu0 %v1547
    %2627 = vmatprep.subr.mxu0 0.0
    %2628 = vmatpush1.msra.mxu0 %v1551
    %2629 = vmatprep.subr.mxu0 0.0
    %2630 = vmatpush1.msra.mxu0 %v1557
    %2631 = vmatprep.subr.mxu0 0.0
    %2632 = vmatpush1.msra.mxu0 %v1561
    %2633 = vmatprep.subr.mxu0 0.0
    %2634 = vmatpush1.msra.mxu0 %v1567
    %2635 = vmatprep.subr.mxu0 0.0
    %2636 = vmatpush1.msra.mxu0 %v1571
    %2637 = vmatprep.subr.mxu0 0.0
    %2638 = vmatpush1.msra.mxu0 %v1577
    %2639 = vmatprep.subr.mxu0 0.0
    %2640 = vmatpush1.msra.mxu0 %v1581
    %2641 = vmatprep.subr.mxu0 0.0
    %2642 = vmatpush1.msra.mxu0 %v1587
    %2643 = vmatprep.subr.mxu0 0.0
    %2644 = vmatpush1.msra.mxu0 %v1591
    %2645 = vmatprep.subr.mxu0 0.0
    %2646 = vmatpush1.msra.mxu0 %v1597
    %2647 = vmatprep.subr.mxu0 0.0
    %2648 = vmatpush1.msra.mxu0 %v1601
    %2649 = vmatprep.subr.mxu0 0.0
    %2650 = vmatpush1.msra.mxu0 0.0
    %2651 = vmatprep.subr.mxu0 0.0
    %2652 = vmatpush1.msra.mxu0 0.0
    %2653 = vmatprep.subr.mxu0 0.0
    %2654 = vmatpush1.msra.mxu0 0.0
    %2655 = vmatprep.subr.mxu0 0.0
    %2656 = vmatpush1.msra.mxu0 0.0
    %2657 = vmatprep.subr.mxu0 0.0
    %2658 = vmatpush1.msra.mxu0 0.0
    %2659 = vmatprep.subr.mxu0 0.0
    %2660 = vmatpush1.msra.mxu0 0.0
    %2661 = vmatprep.subr.mxu0 0.0
    %2662 = vmatpush1.msra.mxu0 0.0
    %2663 = vmatprep.subr.mxu0 0.0
    %2664 = vmatpush1.msra.mxu0 0.0
    %2665 = vmatprep.subr.mxu0 0.0
    %2666 = vmatpush1.msra.mxu0 0.0
    %2667 = vmatprep.subr.mxu0 0.0
    %2668 = vmatpush1.msra.mxu0 0.0
    %2669 = vmatprep.subr.mxu0 0.0
    %2670 = vmatpush1.msra.mxu0 0.0
    %2671 = vmatprep.subr.mxu0 0.0
    %2672 = vmatpush1.msra.mxu0 0.0
    %2673 = vmatprep.subr.mxu0 0.0
    %2674 = vmatpush1.msra.mxu0 0.0
    %2675 = vmatprep.subr.mxu0 0.0
    %2676 = vmatpush1.msra.mxu0 0.0
    %2677 = vmatprep.subr.mxu0 0.0
    %2678 = vmatpush1.msra.mxu0 0.0
    %2679 = vmatprep.subr.mxu0 0.0
    %2680 = vmatpush1.msra.mxu0 0.0
    %2681 = vmatprep.mubr.f32.mxu0 0.0
    %2682 = vmatmul.mubr.f32.gmra.mrb[0].mxu0 %v2613
    %v2683 = vpop.f32.mrb[0].mxu0
    %v2684 = vadd.f32 0.0, %v2683
    %v2685 = vpop.f32.mrb[0].mxu0
    %2686 = vmatprep.mubr.f32.mxu0 0.0
    %2687 = vmatmul.mubr.f32.gmra.mrb[0].mxu0 %v2614
    %v2688 = vpop.f32.mrb[0].mxu0
    %v2689 = vadd.f32 0.0, %v2688
    %v2690 = vpop.f32.mrb[0].mxu0
    %2691 = vmatprep.mubr.f32.mxu0 0.0
    %2692 = vmatmul.mubr.f32.gmra.mrb[0].mxu0 %v2615
    %v2693 = vpop.f32.mrb[0].mxu0
    %v2694 = vadd.f32 0.0, %v2693
    %v2695 = vpop.f32.mrb[0].mxu0
    %2696 = vmatprep.mubr.f32.mxu0 0.0
    %2697 = vmatmul.mubr.f32.gmra.mrb[0].mxu0 %v2616
    %v2698 = vpop.f32.mrb[0].mxu0
    %v2699 = vadd.f32 0.0, %v2698
    %v2700 = vpop.f32.mrb[0].mxu0
    %2701 = vdwg.mxu0
    %v2702 = vadd.f32 %v2608, %v2684
    %v2703 = vadd.f32 %v2609, %v2689
    %v2704 = vadd.f32 %v2610, %v2694
    %v2705 = vadd.f32 %v2611, %v2699
    %s2706 = scalar_lea.vmem [#allocation5], 224
    %v2707 = vld [vmem:[%s2706] sm:$0xff]
    %v2708 = vld [vmem:[%s2706 + $0x8] sm:$0xff]
    %v2709 = vld [vmem:[%s2706 + $0x10] sm:$0xff]
    %v2710 = vld [vmem:[%s2706 + $0x18] sm:$0xff]
    %2711 = vmatprep.subr.mxu0 0.0
    %2712 = vmatpush1.msra.mxu0 %v1529
    %2713 = vmatprep.subr.mxu0 0.0
    %2714 = vmatpush1.msra.mxu0 %v1533
    %2715 = vmatprep.subr.mxu0 0.0
    %2716 = vmatpush1.msra.mxu0 %v1539
    %2717 = vmatprep.subr.mxu0 0.0
    %2718 = vmatpush1.msra.mxu0 %v1543
    %2719 = vmatprep.subr.mxu0 0.0
    %2720 = vmatpush1.msra.mxu0 %v1549
    %2721 = vmatprep.subr.mxu0 0.0
    %2722 = vmatpush1.msra.mxu0 %v1553
    %2723 = vmatprep.subr.mxu0 0.0
    %2724 = vmatpush1.msra.mxu0 %v1559
    %2725 = vmatprep.subr.mxu0 0.0
    %2726 = vmatpush1.msra.mxu0 %v1563
    %2727 = vmatprep.subr.mxu0 0.0
    %2728 = vmatpush1.msra.mxu0 %v1569
    %2729 = vmatprep.subr.mxu0 0.0
    %2730 = vmatpush1.msra.mxu0 %v1573
    %2731 = vmatprep.subr.mxu0 0.0
    %2732 = vmatpush1.msra.mxu0 %v1579
    %2733 = vmatprep.subr.mxu0 0.0
    %2734 = vmatpush1.msra.mxu0 %v1583
    %2735 = vmatprep.subr.mxu0 0.0
    %2736 = vmatpush1.msra.mxu0 %v1589
    %2737 = vmatprep.subr.mxu0 0.0
    %2738 = vmatpush1.msra.mxu0 %v1593
    %2739 = vmatprep.subr.mxu0 0.0
    %2740 = vmatpush1.msra.mxu0 %v1599
    %2741 = vmatprep.subr.mxu0 0.0
    %2742 = vmatpush1.msra.mxu0 %v1603
    %2743 = vmatprep.subr.mxu0 0.0
    %2744 = vmatpush1.msra.mxu0 0.0
    %2745 = vmatprep.subr.mxu0 0.0
    %2746 = vmatpush1.msra.mxu0 0.0
    %2747 = vmatprep.subr.mxu0 0.0
    %2748 = vmatpush1.msra.mxu0 0.0
    %2749 = vmatprep.subr.mxu0 0.0
    %2750 = vmatpush1.msra.mxu0 0.0
    %2751 = vmatprep.subr.mxu0 0.0
    %2752 = vmatpush1.msra.mxu0 0.0
    %2753 = vmatprep.subr.mxu0 0.0
    %2754 = vmatpush1.msra.mxu0 0.0
    %2755 = vmatprep.subr.mxu0 0.0
    %2756 = vmatpush1.msra.mxu0 0.0
    %2757 = vmatprep.subr.mxu0 0.0
    %2758 = vmatpush1.msra.mxu0 0.0
    %2759 = vmatprep.subr.mxu0 0.0
    %2760 = vmatpush1.msra.mxu0 0.0
    %2761 = vmatprep.subr.mxu0 0.0
    %2762 = vmatpush1.msra.mxu0 0.0
    %2763 = vmatprep.subr.mxu0 0.0
    %2764 = vmatpush1.msra.mxu0 0.0
    %2765 = vmatprep.subr.mxu0 0.0
    %2766 = vmatpush1.msra.mxu0 0.0
    %2767 = vmatprep.subr.mxu0 0.0
    %2768 = vmatpush1.msra.mxu0 0.0
    %2769 = vmatprep.subr.mxu0 0.0
    %2770 = vmatpush1.msra.mxu0 0.0
    %2771 = vmatprep.subr.mxu0 0.0
    %2772 = vmatpush1.msra.mxu0 0.0
    %2773 = vmatprep.subr.mxu0 0.0
    %2774 = vmatpush1.msra.mxu0 0.0
    %2775 = vmatprep.mubr.f32.mxu0 0.0
    %2776 = vmatmul.mubr.f32.gmra.mrb[0].mxu0 %v2707
    %v2777 = vpop.f32.mrb[0].mxu0
    %v2778 = vadd.f32 0.0, %v2777
    %v2779 = vpop.f32.mrb[0].mxu0
    %2780 = vmatprep.mubr.f32.mxu0 0.0
    %2781 = vmatmul.mubr.f32.gmra.mrb[0].mxu0 %v2708
    %v2782 = vpop.f32.mrb[0].mxu0
    %v2783 = vadd.f32 0.0, %v2782
    %v2784 = vpop.f32.mrb[0].mxu0
    %2785 = vmatprep.mubr.f32.mxu0 0.0
    %2786 = vmatmul.mubr.f32.gmra.mrb[0].mxu0 %v2709
    %v2787 = vpop.f32.mrb[0].mxu0
    %v2788 = vadd.f32 0.0, %v2787
    %v2789 = vpop.f32.mrb[0].mxu0
    %2790 = vmatprep.mubr.f32.mxu0 0.0
    %2791 = vmatmul.mubr.f32.gmra.mrb[0].mxu0 %v2710
    %v2792 = vpop.f32.mrb[0].mxu0
    %v2793 = vadd.f32 0.0, %v2792
    %v2794 = vpop.f32.mrb[0].mxu0
    %2795 = vdwg.mxu0
    %v2796 = vadd.f32 %v2702, %v2778
    %v2797 = vadd.f32 %v2703, %v2783
    %v2798 = vadd.f32 %v2704, %v2788
    %v2799 = vadd.f32 %v2705, %v2793
    %s2800 = scalar_lea.vmem [#allocation5], 256
    %v2801 = vld [vmem:[%s2800] sm:$0xff]
    %v2802 = vld [vmem:[%s2800 + $0x8] sm:$0xff]
    %v2803 = vld [vmem:[%s2800 + $0x10] sm:$0xff]
    %v2804 = vld [vmem:[%s2800 + $0x18] sm:$0xff]
    %2805 = vmatprep.subr.mxu0 0.0
    %2806 = vmatpush1.msra.mxu0 %v1640
    %2807 = vmatprep.subr.mxu0 0.0
    %2808 = vmatpush1.msra.mxu0 %v1644
    %2809 = vmatprep.subr.mxu0 0.0
    %2810 = vmatpush1.msra.mxu0 %v1650
    %2811 = vmatprep.subr.mxu0 0.0
    %2812 = vmatpush1.msra.mxu0 %v1654
    %2813 = vmatprep.subr.mxu0 0.0
    %2814 = vmatpush1.msra.mxu0 %v1660
    %2815 = vmatprep.subr.mxu0 0.0
    %2816 = vmatpush1.msra.mxu0 %v1664
    %2817 = vmatprep.subr.mxu0 0.0
    %2818 = vmatpush1.msra.mxu0 %v1670
    %2819 = vmatprep.subr.mxu0 0.0
    %2820 = vmatpush1.msra.mxu0 %v1674
    %2821 = vmatprep.subr.mxu0 0.0
    %2822 = vmatpush1.msra.mxu0 %v1680
    %2823 = vmatprep.subr.mxu0 0.0
    %2824 = vmatpush1.msra.mxu0 %v1684
    %2825 = vmatprep.subr.mxu0 0.0
    %2826 = vmatpush1.msra.mxu0 %v1690
    %2827 = vmatprep.subr.mxu0 0.0
    %2828 = vmatpush1.msra.mxu0 %v1694
    %2829 = vmatprep.subr.mxu0 0.0
    %2830 = vmatpush1.msra.mxu0 %v1700
    %2831 = vmatprep.subr.mxu0 0.0
    %2832 = vmatpush1.msra.mxu0 %v1704
    %2833 = vmatprep.subr.mxu0 0.0
    %2834 = vmatpush1.msra.mxu0 %v1710
    %2835 = vmatprep.subr.mxu0 0.0
    %2836 = vmatpush1.msra.mxu0 %v1714
    %2837 = vmatprep.subr.mxu0 0.0
    %2838 = vmatpush1.msra.mxu0 0.0
    %2839 = vmatprep.subr.mxu0 0.0
    %2840 = vmatpush1.msra.mxu0 0.0
    %2841 = vmatprep.subr.mxu0 0.0
    %2842 = vmatpush1.msra.mxu0 0.0
    %2843 = vmatprep.subr.mxu0 0.0
    %2844 = vmatpush1.msra.mxu0 0.0
    %2845 = vmatprep.subr.mxu0 0.0
    %2846 = vmatpush1.msra.mxu0 0.0
    %2847 = vmatprep.subr.mxu0 0.0
    %2848 = vmatpush1.msra.mxu0 0.0
    %2849 = vmatprep.subr.mxu0 0.0
    %2850 = vmatpush1.msra.mxu0 0.0
    %2851 = vmatprep.subr.mxu0 0.0
    %2852 = vmatpush1.msra.mxu0 0.0
    %2853 = vmatprep.subr.mxu0 0.0
    %2854 = vmatpush1.msra.mxu0 0.0
    %2855 = vmatprep.subr.mxu0 0.0
    %2856 = vmatpush1.msra.mxu0 0.0
    %2857 = vmatprep.subr.mxu0 0.0
    %2858 = vmatpush1.msra.mxu0 0.0
    %2859 = vmatprep.subr.mxu0 0.0
    %2860 = vmatpush1.msra.mxu0 0.0
    %2861 = vmatprep.subr.mxu0 0.0
    %2862 = vmatpush1.msra.mxu0 0.0
    %2863 = vmatprep.subr.mxu0 0.0
    %2864 = vmatpush1.msra.mxu0 0.0
    %2865 = vmatprep.subr.mxu0 0.0
    %2866 = vmatpush1.msra.mxu0 0.0
    %2867 = vmatprep.subr.mxu0 0.0
    %2868 = vmatpush1.msra.mxu0 0.0
    %2869 = vmatprep.mubr.f32.mxu0 0.0
    %2870 = vmatmul.mubr.f32.gmra.mrb[0].mxu0 %v2801
    %v2871 = vpop.f32.mrb[0].mxu0
    %v2872 = vadd.f32 0.0, %v2871
    %v2873 = vpop.f32.mrb[0].mxu0
    %2874 = vmatprep.mubr.f32.mxu0 0.0
    %2875 = vmatmul.mubr.f32.gmra.mrb[0].mxu0 %v2802
    %v2876 = vpop.f32.mrb[0].mxu0
    %v2877 = vadd.f32 0.0, %v2876
    %v2878 = vpop.f32.mrb[0].mxu0
    %2879 = vmatprep.mubr.f32.mxu0 0.0
    %2880 = vmatmul.mubr.f32.gmra.mrb[0].mxu0 %v2803
    %v2881 = vpop.f32.mrb[0].mxu0
    %v2882 = vadd.f32 0.0, %v2881
    %v2883 = vpop.f32.mrb[0].mxu0
    %2884 = vmatprep.mubr.f32.mxu0 0.0
    %2885 = vmatmul.mubr.f32.gmra.mrb[0].mxu0 %v2804
    %v2886 = vpop.f32.mrb[0].mxu0
    %v2887 = vadd.f32 0.0, %v2886
    %v2888 = vpop.f32.mrb[0].mxu0
    %2889 = vdwg.mxu0
    %v2890 = vadd.f32 %v2796, %v2872
    %v2891 = vadd.f32 %v2797, %v2877
    %v2892 = vadd.f32 %v2798, %v2882
    %v2893 = vadd.f32 %v2799, %v2887
    %s2894 = scalar_lea.vmem [#allocation5], 288
    %v2895 = vld [vmem:[%s2894] sm:$0xff]
    %v2896 = vld [vmem:[%s2894 + $0x8] sm:$0xff]
    %v2897 = vld [vmem:[%s2894 + $0x10] sm:$0xff]
    %v2898 = vld [vmem:[%s2894 + $0x18] sm:$0xff]
    %2899 = vmatprep.subr.mxu0 0.0
    %2900 = vmatpush1.msra.mxu0 %v1642
    %2901 = vmatprep.subr.mxu0 0.0
    %2902 = vmatpush1.msra.mxu0 %v1646
    %2903 = vmatprep.subr.mxu0 0.0
    %2904 = vmatpush1.msra.mxu0 %v1652
    %2905 = vmatprep.subr.mxu0 0.0
    %2906 = vmatpush1.msra.mxu0 %v1656
    %2907 = vmatprep.subr.mxu0 0.0
    %2908 = vmatpush1.msra.mxu0 %v1662
    %2909 = vmatprep.subr.mxu0 0.0
    %2910 = vmatpush1.msra.mxu0 %v1666
    %2911 = vmatprep.subr.mxu0 0.0
    %2912 = vmatpush1.msra.mxu0 %v1672
    %2913 = vmatprep.subr.mxu0 0.0
    %2914 = vmatpush1.msra.mxu0 %v1676
    %2915 = vmatprep.subr.mxu0 0.0
    %2916 = vmatpush1.msra.mxu0 %v1682
    %2917 = vmatprep.subr.mxu0 0.0
    %2918 = vmatpush1.msra.mxu0 %v1686
    %2919 = vmatprep.subr.mxu0 0.0
    %2920 = vmatpush1.msra.mxu0 %v1692
    %2921 = vmatprep.subr.mxu0 0.0
    %2922 = vmatpush1.msra.mxu0 %v1696
    %2923 = vmatprep.subr.mxu0 0.0
    %2924 = vmatpush1.msra.mxu0 %v1702
    %2925 = vmatprep.subr.mxu0 0.0
    %2926 = vmatpush1.msra.mxu0 %v1706
    %2927 = vmatprep.subr.mxu0 0.0
    %2928 = vmatpush1.msra.mxu0 %v1712
    %2929 = vmatprep.subr.mxu0 0.0
    %2930 = vmatpush1.msra.mxu0 %v1716
    %2931 = vmatprep.subr.mxu0 0.0
    %2932 = vmatpush1.msra.mxu0 0.0
    %2933 = vmatprep.subr.mxu0 0.0
    %2934 = vmatpush1.msra.mxu0 0.0
    %2935 = vmatprep.subr.mxu0 0.0
    %2936 = vmatpush1.msra.mxu0 0.0
    %2937 = vmatprep.subr.mxu0 0.0
    %2938 = vmatpush1.msra.mxu0 0.0
    %2939 = vmatprep.subr.mxu0 0.0
    %2940 = vmatpush1.msra.mxu0 0.0
    %2941 = vmatprep.subr.mxu0 0.0
    %2942 = vmatpush1.msra.mxu0 0.0
    %2943 = vmatprep.subr.mxu0 0.0
    %2944 = vmatpush1.msra.mxu0 0.0
    %2945 = vmatprep.subr.mxu0 0.0
    %2946 = vmatpush1.msra.mxu0 0.0
    %2947 = vmatprep.subr.mxu0 0.0
    %2948 = vmatpush1.msra.mxu0 0.0
    %2949 = vmatprep.subr.mxu0 0.0
    %2950 = vmatpush1.msra.mxu0 0.0
    %2951 = vmatprep.subr.mxu0 0.0
    %2952 = vmatpush1.msra.mxu0 0.0
    %2953 = vmatprep.subr.mxu0 0.0
    %2954 = vmatpush1.msra.mxu0 0.0
    %2955 = vmatprep.subr.mxu0 0.0
    %2956 = vmatpush1.msra.mxu0 0.0
    %2957 = vmatprep.subr.mxu0 0.0
    %2958 = vmatpush1.msra.mxu0 0.0
    %2959 = vmatprep.subr.mxu0 0.0
    %2960 = vmatpush1.msra.mxu0 0.0
    %2961 = vmatprep.subr.mxu0 0.0
    %2962 = vmatpush1.msra.mxu0 0.0
    %2963 = vmatprep.mubr.f32.mxu0 0.0
    %2964 = vmatmul.mubr.f32.gmra.mrb[0].mxu0 %v2895
    %v2965 = vpop.f32.mrb[0].mxu0
    %v2966 = vadd.f32 0.0, %v2965
    %v2967 = vpop.f32.mrb[0].mxu0
    %2968 = vmatprep.mubr.f32.mxu0 0.0
    %2969 = vmatmul.mubr.f32.gmra.mrb[0].mxu0 %v2896
    %v2970 = vpop.f32.mrb[0].mxu0
    %v2971 = vadd.f32 0.0, %v2970
    %v2972 = vpop.f32.mrb[0].mxu0
    %2973 = vmatprep.mubr.f32.mxu0 0.0
    %2974 = vmatmul.mubr.f32.gmra.mrb[0].mxu0 %v2897
    %v2975 = vpop.f32.mrb[0].mxu0
    %v2976 = vadd.f32 0.0, %v2975
    %v2977 = vpop.f32.mrb[0].mxu0
    %2978 = vmatprep.mubr.f32.mxu0 0.0
    %2979 = vmatmul.mubr.f32.gmra.mrb[0].mxu0 %v2898
    %v2980 = vpop.f32.mrb[0].mxu0
    %v2981 = vadd.f32 0.0, %v2980
    %v2982 = vpop.f32.mrb[0].mxu0
    %2983 = vdwg.mxu0
    %v2984 = vadd.f32 %v2890, %v2966
    %v2985 = vadd.f32 %v2891, %v2971
    %v2986 = vadd.f32 %v2892, %v2976
    %v2987 = vadd.f32 %v2893, %v2981
    %s2988 = scalar_lea.vmem [#allocation5], 320
    %v2989 = vld [vmem:[%s2988] sm:$0xff]
    %v2990 = vld [vmem:[%s2988 + $0x8] sm:$0xff]
    %v2991 = vld [vmem:[%s2988 + $0x10] sm:$0xff]
    %v2992 = vld [vmem:[%s2988 + $0x18] sm:$0xff]
    %2993 = vmatprep.subr.mxu0 0.0
    %2994 = vmatpush1.msra.mxu0 %v1753
    %2995 = vmatprep.subr.mxu0 0.0
    %2996 = vmatpush1.msra.mxu0 %v1757
    %2997 = vmatprep.subr.mxu0 0.0
    %2998 = vmatpush1.msra.mxu0 %v1763
    %2999 = vmatprep.subr.mxu0 0.0
    %3000 = vmatpush1.msra.mxu0 %v1767
    %3001 = vmatprep.subr.mxu0 0.0
    %3002 = vmatpush1.msra.mxu0 %v1773
    %3003 = vmatprep.subr.mxu0 0.0
    %3004 = vmatpush1.msra.mxu0 %v1777
    %3005 = vmatprep.subr.mxu0 0.0
    %3006 = vmatpush1.msra.mxu0 %v1783
    %3007 = vmatprep.subr.mxu0 0.0
    %3008 = vmatpush1.msra.mxu0 %v1787
    %3009 = vmatprep.subr.mxu0 0.0
    %3010 = vmatpush1.msra.mxu0 %v1793
    %3011 = vmatprep.subr.mxu0 0.0
    %3012 = vmatpush1.msra.mxu0 %v1797
    %3013 = vmatprep.subr.mxu0 0.0
    %3014 = vmatpush1.msra.mxu0 %v1803
    %3015 = vmatprep.subr.mxu0 0.0
    %3016 = vmatpush1.msra.mxu0 %v1807
    %3017 = vmatprep.subr.mxu0 0.0
    %3018 = vmatpush1.msra.mxu0 %v1813
    %3019 = vmatprep.subr.mxu0 0.0
    %3020 = vmatpush1.msra.mxu0 %v1817
    %3021 = vmatprep.subr.mxu0 0.0
    %3022 = vmatpush1.msra.mxu0 %v1823
    %3023 = vmatprep.subr.mxu0 0.0
    %3024 = vmatpush1.msra.mxu0 %v1827
    %3025 = vmatprep.subr.mxu0 0.0
    %3026 = vmatpush1.msra.mxu0 0.0
    %3027 = vmatprep.subr.mxu0 0.0
    %3028 = vmatpush1.msra.mxu0 0.0
    %3029 = vmatprep.subr.mxu0 0.0
    %3030 = vmatpush1.msra.mxu0 0.0
    %3031 = vmatprep.subr.mxu0 0.0
    %3032 = vmatpush1.msra.mxu0 0.0
    %3033 = vmatprep.subr.mxu0 0.0
    %3034 = vmatpush1.msra.mxu0 0.0
    %3035 = vmatprep.subr.mxu0 0.0
    %3036 = vmatpush1.msra.mxu0 0.0
    %3037 = vmatprep.subr.mxu0 0.0
    %3038 = vmatpush1.msra.mxu0 0.0
    %3039 = vmatprep.subr.mxu0 0.0
    %3040 = vmatpush1.msra.mxu0 0.0
    %3041 = vmatprep.subr.mxu0 0.0
    %3042 = vmatpush1.msra.mxu0 0.0
    %3043 = vmatprep.subr.mxu0 0.0
    %3044 = vmatpush1.msra.mxu0 0.0
    %3045 = vmatprep.subr.mxu0 0.0
    %3046 = vmatpush1.msra.mxu0 0.0
    %3047 = vmatprep.subr.mxu0 0.0
    %3048 = vmatpush1.msra.mxu0 0.0
    %3049 = vmatprep.subr.mxu0 0.0
    %3050 = vmatpush1.msra.mxu0 0.0
    %3051 = vmatprep.subr.mxu0 0.0
    %3052 = vmatpush1.msra.mxu0 0.0
    %3053 = vmatprep.subr.mxu0 0.0
    %3054 = vmatpush1.msra.mxu0 0.0
    %3055 = vmatprep.subr.mxu0 0.0
    %3056 = vmatpush1.msra.mxu0 0.0
    %3057 = vmatprep.mubr.f32.mxu0 0.0
    %3058 = vmatmul.mubr.f32.gmra.mrb[0].mxu0 %v2989
    %v3059 = vpop.f32.mrb[0].mxu0
    %v3060 = vadd.f32 0.0, %v3059
    %v3061 = vpop.f32.mrb[0].mxu0
    %3062 = vmatprep.mubr.f32.mxu0 0.0
    %3063 = vmatmul.mubr.f32.gmra.mrb[0].mxu0 %v2990
    %v3064 = vpop.f32.mrb[0].mxu0
    %v3065 = vadd.f32 0.0, %v3064
    %v3066 = vpop.f32.mrb[0].mxu0
    %3067 = vmatprep.mubr.f32.mxu0 0.0
    %3068 = vmatmul.mubr.f32.gmra.mrb[0].mxu0 %v2991
    %v3069 = vpop.f32.mrb[0].mxu0
    %v3070 = vadd.f32 0.0, %v3069
    %v3071 = vpop.f32.mrb[0].mxu0
    %3072 = vmatprep.mubr.f32.mxu0 0.0
    %3073 = vmatmul.mubr.f32.gmra.mrb[0].mxu0 %v2992
    %v3074 = vpop.f32.mrb[0].mxu0
    %v3075 = vadd.f32 0.0, %v3074
    %v3076 = vpop.f32.mrb[0].mxu0
    %3077 = vdwg.mxu0
    %v3078 = vadd.f32 %v2984, %v3060
    %v3079 = vadd.f32 %v2985, %v3065
    %v3080 = vadd.f32 %v2986, %v3070
    %v3081 = vadd.f32 %v2987, %v3075
    %s3082 = scalar_lea.vmem [#allocation5], 352
    %v3083 = vld [vmem:[%s3082] sm:$0xff]
    %v3084 = vld [vmem:[%s3082 + $0x8] sm:$0xff]
    %v3085 = vld [vmem:[%s3082 + $0x10] sm:$0xff]
    %v3086 = vld [vmem:[%s3082 + $0x18] sm:$0xff]
    %3087 = vmatprep.subr.mxu0 0.0
    %3088 = vmatpush1.msra.mxu0 %v1755
    %3089 = vmatprep.subr.mxu0 0.0
    %3090 = vmatpush1.msra.mxu0 %v1759
    %3091 = vmatprep.subr.mxu0 0.0
    %3092 = vmatpush1.msra.mxu0 %v1765
    %3093 = vmatprep.subr.mxu0 0.0
    %3094 = vmatpush1.msra.mxu0 %v1769
    %3095 = vmatprep.subr.mxu0 0.0
    %3096 = vmatpush1.msra.mxu0 %v1775
    %3097 = vmatprep.subr.mxu0 0.0
    %3098 = vmatpush1.msra.mxu0 %v1779
    %3099 = vmatprep.subr.mxu0 0.0
    %3100 = vmatpush1.msra.mxu0 %v1785
    %3101 = vmatprep.subr.mxu0 0.0
    %3102 = vmatpush1.msra.mxu0 %v1789
    %3103 = vmatprep.subr.mxu0 0.0
    %3104 = vmatpush1.msra.mxu0 %v1795
    %3105 = vmatprep.subr.mxu0 0.0
    %3106 = vmatpush1.msra.mxu0 %v1799
    %3107 = vmatprep.subr.mxu0 0.0
    %3108 = vmatpush1.msra.mxu0 %v1805
    %3109 = vmatprep.subr.mxu0 0.0
    %3110 = vmatpush1.msra.mxu0 %v1809
    %3111 = vmatprep.subr.mxu0 0.0
    %3112 = vmatpush1.msra.mxu0 %v1815
    %3113 = vmatprep.subr.mxu0 0.0
    %3114 = vmatpush1.msra.mxu0 %v1819
    %3115 = vmatprep.subr.mxu0 0.0
    %3116 = vmatpush1.msra.mxu0 %v1825
    %3117 = vmatprep.subr.mxu0 0.0
    %3118 = vmatpush1.msra.mxu0 %v1829
    %3119 = vmatprep.subr.mxu0 0.0
    %3120 = vmatpush1.msra.mxu0 0.0
    %3121 = vmatprep.subr.mxu0 0.0
    %3122 = vmatpush1.msra.mxu0 0.0
    %3123 = vmatprep.subr.mxu0 0.0
    %3124 = vmatpush1.msra.mxu0 0.0
    %3125 = vmatprep.subr.mxu0 0.0
    %3126 = vmatpush1.msra.mxu0 0.0
    %3127 = vmatprep.subr.mxu0 0.0
    %3128 = vmatpush1.msra.mxu0 0.0
    %3129 = vmatprep.subr.mxu0 0.0
    %3130 = vmatpush1.msra.mxu0 0.0
    %3131 = vmatprep.subr.mxu0 0.0
    %3132 = vmatpush1.msra.mxu0 0.0
    %3133 = vmatprep.subr.mxu0 0.0
    %3134 = vmatpush1.msra.mxu0 0.0
    %3135 = vmatprep.subr.mxu0 0.0
    %3136 = vmatpush1.msra.mxu0 0.0
    %3137 = vmatprep.subr.mxu0 0.0
    %3138 = vmatpush1.msra.mxu0 0.0
    %3139 = vmatprep.subr.mxu0 0.0
    %3140 = vmatpush1.msra.mxu0 0.0
    %3141 = vmatprep.subr.mxu0 0.0
    %3142 = vmatpush1.msra.mxu0 0.0
    %3143 = vmatprep.subr.mxu0 0.0
    %3144 = vmatpush1.msra.mxu0 0.0
    %3145 = vmatprep.subr.mxu0 0.0
    %3146 = vmatpush1.msra.mxu0 0.0
    %3147 = vmatprep.subr.mxu0 0.0
    %3148 = vmatpush1.msra.mxu0 0.0
    %3149 = vmatprep.subr.mxu0 0.0
    %3150 = vmatpush1.msra.mxu0 0.0
    %3151 = vmatprep.mubr.f32.mxu0 0.0
    %3152 = vmatmul.mubr.f32.gmra.mrb[0].mxu0 %v3083
    %v3153 = vpop.f32.mrb[0].mxu0
    %v3154 = vadd.f32 0.0, %v3153
    %v3155 = vpop.f32.mrb[0].mxu0
    %3156 = vmatprep.mubr.f32.mxu0 0.0
    %3157 = vmatmul.mubr.f32.gmra.mrb[0].mxu0 %v3084
    %v3158 = vpop.f32.mrb[0].mxu0
    %v3159 = vadd.f32 0.0, %v3158
    %v3160 = vpop.f32.mrb[0].mxu0
    %3161 = vmatprep.mubr.f32.mxu0 0.0
    %3162 = vmatmul.mubr.f32.gmra.mrb[0].mxu0 %v3085
    %v3163 = vpop.f32.mrb[0].mxu0
    %v3164 = vadd.f32 0.0, %v3163
    %v3165 = vpop.f32.mrb[0].mxu0
    %3166 = vmatprep.mubr.f32.mxu0 0.0
    %3167 = vmatmul.mubr.f32.gmra.mrb[0].mxu0 %v3086
    %v3168 = vpop.f32.mrb[0].mxu0
    %v3169 = vadd.f32 0.0, %v3168
    %v3170 = vpop.f32.mrb[0].mxu0
    %3171 = vdwg.mxu0
    %v3172 = vadd.f32 %v3078, %v3154
    %v3173 = vadd.f32 %v3079, %v3159
    %v3174 = vadd.f32 %v3080, %v3164
    %v3175 = vadd.f32 %v3081, %v3169
    %s3176 = scalar_lea.vmem [#allocation5], 384
    %v3177 = vld [vmem:[%s3176] sm:$0xff]
    %v3178 = vld [vmem:[%s3176 + $0x8] sm:$0xff]
    %v3179 = vld [vmem:[%s3176 + $0x10] sm:$0xff]
    %v3180 = vld [vmem:[%s3176 + $0x18] sm:$0xff]
    %3181 = vmatprep.subr.mxu0 0.0
    %3182 = vmatpush1.msra.mxu0 %v1866
    %3183 = vmatprep.subr.mxu0 0.0
    %3184 = vmatpush1.msra.mxu0 %v1870
    %3185 = vmatprep.subr.mxu0 0.0
    %3186 = vmatpush1.msra.mxu0 %v1876
    %3187 = vmatprep.subr.mxu0 0.0
    %3188 = vmatpush1.msra.mxu0 %v1880
    %3189 = vmatprep.subr.mxu0 0.0
    %3190 = vmatpush1.msra.mxu0 %v1886
    %3191 = vmatprep.subr.mxu0 0.0
    %3192 = vmatpush1.msra.mxu0 %v1890
    %3193 = vmatprep.subr.mxu0 0.0
    %3194 = vmatpush1.msra.mxu0 %v1896
    %3195 = vmatprep.subr.mxu0 0.0
    %3196 = vmatpush1.msra.mxu0 %v1900
    %3197 = vmatprep.subr.mxu0 0.0
    %3198 = vmatpush1.msra.mxu0 %v1906
    %3199 = vmatprep.subr.mxu0 0.0
    %3200 = vmatpush1.msra.mxu0 %v1910
    %3201 = vmatprep.subr.mxu0 0.0
    %3202 = vmatpush1.msra.mxu0 %v1916
    %3203 = vmatprep.subr.mxu0 0.0
    %3204 = vmatpush1.msra.mxu0 %v1920
    %3205 = vmatprep.subr.mxu0 0.0
    %3206 = vmatpush1.msra.mxu0 %v1926
    %3207 = vmatprep.subr.mxu0 0.0
    %3208 = vmatpush1.msra.mxu0 %v1930
    %3209 = vmatprep.subr.mxu0 0.0
    %3210 = vmatpush1.msra.mxu0 %v1936
    %3211 = vmatprep.subr.mxu0 0.0
    %3212 = vmatpush1.msra.mxu0 %v1940
    %3213 = vmatprep.subr.mxu0 0.0
    %3214 = vmatpush1.msra.mxu0 0.0
    %3215 = vmatprep.subr.mxu0 0.0
    %3216 = vmatpush1.msra.mxu0 0.0
    %3217 = vmatprep.subr.mxu0 0.0
    %3218 = vmatpush1.msra.mxu0 0.0
    %3219 = vmatprep.subr.mxu0 0.0
    %3220 = vmatpush1.msra.mxu0 0.0
    %3221 = vmatprep.subr.mxu0 0.0
    %3222 = vmatpush1.msra.mxu0 0.0
    %3223 = vmatprep.subr.mxu0 0.0
    %3224 = vmatpush1.msra.mxu0 0.0
    %3225 = vmatprep.subr.mxu0 0.0
    %3226 = vmatpush1.msra.mxu0 0.0
    %3227 = vmatprep.subr.mxu0 0.0
    %3228 = vmatpush1.msra.mxu0 0.0
    %3229 = vmatprep.subr.mxu0 0.0
    %3230 = vmatpush1.msra.mxu0 0.0
    %3231 = vmatprep.subr.mxu0 0.0
    %3232 = vmatpush1.msra.mxu0 0.0
    %3233 = vmatprep.subr.mxu0 0.0
    %3234 = vmatpush1.msra.mxu0 0.0
    %3235 = vmatprep.subr.mxu0 0.0
    %3236 = vmatpush1.msra.mxu0 0.0
    %3237 = vmatprep.subr.mxu0 0.0
    %3238 = vmatpush1.msra.mxu0 0.0
    %3239 = vmatprep.subr.mxu0 0.0
    %3240 = vmatpush1.msra.mxu0 0.0
    %3241 = vmatprep.subr.mxu0 0.0
    %3242 = vmatpush1.msra.mxu0 0.0
    %3243 = vmatprep.subr.mxu0 0.0
    %3244 = vmatpush1.msra.mxu0 0.0
    %3245 = vmatprep.mubr.f32.mxu0 0.0
    %3246 = vmatmul.mubr.f32.gmra.mrb[0].mxu0 %v3177
    %v3247 = vpop.f32.mrb[0].mxu0
    %v3248 = vadd.f32 0.0, %v3247
    %v3249 = vpop.f32.mrb[0].mxu0
    %3250 = vmatprep.mubr.f32.mxu0 0.0
    %3251 = vmatmul.mubr.f32.gmra.mrb[0].mxu0 %v3178
    %v3252 = vpop.f32.mrb[0].mxu0
    %v3253 = vadd.f32 0.0, %v3252
    %v3254 = vpop.f32.mrb[0].mxu0
    %3255 = vmatprep.mubr.f32.mxu0 0.0
    %3256 = vmatmul.mubr.f32.gmra.mrb[0].mxu0 %v3179
    %v3257 = vpop.f32.mrb[0].mxu0
    %v3258 = vadd.f32 0.0, %v3257
    %v3259 = vpop.f32.mrb[0].mxu0
    %3260 = vmatprep.mubr.f32.mxu0 0.0
    %3261 = vmatmul.mubr.f32.gmra.mrb[0].mxu0 %v3180
    %v3262 = vpop.f32.mrb[0].mxu0
    %v3263 = vadd.f32 0.0, %v3262
    %v3264 = vpop.f32.mrb[0].mxu0
    %3265 = vdwg.mxu0
    %v3266 = vadd.f32 %v3172, %v3248
    %v3267 = vadd.f32 %v3173, %v3253
    %v3268 = vadd.f32 %v3174, %v3258
    %v3269 = vadd.f32 %v3175, %v3263
    %s3270 = scalar_lea.vmem [#allocation5], 416
    %v3271 = vld [vmem:[%s3270] sm:$0xff]
    %v3272 = vld [vmem:[%s3270 + $0x8] sm:$0xff]
    %v3273 = vld [vmem:[%s3270 + $0x10] sm:$0xff]
    %v3274 = vld [vmem:[%s3270 + $0x18] sm:$0xff]
    %3275 = vmatprep.subr.mxu0 0.0
    %3276 = vmatpush1.msra.mxu0 %v1868
    %3277 = vmatprep.subr.mxu0 0.0
    %3278 = vmatpush1.msra.mxu0 %v1872
    %3279 = vmatprep.subr.mxu0 0.0
    %3280 = vmatpush1.msra.mxu0 %v1878
    %3281 = vmatprep.subr.mxu0 0.0
    %3282 = vmatpush1.msra.mxu0 %v1882
    %3283 = vmatprep.subr.mxu0 0.0
    %3284 = vmatpush1.msra.mxu0 %v1888
    %3285 = vmatprep.subr.mxu0 0.0
    %3286 = vmatpush1.msra.mxu0 %v1892
    %3287 = vmatprep.subr.mxu0 0.0
    %3288 = vmatpush1.msra.mxu0 %v1898
    %3289 = vmatprep.subr.mxu0 0.0
    %3290 = vmatpush1.msra.mxu0 %v1902
    %3291 = vmatprep.subr.mxu0 0.0
    %3292 = vmatpush1.msra.mxu0 %v1908
    %3293 = vmatprep.subr.mxu0 0.0
    %3294 = vmatpush1.msra.mxu0 %v1912
    %3295 = vmatprep.subr.mxu0 0.0
    %3296 = vmatpush1.msra.mxu0 %v1918
    %3297 = vmatprep.subr.mxu0 0.0
    %3298 = vmatpush1.msra.mxu0 %v1922
    %3299 = vmatprep.subr.mxu0 0.0
    %3300 = vmatpush1.msra.mxu0 %v1928
    %3301 = vmatprep.subr.mxu0 0.0
    %3302 = vmatpush1.msra.mxu0 %v1932
    %3303 = vmatprep.subr.mxu0 0.0
    %3304 = vmatpush1.msra.mxu0 %v1938
    %3305 = vmatprep.subr.mxu0 0.0
    %3306 = vmatpush1.msra.mxu0 %v1942
    %3307 = vmatprep.subr.mxu0 0.0
    %3308 = vmatpush1.msra.mxu0 0.0
    %3309 = vmatprep.subr.mxu0 0.0
    %3310 = vmatpush1.msra.mxu0 0.0
    %3311 = vmatprep.subr.mxu0 0.0
    %3312 = vmatpush1.msra.mxu0 0.0
    %3313 = vmatprep.subr.mxu0 0.0
    %3314 = vmatpush1.msra.mxu0 0.0
    %3315 = vmatprep.subr.mxu0 0.0
    %3316 = vmatpush1.msra.mxu0 0.0
    %3317 = vmatprep.subr.mxu0 0.0
    %3318 = vmatpush1.msra.mxu0 0.0
    %3319 = vmatprep.subr.mxu0 0.0
    %3320 = vmatpush1.msra.mxu0 0.0
    %3321 = vmatprep.subr.mxu0 0.0
    %3322 = vmatpush1.msra.mxu0 0.0
    %3323 = vmatprep.subr.mxu0 0.0
    %3324 = vmatpush1.msra.mxu0 0.0
    %3325 = vmatprep.subr.mxu0 0.0
    %3326 = vmatpush1.msra.mxu0 0.0
    %3327 = vmatprep.subr.mxu0 0.0
    %3328 = vmatpush1.msra.mxu0 0.0
    %3329 = vmatprep.subr.mxu0 0.0
    %3330 = vmatpush1.msra.mxu0 0.0
    %3331 = vmatprep.subr.mxu0 0.0
    %3332 = vmatpush1.msra.mxu0 0.0
    %3333 = vmatprep.subr.mxu0 0.0
    %3334 = vmatpush1.msra.mxu0 0.0
    %3335 = vmatprep.subr.mxu0 0.0
    %3336 = vmatpush1.msra.mxu0 0.0
    %3337 = vmatprep.subr.mxu0 0.0
    %3338 = vmatpush1.msra.mxu0 0.0
    %3339 = vmatprep.mubr.f32.mxu0 0.0
    %3340 = vmatmul.mubr.f32.gmra.mrb[0].mxu0 %v3271
    %v3341 = vpop.f32.mrb[0].mxu0
    %v3342 = vadd.f32 0.0, %v3341
    %v3343 = vpop.f32.mrb[0].mxu0
    %3344 = vmatprep.mubr.f32.mxu0 0.0
    %3345 = vmatmul.mubr.f32.gmra.mrb[0].mxu0 %v3272
    %v3346 = vpop.f32.mrb[0].mxu0
    %v3347 = vadd.f32 0.0, %v3346
    %v3348 = vpop.f32.mrb[0].mxu0
    %3349 = vmatprep.mubr.f32.mxu0 0.0
    %3350 = vmatmul.mubr.f32.gmra.mrb[0].mxu0 %v3273
    %v3351 = vpop.f32.mrb[0].mxu0
    %v3352 = vadd.f32 0.0, %v3351
    %v3353 = vpop.f32.mrb[0].mxu0
    %3354 = vmatprep.mubr.f32.mxu0 0.0
    %3355 = vmatmul.mubr.f32.gmra.mrb[0].mxu0 %v3274
    %v3356 = vpop.f32.mrb[0].mxu0
    %v3357 = vadd.f32 0.0, %v3356
    %v3358 = vpop.f32.mrb[0].mxu0
    %3359 = vdwg.mxu0
    %v3360 = vadd.f32 %v3266, %v3342
    %v3361 = vadd.f32 %v3267, %v3347
    %v3362 = vadd.f32 %v3268, %v3352
    %v3363 = vadd.f32 %v3269, %v3357
    %s3364 = scalar_lea.vmem [#allocation5], 448
    %v3365 = vld [vmem:[%s3364] sm:$0xff]
    %v3366 = vld [vmem:[%s3364 + $0x8] sm:$0xff]
    %v3367 = vld [vmem:[%s3364 + $0x10] sm:$0xff]
    %v3368 = vld [vmem:[%s3364 + $0x18] sm:$0xff]
    %3369 = vmatprep.subr.mxu0 0.0
    %3370 = vmatpush1.msra.mxu0 %v1979
    %3371 = vmatprep.subr.mxu0 0.0
    %3372 = vmatpush1.msra.mxu0 %v1983
    %3373 = vmatprep.subr.mxu0 0.0
    %3374 = vmatpush1.msra.mxu0 %v1989
    %3375 = vmatprep.subr.mxu0 0.0
    %3376 = vmatpush1.msra.mxu0 %v1993
    %3377 = vmatprep.subr.mxu0 0.0
    %3378 = vmatpush1.msra.mxu0 %v1999
    %3379 = vmatprep.subr.mxu0 0.0
    %3380 = vmatpush1.msra.mxu0 %v2003
    %3381 = vmatprep.subr.mxu0 0.0
    %3382 = vmatpush1.msra.mxu0 %v2009
    %3383 = vmatprep.subr.mxu0 0.0
    %3384 = vmatpush1.msra.mxu0 %v2013
    %3385 = vmatprep.subr.mxu0 0.0
    %3386 = vmatpush1.msra.mxu0 %v2019
    %3387 = vmatprep.subr.mxu0 0.0
    %3388 = vmatpush1.msra.mxu0 %v2023
    %3389 = vmatprep.subr.mxu0 0.0
    %3390 = vmatpush1.msra.mxu0 %v2029
    %3391 = vmatprep.subr.mxu0 0.0
    %3392 = vmatpush1.msra.mxu0 %v2033
    %3393 = vmatprep.subr.mxu0 0.0
    %3394 = vmatpush1.msra.mxu0 %v2039
    %3395 = vmatprep.subr.mxu0 0.0
    %3396 = vmatpush1.msra.mxu0 %v2043
    %3397 = vmatprep.subr.mxu0 0.0
    %3398 = vmatpush1.msra.mxu0 %v2049
    %3399 = vmatprep.subr.mxu0 0.0
    %3400 = vmatpush1.msra.mxu0 %v2053
    %3401 = vmatprep.subr.mxu0 0.0
    %3402 = vmatpush1.msra.mxu0 0.0
    %3403 = vmatprep.subr.mxu0 0.0
    %3404 = vmatpush1.msra.mxu0 0.0
    %3405 = vmatprep.subr.mxu0 0.0
    %3406 = vmatpush1.msra.mxu0 0.0
    %3407 = vmatprep.subr.mxu0 0.0
    %3408 = vmatpush1.msra.mxu0 0.0
    %3409 = vmatprep.subr.mxu0 0.0
    %3410 = vmatpush1.msra.mxu0 0.0
    %3411 = vmatprep.subr.mxu0 0.0
    %3412 = vmatpush1.msra.mxu0 0.0
    %3413 = vmatprep.subr.mxu0 0.0
    %3414 = vmatpush1.msra.mxu0 0.0
    %3415 = vmatprep.subr.mxu0 0.0
    %3416 = vmatpush1.msra.mxu0 0.0
    %3417 = vmatprep.subr.mxu0 0.0
    %3418 = vmatpush1.msra.mxu0 0.0
    %3419 = vmatprep.subr.mxu0 0.0
    %3420 = vmatpush1.msra.mxu0 0.0
    %3421 = vmatprep.subr.mxu0 0.0
    %3422 = vmatpush1.msra.mxu0 0.0
    %3423 = vmatprep.subr.mxu0 0.0
    %3424 = vmatpush1.msra.mxu0 0.0
    %3425 = vmatprep.subr.mxu0 0.0
    %3426 = vmatpush1.msra.mxu0 0.0
    %3427 = vmatprep.subr.mxu0 0.0
    %3428 = vmatpush1.msra.mxu0 0.0
    %3429 = vmatprep.subr.mxu0 0.0
    %3430 = vmatpush1.msra.mxu0 0.0
    %3431 = vmatprep.subr.mxu0 0.0
    %3432 = vmatpush1.msra.mxu0 0.0
    %3433 = vmatprep.mubr.f32.mxu0 0.0
    %3434 = vmatmul.mubr.f32.gmra.mrb[0].mxu0 %v3365
    %v3435 = vpop.f32.mrb[0].mxu0
    %v3436 = vadd.f32 0.0, %v3435
    %v3437 = vpop.f32.mrb[0].mxu0
    %3438 = vmatprep.mubr.f32.mxu0 0.0
    %3439 = vmatmul.mubr.f32.gmra.mrb[0].mxu0 %v3366
    %v3440 = vpop.f32.mrb[0].mxu0
    %v3441 = vadd.f32 0.0, %v3440
    %v3442 = vpop.f32.mrb[0].mxu0
    %3443 = vmatprep.mubr.f32.mxu0 0.0
    %3444 = vmatmul.mubr.f32.gmra.mrb[0].mxu0 %v3367
    %v3445 = vpop.f32.mrb[0].mxu0
    %v3446 = vadd.f32 0.0, %v3445
    %v3447 = vpop.f32.mrb[0].mxu0
    %3448 = vmatprep.mubr.f32.mxu0 0.0
    %3449 = vmatmul.mubr.f32.gmra.mrb[0].mxu0 %v3368
    %v3450 = vpop.f32.mrb[0].mxu0
    %v3451 = vadd.f32 0.0, %v3450
    %v3452 = vpop.f32.mrb[0].mxu0
    %3453 = vdwg.mxu0
    %v3454 = vadd.f32 %v3360, %v3436
    %v3455 = vadd.f32 %v3361, %v3441
    %v3456 = vadd.f32 %v3362, %v3446
    %v3457 = vadd.f32 %v3363, %v3451
    %s3458 = scalar_lea.vmem [#allocation5], 480
    %v3459 = vld [vmem:[%s3458] sm:$0xff]
    %v3460 = vld [vmem:[%s3458 + $0x8] sm:$0xff]
    %v3461 = vld [vmem:[%s3458 + $0x10] sm:$0xff]
    %v3462 = vld [vmem:[%s3458 + $0x18] sm:$0xff]
    %3463 = vmatprep.subr.mxu0 0.0
    %3464 = vmatpush1.msra.mxu0 %v1981
    %3465 = vmatprep.subr.mxu0 0.0
    %3466 = vmatpush1.msra.mxu0 %v1985
    %3467 = vmatprep.subr.mxu0 0.0
    %3468 = vmatpush1.msra.mxu0 %v1991
    %3469 = vmatprep.subr.mxu0 0.0
    %3470 = vmatpush1.msra.mxu0 %v1995
    %3471 = vmatprep.subr.mxu0 0.0
    %3472 = vmatpush1.msra.mxu0 %v2001
    %3473 = vmatprep.subr.mxu0 0.0
    %3474 = vmatpush1.msra.mxu0 %v2005
    %3475 = vmatprep.subr.mxu0 0.0
    %3476 = vmatpush1.msra.mxu0 %v2011
    %3477 = vmatprep.subr.mxu0 0.0
    %3478 = vmatpush1.msra.mxu0 %v2015
    %3479 = vmatprep.subr.mxu0 0.0
    %3480 = vmatpush1.msra.mxu0 %v2021
    %3481 = vmatprep.subr.mxu0 0.0
    %3482 = vmatpush1.msra.mxu0 %v2025
    %3483 = vmatprep.subr.mxu0 0.0
    %3484 = vmatpush1.msra.mxu0 %v2031
    %3485 = vmatprep.subr.mxu0 0.0
    %3486 = vmatpush1.msra.mxu0 %v2035
    %3487 = vmatprep.subr.mxu0 0.0
    %3488 = vmatpush1.msra.mxu0 %v2041
    %3489 = vmatprep.subr.mxu0 0.0
    %3490 = vmatpush1.msra.mxu0 %v2045
    %3491 = vmatprep.subr.mxu0 0.0
    %3492 = vmatpush1.msra.mxu0 %v2051
    %3493 = vmatprep.subr.mxu0 0.0
    %3494 = vmatpush1.msra.mxu0 %v2055
    %3495 = vmatprep.subr.mxu0 0.0
    %3496 = vmatpush1.msra.mxu0 0.0
    %3497 = vmatprep.subr.mxu0 0.0
    %3498 = vmatpush1.msra.mxu0 0.0
    %3499 = vmatprep.subr.mxu0 0.0
    %3500 = vmatpush1.msra.mxu0 0.0
    %3501 = vmatprep.subr.mxu0 0.0
    %3502 = vmatpush1.msra.mxu0 0.0
    %3503 = vmatprep.subr.mxu0 0.0
    %3504 = vmatpush1.msra.mxu0 0.0
    %3505 = vmatprep.subr.mxu0 0.0
    %3506 = vmatpush1.msra.mxu0 0.0
    %3507 = vmatprep.subr.mxu0 0.0
    %3508 = vmatpush1.msra.mxu0 0.0
    %3509 = vmatprep.subr.mxu0 0.0
    %3510 = vmatpush1.msra.mxu0 0.0
    %3511 = vmatprep.subr.mxu0 0.0
    %3512 = vmatpush1.msra.mxu0 0.0
    %3513 = vmatprep.subr.mxu0 0.0
    %3514 = vmatpush1.msra.mxu0 0.0
    %3515 = vmatprep.subr.mxu0 0.0
    %3516 = vmatpush1.msra.mxu0 0.0
    %3517 = vmatprep.subr.mxu0 0.0
    %3518 = vmatpush1.msra.mxu0 0.0
    %3519 = vmatprep.subr.mxu0 0.0
    %3520 = vmatpush1.msra.mxu0 0.0
    %3521 = vmatprep.subr.mxu0 0.0
    %3522 = vmatpush1.msra.mxu0 0.0
    %3523 = vmatprep.subr.mxu0 0.0
    %3524 = vmatpush1.msra.mxu0 0.0
    %3525 = vmatprep.subr.mxu0 0.0
    %3526 = vmatpush1.msra.mxu0 0.0
    %3527 = vmatprep.mubr.f32.mxu0 0.0
    %3528 = vmatmul.mubr.f32.gmra.mrb[0].mxu0 %v3459
    %v3529 = vpop.f32.mrb[0].mxu0
    %v3530 = vadd.f32 0.0, %v3529
    %v3531 = vpop.f32.mrb[0].mxu0
    %3532 = vmatprep.mubr.f32.mxu0 0.0
    %3533 = vmatmul.mubr.f32.gmra.mrb[0].mxu0 %v3460
    %v3534 = vpop.f32.mrb[0].mxu0
    %v3535 = vadd.f32 0.0, %v3534
    %v3536 = vpop.f32.mrb[0].mxu0
    %3537 = vmatprep.mubr.f32.mxu0 0.0
    %3538 = vmatmul.mubr.f32.gmra.mrb[0].mxu0 %v3461
    %v3539 = vpop.f32.mrb[0].mxu0
    %v3540 = vadd.f32 0.0, %v3539
    %v3541 = vpop.f32.mrb[0].mxu0
    %3542 = vmatprep.mubr.f32.mxu0 0.0
    %3543 = vmatmul.mubr.f32.gmra.mrb[0].mxu0 %v3462
    %v3544 = vpop.f32.mrb[0].mxu0
    %v3545 = vadd.f32 0.0, %v3544
    %v3546 = vpop.f32.mrb[0].mxu0
    %3547 = vdwg.mxu0
    %v3548 = vadd.f32 %v3454, %v3530
    %v3549 = vadd.f32 %v3455, %v3535
    %v3550 = vadd.f32 %v3456, %v3540
    %v3551 = vadd.f32 %v3457, %v3545
    %v3552 = vadd.f32 %v3548, %v3549
    %v3553 = vadd.f32 %v3552, %v3550
    %v3554 = vadd.f32 %v3553, %v3551
    %v3555 = vrot.slane %v3554, 4
    %v3556 = vadd.f32 %v3554, %v3555
    %v3557 = vrot.slane %v3556, 2
    %v3558 = vadd.f32 %v3556, %v3557
    %v3559 = vrot.slane %v3558, 1
    %v3560 = vadd.f32 %v3558, %v3559
    %v3561 = vrcp.pop 32.0
    %v3562 = vmul.f32 %v3560, %v3561
    %v3563 = vmul.f32 %v3548, %v3548
    %v3564 = vmul.f32 %v3549, %v3549
    %v3565 = vmul.f32 %v3550, %v3550
    %v3566 = vmul.f32 %v3551, %v3551
    %v3567 = vadd.f32 %v3563, %v3564
    %v3568 = vadd.f32 %v3567, %v3565
    %v3569 = vadd.f32 %v3568, %v3566
    %v3570 = vrot.slane %v3569, 4
    %v3571 = vadd.f32 %v3569, %v3570
    %v3572 = vrot.slane %v3571, 2
    %v3573 = vadd.f32 %v3571, %v3572
    %v3574 = vrot.slane %v3573, 1
    %v3575 = vadd.f32 %v3573, %v3574
    %v3576 = vmul.f32 %v3575, %v3561
    %v3577 = vmul.f32 %v3562, %v3562
    %v3578 = vsub.f32 %v3576, %v3577
    %v3579 = vmax.f32 %v3578, 0.0
    %v3580 = vld [vmem:[%s4] sm:$0x1]
    %v3581 = vadd.f32 %v3579, 1e-05
    %v3582 = vrsqrt.pop %v3581
    %v3583 = vmul.f32 %v3580, %v3582
    %v3584 = vld [vmem:[%s5] sm:$0x1]
    %v3585 = vmul.f32 %v3562, %v3583
    %v3586 = vsub.f32 %v3584, %v3585
    %v3588 = vlaneseq
    %v3589 = vshrl.u32 %v3588, 7
    %v3590 = vsub.s32 0, %v3589
    %v3591 = vrot.slane %v3583, %v3590
    %v3593 = vmul.f32 %v3548, %v3591
    %v3594 = vmul.f32 %v3549, %v3591
    %v3595 = vmul.f32 %v3550, %v3591
    %v3596 = vmul.f32 %v3551, %v3591
    %v3598 = vlaneseq
    %v3599 = vshrl.u32 %v3598, 7
    %v3600 = vsub.s32 0, %v3599
    %v3601 = vrot.slane %v3586, %v3600
    %v3603 = vadd.f32 %v3593, %v3601
    %v3604 = vadd.f32 %v3594, %v3601
    %v3605 = vadd.f32 %v3595, %v3601
    %v3606 = vadd.f32 %v3596, %v3601
    %v3607 = vmax.f32 %v3603, 0.0
    %v3608 = vmax.f32 %v3604, 0.0
    %v3609 = vmax.f32 %v3605, 0.0
    %v3610 = vmax.f32 %v3606, 0.0
    %v3611 = vpack.c.bf16 %v3608, %v3607
    %v3612 = vpack.c.bf16 %v3610, %v3609
    %v3613 = vld [vmem:[#allocation7] sm:$0xff]
    %v3614 = vld [vmem:[#allocation7 + $0x8] sm:$0xff]
    %v3615 = vld [vmem:[#allocation7 + $0x10] sm:$0xff]
    %v3616 = vld [vmem:[#allocation7 + $0x18] sm:$0xff]
    %v3617 = vld [vmem:[#allocation7 + $0x20] sm:$0xff]
    %v3618 = vld [vmem:[#allocation7 + $0x28] sm:$0xff]
    %v3619 = vld [vmem:[#allocation7 + $0x30] sm:$0xff]
    %v3620 = vld [vmem:[#allocation7 + $0x38] sm:$0xff]
    %v3621 = vld [vmem:[#allocation7 + $0x40] sm:$0xff]
    %v3622 = vld [vmem:[#allocation7 + $0x48] sm:$0xff]
    %v3623 = vld [vmem:[#allocation7 + $0x50] sm:$0xff]
    %v3624 = vld [vmem:[#allocation7 + $0x58] sm:$0xff]
    %v3625 = vld [vmem:[#allocation7 + $0x60] sm:$0xff]
    %v3626 = vld [vmem:[#allocation7 + $0x68] sm:$0xff]
    %v3627 = vld [vmem:[#allocation7 + $0x70] sm:$0xff]
    %v3628 = vld [vmem:[#allocation7 + $0x78] sm:$0xff]
    %v3629 = vld [vmem:[#allocation7 + $0x80] sm:$0xff]
    %v3630 = vld [vmem:[#allocation7 + $0x88] sm:$0xff]
    %v3631 = vld [vmem:[#allocation7 + $0x90] sm:$0xff]
    %v3632 = vld [vmem:[#allocation7 + $0x98] sm:$0xff]
    %v3633 = vld [vmem:[#allocation7 + $0xa0] sm:$0xff]
    %v3634 = vld [vmem:[#allocation7 + $0xa8] sm:$0xff]
    %v3635 = vld [vmem:[#allocation7 + $0xb0] sm:$0xff]
    %v3636 = vld [vmem:[#allocation7 + $0xb8] sm:$0xff]
    %v3637 = vld [vmem:[#allocation7 + $0xc0] sm:$0xff]
    %v3638 = vld [vmem:[#allocation7 + $0xc8] sm:$0xff]
    %v3639 = vld [vmem:[#allocation7 + $0xd0] sm:$0xff]
    %v3640 = vld [vmem:[#allocation7 + $0xd8] sm:$0xff]
    %v3641 = vld [vmem:[#allocation7 + $0xe0] sm:$0xff]
    %v3642 = vld [vmem:[#allocation7 + $0xe8] sm:$0xff]
    %v3643 = vld [vmem:[#allocation7 + $0xf0] sm:$0xff]
    %v3644 = vld [vmem:[#allocation7 + $0xf8] sm:$0xff]
    %v3645 = vld [vmem:[#allocation7 + $0x100] sm:$0xff]
    %v3646 = vld [vmem:[#allocation7 + $0x108] sm:$0xff]
    %v3647 = vld [vmem:[#allocation7 + $0x110] sm:$0xff]
    %v3648 = vld [vmem:[#allocation7 + $0x118] sm:$0xff]
    %v3649 = vld [vmem:[#allocation7 + $0x120] sm:$0xff]
    %v3650 = vld [vmem:[#allocation7 + $0x128] sm:$0xff]
    %v3651 = vld [vmem:[#allocation7 + $0x130] sm:$0xff]
    %v3652 = vld [vmem:[#allocation7 + $0x138] sm:$0xff]
    %v3653 = vld [vmem:[#allocation7 + $0x140] sm:$0xff]
    %v3654 = vld [vmem:[#allocation7 + $0x148] sm:$0xff]
    %v3655 = vld [vmem:[#allocation7 + $0x150] sm:$0xff]
    %v3656 = vld [vmem:[#allocation7 + $0x158] sm:$0xff]
    %v3657 = vld [vmem:[#allocation7 + $0x160] sm:$0xff]
    %v3658 = vld [vmem:[#allocation7 + $0x168] sm:$0xff]
    %v3659 = vld [vmem:[#allocation7 + $0x170] sm:$0xff]
    %v3660 = vld [vmem:[#allocation7 + $0x178] sm:$0xff]
    %v3661 = vld [vmem:[#allocation7 + $0x180] sm:$0xff]
    %v3662 = vld [vmem:[#allocation7 + $0x188] sm:$0xff]
    %v3663 = vld [vmem:[#allocation7 + $0x190] sm:$0xff]
    %v3664 = vld [vmem:[#allocation7 + $0x198] sm:$0xff]
    %v3665 = vld [vmem:[#allocation7 + $0x1a0] sm:$0xff]
    %v3666 = vld [vmem:[#allocation7 + $0x1a8] sm:$0xff]
    %v3667 = vld [vmem:[#allocation7 + $0x1b0] sm:$0xff]
    %v3668 = vld [vmem:[#allocation7 + $0x1b8] sm:$0xff]
    %v3669 = vld [vmem:[#allocation7 + $0x1c0] sm:$0xff]
    %v3670 = vld [vmem:[#allocation7 + $0x1c8] sm:$0xff]
    %v3671 = vld [vmem:[#allocation7 + $0x1d0] sm:$0xff]
    %v3672 = vld [vmem:[#allocation7 + $0x1d8] sm:$0xff]
    %v3673 = vld [vmem:[#allocation7 + $0x1e0] sm:$0xff]
    %v3674 = vld [vmem:[#allocation7 + $0x1e8] sm:$0xff]
    %v3675 = vld [vmem:[#allocation7 + $0x1f0] sm:$0xff]
    %v3676 = vld [vmem:[#allocation7 + $0x1f8] sm:$0xff]
    %v3677 = vld [vmem:[#allocation7 + $0x200] sm:$0xff]
    %v3678 = vld [vmem:[#allocation7 + $0x208] sm:$0xff]
    %v3679 = vld [vmem:[#allocation7 + $0x210] sm:$0xff]
    %v3680 = vld [vmem:[#allocation7 + $0x218] sm:$0xff]
    %v3681 = vld [vmem:[#allocation7 + $0x220] sm:$0xff]
    %v3682 = vld [vmem:[#allocation7 + $0x228] sm:$0xff]
    %v3683 = vld [vmem:[#allocation7 + $0x230] sm:$0xff]
    %v3684 = vld [vmem:[#allocation7 + $0x238] sm:$0xff]
    %v3685 = vld [vmem:[#allocation7 + $0x240] sm:$0xff]
    %v3686 = vld [vmem:[#allocation7 + $0x248] sm:$0xff]
    %v3687 = vld [vmem:[#allocation7 + $0x250] sm:$0xff]
    %v3688 = vld [vmem:[#allocation7 + $0x258] sm:$0xff]
    %v3689 = vld [vmem:[#allocation7 + $0x260] sm:$0xff]
    %v3690 = vld [vmem:[#allocation7 + $0x268] sm:$0xff]
    %v3691 = vld [vmem:[#allocation7 + $0x270] sm:$0xff]
    %v3692 = vld [vmem:[#allocation7 + $0x278] sm:$0xff]
    %v3693 = vld [vmem:[#allocation7 + $0x280] sm:$0xff]
    %v3694 = vld [vmem:[#allocation7 + $0x288] sm:$0xff]
    %v3695 = vld [vmem:[#allocation7 + $0x290] sm:$0xff]
    %v3696 = vld [vmem:[#allocation7 + $0x298] sm:$0xff]
    %v3697 = vld [vmem:[#allocation7 + $0x2a0] sm:$0xff]
    %v3698 = vld [vmem:[#allocation7 + $0x2a8] sm:$0xff]
    %v3699 = vld [vmem:[#allocation7 + $0x2b0] sm:$0xff]
    %v3700 = vld [vmem:[#allocation7 + $0x2b8] sm:$0xff]
    %v3701 = vld [vmem:[#allocation7 + $0x2c0] sm:$0xff]
    %v3702 = vld [vmem:[#allocation7 + $0x2c8] sm:$0xff]
    %v3703 = vld [vmem:[#allocation7 + $0x2d0] sm:$0xff]
    %v3704 = vld [vmem:[#allocation7 + $0x2d8] sm:$0xff]
    %v3705 = vld [vmem:[#allocation7 + $0x2e0] sm:$0xff]
    %v3706 = vld [vmem:[#allocation7 + $0x2e8] sm:$0xff]
    %v3707 = vld [vmem:[#allocation7 + $0x2f0] sm:$0xff]
    %v3708 = vld [vmem:[#allocation7 + $0x2f8] sm:$0xff]
    %v3709 = vld [vmem:[#allocation7 + $0x300] sm:$0xff]
    %v3710 = vld [vmem:[#allocation7 + $0x308] sm:$0xff]
    %v3711 = vld [vmem:[#allocation7 + $0x310] sm:$0xff]
    %v3712 = vld [vmem:[#allocation7 + $0x318] sm:$0xff]
    %v3713 = vld [vmem:[#allocation7 + $0x320] sm:$0xff]
    %v3714 = vld [vmem:[#allocation7 + $0x328] sm:$0xff]
    %v3715 = vld [vmem:[#allocation7 + $0x330] sm:$0xff]
    %v3716 = vld [vmem:[#allocation7 + $0x338] sm:$0xff]
    %v3717 = vld [vmem:[#allocation7 + $0x340] sm:$0xff]
    %v3718 = vld [vmem:[#allocation7 + $0x348] sm:$0xff]
    %v3719 = vld [vmem:[#allocation7 + $0x350] sm:$0xff]
    %v3720 = vld [vmem:[#allocation7 + $0x358] sm:$0xff]
    %v3721 = vld [vmem:[#allocation7 + $0x360] sm:$0xff]
    %v3722 = vld [vmem:[#allocation7 + $0x368] sm:$0xff]
    %v3723 = vld [vmem:[#allocation7 + $0x370] sm:$0xff]
    %v3724 = vld [vmem:[#allocation7 + $0x378] sm:$0xff]
    %v3725 = vld [vmem:[#allocation7 + $0x380] sm:$0xff]
    %v3726 = vld [vmem:[#allocation7 + $0x388] sm:$0xff]
    %v3727 = vld [vmem:[#allocation7 + $0x390] sm:$0xff]
    %v3728 = vld [vmem:[#allocation7 + $0x398] sm:$0xff]
    %v3729 = vld [vmem:[#allocation7 + $0x3a0] sm:$0xff]
    %v3730 = vld [vmem:[#allocation7 + $0x3a8] sm:$0xff]
    %v3731 = vld [vmem:[#allocation7 + $0x3b0] sm:$0xff]
    %v3732 = vld [vmem:[#allocation7 + $0x3b8] sm:$0xff]
    %v3733 = vld [vmem:[#allocation7 + $0x3c0] sm:$0xff]
    %v3734 = vld [vmem:[#allocation7 + $0x3c8] sm:$0xff]
    %v3735 = vld [vmem:[#allocation7 + $0x3d0] sm:$0xff]
    %v3736 = vld [vmem:[#allocation7 + $0x3d8] sm:$0xff]
    %v3737 = vld [vmem:[#allocation7 + $0x3e0] sm:$0xff]
    %v3738 = vld [vmem:[#allocation7 + $0x3e8] sm:$0xff]
    %v3739 = vld [vmem:[#allocation7 + $0x3f0] sm:$0xff]
    %v3740 = vld [vmem:[#allocation7 + $0x3f8] sm:$0xff]
    %v3869 = vunpack.c.l.b16 %v3613
    %v3870 = vunpack.c.h.b16 %v3613
    %v3871 = vunpack.c.l.b16 %v3614
    %v3872 = vunpack.c.h.b16 %v3614
    %v3873 = vunpack.c.l.b16 %v3615
    %v3874 = vunpack.c.h.b16 %v3615
    %v3875 = vunpack.c.l.b16 %v3616
    %v3876 = vunpack.c.h.b16 %v3616
    %v3877 = vunpack.c.l.b16 %v3617
    %v3878 = vunpack.c.h.b16 %v3617
    %v3879 = vunpack.c.l.b16 %v3618
    %v3880 = vunpack.c.h.b16 %v3618
    %v3881 = vunpack.c.l.b16 %v3619
    %v3882 = vunpack.c.h.b16 %v3619
    %v3883 = vunpack.c.l.b16 %v3620
    %v3884 = vunpack.c.h.b16 %v3620
    %v3885 = vunpack.c.l.b16 %v3621
    %v3886 = vunpack.c.h.b16 %v3621
    %v3887 = vunpack.c.l.b16 %v3622
    %v3888 = vunpack.c.h.b16 %v3622
    %v3889 = vunpack.c.l.b16 %v3623
    %v3890 = vunpack.c.h.b16 %v3623
    %v3891 = vunpack.c.l.b16 %v3624
    %v3892 = vunpack.c.h.b16 %v3624
    %v3893 = vunpack.c.l.b16 %v3625
    %v3894 = vunpack.c.h.b16 %v3625
    %v3895 = vunpack.c.l.b16 %v3626
    %v3896 = vunpack.c.h.b16 %v3626
    %v3897 = vunpack.c.l.b16 %v3627
    %v3898 = vunpack.c.h.b16 %v3627
    %v3899 = vunpack.c.l.b16 %v3628
    %v3900 = vunpack.c.h.b16 %v3628
    %v3901 = vunpack.c.l.b16 %v3629
    %v3902 = vunpack.c.h.b16 %v3629
    %v3903 = vunpack.c.l.b16 %v3630
    %v3904 = vunpack.c.h.b16 %v3630
    %v3905 = vunpack.c.l.b16 %v3631
    %v3906 = vunpack.c.h.b16 %v3631
    %v3907 = vunpack.c.l.b16 %v3632
    %v3908 = vunpack.c.h.b16 %v3632
    %v3909 = vunpack.c.l.b16 %v3633
    %v3910 = vunpack.c.h.b16 %v3633
    %v3911 = vunpack.c.l.b16 %v3634
    %v3912 = vunpack.c.h.b16 %v3634
    %v3913 = vunpack.c.l.b16 %v3635
    %v3914 = vunpack.c.h.b16 %v3635
    %v3915 = vunpack.c.l.b16 %v3636
    %v3916 = vunpack.c.h.b16 %v3636
    %v3917 = vunpack.c.l.b16 %v3637
    %v3918 = vunpack.c.h.b16 %v3637
    %v3919 = vunpack.c.l.b16 %v3638
    %v3920 = vunpack.c.h.b16 %v3638
    %v3921 = vunpack.c.l.b16 %v3639
    %v3922 = vunpack.c.h.b16 %v3639
    %v3923 = vunpack.c.l.b16 %v3640
    %v3924 = vunpack.c.h.b16 %v3640
    %v3925 = vunpack.c.l.b16 %v3641
    %v3926 = vunpack.c.h.b16 %v3641
    %v3927 = vunpack.c.l.b16 %v3642
    %v3928 = vunpack.c.h.b16 %v3642
    %v3929 = vunpack.c.l.b16 %v3643
    %v3930 = vunpack.c.h.b16 %v3643
    %v3931 = vunpack.c.l.b16 %v3644
    %v3932 = vunpack.c.h.b16 %v3644
    %v3933 = vunpack.c.l.b16 %v3645
    %v3934 = vunpack.c.h.b16 %v3645
    %v3935 = vunpack.c.l.b16 %v3646
    %v3936 = vunpack.c.h.b16 %v3646
    %v3937 = vunpack.c.l.b16 %v3647
    %v3938 = vunpack.c.h.b16 %v3647
    %v3939 = vunpack.c.l.b16 %v3648
    %v3940 = vunpack.c.h.b16 %v3648
    %v3941 = vunpack.c.l.b16 %v3649
    %v3942 = vunpack.c.h.b16 %v3649
    %v3943 = vunpack.c.l.b16 %v3650
    %v3944 = vunpack.c.h.b16 %v3650
    %v3945 = vunpack.c.l.b16 %v3651
    %v3946 = vunpack.c.h.b16 %v3651
    %v3947 = vunpack.c.l.b16 %v3652
    %v3948 = vunpack.c.h.b16 %v3652
    %v3949 = vunpack.c.l.b16 %v3653
    %v3950 = vunpack.c.h.b16 %v3653
    %v3951 = vunpack.c.l.b16 %v3654
    %v3952 = vunpack.c.h.b16 %v3654
    %v3953 = vunpack.c.l.b16 %v3655
    %v3954 = vunpack.c.h.b16 %v3655
    %v3955 = vunpack.c.l.b16 %v3656
    %v3956 = vunpack.c.h.b16 %v3656
    %v3957 = vunpack.c.l.b16 %v3657
    %v3958 = vunpack.c.h.b16 %v3657
    %v3959 = vunpack.c.l.b16 %v3658
    %v3960 = vunpack.c.h.b16 %v3658
    %v3961 = vunpack.c.l.b16 %v3659
    %v3962 = vunpack.c.h.b16 %v3659
    %v3963 = vunpack.c.l.b16 %v3660
    %v3964 = vunpack.c.h.b16 %v3660
    %v3965 = vunpack.c.l.b16 %v3661
    %v3966 = vunpack.c.h.b16 %v3661
    %v3967 = vunpack.c.l.b16 %v3662
    %v3968 = vunpack.c.h.b16 %v3662
    %v3969 = vunpack.c.l.b16 %v3663
    %v3970 = vunpack.c.h.b16 %v3663
    %v3971 = vunpack.c.l.b16 %v3664
    %v3972 = vunpack.c.h.b16 %v3664
    %v3973 = vunpack.c.l.b16 %v3665
    %v3974 = vunpack.c.h.b16 %v3665
    %v3975 = vunpack.c.l.b16 %v3666
    %v3976 = vunpack.c.h.b16 %v3666
    %v3977 = vunpack.c.l.b16 %v3667
    %v3978 = vunpack.c.h.b16 %v3667
    %v3979 = vunpack.c.l.b16 %v3668
    %v3980 = vunpack.c.h.b16 %v3668
    %v3981 = vunpack.c.l.b16 %v3669
    %v3982 = vunpack.c.h.b16 %v3669
    %v3983 = vunpack.c.l.b16 %v3670
    %v3984 = vunpack.c.h.b16 %v3670
    %v3985 = vunpack.c.l.b16 %v3671
    %v3986 = vunpack.c.h.b16 %v3671
    %v3987 = vunpack.c.l.b16 %v3672
    %v3988 = vunpack.c.h.b16 %v3672
    %v3989 = vunpack.c.l.b16 %v3673
    %v3990 = vunpack.c.h.b16 %v3673
    %v3991 = vunpack.c.l.b16 %v3674
    %v3992 = vunpack.c.h.b16 %v3674
    %v3993 = vunpack.c.l.b16 %v3675
    %v3994 = vunpack.c.h.b16 %v3675
    %v3995 = vunpack.c.l.b16 %v3676
    %v3996 = vunpack.c.h.b16 %v3676
    %v3997 = vunpack.c.l.b16 %v3677
    %v3998 = vunpack.c.h.b16 %v3677
    %v3999 = vunpack.c.l.b16 %v3678
    %v4000 = vunpack.c.h.b16 %v3678
    %v4001 = vunpack.c.l.b16 %v3679
    %v4002 = vunpack.c.h.b16 %v3679
    %v4003 = vunpack.c.l.b16 %v3680
    %v4004 = vunpack.c.h.b16 %v3680
    %v4005 = vunpack.c.l.b16 %v3681
    %v4006 = vunpack.c.h.b16 %v3681
    %v4007 = vunpack.c.l.b16 %v3682
    %v4008 = vunpack.c.h.b16 %v3682
    %v4009 = vunpack.c.l.b16 %v3683
    %v4010 = vunpack.c.h.b16 %v3683
    %v4011 = vunpack.c.l.b16 %v3684
    %v4012 = vunpack.c.h.b16 %v3684
    %v4013 = vunpack.c.l.b16 %v3685
    %v4014 = vunpack.c.h.b16 %v3685
    %v4015 = vunpack.c.l.b16 %v3686
    %v4016 = vunpack.c.h.b16 %v3686
    %v4017 = vunpack.c.l.b16 %v3687
    %v4018 = vunpack.c.h.b16 %v3687
    %v4019 = vunpack.c.l.b16 %v3688
    %v4020 = vunpack.c.h.b16 %v3688
    %v4021 = vunpack.c.l.b16 %v3689
    %v4022 = vunpack.c.h.b16 %v3689
    %v4023 = vunpack.c.l.b16 %v3690
    %v4024 = vunpack.c.h.b16 %v3690
    %v4025 = vunpack.c.l.b16 %v3691
    %v4026 = vunpack.c.h.b16 %v3691
    %v4027 = vunpack.c.l.b16 %v3692
    %v4028 = vunpack.c.h.b16 %v3692
    %v4029 = vunpack.c.l.b16 %v3693
    %v4030 = vunpack.c.h.b16 %v3693
    %v4031 = vunpack.c.l.b16 %v3694
    %v4032 = vunpack.c.h.b16 %v3694
    %v4033 = vunpack.c.l.b16 %v3695
    %v4034 = vunpack.c.h.b16 %v3695
    %v4035 = vunpack.c.l.b16 %v3696
    %v4036 = vunpack.c.h.b16 %v3696
    %v4037 = vunpack.c.l.b16 %v3697
    %v4038 = vunpack.c.h.b16 %v3697
    %v4039 = vunpack.c.l.b16 %v3698
    %v4040 = vunpack.c.h.b16 %v3698
    %v4041 = vunpack.c.l.b16 %v3699
    %v4042 = vunpack.c.h.b16 %v3699
    %v4043 = vunpack.c.l.b16 %v3700
    %v4044 = vunpack.c.h.b16 %v3700
    %v4045 = vunpack.c.l.b16 %v3701
    %v4046 = vunpack.c.h.b16 %v3701
    %v4047 = vunpack.c.l.b16 %v3702
    %v4048 = vunpack.c.h.b16 %v3702
    %v4049 = vunpack.c.l.b16 %v3703
    %v4050 = vunpack.c.h.b16 %v3703
    %v4051 = vunpack.c.l.b16 %v3704
    %v4052 = vunpack.c.h.b16 %v3704
    %v4053 = vunpack.c.l.b16 %v3705
    %v4054 = vunpack.c.h.b16 %v3705
    %v4055 = vunpack.c.l.b16 %v3706
    %v4056 = vunpack.c.h.b16 %v3706
    %v4057 = vunpack.c.l.b16 %v3707
    %v4058 = vunpack.c.h.b16 %v3707
    %v4059 = vunpack.c.l.b16 %v3708
    %v4060 = vunpack.c.h.b16 %v3708
    %v4061 = vunpack.c.l.b16 %v3709
    %v4062 = vunpack.c.h.b16 %v3709
    %v4063 = vunpack.c.l.b16 %v3710
    %v4064 = vunpack.c.h.b16 %v3710
    %v4065 = vunpack.c.l.b16 %v3711
    %v4066 = vunpack.c.h.b16 %v3711
    %v4067 = vunpack.c.l.b16 %v3712
    %v4068 = vunpack.c.h.b16 %v3712
    %v4069 = vunpack.c.l.b16 %v3713
    %v4070 = vunpack.c.h.b16 %v3713
    %v4071 = vunpack.c.l.b16 %v3714
    %v4072 = vunpack.c.h.b16 %v3714
    %v4073 = vunpack.c.l.b16 %v3715
    %v4074 = vunpack.c.h.b16 %v3715
    %v4075 = vunpack.c.l.b16 %v3716
    %v4076 = vunpack.c.h.b16 %v3716
    %v4077 = vunpack.c.l.b16 %v3717
    %v4078 = vunpack.c.h.b16 %v3717
    %v4079 = vunpack.c.l.b16 %v3718
    %v4080 = vunpack.c.h.b16 %v3718
    %v4081 = vunpack.c.l.b16 %v3719
    %v4082 = vunpack.c.h.b16 %v3719
    %v4083 = vunpack.c.l.b16 %v3720
    %v4084 = vunpack.c.h.b16 %v3720
    %v4085 = vunpack.c.l.b16 %v3721
    %v4086 = vunpack.c.h.b16 %v3721
    %v4087 = vunpack.c.l.b16 %v3722
    %v4088 = vunpack.c.h.b16 %v3722
    %v4089 = vunpack.c.l.b16 %v3723
    %v4090 = vunpack.c.h.b16 %v3723
    %v4091 = vunpack.c.l.b16 %v3724
    %v4092 = vunpack.c.h.b16 %v3724
    %v4093 = vunpack.c.l.b16 %v3725
    %v4094 = vunpack.c.h.b16 %v3725
    %v4095 = vunpack.c.l.b16 %v3726
    %v4096 = vunpack.c.h.b16 %v3726
    %v4097 = vunpack.c.l.b16 %v3727
    %v4098 = vunpack.c.h.b16 %v3727
    %v4099 = vunpack.c.l.b16 %v3728
    %v4100 = vunpack.c.h.b16 %v3728
    %v4101 = vunpack.c.l.b16 %v3729
    %v4102 = vunpack.c.h.b16 %v3729
    %v4103 = vunpack.c.l.b16 %v3730
    %v4104 = vunpack.c.h.b16 %v3730
    %v4105 = vunpack.c.l.b16 %v3731
    %v4106 = vunpack.c.h.b16 %v3731
    %v4107 = vunpack.c.l.b16 %v3732
    %v4108 = vunpack.c.h.b16 %v3732
    %v4109 = vunpack.c.l.b16 %v3733
    %v4110 = vunpack.c.h.b16 %v3733
    %v4111 = vunpack.c.l.b16 %v3734
    %v4112 = vunpack.c.h.b16 %v3734
    %v4113 = vunpack.c.l.b16 %v3735
    %v4114 = vunpack.c.h.b16 %v3735
    %v4115 = vunpack.c.l.b16 %v3736
    %v4116 = vunpack.c.h.b16 %v3736
    %v4117 = vunpack.c.l.b16 %v3737
    %v4118 = vunpack.c.h.b16 %v3737
    %v4119 = vunpack.c.l.b16 %v3738
    %v4120 = vunpack.c.h.b16 %v3738
    %v4121 = vunpack.c.l.b16 %v3739
    %v4122 = vunpack.c.h.b16 %v3739
    %v4123 = vunpack.c.l.b16 %v3740
    %v4124 = vunpack.c.h.b16 %v3740
    %v4125 = vpack.c.b16 %v3885, %v3869
    %v4126 = vpack.c.b16 %v3886, %v3870
    %v4127 = vpack.c.b16 %v3887, %v3871
    %v4128 = vpack.c.b16 %v3888, %v3872
    %v4129 = vpack.c.b16 %v3889, %v3873
    %v4130 = vpack.c.b16 %v3890, %v3874
    %v4131 = vpack.c.b16 %v3891, %v3875
    %v4132 = vpack.c.b16 %v3892, %v3876
    %v4133 = vpack.c.b16 %v3893, %v3877
    %v4134 = vpack.c.b16 %v3894, %v3878
    %v4135 = vpack.c.b16 %v3895, %v3879
    %v4136 = vpack.c.b16 %v3896, %v3880
    %v4137 = vpack.c.b16 %v3897, %v3881
    %v4138 = vpack.c.b16 %v3898, %v3882
    %v4139 = vpack.c.b16 %v3899, %v3883
    %v4140 = vpack.c.b16 %v3900, %v3884
    %v4141 = vpack.c.b16 %v3917, %v3901
    %v4142 = vpack.c.b16 %v3918, %v3902
    %v4143 = vpack.c.b16 %v3919, %v3903
    %v4144 = vpack.c.b16 %v3920, %v3904
    %v4145 = vpack.c.b16 %v3921, %v3905
    %v4146 = vpack.c.b16 %v3922, %v3906
    %v4147 = vpack.c.b16 %v3923, %v3907
    %v4148 = vpack.c.b16 %v3924, %v3908
    %v4149 = vpack.c.b16 %v3925, %v3909
    %v4150 = vpack.c.b16 %v3926, %v3910
    %v4151 = vpack.c.b16 %v3927, %v3911
    %v4152 = vpack.c.b16 %v3928, %v3912
    %v4153 = vpack.c.b16 %v3929, %v3913
    %v4154 = vpack.c.b16 %v3930, %v3914
    %v4155 = vpack.c.b16 %v3931, %v3915
    %v4156 = vpack.c.b16 %v3932, %v3916
    %v4157 = vpack.c.b16 %v3949, %v3933
    %v4158 = vpack.c.b16 %v3950, %v3934
    %v4159 = vpack.c.b16 %v3951, %v3935
    %v4160 = vpack.c.b16 %v3952, %v3936
    %v4161 = vpack.c.b16 %v3953, %v3937
    %v4162 = vpack.c.b16 %v3954, %v3938
    %v4163 = vpack.c.b16 %v3955, %v3939
    %v4164 = vpack.c.b16 %v3956, %v3940
    %v4165 = vpack.c.b16 %v3957, %v3941
    %v4166 = vpack.c.b16 %v3958, %v3942
    %v4167 = vpack.c.b16 %v3959, %v3943
    %v4168 = vpack.c.b16 %v3960, %v3944
    %v4169 = vpack.c.b16 %v3961, %v3945
    %v4170 = vpack.c.b16 %v3962, %v3946
    %v4171 = vpack.c.b16 %v3963, %v3947
    %v4172 = vpack.c.b16 %v3964, %v3948
    %v4173 = vpack.c.b16 %v3981, %v3965
    %v4174 = vpack.c.b16 %v3982, %v3966
    %v4175 = vpack.c.b16 %v3983, %v3967
    %v4176 = vpack.c.b16 %v3984, %v3968
    %v4177 = vpack.c.b16 %v3985, %v3969
    %v4178 = vpack.c.b16 %v3986, %v3970
    %v4179 = vpack.c.b16 %v3987, %v3971
    %v4180 = vpack.c.b16 %v3988, %v3972
    %v4181 = vpack.c.b16 %v3989, %v3973
    %v4182 = vpack.c.b16 %v3990, %v3974
    %v4183 = vpack.c.b16 %v3991, %v3975
    %v4184 = vpack.c.b16 %v3992, %v3976
    %v4185 = vpack.c.b16 %v3993, %v3977
    %v4186 = vpack.c.b16 %v3994, %v3978
    %v4187 = vpack.c.b16 %v3995, %v3979
    %v4188 = vpack.c.b16 %v3996, %v3980
    %v4189 = vpack.c.b16 %v4013, %v3997
    %v4190 = vpack.c.b16 %v4014, %v3998
    %v4191 = vpack.c.b16 %v4015, %v3999
    %v4192 = vpack.c.b16 %v4016, %v4000
    %v4193 = vpack.c.b16 %v4017, %v4001
    %v4194 = vpack.c.b16 %v4018, %v4002
    %v4195 = vpack.c.b16 %v4019, %v4003
    %v4196 = vpack.c.b16 %v4020, %v4004
    %v4197 = vpack.c.b16 %v4021, %v4005
    %v4198 = vpack.c.b16 %v4022, %v4006
    %v4199 = vpack.c.b16 %v4023, %v4007
    %v4200 = vpack.c.b16 %v4024, %v4008
    %v4201 = vpack.c.b16 %v4025, %v4009
    %v4202 = vpack.c.b16 %v4026, %v4010
    %v4203 = vpack.c.b16 %v4027, %v4011
    %v4204 = vpack.c.b16 %v4028, %v4012
    %v4205 = vpack.c.b16 %v4045, %v4029
    %v4206 = vpack.c.b16 %v4046, %v4030
    %v4207 = vpack.c.b16 %v4047, %v4031
    %v4208 = vpack.c.b16 %v4048, %v4032
    %v4209 = vpack.c.b16 %v4049, %v4033
    %v4210 = vpack.c.b16 %v4050, %v4034
    %v4211 = vpack.c.b16 %v4051, %v4035
    %v4212 = vpack.c.b16 %v4052, %v4036
    %v4213 = vpack.c.b16 %v4053, %v4037
    %v4214 = vpack.c.b16 %v4054, %v4038
    %v4215 = vpack.c.b16 %v4055, %v4039
    %v4216 = vpack.c.b16 %v4056, %v4040
    %v4217 = vpack.c.b16 %v4057, %v4041
    %v4218 = vpack.c.b16 %v4058, %v4042
    %v4219 = vpack.c.b16 %v4059, %v4043
    %v4220 = vpack.c.b16 %v4060, %v4044
    %v4221 = vpack.c.b16 %v4077, %v4061
    %v4222 = vpack.c.b16 %v4078, %v4062
    %v4223 = vpack.c.b16 %v4079, %v4063
    %v4224 = vpack.c.b16 %v4080, %v4064
    %v4225 = vpack.c.b16 %v4081, %v4065
    %v4226 = vpack.c.b16 %v4082, %v4066
    %v4227 = vpack.c.b16 %v4083, %v4067
    %v4228 = vpack.c.b16 %v4084, %v4068
    %v4229 = vpack.c.b16 %v4085, %v4069
    %v4230 = vpack.c.b16 %v4086, %v4070
    %v4231 = vpack.c.b16 %v4087, %v4071
    %v4232 = vpack.c.b16 %v4088, %v4072
    %v4233 = vpack.c.b16 %v4089, %v4073
    %v4234 = vpack.c.b16 %v4090, %v4074
    %v4235 = vpack.c.b16 %v4091, %v4075
    %v4236 = vpack.c.b16 %v4092, %v4076
    %v4237 = vpack.c.b16 %v4109, %v4093
    %v4238 = vpack.c.b16 %v4110, %v4094
    %v4239 = vpack.c.b16 %v4111, %v4095
    %v4240 = vpack.c.b16 %v4112, %v4096
    %v4241 = vpack.c.b16 %v4113, %v4097
    %v4242 = vpack.c.b16 %v4114, %v4098
    %v4243 = vpack.c.b16 %v4115, %v4099
    %v4244 = vpack.c.b16 %v4116, %v4100
    %v4245 = vpack.c.b16 %v4117, %v4101
    %v4246 = vpack.c.b16 %v4118, %v4102
    %v4247 = vpack.c.b16 %v4119, %v4103
    %v4248 = vpack.c.b16 %v4120, %v4104
    %v4249 = vpack.c.b16 %v4121, %v4105
    %v4250 = vpack.c.b16 %v4122, %v4106
    %v4251 = vpack.c.b16 %v4123, %v4107
    %v4252 = vpack.c.b16 %v4124, %v4108
    %4381 = vmatprep.subr.bf16.mxu0 %v4126
    %4382 = vmatpush1.bf16.msra.mxu0 %v4125
    %4383 = vmatprep.subr.bf16.mxu0 %v4142
    %4384 = vmatpush1.bf16.msra.mxu0 %v4141
    %4385 = vmatprep.subr.bf16.mxu0 %v4158
    %4386 = vmatpush1.bf16.msra.mxu0 %v4157
    %4387 = vmatprep.subr.bf16.mxu0 %v4174
    %4388 = vmatpush1.bf16.msra.mxu0 %v4173
    %4389 = vmatprep.subr.bf16.mxu0 %v4190
    %4390 = vmatpush1.bf16.msra.mxu0 %v4189
    %4391 = vmatprep.subr.bf16.mxu0 %v4206
    %4392 = vmatpush1.bf16.msra.mxu0 %v4205
    %4393 = vmatprep.subr.bf16.mxu0 %v4222
    %4394 = vmatpush1.bf16.msra.mxu0 %v4221
    %4395 = vmatprep.subr.bf16.mxu0 %v4238
    %4396 = vmatpush1.bf16.msra.mxu0 %v4237
    %4397 = vmatprep.subr.bf16.mxu0 0
    %4398 = vmatpush1.bf16.msra.mxu0 0
    %4399 = vmatprep.subr.bf16.mxu0 0
    %4400 = vmatpush1.bf16.msra.mxu0 0
    %4401 = vmatprep.subr.bf16.mxu0 0
    %4402 = vmatpush1.bf16.msra.mxu0 0
    %4403 = vmatprep.subr.bf16.mxu0 0
    %4404 = vmatpush1.bf16.msra.mxu0 0
    %4405 = vmatprep.subr.bf16.mxu0 0
    %4406 = vmatpush1.bf16.msra.mxu0 0
    %4407 = vmatprep.subr.bf16.mxu0 0
    %4408 = vmatpush1.bf16.msra.mxu0 0
    %4409 = vmatprep.subr.bf16.mxu0 0
    %4410 = vmatpush1.bf16.msra.mxu0 0
    %4411 = vmatprep.subr.bf16.mxu0 0
    %4412 = vmatpush1.bf16.msra.mxu0 0
    %4413 = vmatprep.mubr.bf16.mxu0 0
    %4414 = vmatmul.mubr.bf16.gmra.mrb[0].mxu0 %v3611
    %v4415 = vpop.f32.mrb[0].mxu0
    %v4416 = vadd.f32 0.0, %v4415
    %v4417 = vpop.f32.mrb[0].mxu0
    %v4418 = vadd.f32 0.0, %v4417
    %v4419 = vpop.f32.mrb[0].mxu0
    %v4420 = vadd.f32 0.0, %v4419
    %v4421 = vpop.f32.mrb[0].mxu0
    %v4422 = vadd.f32 0.0, %v4421
    %4423 = vmatprep.mubr.bf16.mxu0 0
    %4424 = vmatmul.mubr.bf16.gmra.mrb[0].mxu0 %v3612
    %v4425 = vpop.f32.mrb[0].mxu0
    %v4426 = vadd.f32 0.0, %v4425
    %v4427 = vpop.f32.mrb[0].mxu0
    %v4428 = vadd.f32 0.0, %v4427
    %v4429 = vpop.f32.mrb[0].mxu0
    %v4430 = vadd.f32 0.0, %v4429
    %v4431 = vpop.f32.mrb[0].mxu0
    %v4432 = vadd.f32 0.0, %v4431
    %4433 = vdwg.mxu0
    %4434 = vmatprep.subr.bf16.mxu0 %v4128
    %4435 = vmatpush1.bf16.msra.mxu0 %v4127
    %4436 = vmatprep.subr.bf16.mxu0 %v4144
    %4437 = vmatpush1.bf16.msra.mxu0 %v4143
    %4438 = vmatprep.subr.bf16.mxu0 %v4160
    %4439 = vmatpush1.bf16.msra.mxu0 %v4159
    %4440 = vmatprep.subr.bf16.mxu0 %v4176
    %4441 = vmatpush1.bf16.msra.mxu0 %v4175
    %4442 = vmatprep.subr.bf16.mxu0 %v4192
    %4443 = vmatpush1.bf16.msra.mxu0 %v4191
    %4444 = vmatprep.subr.bf16.mxu0 %v4208
    %4445 = vmatpush1.bf16.msra.mxu0 %v4207
    %4446 = vmatprep.subr.bf16.mxu0 %v4224
    %4447 = vmatpush1.bf16.msra.mxu0 %v4223
    %4448 = vmatprep.subr.bf16.mxu0 %v4240
    %4449 = vmatpush1.bf16.msra.mxu0 %v4239
    %4450 = vmatprep.subr.bf16.mxu0 0
    %4451 = vmatpush1.bf16.msra.mxu0 0
    %4452 = vmatprep.subr.bf16.mxu0 0
    %4453 = vmatpush1.bf16.msra.mxu0 0
    %4454 = vmatprep.subr.bf16.mxu0 0
    %4455 = vmatpush1.bf16.msra.mxu0 0
    %4456 = vmatprep.subr.bf16.mxu0 0
    %4457 = vmatpush1.bf16.msra.mxu0 0
    %4458 = vmatprep.subr.bf16.mxu0 0
    %4459 = vmatpush1.bf16.msra.mxu0 0
    %4460 = vmatprep.subr.bf16.mxu0 0
    %4461 = vmatpush1.bf16.msra.mxu0 0
    %4462 = vmatprep.subr.bf16.mxu0 0
    %4463 = vmatpush1.bf16.msra.mxu0 0
    %4464 = vmatprep.subr.bf16.mxu0 0
    %4465 = vmatpush1.bf16.msra.mxu0 0
    %4466 = vmatprep.mubr.bf16.mxu0 0
    %4467 = vmatmul.mubr.bf16.gmra.mrb[0].mxu0 %v3611
    %v4468 = vpop.f32.mrb[0].mxu0
    %v4469 = vadd.f32 0.0, %v4468
    %v4470 = vpop.f32.mrb[0].mxu0
    %v4471 = vadd.f32 0.0, %v4470
    %v4472 = vpop.f32.mrb[0].mxu0
    %v4473 = vadd.f32 0.0, %v4472
    %v4474 = vpop.f32.mrb[0].mxu0
    %v4475 = vadd.f32 0.0, %v4474
    %4476 = vmatprep.mubr.bf16.mxu0 0
    %4477 = vmatmul.mubr.bf16.gmra.mrb[0].mxu0 %v3612
    %v4478 = vpop.f32.mrb[0].mxu0
    %v4479 = vadd.f32 0.0, %v4478
    %v4480 = vpop.f32.mrb[0].mxu0
    %v4481 = vadd.f32 0.0, %v4480
    %v4482 = vpop.f32.mrb[0].mxu0
    %v4483 = vadd.f32 0.0, %v4482
    %v4484 = vpop.f32.mrb[0].mxu0
    %v4485 = vadd.f32 0.0, %v4484
    %4486 = vdwg.mxu0
    %4487 = vmatprep.subr.bf16.mxu0 %v4130
    %4488 = vmatpush1.bf16.msra.mxu0 %v4129
    %4489 = vmatprep.subr.bf16.mxu0 %v4146
    %4490 = vmatpush1.bf16.msra.mxu0 %v4145
    %4491 = vmatprep.subr.bf16.mxu0 %v4162
    %4492 = vmatpush1.bf16.msra.mxu0 %v4161
    %4493 = vmatprep.subr.bf16.mxu0 %v4178
    %4494 = vmatpush1.bf16.msra.mxu0 %v4177
    %4495 = vmatprep.subr.bf16.mxu0 %v4194
    %4496 = vmatpush1.bf16.msra.mxu0 %v4193
    %4497 = vmatprep.subr.bf16.mxu0 %v4210
    %4498 = vmatpush1.bf16.msra.mxu0 %v4209
    %4499 = vmatprep.subr.bf16.mxu0 %v4226
    %4500 = vmatpush1.bf16.msra.mxu0 %v4225
    %4501 = vmatprep.subr.bf16.mxu0 %v4242
    %4502 = vmatpush1.bf16.msra.mxu0 %v4241
    %4503 = vmatprep.subr.bf16.mxu0 0
    %4504 = vmatpush1.bf16.msra.mxu0 0
    %4505 = vmatprep.subr.bf16.mxu0 0
    %4506 = vmatpush1.bf16.msra.mxu0 0
    %4507 = vmatprep.subr.bf16.mxu0 0
    %4508 = vmatpush1.bf16.msra.mxu0 0
    %4509 = vmatprep.subr.bf16.mxu0 0
    %4510 = vmatpush1.bf16.msra.mxu0 0
    %4511 = vmatprep.subr.bf16.mxu0 0
    %4512 = vmatpush1.bf16.msra.mxu0 0
    %4513 = vmatprep.subr.bf16.mxu0 0
    %4514 = vmatpush1.bf16.msra.mxu0 0
    %4515 = vmatprep.subr.bf16.mxu0 0
    %4516 = vmatpush1.bf16.msra.mxu0 0
    %4517 = vmatprep.subr.bf16.mxu0 0
    %4518 = vmatpush1.bf16.msra.mxu0 0
    %4519 = vmatprep.mubr.bf16.mxu0 0
    %4520 = vmatmul.mubr.bf16.gmra.mrb[0].mxu0 %v3611
    %v4521 = vpop.f32.mrb[0].mxu0
    %v4522 = vadd.f32 0.0, %v4521
    %v4523 = vpop.f32.mrb[0].mxu0
    %v4524 = vadd.f32 0.0, %v4523
    %v4525 = vpop.f32.mrb[0].mxu0
    %v4526 = vadd.f32 0.0, %v4525
    %v4527 = vpop.f32.mrb[0].mxu0
    %v4528 = vadd.f32 0.0, %v4527
    %4529 = vmatprep.mubr.bf16.mxu0 0
    %4530 = vmatmul.mubr.bf16.gmra.mrb[0].mxu0 %v3612
    %v4531 = vpop.f32.mrb[0].mxu0
    %v4532 = vadd.f32 0.0, %v4531
    %v4533 = vpop.f32.mrb[0].mxu0
    %v4534 = vadd.f32 0.0, %v4533
    %v4535 = vpop.f32.mrb[0].mxu0
    %v4536 = vadd.f32 0.0, %v4535
    %v4537 = vpop.f32.mrb[0].mxu0
    %v4538 = vadd.f32 0.0, %v4537
    %4539 = vdwg.mxu0
    %4540 = vmatprep.subr.bf16.mxu0 %v4132
    %4541 = vmatpush1.bf16.msra.mxu0 %v4131
    %4542 = vmatprep.subr.bf16.mxu0 %v4148
    %4543 = vmatpush1.bf16.msra.mxu0 %v4147
    %4544 = vmatprep.subr.bf16.mxu0 %v4164
    %4545 = vmatpush1.bf16.msra.mxu0 %v4163
    %4546 = vmatprep.subr.bf16.mxu0 %v4180
    %4547 = vmatpush1.bf16.msra.mxu0 %v4179
    %4548 = vmatprep.subr.bf16.mxu0 %v4196
    %4549 = vmatpush1.bf16.msra.mxu0 %v4195
    %4550 = vmatprep.subr.bf16.mxu0 %v4212
    %4551 = vmatpush1.bf16.msra.mxu0 %v4211
    %4552 = vmatprep.subr.bf16.mxu0 %v4228
    %4553 = vmatpush1.bf16.msra.mxu0 %v4227
    %4554 = vmatprep.subr.bf16.mxu0 %v4244
    %4555 = vmatpush1.bf16.msra.mxu0 %v4243
    %4556 = vmatprep.subr.bf16.mxu0 0
    %4557 = vmatpush1.bf16.msra.mxu0 0
    %4558 = vmatprep.subr.bf16.mxu0 0
    %4559 = vmatpush1.bf16.msra.mxu0 0
    %4560 = vmatprep.subr.bf16.mxu0 0
    %4561 = vmatpush1.bf16.msra.mxu0 0
    %4562 = vmatprep.subr.bf16.mxu0 0
    %4563 = vmatpush1.bf16.msra.mxu0 0
    %4564 = vmatprep.subr.bf16.mxu0 0
    %4565 = vmatpush1.bf16.msra.mxu0 0
    %4566 = vmatprep.subr.bf16.mxu0 0
    %4567 = vmatpush1.bf16.msra.mxu0 0
    %4568 = vmatprep.subr.bf16.mxu0 0
    %4569 = vmatpush1.bf16.msra.mxu0 0
    %4570 = vmatprep.subr.bf16.mxu0 0
    %4571 = vmatpush1.bf16.msra.mxu0 0
    %4572 = vmatprep.mubr.bf16.mxu0 0
    %4573 = vmatmul.mubr.bf16.gmra.mrb[0].mxu0 %v3611
    %v4574 = vpop.f32.mrb[0].mxu0
    %v4575 = vadd.f32 0.0, %v4574
    %v4576 = vpop.f32.mrb[0].mxu0
    %v4577 = vadd.f32 0.0, %v4576
    %v4578 = vpop.f32.mrb[0].mxu0
    %v4579 = vadd.f32 0.0, %v4578
    %v4580 = vpop.f32.mrb[0].mxu0
    %v4581 = vadd.f32 0.0, %v4580
    %4582 = vmatprep.mubr.bf16.mxu0 0
    %4583 = vmatmul.mubr.bf16.gmra.mrb[0].mxu0 %v3612
    %v4584 = vpop.f32.mrb[0].mxu0
    %v4585 = vadd.f32 0.0, %v4584
    %v4586 = vpop.f32.mrb[0].mxu0
    %v4587 = vadd.f32 0.0, %v4586
    %v4588 = vpop.f32.mrb[0].mxu0
    %v4589 = vadd.f32 0.0, %v4588
    %v4590 = vpop.f32.mrb[0].mxu0
    %v4591 = vadd.f32 0.0, %v4590
    %4592 = vdwg.mxu0
    %4593 = vmatprep.subr.bf16.mxu0 %v4134
    %4594 = vmatpush1.bf16.msra.mxu0 %v4133
    %4595 = vmatprep.subr.bf16.mxu0 %v4150
    %4596 = vmatpush1.bf16.msra.mxu0 %v4149
    %4597 = vmatprep.subr.bf16.mxu0 %v4166
    %4598 = vmatpush1.bf16.msra.mxu0 %v4165
    %4599 = vmatprep.subr.bf16.mxu0 %v4182
    %4600 = vmatpush1.bf16.msra.mxu0 %v4181
    %4601 = vmatprep.subr.bf16.mxu0 %v4198
    %4602 = vmatpush1.bf16.msra.mxu0 %v4197
    %4603 = vmatprep.subr.bf16.mxu0 %v4214
    %4604 = vmatpush1.bf16.msra.mxu0 %v4213
    %4605 = vmatprep.subr.bf16.mxu0 %v4230
    %4606 = vmatpush1.bf16.msra.mxu0 %v4229
    %4607 = vmatprep.subr.bf16.mxu0 %v4246
    %4608 = vmatpush1.bf16.msra.mxu0 %v4245
    %4609 = vmatprep.subr.bf16.mxu0 0
    %4610 = vmatpush1.bf16.msra.mxu0 0
    %4611 = vmatprep.subr.bf16.mxu0 0
    %4612 = vmatpush1.bf16.msra.mxu0 0
    %4613 = vmatprep.subr.bf16.mxu0 0
    %4614 = vmatpush1.bf16.msra.mxu0 0
    %4615 = vmatprep.subr.bf16.mxu0 0
    %4616 = vmatpush1.bf16.msra.mxu0 0
    %4617 = vmatprep.subr.bf16.mxu0 0
    %4618 = vmatpush1.bf16.msra.mxu0 0
    %4619 = vmatprep.subr.bf16.mxu0 0
    %4620 = vmatpush1.bf16.msra.mxu0 0
    %4621 = vmatprep.subr.bf16.mxu0 0
    %4622 = vmatpush1.bf16.msra.mxu0 0
    %4623 = vmatprep.subr.bf16.mxu0 0
    %4624 = vmatpush1.bf16.msra.mxu0 0
    %4625 = vmatprep.mubr.bf16.mxu0 0
    %4626 = vmatmul.mubr.bf16.gmra.mrb[0].mxu0 %v3611
    %v4627 = vpop.f32.mrb[0].mxu0
    %v4628 = vadd.f32 0.0, %v4627
    %v4629 = vpop.f32.mrb[0].mxu0
    %v4630 = vadd.f32 0.0, %v4629
    %v4631 = vpop.f32.mrb[0].mxu0
    %v4632 = vadd.f32 0.0, %v4631
    %v4633 = vpop.f32.mrb[0].mxu0
    %v4634 = vadd.f32 0.0, %v4633
    %4635 = vmatprep.mubr.bf16.mxu0 0
    %4636 = vmatmul.mubr.bf16.gmra.mrb[0].mxu0 %v3612
    %v4637 = vpop.f32.mrb[0].mxu0
    %v4638 = vadd.f32 0.0, %v4637
    %v4639 = vpop.f32.mrb[0].mxu0
    %v4640 = vadd.f32 0.0, %v4639
    %v4641 = vpop.f32.mrb[0].mxu0
    %v4642 = vadd.f32 0.0, %v4641
    %v4643 = vpop.f32.mrb[0].mxu0
    %v4644 = vadd.f32 0.0, %v4643
    %4645 = vdwg.mxu0
    %4646 = vmatprep.subr.bf16.mxu0 %v4136
    %4647 = vmatpush1.bf16.msra.mxu0 %v4135
    %4648 = vmatprep.subr.bf16.mxu0 %v4152
    %4649 = vmatpush1.bf16.msra.mxu0 %v4151
    %4650 = vmatprep.subr.bf16.mxu0 %v4168
    %4651 = vmatpush1.bf16.msra.mxu0 %v4167
    %4652 = vmatprep.subr.bf16.mxu0 %v4184
    %4653 = vmatpush1.bf16.msra.mxu0 %v4183
    %4654 = vmatprep.subr.bf16.mxu0 %v4200
    %4655 = vmatpush1.bf16.msra.mxu0 %v4199
    %4656 = vmatprep.subr.bf16.mxu0 %v4216
    %4657 = vmatpush1.bf16.msra.mxu0 %v4215
    %4658 = vmatprep.subr.bf16.mxu0 %v4232
    %4659 = vmatpush1.bf16.msra.mxu0 %v4231
    %4660 = vmatprep.subr.bf16.mxu0 %v4248
    %4661 = vmatpush1.bf16.msra.mxu0 %v4247
    %4662 = vmatprep.subr.bf16.mxu0 0
    %4663 = vmatpush1.bf16.msra.mxu0 0
    %4664 = vmatprep.subr.bf16.mxu0 0
    %4665 = vmatpush1.bf16.msra.mxu0 0
    %4666 = vmatprep.subr.bf16.mxu0 0
    %4667 = vmatpush1.bf16.msra.mxu0 0
    %4668 = vmatprep.subr.bf16.mxu0 0
    %4669 = vmatpush1.bf16.msra.mxu0 0
    %4670 = vmatprep.subr.bf16.mxu0 0
    %4671 = vmatpush1.bf16.msra.mxu0 0
    %4672 = vmatprep.subr.bf16.mxu0 0
    %4673 = vmatpush1.bf16.msra.mxu0 0
    %4674 = vmatprep.subr.bf16.mxu0 0
    %4675 = vmatpush1.bf16.msra.mxu0 0
    %4676 = vmatprep.subr.bf16.mxu0 0
    %4677 = vmatpush1.bf16.msra.mxu0 0
    %4678 = vmatprep.mubr.bf16.mxu0 0
    %4679 = vmatmul.mubr.bf16.gmra.mrb[0].mxu0 %v3611
    %v4680 = vpop.f32.mrb[0].mxu0
    %v4681 = vadd.f32 0.0, %v4680
    %v4682 = vpop.f32.mrb[0].mxu0
    %v4683 = vadd.f32 0.0, %v4682
    %v4684 = vpop.f32.mrb[0].mxu0
    %v4685 = vadd.f32 0.0, %v4684
    %v4686 = vpop.f32.mrb[0].mxu0
    %v4687 = vadd.f32 0.0, %v4686
    %4688 = vmatprep.mubr.bf16.mxu0 0
    %4689 = vmatmul.mubr.bf16.gmra.mrb[0].mxu0 %v3612
    %v4690 = vpop.f32.mrb[0].mxu0
    %v4691 = vadd.f32 0.0, %v4690
    %v4692 = vpop.f32.mrb[0].mxu0
    %v4693 = vadd.f32 0.0, %v4692
    %v4694 = vpop.f32.mrb[0].mxu0
    %v4695 = vadd.f32 0.0, %v4694
    %v4696 = vpop.f32.mrb[0].mxu0
    %v4697 = vadd.f32 0.0, %v4696
    %4698 = vdwg.mxu0
    %4699 = vmatprep.subr.bf16.mxu0 %v4138
    %4700 = vmatpush1.bf16.msra.mxu0 %v4137
    %4701 = vmatprep.subr.bf16.mxu0 %v4154
    %4702 = vmatpush1.bf16.msra.mxu0 %v4153
    %4703 = vmatprep.subr.bf16.mxu0 %v4170
    %4704 = vmatpush1.bf16.msra.mxu0 %v4169
    %4705 = vmatprep.subr.bf16.mxu0 %v4186
    %4706 = vmatpush1.bf16.msra.mxu0 %v4185
    %4707 = vmatprep.subr.bf16.mxu0 %v4202
    %4708 = vmatpush1.bf16.msra.mxu0 %v4201
    %4709 = vmatprep.subr.bf16.mxu0 %v4218
    %4710 = vmatpush1.bf16.msra.mxu0 %v4217
    %4711 = vmatprep.subr.bf16.mxu0 %v4234
    %4712 = vmatpush1.bf16.msra.mxu0 %v4233
    %4713 = vmatprep.subr.bf16.mxu0 %v4250
    %4714 = vmatpush1.bf16.msra.mxu0 %v4249
    %4715 = vmatprep.subr.bf16.mxu0 0
    %4716 = vmatpush1.bf16.msra.mxu0 0
    %4717 = vmatprep.subr.bf16.mxu0 0
    %4718 = vmatpush1.bf16.msra.mxu0 0
    %4719 = vmatprep.subr.bf16.mxu0 0
    %4720 = vmatpush1.bf16.msra.mxu0 0
    %4721 = vmatprep.subr.bf16.mxu0 0
    %4722 = vmatpush1.bf16.msra.mxu0 0
    %4723 = vmatprep.subr.bf16.mxu0 0
    %4724 = vmatpush1.bf16.msra.mxu0 0
    %4725 = vmatprep.subr.bf16.mxu0 0
    %4726 = vmatpush1.bf16.msra.mxu0 0
    %4727 = vmatprep.subr.bf16.mxu0 0
    %4728 = vmatpush1.bf16.msra.mxu0 0
    %4729 = vmatprep.subr.bf16.mxu0 0
    %4730 = vmatpush1.bf16.msra.mxu0 0
    %4731 = vmatprep.mubr.bf16.mxu0 0
    %4732 = vmatmul.mubr.bf16.gmra.mrb[0].mxu0 %v3611
    %v4733 = vpop.f32.mrb[0].mxu0
    %v4734 = vadd.f32 0.0, %v4733
    %v4735 = vpop.f32.mrb[0].mxu0
    %v4736 = vadd.f32 0.0, %v4735
    %v4737 = vpop.f32.mrb[0].mxu0
    %v4738 = vadd.f32 0.0, %v4737
    %v4739 = vpop.f32.mrb[0].mxu0
    %v4740 = vadd.f32 0.0, %v4739
    %4741 = vmatprep.mubr.bf16.mxu0 0
    %4742 = vmatmul.mubr.bf16.gmra.mrb[0].mxu0 %v3612
    %v4743 = vpop.f32.mrb[0].mxu0
    %v4744 = vadd.f32 0.0, %v4743
    %v4745 = vpop.f32.mrb[0].mxu0
    %v4746 = vadd.f32 0.0, %v4745
    %v4747 = vpop.f32.mrb[0].mxu0
    %v4748 = vadd.f32 0.0, %v4747
    %v4749 = vpop.f32.mrb[0].mxu0
    %v4750 = vadd.f32 0.0, %v4749
    %4751 = vdwg.mxu0
    %4752 = vmatprep.subr.bf16.mxu0 %v4140
    %4753 = vmatpush1.bf16.msra.mxu0 %v4139
    %4754 = vmatprep.subr.bf16.mxu0 %v4156
    %4755 = vmatpush1.bf16.msra.mxu0 %v4155
    %4756 = vmatprep.subr.bf16.mxu0 %v4172
    %4757 = vmatpush1.bf16.msra.mxu0 %v4171
    %4758 = vmatprep.subr.bf16.mxu0 %v4188
    %4759 = vmatpush1.bf16.msra.mxu0 %v4187
    %4760 = vmatprep.subr.bf16.mxu0 %v4204
    %4761 = vmatpush1.bf16.msra.mxu0 %v4203
    %4762 = vmatprep.subr.bf16.mxu0 %v4220
    %4763 = vmatpush1.bf16.msra.mxu0 %v4219
    %4764 = vmatprep.subr.bf16.mxu0 %v4236
    %4765 = vmatpush1.bf16.msra.mxu0 %v4235
    %4766 = vmatprep.subr.bf16.mxu0 %v4252
    %4767 = vmatpush1.bf16.msra.mxu0 %v4251
    %4768 = vmatprep.subr.bf16.mxu0 0
    %4769 = vmatpush1.bf16.msra.mxu0 0
    %4770 = vmatprep.subr.bf16.mxu0 0
    %4771 = vmatpush1.bf16.msra.mxu0 0
    %4772 = vmatprep.subr.bf16.mxu0 0
    %4773 = vmatpush1.bf16.msra.mxu0 0
    %4774 = vmatprep.subr.bf16.mxu0 0
    %4775 = vmatpush1.bf16.msra.mxu0 0
    %4776 = vmatprep.subr.bf16.mxu0 0
    %4777 = vmatpush1.bf16.msra.mxu0 0
    %4778 = vmatprep.subr.bf16.mxu0 0
    %4779 = vmatpush1.bf16.msra.mxu0 0
    %4780 = vmatprep.subr.bf16.mxu0 0
    %4781 = vmatpush1.bf16.msra.mxu0 0
    %4782 = vmatprep.subr.bf16.mxu0 0
    %4783 = vmatpush1.bf16.msra.mxu0 0
    %4784 = vmatprep.mubr.bf16.mxu0 0
    %4785 = vmatmul.mubr.bf16.gmra.mrb[0].mxu0 %v3611
    %v4786 = vpop.f32.mrb[0].mxu0
    %v4787 = vadd.f32 0.0, %v4786
    %v4788 = vpop.f32.mrb[0].mxu0
    %v4789 = vadd.f32 0.0, %v4788
    %v4790 = vpop.f32.mrb[0].mxu0
    %v4791 = vadd.f32 0.0, %v4790
    %v4792 = vpop.f32.mrb[0].mxu0
    %v4793 = vadd.f32 0.0, %v4792
    %4794 = vmatprep.mubr.bf16.mxu0 0
    %4795 = vmatmul.mubr.bf16.gmra.mrb[0].mxu0 %v3612
    %v4796 = vpop.f32.mrb[0].mxu0
    %v4797 = vadd.f32 0.0, %v4796
    %v4798 = vpop.f32.mrb[0].mxu0
    %v4799 = vadd.f32 0.0, %v4798
    %v4800 = vpop.f32.mrb[0].mxu0
    %v4801 = vadd.f32 0.0, %v4800
    %v4802 = vpop.f32.mrb[0].mxu0
    %v4803 = vadd.f32 0.0, %v4802
    %4804 = vdwg.mxu0
    %v4805 = vld [vmem:[#allocation8] sm:$0xff]
    %s4806 = scalar_lea.vmem [#allocation8], 8
    %v4807 = vld [vmem:[%s4806] sm:$0xff]
    %vm4808 = vcmask 261120
    %v4810 = vsel %vm4808, %v4807, 0
    %4812 = vmatprep.subr.mxu0 0.0
    %4813 = vmatpush1.msra.mxu0 %v4418
    %4814 = vmatprep.subr.mxu0 0.0
    %4815 = vmatpush1.msra.mxu0 %v4422
    %4816 = vmatprep.subr.mxu0 0.0
    %4817 = vmatpush1.msra.mxu0 %v4428
    %4818 = vmatprep.subr.mxu0 0.0
    %4819 = vmatpush1.msra.mxu0 %v4432
    %4820 = vmatprep.subr.mxu0 0.0
    %4821 = vmatpush1.msra.mxu0 0.0
    %4822 = vmatprep.subr.mxu0 0.0
    %4823 = vmatpush1.msra.mxu0 0.0
    %4824 = vmatprep.subr.mxu0 0.0
    %4825 = vmatpush1.msra.mxu0 0.0
    %4826 = vmatprep.subr.mxu0 0.0
    %4827 = vmatpush1.msra.mxu0 0.0
    %4828 = vmatprep.subr.mxu0 0.0
    %4829 = vmatpush1.msra.mxu0 0.0
    %4830 = vmatprep.subr.mxu0 0.0
    %4831 = vmatpush1.msra.mxu0 0.0
    %4832 = vmatprep.subr.mxu0 0.0
    %4833 = vmatpush1.msra.mxu0 0.0
    %4834 = vmatprep.subr.mxu0 0.0
    %4835 = vmatpush1.msra.mxu0 0.0
    %4836 = vmatprep.subr.mxu0 0.0
    %4837 = vmatpush1.msra.mxu0 0.0
    %4838 = vmatprep.subr.mxu0 0.0
    %4839 = vmatpush1.msra.mxu0 0.0
    %4840 = vmatprep.subr.mxu0 0.0
    %4841 = vmatpush1.msra.mxu0 0.0
    %4842 = vmatprep.subr.mxu0 0.0
    %4843 = vmatpush1.msra.mxu0 0.0
    %4844 = vmatprep.subr.mxu0 0.0
    %4845 = vmatpush1.msra.mxu0 0.0
    %4846 = vmatprep.subr.mxu0 0.0
    %4847 = vmatpush1.msra.mxu0 0.0
    %4848 = vmatprep.subr.mxu0 0.0
    %4849 = vmatpush1.msra.mxu0 0.0
    %4850 = vmatprep.subr.mxu0 0.0
    %4851 = vmatpush1.msra.mxu0 0.0
    %4852 = vmatprep.subr.mxu0 0.0
    %4853 = vmatpush1.msra.mxu0 0.0
    %4854 = vmatprep.subr.mxu0 0.0
    %4855 = vmatpush1.msra.mxu0 0.0
    %4856 = vmatprep.subr.mxu0 0.0
    %4857 = vmatpush1.msra.mxu0 0.0
    %4858 = vmatprep.subr.mxu0 0.0
    %4859 = vmatpush1.msra.mxu0 0.0
    %4860 = vmatprep.subr.mxu0 0.0
    %4861 = vmatpush1.msra.mxu0 0.0
    %4862 = vmatprep.subr.mxu0 0.0
    %4863 = vmatpush1.msra.mxu0 0.0
    %4864 = vmatprep.subr.mxu0 0.0
    %4865 = vmatpush1.msra.mxu0 0.0
    %4866 = vmatprep.subr.mxu0 0.0
    %4867 = vmatpush1.msra.mxu0 0.0
    %4868 = vmatprep.subr.mxu0 0.0
    %4869 = vmatpush1.msra.mxu0 0.0
    %4870 = vmatprep.subr.mxu0 0.0
    %4871 = vmatpush1.msra.mxu0 0.0
    %4872 = vmatprep.subr.mxu0 0.0
    %4873 = vmatpush1.msra.mxu0 0.0
    %4874 = vmatprep.subr.mxu0 0.0
    %4875 = vmatpush1.msra.mxu0 0.0
    %4876 = vmatprep.mubr.f32.mxu0 0.0
    %4877 = vmatmul.mubr.f32.gmra.mrb[0].mxu0 %v4810
    %v4878 = vpop.f32.mrb[0].mxu0
    %v4879 = vadd.f32 0.0, %v4878
    %v4880 = vpop.f32.mrb[0].mxu0
    %4881 = vdwg.mxu0
    %v4883 = vsel %vm4808, %v4805, 0
    %4885 = vmatprep.subr.mxu0 0.0
    %4886 = vmatpush1.msra.mxu0 %v4416
    %4887 = vmatprep.subr.mxu0 0.0
    %4888 = vmatpush1.msra.mxu0 %v4420
    %4889 = vmatprep.subr.mxu0 0.0
    %4890 = vmatpush1.msra.mxu0 %v4426
    %4891 = vmatprep.subr.mxu0 0.0
    %4892 = vmatpush1.msra.mxu0 %v4430
    %4893 = vmatprep.subr.mxu0 0.0
    %4894 = vmatpush1.msra.mxu0 0.0
    %4895 = vmatprep.subr.mxu0 0.0
    %4896 = vmatpush1.msra.mxu0 0.0
    %4897 = vmatprep.subr.mxu0 0.0
    %4898 = vmatpush1.msra.mxu0 0.0
    %4899 = vmatprep.subr.mxu0 0.0
    %4900 = vmatpush1.msra.mxu0 0.0
    %4901 = vmatprep.subr.mxu0 0.0
    %4902 = vmatpush1.msra.mxu0 0.0
    %4903 = vmatprep.subr.mxu0 0.0
    %4904 = vmatpush1.msra.mxu0 0.0
    %4905 = vmatprep.subr.mxu0 0.0
    %4906 = vmatpush1.msra.mxu0 0.0
    %4907 = vmatprep.subr.mxu0 0.0
    %4908 = vmatpush1.msra.mxu0 0.0
    %4909 = vmatprep.subr.mxu0 0.0
    %4910 = vmatpush1.msra.mxu0 0.0
    %4911 = vmatprep.subr.mxu0 0.0
    %4912 = vmatpush1.msra.mxu0 0.0
    %4913 = vmatprep.subr.mxu0 0.0
    %4914 = vmatpush1.msra.mxu0 0.0
    %4915 = vmatprep.subr.mxu0 0.0
    %4916 = vmatpush1.msra.mxu0 0.0
    %4917 = vmatprep.subr.mxu0 0.0
    %4918 = vmatpush1.msra.mxu0 0.0
    %4919 = vmatprep.subr.mxu0 0.0
    %4920 = vmatpush1.msra.mxu0 0.0
    %4921 = vmatprep.subr.mxu0 0.0
    %4922 = vmatpush1.msra.mxu0 0.0
    %4923 = vmatprep.subr.mxu0 0.0
    %4924 = vmatpush1.msra.mxu0 0.0
    %4925 = vmatprep.subr.mxu0 0.0
    %4926 = vmatpush1.msra.mxu0 0.0
    %4927 = vmatprep.subr.mxu0 0.0
    %4928 = vmatpush1.msra.mxu0 0.0
    %4929 = vmatprep.subr.mxu0 0.0
    %4930 = vmatpush1.msra.mxu0 0.0
    %4931 = vmatprep.subr.mxu0 0.0
    %4932 = vmatpush1.msra.mxu0 0.0
    %4933 = vmatprep.subr.mxu0 0.0
    %4934 = vmatpush1.msra.mxu0 0.0
    %4935 = vmatprep.subr.mxu0 0.0
    %4936 = vmatpush1.msra.mxu0 0.0
    %4937 = vmatprep.subr.mxu0 0.0
    %4938 = vmatpush1.msra.mxu0 0.0
    %4939 = vmatprep.subr.mxu0 0.0
    %4940 = vmatpush1.msra.mxu0 0.0
    %4941 = vmatprep.subr.mxu0 0.0
    %4942 = vmatpush1.msra.mxu0 0.0
    %4943 = vmatprep.subr.mxu0 0.0
    %4944 = vmatpush1.msra.mxu0 0.0
    %4945 = vmatprep.subr.mxu0 0.0
    %4946 = vmatpush1.msra.mxu0 0.0
    %4947 = vmatprep.subr.mxu0 0.0
    %4948 = vmatpush1.msra.mxu0 0.0
    %4949 = vmatprep.mubr.f32.mxu0 0.0
    %4950 = vmatmul.mubr.f32.gmra.mrb[0].mxu0 %v4883
    %v4951 = vpop.f32.mrb[0].mxu0
    %v4952 = vadd.f32 %v4879, %v4951
    %v4953 = vpop.f32.mrb[0].mxu0
    %4954 = vdwg.mxu0
    %s4955 = scalar_lea.vmem [#allocation8], 16
    %v4956 = vld [vmem:[%s4955] sm:$0xff]
    %v4958 = vsel %vm4808, %v4956, 0
    %4960 = vmatprep.subr.mxu0 0.0
    %4961 = vmatpush1.msra.mxu0 %v4469
    %4962 = vmatprep.subr.mxu0 0.0
    %4963 = vmatpush1.msra.mxu0 %v4473
    %4964 = vmatprep.subr.mxu0 0.0
    %4965 = vmatpush1.msra.mxu0 %v4479
    %4966 = vmatprep.subr.mxu0 0.0
    %4967 = vmatpush1.msra.mxu0 %v4483
    %4968 = vmatprep.subr.mxu0 0.0
    %4969 = vmatpush1.msra.mxu0 0.0
    %4970 = vmatprep.subr.mxu0 0.0
    %4971 = vmatpush1.msra.mxu0 0.0
    %4972 = vmatprep.subr.mxu0 0.0
    %4973 = vmatpush1.msra.mxu0 0.0
    %4974 = vmatprep.subr.mxu0 0.0
    %4975 = vmatpush1.msra.mxu0 0.0
    %4976 = vmatprep.subr.mxu0 0.0
    %4977 = vmatpush1.msra.mxu0 0.0
    %4978 = vmatprep.subr.mxu0 0.0
    %4979 = vmatpush1.msra.mxu0 0.0
    %4980 = vmatprep.subr.mxu0 0.0
    %4981 = vmatpush1.msra.mxu0 0.0
    %4982 = vmatprep.subr.mxu0 0.0
    %4983 = vmatpush1.msra.mxu0 0.0
    %4984 = vmatprep.subr.mxu0 0.0
    %4985 = vmatpush1.msra.mxu0 0.0
    %4986 = vmatprep.subr.mxu0 0.0
    %4987 = vmatpush1.msra.mxu0 0.0
    %4988 = vmatprep.subr.mxu0 0.0
    %4989 = vmatpush1.msra.mxu0 0.0
    %4990 = vmatprep.subr.mxu0 0.0
    %4991 = vmatpush1.msra.mxu0 0.0
    %4992 = vmatprep.subr.mxu0 0.0
    %4993 = vmatpush1.msra.mxu0 0.0
    %4994 = vmatprep.subr.mxu0 0.0
    %4995 = vmatpush1.msra.mxu0 0.0
    %4996 = vmatprep.subr.mxu0 0.0
    %4997 = vmatpush1.msra.mxu0 0.0
    %4998 = vmatprep.subr.mxu0 0.0
    %4999 = vmatpush1.msra.mxu0 0.0
    %5000 = vmatprep.subr.mxu0 0.0
    %5001 = vmatpush1.msra.mxu0 0.0
    %5002 = vmatprep.subr.mxu0 0.0
    %5003 = vmatpush1.msra.mxu0 0.0
    %5004 = vmatprep.subr.mxu0 0.0
    %5005 = vmatpush1.msra.mxu0 0.0
    %5006 = vmatprep.subr.mxu0 0.0
    %5007 = vmatpush1.msra.mxu0 0.0
    %5008 = vmatprep.subr.mxu0 0.0
    %5009 = vmatpush1.msra.mxu0 0.0
    %5010 = vmatprep.subr.mxu0 0.0
    %5011 = vmatpush1.msra.mxu0 0.0
    %5012 = vmatprep.subr.mxu0 0.0
    %5013 = vmatpush1.msra.mxu0 0.0
    %5014 = vmatprep.subr.mxu0 0.0
    %5015 = vmatpush1.msra.mxu0 0.0
    %5016 = vmatprep.subr.mxu0 0.0
    %5017 = vmatpush1.msra.mxu0 0.0
    %5018 = vmatprep.subr.mxu0 0.0
    %5019 = vmatpush1.msra.mxu0 0.0
    %5020 = vmatprep.subr.mxu0 0.0
    %5021 = vmatpush1.msra.mxu0 0.0
    %5022 = vmatprep.subr.mxu0 0.0
    %5023 = vmatpush1.msra.mxu0 0.0
    %5024 = vmatprep.mubr.f32.mxu0 0.0
    %5025 = vmatmul.mubr.f32.gmra.mrb[0].mxu0 %v4958
    %v5026 = vpop.f32.mrb[0].mxu0
    %v5027 = vadd.f32 0.0, %v5026
    %v5028 = vpop.f32.mrb[0].mxu0
    %5029 = vdwg.mxu0
    %v5030 = vadd.f32 %v4952, %v5027
    %s5031 = scalar_lea.vmem [#allocation8], 24
    %v5032 = vld [vmem:[%s5031] sm:$0xff]
    %v5034 = vsel %vm4808, %v5032, 0
    %5036 = vmatprep.subr.mxu0 0.0
    %5037 = vmatpush1.msra.mxu0 %v4471
    %5038 = vmatprep.subr.mxu0 0.0
    %5039 = vmatpush1.msra.mxu0 %v4475
    %5040 = vmatprep.subr.mxu0 0.0
    %5041 = vmatpush1.msra.mxu0 %v4481
    %5042 = vmatprep.subr.mxu0 0.0
    %5043 = vmatpush1.msra.mxu0 %v4485
    %5044 = vmatprep.subr.mxu0 0.0
    %5045 = vmatpush1.msra.mxu0 0.0
    %5046 = vmatprep.subr.mxu0 0.0
    %5047 = vmatpush1.msra.mxu0 0.0
    %5048 = vmatprep.subr.mxu0 0.0
    %5049 = vmatpush1.msra.mxu0 0.0
    %5050 = vmatprep.subr.mxu0 0.0
    %5051 = vmatpush1.msra.mxu0 0.0
    %5052 = vmatprep.subr.mxu0 0.0
    %5053 = vmatpush1.msra.mxu0 0.0
    %5054 = vmatprep.subr.mxu0 0.0
    %5055 = vmatpush1.msra.mxu0 0.0
    %5056 = vmatprep.subr.mxu0 0.0
    %5057 = vmatpush1.msra.mxu0 0.0
    %5058 = vmatprep.subr.mxu0 0.0
    %5059 = vmatpush1.msra.mxu0 0.0
    %5060 = vmatprep.subr.mxu0 0.0
    %5061 = vmatpush1.msra.mxu0 0.0
    %5062 = vmatprep.subr.mxu0 0.0
    %5063 = vmatpush1.msra.mxu0 0.0
    %5064 = vmatprep.subr.mxu0 0.0
    %5065 = vmatpush1.msra.mxu0 0.0
    %5066 = vmatprep.subr.mxu0 0.0
    %5067 = vmatpush1.msra.mxu0 0.0
    %5068 = vmatprep.subr.mxu0 0.0
    %5069 = vmatpush1.msra.mxu0 0.0
    %5070 = vmatprep.subr.mxu0 0.0
    %5071 = vmatpush1.msra.mxu0 0.0
    %5072 = vmatprep.subr.mxu0 0.0
    %5073 = vmatpush1.msra.mxu0 0.0
    %5074 = vmatprep.subr.mxu0 0.0
    %5075 = vmatpush1.msra.mxu0 0.0
    %5076 = vmatprep.subr.mxu0 0.0
    %5077 = vmatpush1.msra.mxu0 0.0
    %5078 = vmatprep.subr.mxu0 0.0
    %5079 = vmatpush1.msra.mxu0 0.0
    %5080 = vmatprep.subr.mxu0 0.0
    %5081 = vmatpush1.msra.mxu0 0.0
    %5082 = vmatprep.subr.mxu0 0.0
    %5083 = vmatpush1.msra.mxu0 0.0
    %5084 = vmatprep.subr.mxu0 0.0
    %5085 = vmatpush1.msra.mxu0 0.0
    %5086 = vmatprep.subr.mxu0 0.0
    %5087 = vmatpush1.msra.mxu0 0.0
    %5088 = vmatprep.subr.mxu0 0.0
    %5089 = vmatpush1.msra.mxu0 0.0
    %5090 = vmatprep.subr.mxu0 0.0
    %5091 = vmatpush1.msra.mxu0 0.0
    %5092 = vmatprep.subr.mxu0 0.0
    %5093 = vmatpush1.msra.mxu0 0.0
    %5094 = vmatprep.subr.mxu0 0.0
    %5095 = vmatpush1.msra.mxu0 0.0
    %5096 = vmatprep.subr.mxu0 0.0
    %5097 = vmatpush1.msra.mxu0 0.0
    %5098 = vmatprep.subr.mxu0 0.0
    %5099 = vmatpush1.msra.mxu0 0.0
    %5100 = vmatprep.mubr.f32.mxu0 0.0
    %5101 = vmatmul.mubr.f32.gmra.mrb[0].mxu0 %v5034
    %v5102 = vpop.f32.mrb[0].mxu0
    %v5103 = vadd.f32 0.0, %v5102
    %v5104 = vpop.f32.mrb[0].mxu0
    %5105 = vdwg.mxu0
    %v5106 = vadd.f32 %v5030, %v5103
    %s5107 = scalar_lea.vmem [#allocation8], 32
    %v5108 = vld [vmem:[%s5107] sm:$0xff]
    %v5110 = vsel %vm4808, %v5108, 0
    %5112 = vmatprep.subr.mxu0 0.0
    %5113 = vmatpush1.msra.mxu0 %v4522
    %5114 = vmatprep.subr.mxu0 0.0
    %5115 = vmatpush1.msra.mxu0 %v4526
    %5116 = vmatprep.subr.mxu0 0.0
    %5117 = vmatpush1.msra.mxu0 %v4532
    %5118 = vmatprep.subr.mxu0 0.0
    %5119 = vmatpush1.msra.mxu0 %v4536
    %5120 = vmatprep.subr.mxu0 0.0
    %5121 = vmatpush1.msra.mxu0 0.0
    %5122 = vmatprep.subr.mxu0 0.0
    %5123 = vmatpush1.msra.mxu0 0.0
    %5124 = vmatprep.subr.mxu0 0.0
    %5125 = vmatpush1.msra.mxu0 0.0
    %5126 = vmatprep.subr.mxu0 0.0
    %5127 = vmatpush1.msra.mxu0 0.0
    %5128 = vmatprep.subr.mxu0 0.0
    %5129 = vmatpush1.msra.mxu0 0.0
    %5130 = vmatprep.subr.mxu0 0.0
    %5131 = vmatpush1.msra.mxu0 0.0
    %5132 = vmatprep.subr.mxu0 0.0
    %5133 = vmatpush1.msra.mxu0 0.0
    %5134 = vmatprep.subr.mxu0 0.0
    %5135 = vmatpush1.msra.mxu0 0.0
    %5136 = vmatprep.subr.mxu0 0.0
    %5137 = vmatpush1.msra.mxu0 0.0
    %5138 = vmatprep.subr.mxu0 0.0
    %5139 = vmatpush1.msra.mxu0 0.0
    %5140 = vmatprep.subr.mxu0 0.0
    %5141 = vmatpush1.msra.mxu0 0.0
    %5142 = vmatprep.subr.mxu0 0.0
    %5143 = vmatpush1.msra.mxu0 0.0
    %5144 = vmatprep.subr.mxu0 0.0
    %5145 = vmatpush1.msra.mxu0 0.0
    %5146 = vmatprep.subr.mxu0 0.0
    %5147 = vmatpush1.msra.mxu0 0.0
    %5148 = vmatprep.subr.mxu0 0.0
    %5149 = vmatpush1.msra.mxu0 0.0
    %5150 = vmatprep.subr.mxu0 0.0
    %5151 = vmatpush1.msra.mxu0 0.0
    %5152 = vmatprep.subr.mxu0 0.0
    %5153 = vmatpush1.msra.mxu0 0.0
    %5154 = vmatprep.subr.mxu0 0.0
    %5155 = vmatpush1.msra.mxu0 0.0
    %5156 = vmatprep.subr.mxu0 0.0
    %5157 = vmatpush1.msra.mxu0 0.0
    %5158 = vmatprep.subr.mxu0 0.0
    %5159 = vmatpush1.msra.mxu0 0.0
    %5160 = vmatprep.subr.mxu0 0.0
    %5161 = vmatpush1.msra.mxu0 0.0
    %5162 = vmatprep.subr.mxu0 0.0
    %5163 = vmatpush1.msra.mxu0 0.0
    %5164 = vmatprep.subr.mxu0 0.0
    %5165 = vmatpush1.msra.mxu0 0.0
    %5166 = vmatprep.subr.mxu0 0.0
    %5167 = vmatpush1.msra.mxu0 0.0
    %5168 = vmatprep.subr.mxu0 0.0
    %5169 = vmatpush1.msra.mxu0 0.0
    %5170 = vmatprep.subr.mxu0 0.0
    %5171 = vmatpush1.msra.mxu0 0.0
    %5172 = vmatprep.subr.mxu0 0.0
    %5173 = vmatpush1.msra.mxu0 0.0
    %5174 = vmatprep.subr.mxu0 0.0
    %5175 = vmatpush1.msra.mxu0 0.0
    %5176 = vmatprep.mubr.f32.mxu0 0.0
    %5177 = vmatmul.mubr.f32.gmra.mrb[0].mxu0 %v5110
    %v5178 = vpop.f32.mrb[0].mxu0
    %v5179 = vadd.f32 0.0, %v5178
    %v5180 = vpop.f32.mrb[0].mxu0
    %5181 = vdwg.mxu0
    %v5182 = vadd.f32 %v5106, %v5179
    %s5183 = scalar_lea.vmem [#allocation8], 40
    %v5184 = vld [vmem:[%s5183] sm:$0xff]
    %v5186 = vsel %vm4808, %v5184, 0
    %5188 = vmatprep.subr.mxu0 0.0
    %5189 = vmatpush1.msra.mxu0 %v4524
    %5190 = vmatprep.subr.mxu0 0.0
    %5191 = vmatpush1.msra.mxu0 %v4528
    %5192 = vmatprep.subr.mxu0 0.0
    %5193 = vmatpush1.msra.mxu0 %v4534
    %5194 = vmatprep.subr.mxu0 0.0
    %5195 = vmatpush1.msra.mxu0 %v4538
    %5196 = vmatprep.subr.mxu0 0.0
    %5197 = vmatpush1.msra.mxu0 0.0
    %5198 = vmatprep.subr.mxu0 0.0
    %5199 = vmatpush1.msra.mxu0 0.0
    %5200 = vmatprep.subr.mxu0 0.0
    %5201 = vmatpush1.msra.mxu0 0.0
    %5202 = vmatprep.subr.mxu0 0.0
    %5203 = vmatpush1.msra.mxu0 0.0
    %5204 = vmatprep.subr.mxu0 0.0
    %5205 = vmatpush1.msra.mxu0 0.0
    %5206 = vmatprep.subr.mxu0 0.0
    %5207 = vmatpush1.msra.mxu0 0.0
    %5208 = vmatprep.subr.mxu0 0.0
    %5209 = vmatpush1.msra.mxu0 0.0
    %5210 = vmatprep.subr.mxu0 0.0
    %5211 = vmatpush1.msra.mxu0 0.0
    %5212 = vmatprep.subr.mxu0 0.0
    %5213 = vmatpush1.msra.mxu0 0.0
    %5214 = vmatprep.subr.mxu0 0.0
    %5215 = vmatpush1.msra.mxu0 0.0
    %5216 = vmatprep.subr.mxu0 0.0
    %5217 = vmatpush1.msra.mxu0 0.0
    %5218 = vmatprep.subr.mxu0 0.0
    %5219 = vmatpush1.msra.mxu0 0.0
    %5220 = vmatprep.subr.mxu0 0.0
    %5221 = vmatpush1.msra.mxu0 0.0
    %5222 = vmatprep.subr.mxu0 0.0
    %5223 = vmatpush1.msra.mxu0 0.0
    %5224 = vmatprep.subr.mxu0 0.0
    %5225 = vmatpush1.msra.mxu0 0.0
    %5226 = vmatprep.subr.mxu0 0.0
    %5227 = vmatpush1.msra.mxu0 0.0
    %5228 = vmatprep.subr.mxu0 0.0
    %5229 = vmatpush1.msra.mxu0 0.0
    %5230 = vmatprep.subr.mxu0 0.0
    %5231 = vmatpush1.msra.mxu0 0.0
    %5232 = vmatprep.subr.mxu0 0.0
    %5233 = vmatpush1.msra.mxu0 0.0
    %5234 = vmatprep.subr.mxu0 0.0
    %5235 = vmatpush1.msra.mxu0 0.0
    %5236 = vmatprep.subr.mxu0 0.0
    %5237 = vmatpush1.msra.mxu0 0.0
    %5238 = vmatprep.subr.mxu0 0.0
    %5239 = vmatpush1.msra.mxu0 0.0
    %5240 = vmatprep.subr.mxu0 0.0
    %5241 = vmatpush1.msra.mxu0 0.0
    %5242 = vmatprep.subr.mxu0 0.0
    %5243 = vmatpush1.msra.mxu0 0.0
    %5244 = vmatprep.subr.mxu0 0.0
    %5245 = vmatpush1.msra.mxu0 0.0
    %5246 = vmatprep.subr.mxu0 0.0
    %5247 = vmatpush1.msra.mxu0 0.0
    %5248 = vmatprep.subr.mxu0 0.0
    %5249 = vmatpush1.msra.mxu0 0.0
    %5250 = vmatprep.subr.mxu0 0.0
    %5251 = vmatpush1.msra.mxu0 0.0
    %5252 = vmatprep.mubr.f32.mxu0 0.0
    %5253 = vmatmul.mubr.f32.gmra.mrb[0].mxu0 %v5186
    %v5254 = vpop.f32.mrb[0].mxu0
    %v5255 = vadd.f32 0.0, %v5254
    %v5256 = vpop.f32.mrb[0].mxu0
    %5257 = vdwg.mxu0
    %v5258 = vadd.f32 %v5182, %v5255
    %s5259 = scalar_lea.vmem [#allocation8], 48
    %v5260 = vld [vmem:[%s5259] sm:$0xff]
    %v5262 = vsel %vm4808, %v5260, 0
    %5264 = vmatprep.subr.mxu0 0.0
    %5265 = vmatpush1.msra.mxu0 %v4575
    %5266 = vmatprep.subr.mxu0 0.0
    %5267 = vmatpush1.msra.mxu0 %v4579
    %5268 = vmatprep.subr.mxu0 0.0
    %5269 = vmatpush1.msra.mxu0 %v4585
    %5270 = vmatprep.subr.mxu0 0.0
    %5271 = vmatpush1.msra.mxu0 %v4589
    %5272 = vmatprep.subr.mxu0 0.0
    %5273 = vmatpush1.msra.mxu0 0.0
    %5274 = vmatprep.subr.mxu0 0.0
    %5275 = vmatpush1.msra.mxu0 0.0
    %5276 = vmatprep.subr.mxu0 0.0
    %5277 = vmatpush1.msra.mxu0 0.0
    %5278 = vmatprep.subr.mxu0 0.0
    %5279 = vmatpush1.msra.mxu0 0.0
    %5280 = vmatprep.subr.mxu0 0.0
    %5281 = vmatpush1.msra.mxu0 0.0
    %5282 = vmatprep.subr.mxu0 0.0
    %5283 = vmatpush1.msra.mxu0 0.0
    %5284 = vmatprep.subr.mxu0 0.0
    %5285 = vmatpush1.msra.mxu0 0.0
    %5286 = vmatprep.subr.mxu0 0.0
    %5287 = vmatpush1.msra.mxu0 0.0
    %5288 = vmatprep.subr.mxu0 0.0
    %5289 = vmatpush1.msra.mxu0 0.0
    %5290 = vmatprep.subr.mxu0 0.0
    %5291 = vmatpush1.msra.mxu0 0.0
    %5292 = vmatprep.subr.mxu0 0.0
    %5293 = vmatpush1.msra.mxu0 0.0
    %5294 = vmatprep.subr.mxu0 0.0
    %5295 = vmatpush1.msra.mxu0 0.0
    %5296 = vmatprep.subr.mxu0 0.0
    %5297 = vmatpush1.msra.mxu0 0.0
    %5298 = vmatprep.subr.mxu0 0.0
    %5299 = vmatpush1.msra.mxu0 0.0
    %5300 = vmatprep.subr.mxu0 0.0
    %5301 = vmatpush1.msra.mxu0 0.0
    %5302 = vmatprep.subr.mxu0 0.0
    %5303 = vmatpush1.msra.mxu0 0.0
    %5304 = vmatprep.subr.mxu0 0.0
    %5305 = vmatpush1.msra.mxu0 0.0
    %5306 = vmatprep.subr.mxu0 0.0
    %5307 = vmatpush1.msra.mxu0 0.0
    %5308 = vmatprep.subr.mxu0 0.0
    %5309 = vmatpush1.msra.mxu0 0.0
    %5310 = vmatprep.subr.mxu0 0.0
    %5311 = vmatpush1.msra.mxu0 0.0
    %5312 = vmatprep.subr.mxu0 0.0
    %5313 = vmatpush1.msra.mxu0 0.0
    %5314 = vmatprep.subr.mxu0 0.0
    %5315 = vmatpush1.msra.mxu0 0.0
    %5316 = vmatprep.subr.mxu0 0.0
    %5317 = vmatpush1.msra.mxu0 0.0
    %5318 = vmatprep.subr.mxu0 0.0
    %5319 = vmatpush1.msra.mxu0 0.0
    %5320 = vmatprep.subr.mxu0 0.0
    %5321 = vmatpush1.msra.mxu0 0.0
    %5322 = vmatprep.subr.mxu0 0.0
    %5323 = vmatpush1.msra.mxu0 0.0
    %5324 = vmatprep.subr.mxu0 0.0
    %5325 = vmatpush1.msra.mxu0 0.0
    %5326 = vmatprep.subr.mxu0 0.0
    %5327 = vmatpush1.msra.mxu0 0.0
    %5328 = vmatprep.mubr.f32.mxu0 0.0
    %5329 = vmatmul.mubr.f32.gmra.mrb[0].mxu0 %v5262
    %v5330 = vpop.f32.mrb[0].mxu0
    %v5331 = vadd.f32 0.0, %v5330
    %v5332 = vpop.f32.mrb[0].mxu0
    %5333 = vdwg.mxu0
    %v5334 = vadd.f32 %v5258, %v5331
    %s5335 = scalar_lea.vmem [#allocation8], 56
    %v5336 = vld [vmem:[%s5335] sm:$0xff]
    %v5338 = vsel %vm4808, %v5336, 0
    %5340 = vmatprep.subr.mxu0 0.0
    %5341 = vmatpush1.msra.mxu0 %v4577
    %5342 = vmatprep.subr.mxu0 0.0
    %5343 = vmatpush1.msra.mxu0 %v4581
    %5344 = vmatprep.subr.mxu0 0.0
    %5345 = vmatpush1.msra.mxu0 %v4587
    %5346 = vmatprep.subr.mxu0 0.0
    %5347 = vmatpush1.msra.mxu0 %v4591
    %5348 = vmatprep.subr.mxu0 0.0
    %5349 = vmatpush1.msra.mxu0 0.0
    %5350 = vmatprep.subr.mxu0 0.0
    %5351 = vmatpush1.msra.mxu0 0.0
    %5352 = vmatprep.subr.mxu0 0.0
    %5353 = vmatpush1.msra.mxu0 0.0
    %5354 = vmatprep.subr.mxu0 0.0
    %5355 = vmatpush1.msra.mxu0 0.0
    %5356 = vmatprep.subr.mxu0 0.0
    %5357 = vmatpush1.msra.mxu0 0.0
    %5358 = vmatprep.subr.mxu0 0.0
    %5359 = vmatpush1.msra.mxu0 0.0
    %5360 = vmatprep.subr.mxu0 0.0
    %5361 = vmatpush1.msra.mxu0 0.0
    %5362 = vmatprep.subr.mxu0 0.0
    %5363 = vmatpush1.msra.mxu0 0.0
    %5364 = vmatprep.subr.mxu0 0.0
    %5365 = vmatpush1.msra.mxu0 0.0
    %5366 = vmatprep.subr.mxu0 0.0
    %5367 = vmatpush1.msra.mxu0 0.0
    %5368 = vmatprep.subr.mxu0 0.0
    %5369 = vmatpush1.msra.mxu0 0.0
    %5370 = vmatprep.subr.mxu0 0.0
    %5371 = vmatpush1.msra.mxu0 0.0
    %5372 = vmatprep.subr.mxu0 0.0
    %5373 = vmatpush1.msra.mxu0 0.0
    %5374 = vmatprep.subr.mxu0 0.0
    %5375 = vmatpush1.msra.mxu0 0.0
    %5376 = vmatprep.subr.mxu0 0.0
    %5377 = vmatpush1.msra.mxu0 0.0
    %5378 = vmatprep.subr.mxu0 0.0
    %5379 = vmatpush1.msra.mxu0 0.0
    %5380 = vmatprep.subr.mxu0 0.0
    %5381 = vmatpush1.msra.mxu0 0.0
    %5382 = vmatprep.subr.mxu0 0.0
    %5383 = vmatpush1.msra.mxu0 0.0
    %5384 = vmatprep.subr.mxu0 0.0
    %5385 = vmatpush1.msra.mxu0 0.0
    %5386 = vmatprep.subr.mxu0 0.0
    %5387 = vmatpush1.msra.mxu0 0.0
    %5388 = vmatprep.subr.mxu0 0.0
    %5389 = vmatpush1.msra.mxu0 0.0
    %5390 = vmatprep.subr.mxu0 0.0
    %5391 = vmatpush1.msra.mxu0 0.0
    %5392 = vmatprep.subr.mxu0 0.0
    %5393 = vmatpush1.msra.mxu0 0.0
    %5394 = vmatprep.subr.mxu0 0.0
    %5395 = vmatpush1.msra.mxu0 0.0
    %5396 = vmatprep.subr.mxu0 0.0
    %5397 = vmatpush1.msra.mxu0 0.0
    %5398 = vmatprep.subr.mxu0 0.0
    %5399 = vmatpush1.msra.mxu0 0.0
    %5400 = vmatprep.subr.mxu0 0.0
    %5401 = vmatpush1.msra.mxu0 0.0
    %5402 = vmatprep.subr.mxu0 0.0
    %5403 = vmatpush1.msra.mxu0 0.0
    %5404 = vmatprep.mubr.f32.mxu0 0.0
    %5405 = vmatmul.mubr.f32.gmra.mrb[0].mxu0 %v5338
    %v5406 = vpop.f32.mrb[0].mxu0
    %v5407 = vadd.f32 0.0, %v5406
    %v5408 = vpop.f32.mrb[0].mxu0
    %5409 = vdwg.mxu0
    %v5410 = vadd.f32 %v5334, %v5407
    %s5411 = scalar_lea.vmem [#allocation8], 64
    %v5412 = vld [vmem:[%s5411] sm:$0xff]
    %v5414 = vsel %vm4808, %v5412, 0
    %5416 = vmatprep.subr.mxu0 0.0
    %5417 = vmatpush1.msra.mxu0 %v4628
    %5418 = vmatprep.subr.mxu0 0.0
    %5419 = vmatpush1.msra.mxu0 %v4632
    %5420 = vmatprep.subr.mxu0 0.0
    %5421 = vmatpush1.msra.mxu0 %v4638
    %5422 = vmatprep.subr.mxu0 0.0
    %5423 = vmatpush1.msra.mxu0 %v4642
    %5424 = vmatprep.subr.mxu0 0.0
    %5425 = vmatpush1.msra.mxu0 0.0
    %5426 = vmatprep.subr.mxu0 0.0
    %5427 = vmatpush1.msra.mxu0 0.0
    %5428 = vmatprep.subr.mxu0 0.0
    %5429 = vmatpush1.msra.mxu0 0.0
    %5430 = vmatprep.subr.mxu0 0.0
    %5431 = vmatpush1.msra.mxu0 0.0
    %5432 = vmatprep.subr.mxu0 0.0
    %5433 = vmatpush1.msra.mxu0 0.0
    %5434 = vmatprep.subr.mxu0 0.0
    %5435 = vmatpush1.msra.mxu0 0.0
    %5436 = vmatprep.subr.mxu0 0.0
    %5437 = vmatpush1.msra.mxu0 0.0
    %5438 = vmatprep.subr.mxu0 0.0
    %5439 = vmatpush1.msra.mxu0 0.0
    %5440 = vmatprep.subr.mxu0 0.0
    %5441 = vmatpush1.msra.mxu0 0.0
    %5442 = vmatprep.subr.mxu0 0.0
    %5443 = vmatpush1.msra.mxu0 0.0
    %5444 = vmatprep.subr.mxu0 0.0
    %5445 = vmatpush1.msra.mxu0 0.0
    %5446 = vmatprep.subr.mxu0 0.0
    %5447 = vmatpush1.msra.mxu0 0.0
    %5448 = vmatprep.subr.mxu0 0.0
    %5449 = vmatpush1.msra.mxu0 0.0
    %5450 = vmatprep.subr.mxu0 0.0
    %5451 = vmatpush1.msra.mxu0 0.0
    %5452 = vmatprep.subr.mxu0 0.0
    %5453 = vmatpush1.msra.mxu0 0.0
    %5454 = vmatprep.subr.mxu0 0.0
    %5455 = vmatpush1.msra.mxu0 0.0
    %5456 = vmatprep.subr.mxu0 0.0
    %5457 = vmatpush1.msra.mxu0 0.0
    %5458 = vmatprep.subr.mxu0 0.0
    %5459 = vmatpush1.msra.mxu0 0.0
    %5460 = vmatprep.subr.mxu0 0.0
    %5461 = vmatpush1.msra.mxu0 0.0
    %5462 = vmatprep.subr.mxu0 0.0
    %5463 = vmatpush1.msra.mxu0 0.0
    %5464 = vmatprep.subr.mxu0 0.0
    %5465 = vmatpush1.msra.mxu0 0.0
    %5466 = vmatprep.subr.mxu0 0.0
    %5467 = vmatpush1.msra.mxu0 0.0
    %5468 = vmatprep.subr.mxu0 0.0
    %5469 = vmatpush1.msra.mxu0 0.0
    %5470 = vmatprep.subr.mxu0 0.0
    %5471 = vmatpush1.msra.mxu0 0.0
    %5472 = vmatprep.subr.mxu0 0.0
    %5473 = vmatpush1.msra.mxu0 0.0
    %5474 = vmatprep.subr.mxu0 0.0
    %5475 = vmatpush1.msra.mxu0 0.0
    %5476 = vmatprep.subr.mxu0 0.0
    %5477 = vmatpush1.msra.mxu0 0.0
    %5478 = vmatprep.subr.mxu0 0.0
    %5479 = vmatpush1.msra.mxu0 0.0
    %5480 = vmatprep.mubr.f32.mxu0 0.0
    %5481 = vmatmul.mubr.f32.gmra.mrb[0].mxu0 %v5414
    %v5482 = vpop.f32.mrb[0].mxu0
    %v5483 = vadd.f32 0.0, %v5482
    %v5484 = vpop.f32.mrb[0].mxu0
    %5485 = vdwg.mxu0
    %v5486 = vadd.f32 %v5410, %v5483
    %s5487 = scalar_lea.vmem [#allocation8], 72
    %v5488 = vld [vmem:[%s5487] sm:$0xff]
    %v5490 = vsel %vm4808, %v5488, 0
    %5492 = vmatprep.subr.mxu0 0.0
    %5493 = vmatpush1.msra.mxu0 %v4630
    %5494 = vmatprep.subr.mxu0 0.0
    %5495 = vmatpush1.msra.mxu0 %v4634
    %5496 = vmatprep.subr.mxu0 0.0
    %5497 = vmatpush1.msra.mxu0 %v4640
    %5498 = vmatprep.subr.mxu0 0.0
    %5499 = vmatpush1.msra.mxu0 %v4644
    %5500 = vmatprep.subr.mxu0 0.0
    %5501 = vmatpush1.msra.mxu0 0.0
    %5502 = vmatprep.subr.mxu0 0.0
    %5503 = vmatpush1.msra.mxu0 0.0
    %5504 = vmatprep.subr.mxu0 0.0
    %5505 = vmatpush1.msra.mxu0 0.0
    %5506 = vmatprep.subr.mxu0 0.0
    %5507 = vmatpush1.msra.mxu0 0.0
    %5508 = vmatprep.subr.mxu0 0.0
    %5509 = vmatpush1.msra.mxu0 0.0
    %5510 = vmatprep.subr.mxu0 0.0
    %5511 = vmatpush1.msra.mxu0 0.0
    %5512 = vmatprep.subr.mxu0 0.0
    %5513 = vmatpush1.msra.mxu0 0.0
    %5514 = vmatprep.subr.mxu0 0.0
    %5515 = vmatpush1.msra.mxu0 0.0
    %5516 = vmatprep.subr.mxu0 0.0
    %5517 = vmatpush1.msra.mxu0 0.0
    %5518 = vmatprep.subr.mxu0 0.0
    %5519 = vmatpush1.msra.mxu0 0.0
    %5520 = vmatprep.subr.mxu0 0.0
    %5521 = vmatpush1.msra.mxu0 0.0
    %5522 = vmatprep.subr.mxu0 0.0
    %5523 = vmatpush1.msra.mxu0 0.0
    %5524 = vmatprep.subr.mxu0 0.0
    %5525 = vmatpush1.msra.mxu0 0.0
    %5526 = vmatprep.subr.mxu0 0.0
    %5527 = vmatpush1.msra.mxu0 0.0
    %5528 = vmatprep.subr.mxu0 0.0
    %5529 = vmatpush1.msra.mxu0 0.0
    %5530 = vmatprep.subr.mxu0 0.0
    %5531 = vmatpush1.msra.mxu0 0.0
    %5532 = vmatprep.subr.mxu0 0.0
    %5533 = vmatpush1.msra.mxu0 0.0
    %5534 = vmatprep.subr.mxu0 0.0
    %5535 = vmatpush1.msra.mxu0 0.0
    %5536 = vmatprep.subr.mxu0 0.0
    %5537 = vmatpush1.msra.mxu0 0.0
    %5538 = vmatprep.subr.mxu0 0.0
    %5539 = vmatpush1.msra.mxu0 0.0
    %5540 = vmatprep.subr.mxu0 0.0
    %5541 = vmatpush1.msra.mxu0 0.0
    %5542 = vmatprep.subr.mxu0 0.0
    %5543 = vmatpush1.msra.mxu0 0.0
    %5544 = vmatprep.subr.mxu0 0.0
    %5545 = vmatpush1.msra.mxu0 0.0
    %5546 = vmatprep.subr.mxu0 0.0
    %5547 = vmatpush1.msra.mxu0 0.0
    %5548 = vmatprep.subr.mxu0 0.0
    %5549 = vmatpush1.msra.mxu0 0.0
    %5550 = vmatprep.subr.mxu0 0.0
    %5551 = vmatpush1.msra.mxu0 0.0
    %5552 = vmatprep.subr.mxu0 0.0
    %5553 = vmatpush1.msra.mxu0 0.0
    %5554 = vmatprep.subr.mxu0 0.0
    %5555 = vmatpush1.msra.mxu0 0.0
    %5556 = vmatprep.mubr.f32.mxu0 0.0
    %5557 = vmatmul.mubr.f32.gmra.mrb[0].mxu0 %v5490
    %v5558 = vpop.f32.mrb[0].mxu0
    %v5559 = vadd.f32 0.0, %v5558
    %v5560 = vpop.f32.mrb[0].mxu0
    %5561 = vdwg.mxu0
    %v5562 = vadd.f32 %v5486, %v5559
    %s5563 = scalar_lea.vmem [#allocation8], 80
    %v5564 = vld [vmem:[%s5563] sm:$0xff]
    %v5566 = vsel %vm4808, %v5564, 0
    %5568 = vmatprep.subr.mxu0 0.0
    %5569 = vmatpush1.msra.mxu0 %v4681
    %5570 = vmatprep.subr.mxu0 0.0
    %5571 = vmatpush1.msra.mxu0 %v4685
    %5572 = vmatprep.subr.mxu0 0.0
    %5573 = vmatpush1.msra.mxu0 %v4691
    %5574 = vmatprep.subr.mxu0 0.0
    %5575 = vmatpush1.msra.mxu0 %v4695
    %5576 = vmatprep.subr.mxu0 0.0
    %5577 = vmatpush1.msra.mxu0 0.0
    %5578 = vmatprep.subr.mxu0 0.0
    %5579 = vmatpush1.msra.mxu0 0.0
    %5580 = vmatprep.subr.mxu0 0.0
    %5581 = vmatpush1.msra.mxu0 0.0
    %5582 = vmatprep.subr.mxu0 0.0
    %5583 = vmatpush1.msra.mxu0 0.0
    %5584 = vmatprep.subr.mxu0 0.0
    %5585 = vmatpush1.msra.mxu0 0.0
    %5586 = vmatprep.subr.mxu0 0.0
    %5587 = vmatpush1.msra.mxu0 0.0
    %5588 = vmatprep.subr.mxu0 0.0
    %5589 = vmatpush1.msra.mxu0 0.0
    %5590 = vmatprep.subr.mxu0 0.0
    %5591 = vmatpush1.msra.mxu0 0.0
    %5592 = vmatprep.subr.mxu0 0.0
    %5593 = vmatpush1.msra.mxu0 0.0
    %5594 = vmatprep.subr.mxu0 0.0
    %5595 = vmatpush1.msra.mxu0 0.0
    %5596 = vmatprep.subr.mxu0 0.0
    %5597 = vmatpush1.msra.mxu0 0.0
    %5598 = vmatprep.subr.mxu0 0.0
    %5599 = vmatpush1.msra.mxu0 0.0
    %5600 = vmatprep.subr.mxu0 0.0
    %5601 = vmatpush1.msra.mxu0 0.0
    %5602 = vmatprep.subr.mxu0 0.0
    %5603 = vmatpush1.msra.mxu0 0.0
    %5604 = vmatprep.subr.mxu0 0.0
    %5605 = vmatpush1.msra.mxu0 0.0
    %5606 = vmatprep.subr.mxu0 0.0
    %5607 = vmatpush1.msra.mxu0 0.0
    %5608 = vmatprep.subr.mxu0 0.0
    %5609 = vmatpush1.msra.mxu0 0.0
    %5610 = vmatprep.subr.mxu0 0.0
    %5611 = vmatpush1.msra.mxu0 0.0
    %5612 = vmatprep.subr.mxu0 0.0
    %5613 = vmatpush1.msra.mxu0 0.0
    %5614 = vmatprep.subr.mxu0 0.0
    %5615 = vmatpush1.msra.mxu0 0.0
    %5616 = vmatprep.subr.mxu0 0.0
    %5617 = vmatpush1.msra.mxu0 0.0
    %5618 = vmatprep.subr.mxu0 0.0
    %5619 = vmatpush1.msra.mxu0 0.0
    %5620 = vmatprep.subr.mxu0 0.0
    %5621 = vmatpush1.msra.mxu0 0.0
    %5622 = vmatprep.subr.mxu0 0.0
    %5623 = vmatpush1.msra.mxu0 0.0
    %5624 = vmatprep.subr.mxu0 0.0
    %5625 = vmatpush1.msra.mxu0 0.0
    %5626 = vmatprep.subr.mxu0 0.0
    %5627 = vmatpush1.msra.mxu0 0.0
    %5628 = vmatprep.subr.mxu0 0.0
    %5629 = vmatpush1.msra.mxu0 0.0
    %5630 = vmatprep.subr.mxu0 0.0
    %5631 = vmatpush1.msra.mxu0 0.0
    %5632 = vmatprep.mubr.f32.mxu0 0.0
    %5633 = vmatmul.mubr.f32.gmra.mrb[0].mxu0 %v5566
    %v5634 = vpop.f32.mrb[0].mxu0
    %v5635 = vadd.f32 0.0, %v5634
    %v5636 = vpop.f32.mrb[0].mxu0
    %5637 = vdwg.mxu0
    %v5638 = vadd.f32 %v5562, %v5635
    %s5639 = scalar_lea.vmem [#allocation8], 88
    %v5640 = vld [vmem:[%s5639] sm:$0xff]
    %v5642 = vsel %vm4808, %v5640, 0
    %5644 = vmatprep.subr.mxu0 0.0
    %5645 = vmatpush1.msra.mxu0 %v4683
    %5646 = vmatprep.subr.mxu0 0.0
    %5647 = vmatpush1.msra.mxu0 %v4687
    %5648 = vmatprep.subr.mxu0 0.0
    %5649 = vmatpush1.msra.mxu0 %v4693
    %5650 = vmatprep.subr.mxu0 0.0
    %5651 = vmatpush1.msra.mxu0 %v4697
    %5652 = vmatprep.subr.mxu0 0.0
    %5653 = vmatpush1.msra.mxu0 0.0
    %5654 = vmatprep.subr.mxu0 0.0
    %5655 = vmatpush1.msra.mxu0 0.0
    %5656 = vmatprep.subr.mxu0 0.0
    %5657 = vmatpush1.msra.mxu0 0.0
    %5658 = vmatprep.subr.mxu0 0.0
    %5659 = vmatpush1.msra.mxu0 0.0
    %5660 = vmatprep.subr.mxu0 0.0
    %5661 = vmatpush1.msra.mxu0 0.0
    %5662 = vmatprep.subr.mxu0 0.0
    %5663 = vmatpush1.msra.mxu0 0.0
    %5664 = vmatprep.subr.mxu0 0.0
    %5665 = vmatpush1.msra.mxu0 0.0
    %5666 = vmatprep.subr.mxu0 0.0
    %5667 = vmatpush1.msra.mxu0 0.0
    %5668 = vmatprep.subr.mxu0 0.0
    %5669 = vmatpush1.msra.mxu0 0.0
    %5670 = vmatprep.subr.mxu0 0.0
    %5671 = vmatpush1.msra.mxu0 0.0
    %5672 = vmatprep.subr.mxu0 0.0
    %5673 = vmatpush1.msra.mxu0 0.0
    %5674 = vmatprep.subr.mxu0 0.0
    %5675 = vmatpush1.msra.mxu0 0.0
    %5676 = vmatprep.subr.mxu0 0.0
    %5677 = vmatpush1.msra.mxu0 0.0
    %5678 = vmatprep.subr.mxu0 0.0
    %5679 = vmatpush1.msra.mxu0 0.0
    %5680 = vmatprep.subr.mxu0 0.0
    %5681 = vmatpush1.msra.mxu0 0.0
    %5682 = vmatprep.subr.mxu0 0.0
    %5683 = vmatpush1.msra.mxu0 0.0
    %5684 = vmatprep.subr.mxu0 0.0
    %5685 = vmatpush1.msra.mxu0 0.0
    %5686 = vmatprep.subr.mxu0 0.0
    %5687 = vmatpush1.msra.mxu0 0.0
    %5688 = vmatprep.subr.mxu0 0.0
    %5689 = vmatpush1.msra.mxu0 0.0
    %5690 = vmatprep.subr.mxu0 0.0
    %5691 = vmatpush1.msra.mxu0 0.0
    %5692 = vmatprep.subr.mxu0 0.0
    %5693 = vmatpush1.msra.mxu0 0.0
    %5694 = vmatprep.subr.mxu0 0.0
    %5695 = vmatpush1.msra.mxu0 0.0
    %5696 = vmatprep.subr.mxu0 0.0
    %5697 = vmatpush1.msra.mxu0 0.0
    %5698 = vmatprep.subr.mxu0 0.0
    %5699 = vmatpush1.msra.mxu0 0.0
    %5700 = vmatprep.subr.mxu0 0.0
    %5701 = vmatpush1.msra.mxu0 0.0
    %5702 = vmatprep.subr.mxu0 0.0
    %5703 = vmatpush1.msra.mxu0 0.0
    %5704 = vmatprep.subr.mxu0 0.0
    %5705 = vmatpush1.msra.mxu0 0.0
    %5706 = vmatprep.subr.mxu0 0.0
    %5707 = vmatpush1.msra.mxu0 0.0
    %5708 = vmatprep.mubr.f32.mxu0 0.0
    %5709 = vmatmul.mubr.f32.gmra.mrb[0].mxu0 %v5642
    %v5710 = vpop.f32.mrb[0].mxu0
    %v5711 = vadd.f32 0.0, %v5710
    %v5712 = vpop.f32.mrb[0].mxu0
    %5713 = vdwg.mxu0
    %v5714 = vadd.f32 %v5638, %v5711
    %s5715 = scalar_lea.vmem [#allocation8], 96
    %v5716 = vld [vmem:[%s5715] sm:$0xff]
    %v5718 = vsel %vm4808, %v5716, 0
    %5720 = vmatprep.subr.mxu0 0.0
    %5721 = vmatpush1.msra.mxu0 %v4734
    %5722 = vmatprep.subr.mxu0 0.0
    %5723 = vmatpush1.msra.mxu0 %v4738
    %5724 = vmatprep.subr.mxu0 0.0
    %5725 = vmatpush1.msra.mxu0 %v4744
    %5726 = vmatprep.subr.mxu0 0.0
    %5727 = vmatpush1.msra.mxu0 %v4748
    %5728 = vmatprep.subr.mxu0 0.0
    %5729 = vmatpush1.msra.mxu0 0.0
    %5730 = vmatprep.subr.mxu0 0.0
    %5731 = vmatpush1.msra.mxu0 0.0
    %5732 = vmatprep.subr.mxu0 0.0
    %5733 = vmatpush1.msra.mxu0 0.0
    %5734 = vmatprep.subr.mxu0 0.0
    %5735 = vmatpush1.msra.mxu0 0.0
    %5736 = vmatprep.subr.mxu0 0.0
    %5737 = vmatpush1.msra.mxu0 0.0
    %5738 = vmatprep.subr.mxu0 0.0
    %5739 = vmatpush1.msra.mxu0 0.0
    %5740 = vmatprep.subr.mxu0 0.0
    %5741 = vmatpush1.msra.mxu0 0.0
    %5742 = vmatprep.subr.mxu0 0.0
    %5743 = vmatpush1.msra.mxu0 0.0
    %5744 = vmatprep.subr.mxu0 0.0
    %5745 = vmatpush1.msra.mxu0 0.0
    %5746 = vmatprep.subr.mxu0 0.0
    %5747 = vmatpush1.msra.mxu0 0.0
    %5748 = vmatprep.subr.mxu0 0.0
    %5749 = vmatpush1.msra.mxu0 0.0
    %5750 = vmatprep.subr.mxu0 0.0
    %5751 = vmatpush1.msra.mxu0 0.0
    %5752 = vmatprep.subr.mxu0 0.0
    %5753 = vmatpush1.msra.mxu0 0.0
    %5754 = vmatprep.subr.mxu0 0.0
    %5755 = vmatpush1.msra.mxu0 0.0
    %5756 = vmatprep.subr.mxu0 0.0
    %5757 = vmatpush1.msra.mxu0 0.0
    %5758 = vmatprep.subr.mxu0 0.0
    %5759 = vmatpush1.msra.mxu0 0.0
    %5760 = vmatprep.subr.mxu0 0.0
    %5761 = vmatpush1.msra.mxu0 0.0
    %5762 = vmatprep.subr.mxu0 0.0
    %5763 = vmatpush1.msra.mxu0 0.0
    %5764 = vmatprep.subr.mxu0 0.0
    %5765 = vmatpush1.msra.mxu0 0.0
    %5766 = vmatprep.subr.mxu0 0.0
    %5767 = vmatpush1.msra.mxu0 0.0
    %5768 = vmatprep.subr.mxu0 0.0
    %5769 = vmatpush1.msra.mxu0 0.0
    %5770 = vmatprep.subr.mxu0 0.0
    %5771 = vmatpush1.msra.mxu0 0.0
    %5772 = vmatprep.subr.mxu0 0.0
    %5773 = vmatpush1.msra.mxu0 0.0
    %5774 = vmatprep.subr.mxu0 0.0
    %5775 = vmatpush1.msra.mxu0 0.0
    %5776 = vmatprep.subr.mxu0 0.0
    %5777 = vmatpush1.msra.mxu0 0.0
    %5778 = vmatprep.subr.mxu0 0.0
    %5779 = vmatpush1.msra.mxu0 0.0
    %5780 = vmatprep.subr.mxu0 0.0
    %5781 = vmatpush1.msra.mxu0 0.0
    %5782 = vmatprep.subr.mxu0 0.0
    %5783 = vmatpush1.msra.mxu0 0.0
    %5784 = vmatprep.mubr.f32.mxu0 0.0
    %5785 = vmatmul.mubr.f32.gmra.mrb[0].mxu0 %v5718
    %v5786 = vpop.f32.mrb[0].mxu0
    %v5787 = vadd.f32 0.0, %v5786
    %v5788 = vpop.f32.mrb[0].mxu0
    %5789 = vdwg.mxu0
    %v5790 = vadd.f32 %v5714, %v5787
    %s5791 = scalar_lea.vmem [#allocation8], 104
    %v5792 = vld [vmem:[%s5791] sm:$0xff]
    %v5794 = vsel %vm4808, %v5792, 0
    %5796 = vmatprep.subr.mxu0 0.0
    %5797 = vmatpush1.msra.mxu0 %v4736
    %5798 = vmatprep.subr.mxu0 0.0
    %5799 = vmatpush1.msra.mxu0 %v4740
    %5800 = vmatprep.subr.mxu0 0.0
    %5801 = vmatpush1.msra.mxu0 %v4746
    %5802 = vmatprep.subr.mxu0 0.0
    %5803 = vmatpush1.msra.mxu0 %v4750
    %5804 = vmatprep.subr.mxu0 0.0
    %5805 = vmatpush1.msra.mxu0 0.0
    %5806 = vmatprep.subr.mxu0 0.0
    %5807 = vmatpush1.msra.mxu0 0.0
    %5808 = vmatprep.subr.mxu0 0.0
    %5809 = vmatpush1.msra.mxu0 0.0
    %5810 = vmatprep.subr.mxu0 0.0
    %5811 = vmatpush1.msra.mxu0 0.0
    %5812 = vmatprep.subr.mxu0 0.0
    %5813 = vmatpush1.msra.mxu0 0.0
    %5814 = vmatprep.subr.mxu0 0.0
    %5815 = vmatpush1.msra.mxu0 0.0
    %5816 = vmatprep.subr.mxu0 0.0
    %5817 = vmatpush1.msra.mxu0 0.0
    %5818 = vmatprep.subr.mxu0 0.0
    %5819 = vmatpush1.msra.mxu0 0.0
    %5820 = vmatprep.subr.mxu0 0.0
    %5821 = vmatpush1.msra.mxu0 0.0
    %5822 = vmatprep.subr.mxu0 0.0
    %5823 = vmatpush1.msra.mxu0 0.0
    %5824 = vmatprep.subr.mxu0 0.0
    %5825 = vmatpush1.msra.mxu0 0.0
    %5826 = vmatprep.subr.mxu0 0.0
    %5827 = vmatpush1.msra.mxu0 0.0
    %5828 = vmatprep.subr.mxu0 0.0
    %5829 = vmatpush1.msra.mxu0 0.0
    %5830 = vmatprep.subr.mxu0 0.0
    %5831 = vmatpush1.msra.mxu0 0.0
    %5832 = vmatprep.subr.mxu0 0.0
    %5833 = vmatpush1.msra.mxu0 0.0
    %5834 = vmatprep.subr.mxu0 0.0
    %5835 = vmatpush1.msra.mxu0 0.0
    %5836 = vmatprep.subr.mxu0 0.0
    %5837 = vmatpush1.msra.mxu0 0.0
    %5838 = vmatprep.subr.mxu0 0.0
    %5839 = vmatpush1.msra.mxu0 0.0
    %5840 = vmatprep.subr.mxu0 0.0
    %5841 = vmatpush1.msra.mxu0 0.0
    %5842 = vmatprep.subr.mxu0 0.0
    %5843 = vmatpush1.msra.mxu0 0.0
    %5844 = vmatprep.subr.mxu0 0.0
    %5845 = vmatpush1.msra.mxu0 0.0
    %5846 = vmatprep.subr.mxu0 0.0
    %5847 = vmatpush1.msra.mxu0 0.0
    %5848 = vmatprep.subr.mxu0 0.0
    %5849 = vmatpush1.msra.mxu0 0.0
    %5850 = vmatprep.subr.mxu0 0.0
    %5851 = vmatpush1.msra.mxu0 0.0
    %5852 = vmatprep.subr.mxu0 0.0
    %5853 = vmatpush1.msra.mxu0 0.0
    %5854 = vmatprep.subr.mxu0 0.0
    %5855 = vmatpush1.msra.mxu0 0.0
    %5856 = vmatprep.subr.mxu0 0.0
    %5857 = vmatpush1.msra.mxu0 0.0
    %5858 = vmatprep.subr.mxu0 0.0
    %5859 = vmatpush1.msra.mxu0 0.0
    %5860 = vmatprep.mubr.f32.mxu0 0.0
    %5861 = vmatmul.mubr.f32.gmra.mrb[0].mxu0 %v5794
    %v5862 = vpop.f32.mrb[0].mxu0
    %v5863 = vadd.f32 0.0, %v5862
    %v5864 = vpop.f32.mrb[0].mxu0
    %5865 = vdwg.mxu0
    %v5866 = vadd.f32 %v5790, %v5863
    %s5867 = scalar_lea.vmem [#allocation8], 112
    %v5868 = vld [vmem:[%s5867] sm:$0xff]
    %v5870 = vsel %vm4808, %v5868, 0
    %5872 = vmatprep.subr.mxu0 0.0
    %5873 = vmatpush1.msra.mxu0 %v4787
    %5874 = vmatprep.subr.mxu0 0.0
    %5875 = vmatpush1.msra.mxu0 %v4791
    %5876 = vmatprep.subr.mxu0 0.0
    %5877 = vmatpush1.msra.mxu0 %v4797
    %5878 = vmatprep.subr.mxu0 0.0
    %5879 = vmatpush1.msra.mxu0 %v4801
    %5880 = vmatprep.subr.mxu0 0.0
    %5881 = vmatpush1.msra.mxu0 0.0
    %5882 = vmatprep.subr.mxu0 0.0
    %5883 = vmatpush1.msra.mxu0 0.0
    %5884 = vmatprep.subr.mxu0 0.0
    %5885 = vmatpush1.msra.mxu0 0.0
    %5886 = vmatprep.subr.mxu0 0.0
    %5887 = vmatpush1.msra.mxu0 0.0
    %5888 = vmatprep.subr.mxu0 0.0
    %5889 = vmatpush1.msra.mxu0 0.0
    %5890 = vmatprep.subr.mxu0 0.0
    %5891 = vmatpush1.msra.mxu0 0.0
    %5892 = vmatprep.subr.mxu0 0.0
    %5893 = vmatpush1.msra.mxu0 0.0
    %5894 = vmatprep.subr.mxu0 0.0
    %5895 = vmatpush1.msra.mxu0 0.0
    %5896 = vmatprep.subr.mxu0 0.0
    %5897 = vmatpush1.msra.mxu0 0.0
    %5898 = vmatprep.subr.mxu0 0.0
    %5899 = vmatpush1.msra.mxu0 0.0
    %5900 = vmatprep.subr.mxu0 0.0
    %5901 = vmatpush1.msra.mxu0 0.0
    %5902 = vmatprep.subr.mxu0 0.0
    %5903 = vmatpush1.msra.mxu0 0.0
    %5904 = vmatprep.subr.mxu0 0.0
    %5905 = vmatpush1.msra.mxu0 0.0
    %5906 = vmatprep.subr.mxu0 0.0
    %5907 = vmatpush1.msra.mxu0 0.0
    %5908 = vmatprep.subr.mxu0 0.0
    %5909 = vmatpush1.msra.mxu0 0.0
    %5910 = vmatprep.subr.mxu0 0.0
    %5911 = vmatpush1.msra.mxu0 0.0
    %5912 = vmatprep.subr.mxu0 0.0
    %5913 = vmatpush1.msra.mxu0 0.0
    %5914 = vmatprep.subr.mxu0 0.0
    %5915 = vmatpush1.msra.mxu0 0.0
    %5916 = vmatprep.subr.mxu0 0.0
    %5917 = vmatpush1.msra.mxu0 0.0
    %5918 = vmatprep.subr.mxu0 0.0
    %5919 = vmatpush1.msra.mxu0 0.0
    %5920 = vmatprep.subr.mxu0 0.0
    %5921 = vmatpush1.msra.mxu0 0.0
    %5922 = vmatprep.subr.mxu0 0.0
    %5923 = vmatpush1.msra.mxu0 0.0
    %5924 = vmatprep.subr.mxu0 0.0
    %5925 = vmatpush1.msra.mxu0 0.0
    %5926 = vmatprep.subr.mxu0 0.0
    %5927 = vmatpush1.msra.mxu0 0.0
    %5928 = vmatprep.subr.mxu0 0.0
    %5929 = vmatpush1.msra.mxu0 0.0
    %5930 = vmatprep.subr.mxu0 0.0
    %5931 = vmatpush1.msra.mxu0 0.0
    %5932 = vmatprep.subr.mxu0 0.0
    %5933 = vmatpush1.msra.mxu0 0.0
    %5934 = vmatprep.subr.mxu0 0.0
    %5935 = vmatpush1.msra.mxu0 0.0
    %5936 = vmatprep.mubr.f32.mxu0 0.0
    %5937 = vmatmul.mubr.f32.gmra.mrb[0].mxu0 %v5870
    %v5938 = vpop.f32.mrb[0].mxu0
    %v5939 = vadd.f32 0.0, %v5938
    %v5940 = vpop.f32.mrb[0].mxu0
    %5941 = vdwg.mxu0
    %v5942 = vadd.f32 %v5866, %v5939
    %s5943 = scalar_lea.vmem [#allocation8], 120
    %v5944 = vld [vmem:[%s5943] sm:$0xff]
    %v5946 = vsel %vm4808, %v5944, 0
    %5948 = vmatprep.subr.mxu0 0.0
    %5949 = vmatpush1.msra.mxu0 %v4789
    %5950 = vmatprep.subr.mxu0 0.0
    %5951 = vmatpush1.msra.mxu0 %v4793
    %5952 = vmatprep.subr.mxu0 0.0
    %5953 = vmatpush1.msra.mxu0 %v4799
    %5954 = vmatprep.subr.mxu0 0.0
    %5955 = vmatpush1.msra.mxu0 %v4803
    %5956 = vmatprep.subr.mxu0 0.0
    %5957 = vmatpush1.msra.mxu0 0.0
    %5958 = vmatprep.subr.mxu0 0.0
    %5959 = vmatpush1.msra.mxu0 0.0
    %5960 = vmatprep.subr.mxu0 0.0
    %5961 = vmatpush1.msra.mxu0 0.0
    %5962 = vmatprep.subr.mxu0 0.0
    %5963 = vmatpush1.msra.mxu0 0.0
    %5964 = vmatprep.subr.mxu0 0.0
    %5965 = vmatpush1.msra.mxu0 0.0
    %5966 = vmatprep.subr.mxu0 0.0
    %5967 = vmatpush1.msra.mxu0 0.0
    %5968 = vmatprep.subr.mxu0 0.0
    %5969 = vmatpush1.msra.mxu0 0.0
    %5970 = vmatprep.subr.mxu0 0.0
    %5971 = vmatpush1.msra.mxu0 0.0
    %5972 = vmatprep.subr.mxu0 0.0
    %5973 = vmatpush1.msra.mxu0 0.0
    %5974 = vmatprep.subr.mxu0 0.0
    %5975 = vmatpush1.msra.mxu0 0.0
    %5976 = vmatprep.subr.mxu0 0.0
    %5977 = vmatpush1.msra.mxu0 0.0
    %5978 = vmatprep.subr.mxu0 0.0
    %5979 = vmatpush1.msra.mxu0 0.0
    %5980 = vmatprep.subr.mxu0 0.0
    %5981 = vmatpush1.msra.mxu0 0.0
    %5982 = vmatprep.subr.mxu0 0.0
    %5983 = vmatpush1.msra.mxu0 0.0
    %5984 = vmatprep.subr.mxu0 0.0
    %5985 = vmatpush1.msra.mxu0 0.0
    %5986 = vmatprep.subr.mxu0 0.0
    %5987 = vmatpush1.msra.mxu0 0.0
    %5988 = vmatprep.subr.mxu0 0.0
    %5989 = vmatpush1.msra.mxu0 0.0
    %5990 = vmatprep.subr.mxu0 0.0
    %5991 = vmatpush1.msra.mxu0 0.0
    %5992 = vmatprep.subr.mxu0 0.0
    %5993 = vmatpush1.msra.mxu0 0.0
    %5994 = vmatprep.subr.mxu0 0.0
    %5995 = vmatpush1.msra.mxu0 0.0
    %5996 = vmatprep.subr.mxu0 0.0
    %5997 = vmatpush1.msra.mxu0 0.0
    %5998 = vmatprep.subr.mxu0 0.0
    %5999 = vmatpush1.msra.mxu0 0.0
    %6000 = vmatprep.subr.mxu0 0.0
    %6001 = vmatpush1.msra.mxu0 0.0
    %6002 = vmatprep.subr.mxu0 0.0
    %6003 = vmatpush1.msra.mxu0 0.0
    %6004 = vmatprep.subr.mxu0 0.0
    %6005 = vmatpush1.msra.mxu0 0.0
    %6006 = vmatprep.subr.mxu0 0.0
    %6007 = vmatpush1.msra.mxu0 0.0
    %6008 = vmatprep.subr.mxu0 0.0
    %6009 = vmatpush1.msra.mxu0 0.0
    %6010 = vmatprep.subr.mxu0 0.0
    %6011 = vmatpush1.msra.mxu0 0.0
    %6012 = vmatprep.mubr.f32.mxu0 0.0
    %6013 = vmatmul.mubr.f32.gmra.mrb[0].mxu0 %v5946
    %v6014 = vpop.f32.mrb[0].mxu0
    %v6015 = vadd.f32 0.0, %v6014
    %v6016 = vpop.f32.mrb[0].mxu0
    %6017 = vdwg.mxu0
    %v6018 = vadd.f32 %v5942, %v6015
    %v6019 = vrot.slane %v6018, 4
    %v6020 = vadd.f32 %v6018, %v6019
    %v6021 = vrot.slane %v6020, 2
    %v6022 = vadd.f32 %v6020, %v6021
    %v6023 = vrot.slane %v6022, 1
    %v6024 = vadd.f32 %v6022, %v6023
    %v6025 = vrcp.pop 8.0
    %v6026 = vmul.f32 %v6024, %v6025
    %v6027 = vmul.f32 %v6018, %v6018
    %v6028 = vrot.slane %v6027, 4
    %v6029 = vadd.f32 %v6027, %v6028
    %v6030 = vrot.slane %v6029, 2
    %v6031 = vadd.f32 %v6029, %v6030
    %v6032 = vrot.slane %v6031, 1
    %v6033 = vadd.f32 %v6031, %v6032
    %v6034 = vmul.f32 %v6033, %v6025
    %v6035 = vmul.f32 %v6026, %v6026
    %v6036 = vsub.f32 %v6034, %v6035
    %v6037 = vmax.f32 %v6036, 0.0
    %v6038 = vld [vmem:[%s8] sm:$0x1]
    %v6039 = vadd.f32 %v6037, 1e-05
    %v6040 = vrsqrt.pop %v6039
    %v6041 = vmul.f32 %v6038, %v6040
    %v6042 = vld [vmem:[%s9] sm:$0x1]
    %v6043 = vmul.f32 %v6026, %v6041
    %v6044 = vsub.f32 %v6042, %v6043
    %v6046 = vlaneseq
    %v6047 = vshrl.u32 %v6046, 7
    %v6048 = vsub.s32 0, %v6047
    %v6049 = vrot.slane %v6041, %v6048
    %v6051 = vmul.f32 %v6018, %v6049
    %v6053 = vlaneseq
    %v6054 = vshrl.u32 %v6053, 7
    %v6055 = vsub.s32 0, %v6054
    %v6056 = vrot.slane %v6044, %v6055
    %v6058 = vadd.f32 %v6051, %v6056
    %v6059 = vmax.f32 %v6058, 0.0
    %v6060 = vpack.c.bf16 %v6059, %v6059
    %v6061 = vld [vmem:[#allocation10] sm:$0xff]
    %v6062 = vld [vmem:[#allocation10 + $0x8] sm:$0xff]
    %v6063 = vld [vmem:[#allocation10 + $0x10] sm:$0xff]
    %v6064 = vld [vmem:[#allocation10 + $0x18] sm:$0xff]
    %v6065 = vld [vmem:[#allocation10 + $0x20] sm:$0xff]
    %v6066 = vld [vmem:[#allocation10 + $0x28] sm:$0xff]
    %v6067 = vld [vmem:[#allocation10 + $0x30] sm:$0xff]
    %v6068 = vld [vmem:[#allocation10 + $0x38] sm:$0xff]
    %v6069 = vld [vmem:[#allocation10 + $0x40] sm:$0xff]
    %v6070 = vld [vmem:[#allocation10 + $0x48] sm:$0xff]
    %v6071 = vld [vmem:[#allocation10 + $0x50] sm:$0xff]
    %v6072 = vld [vmem:[#allocation10 + $0x58] sm:$0xff]
    %v6073 = vld [vmem:[#allocation10 + $0x60] sm:$0xff]
    %v6074 = vld [vmem:[#allocation10 + $0x68] sm:$0xff]
    %v6075 = vld [vmem:[#allocation10 + $0x70] sm:$0xff]
    %v6076 = vld [vmem:[#allocation10 + $0x78] sm:$0xff]
    %v6077 = vld [vmem:[#allocation10 + $0x80] sm:$0xff]
    %v6078 = vld [vmem:[#allocation10 + $0x88] sm:$0xff]
    %v6079 = vld [vmem:[#allocation10 + $0x90] sm:$0xff]
    %v6080 = vld [vmem:[#allocation10 + $0x98] sm:$0xff]
    %v6081 = vld [vmem:[#allocation10 + $0xa0] sm:$0xff]
    %v6082 = vld [vmem:[#allocation10 + $0xa8] sm:$0xff]
    %v6083 = vld [vmem:[#allocation10 + $0xb0] sm:$0xff]
    %v6084 = vld [vmem:[#allocation10 + $0xb8] sm:$0xff]
    %v6085 = vld [vmem:[#allocation10 + $0xc0] sm:$0xff]
    %v6086 = vld [vmem:[#allocation10 + $0xc8] sm:$0xff]
    %v6087 = vld [vmem:[#allocation10 + $0xd0] sm:$0xff]
    %v6088 = vld [vmem:[#allocation10 + $0xd8] sm:$0xff]
    %v6089 = vld [vmem:[#allocation10 + $0xe0] sm:$0xff]
    %v6090 = vld [vmem:[#allocation10 + $0xe8] sm:$0xff]
    %v6091 = vld [vmem:[#allocation10 + $0xf0] sm:$0xff]
    %v6092 = vld [vmem:[#allocation10 + $0xf8] sm:$0xff]
    %v6093 = vld [vmem:[#allocation10 + $0x100] sm:$0xff]
    %v6094 = vld [vmem:[#allocation10 + $0x108] sm:$0xff]
    %v6095 = vld [vmem:[#allocation10 + $0x110] sm:$0xff]
    %v6096 = vld [vmem:[#allocation10 + $0x118] sm:$0xff]
    %v6097 = vld [vmem:[#allocation10 + $0x120] sm:$0xff]
    %v6098 = vld [vmem:[#allocation10 + $0x128] sm:$0xff]
    %v6099 = vld [vmem:[#allocation10 + $0x130] sm:$0xff]
    %v6100 = vld [vmem:[#allocation10 + $0x138] sm:$0xff]
    %v6101 = vld [vmem:[#allocation10 + $0x140] sm:$0xff]
    %v6102 = vld [vmem:[#allocation10 + $0x148] sm:$0xff]
    %v6103 = vld [vmem:[#allocation10 + $0x150] sm:$0xff]
    %v6104 = vld [vmem:[#allocation10 + $0x158] sm:$0xff]
    %v6105 = vld [vmem:[#allocation10 + $0x160] sm:$0xff]
    %v6106 = vld [vmem:[#allocation10 + $0x168] sm:$0xff]
    %v6107 = vld [vmem:[#allocation10 + $0x170] sm:$0xff]
    %v6108 = vld [vmem:[#allocation10 + $0x178] sm:$0xff]
    %v6109 = vld [vmem:[#allocation10 + $0x180] sm:$0xff]
    %v6110 = vld [vmem:[#allocation10 + $0x188] sm:$0xff]
    %v6111 = vld [vmem:[#allocation10 + $0x190] sm:$0xff]
    %v6112 = vld [vmem:[#allocation10 + $0x198] sm:$0xff]
    %v6113 = vld [vmem:[#allocation10 + $0x1a0] sm:$0xff]
    %v6114 = vld [vmem:[#allocation10 + $0x1a8] sm:$0xff]
    %v6115 = vld [vmem:[#allocation10 + $0x1b0] sm:$0xff]
    %v6116 = vld [vmem:[#allocation10 + $0x1b8] sm:$0xff]
    %v6117 = vld [vmem:[#allocation10 + $0x1c0] sm:$0xff]
    %v6118 = vld [vmem:[#allocation10 + $0x1c8] sm:$0xff]
    %v6119 = vld [vmem:[#allocation10 + $0x1d0] sm:$0xff]
    %v6120 = vld [vmem:[#allocation10 + $0x1d8] sm:$0xff]
    %v6121 = vld [vmem:[#allocation10 + $0x1e0] sm:$0xff]
    %v6122 = vld [vmem:[#allocation10 + $0x1e8] sm:$0xff]
    %v6123 = vld [vmem:[#allocation10 + $0x1f0] sm:$0xff]
    %v6124 = vld [vmem:[#allocation10 + $0x1f8] sm:$0xff]
    %v6125 = vld [vmem:[#allocation10 + $0x200] sm:$0xff]
    %v6126 = vld [vmem:[#allocation10 + $0x208] sm:$0xff]
    %v6127 = vld [vmem:[#allocation10 + $0x210] sm:$0xff]
    %v6128 = vld [vmem:[#allocation10 + $0x218] sm:$0xff]
    %v6129 = vld [vmem:[#allocation10 + $0x220] sm:$0xff]
    %v6130 = vld [vmem:[#allocation10 + $0x228] sm:$0xff]
    %v6131 = vld [vmem:[#allocation10 + $0x230] sm:$0xff]
    %v6132 = vld [vmem:[#allocation10 + $0x238] sm:$0xff]
    %v6133 = vld [vmem:[#allocation10 + $0x240] sm:$0xff]
    %v6134 = vld [vmem:[#allocation10 + $0x248] sm:$0xff]
    %v6135 = vld [vmem:[#allocation10 + $0x250] sm:$0xff]
    %v6136 = vld [vmem:[#allocation10 + $0x258] sm:$0xff]
    %v6137 = vld [vmem:[#allocation10 + $0x260] sm:$0xff]
    %v6138 = vld [vmem:[#allocation10 + $0x268] sm:$0xff]
    %v6139 = vld [vmem:[#allocation10 + $0x270] sm:$0xff]
    %v6140 = vld [vmem:[#allocation10 + $0x278] sm:$0xff]
    %v6141 = vld [vmem:[#allocation10 + $0x280] sm:$0xff]
    %v6142 = vld [vmem:[#allocation10 + $0x288] sm:$0xff]
    %v6143 = vld [vmem:[#allocation10 + $0x290] sm:$0xff]
    %v6144 = vld [vmem:[#allocation10 + $0x298] sm:$0xff]
    %v6145 = vld [vmem:[#allocation10 + $0x2a0] sm:$0xff]
    %v6146 = vld [vmem:[#allocation10 + $0x2a8] sm:$0xff]
    %v6147 = vld [vmem:[#allocation10 + $0x2b0] sm:$0xff]
    %v6148 = vld [vmem:[#allocation10 + $0x2b8] sm:$0xff]
    %v6149 = vld [vmem:[#allocation10 + $0x2c0] sm:$0xff]
    %v6150 = vld [vmem:[#allocation10 + $0x2c8] sm:$0xff]
    %v6151 = vld [vmem:[#allocation10 + $0x2d0] sm:$0xff]
    %v6152 = vld [vmem:[#allocation10 + $0x2d8] sm:$0xff]
    %v6153 = vld [vmem:[#allocation10 + $0x2e0] sm:$0xff]
    %v6154 = vld [vmem:[#allocation10 + $0x2e8] sm:$0xff]
    %v6155 = vld [vmem:[#allocation10 + $0x2f0] sm:$0xff]
    %v6156 = vld [vmem:[#allocation10 + $0x2f8] sm:$0xff]
    %v6157 = vld [vmem:[#allocation10 + $0x300] sm:$0xff]
    %v6158 = vld [vmem:[#allocation10 + $0x308] sm:$0xff]
    %v6159 = vld [vmem:[#allocation10 + $0x310] sm:$0xff]
    %v6160 = vld [vmem:[#allocation10 + $0x318] sm:$0xff]
    %v6161 = vld [vmem:[#allocation10 + $0x320] sm:$0xff]
    %v6162 = vld [vmem:[#allocation10 + $0x328] sm:$0xff]
    %v6163 = vld [vmem:[#allocation10 + $0x330] sm:$0xff]
    %v6164 = vld [vmem:[#allocation10 + $0x338] sm:$0xff]
    %v6165 = vld [vmem:[#allocation10 + $0x340] sm:$0xff]
    %v6166 = vld [vmem:[#allocation10 + $0x348] sm:$0xff]
    %v6167 = vld [vmem:[#allocation10 + $0x350] sm:$0xff]
    %v6168 = vld [vmem:[#allocation10 + $0x358] sm:$0xff]
    %v6169 = vld [vmem:[#allocation10 + $0x360] sm:$0xff]
    %v6170 = vld [vmem:[#allocation10 + $0x368] sm:$0xff]
    %v6171 = vld [vmem:[#allocation10 + $0x370] sm:$0xff]
    %v6172 = vld [vmem:[#allocation10 + $0x378] sm:$0xff]
    %v6173 = vld [vmem:[#allocation10 + $0x380] sm:$0xff]
    %v6174 = vld [vmem:[#allocation10 + $0x388] sm:$0xff]
    %v6175 = vld [vmem:[#allocation10 + $0x390] sm:$0xff]
    %v6176 = vld [vmem:[#allocation10 + $0x398] sm:$0xff]
    %v6177 = vld [vmem:[#allocation10 + $0x3a0] sm:$0xff]
    %v6178 = vld [vmem:[#allocation10 + $0x3a8] sm:$0xff]
    %v6179 = vld [vmem:[#allocation10 + $0x3b0] sm:$0xff]
    %v6180 = vld [vmem:[#allocation10 + $0x3b8] sm:$0xff]
    %v6181 = vld [vmem:[#allocation10 + $0x3c0] sm:$0xff]
    %v6182 = vld [vmem:[#allocation10 + $0x3c8] sm:$0xff]
    %v6183 = vld [vmem:[#allocation10 + $0x3d0] sm:$0xff]
    %v6184 = vld [vmem:[#allocation10 + $0x3d8] sm:$0xff]
    %v6185 = vld [vmem:[#allocation10 + $0x3e0] sm:$0xff]
    %v6186 = vld [vmem:[#allocation10 + $0x3e8] sm:$0xff]
    %v6187 = vld [vmem:[#allocation10 + $0x3f0] sm:$0xff]
    %v6188 = vld [vmem:[#allocation10 + $0x3f8] sm:$0xff]
    %v6189 = vld [vmem:[#allocation10 + $0x400] sm:$0xff]
    %v6190 = vld [vmem:[#allocation10 + $0x408] sm:$0xff]
    %v6191 = vld [vmem:[#allocation10 + $0x410] sm:$0xff]
    %v6192 = vld [vmem:[#allocation10 + $0x418] sm:$0xff]
    %v6193 = vld [vmem:[#allocation10 + $0x420] sm:$0xff]
    %v6194 = vld [vmem:[#allocation10 + $0x428] sm:$0xff]
    %v6195 = vld [vmem:[#allocation10 + $0x430] sm:$0xff]
    %v6196 = vld [vmem:[#allocation10 + $0x438] sm:$0xff]
    %v6197 = vld [vmem:[#allocation10 + $0x440] sm:$0xff]
    %v6198 = vld [vmem:[#allocation10 + $0x448] sm:$0xff]
    %v6199 = vld [vmem:[#allocation10 + $0x450] sm:$0xff]
    %v6200 = vld [vmem:[#allocation10 + $0x458] sm:$0xff]
    %v6201 = vld [vmem:[#allocation10 + $0x460] sm:$0xff]
    %v6202 = vld [vmem:[#allocation10 + $0x468] sm:$0xff]
    %v6203 = vld [vmem:[#allocation10 + $0x470] sm:$0xff]
    %v6204 = vld [vmem:[#allocation10 + $0x478] sm:$0xff]
    %v6205 = vld [vmem:[#allocation10 + $0x480] sm:$0xff]
    %v6206 = vld [vmem:[#allocation10 + $0x488] sm:$0xff]
    %v6207 = vld [vmem:[#allocation10 + $0x490] sm:$0xff]
    %v6208 = vld [vmem:[#allocation10 + $0x498] sm:$0xff]
    %v6209 = vld [vmem:[#allocation10 + $0x4a0] sm:$0xff]
    %v6210 = vld [vmem:[#allocation10 + $0x4a8] sm:$0xff]
    %v6211 = vld [vmem:[#allocation10 + $0x4b0] sm:$0xff]
    %v6212 = vld [vmem:[#allocation10 + $0x4b8] sm:$0xff]
    %v6213 = vld [vmem:[#allocation10 + $0x4c0] sm:$0xff]
    %v6214 = vld [vmem:[#allocation10 + $0x4c8] sm:$0xff]
    %v6215 = vld [vmem:[#allocation10 + $0x4d0] sm:$0xff]
    %v6216 = vld [vmem:[#allocation10 + $0x4d8] sm:$0xff]
    %v6217 = vld [vmem:[#allocation10 + $0x4e0] sm:$0xff]
    %v6218 = vld [vmem:[#allocation10 + $0x4e8] sm:$0xff]
    %v6219 = vld [vmem:[#allocation10 + $0x4f0] sm:$0xff]
    %v6220 = vld [vmem:[#allocation10 + $0x4f8] sm:$0xff]
    %v6221 = vld [vmem:[#allocation10 + $0x500] sm:$0xff]
    %v6222 = vld [vmem:[#allocation10 + $0x508] sm:$0xff]
    %v6223 = vld [vmem:[#allocation10 + $0x510] sm:$0xff]
    %v6224 = vld [vmem:[#allocation10 + $0x518] sm:$0xff]
    %v6225 = vld [vmem:[#allocation10 + $0x520] sm:$0xff]
    %v6226 = vld [vmem:[#allocation10 + $0x528] sm:$0xff]
    %v6227 = vld [vmem:[#allocation10 + $0x530] sm:$0xff]
    %v6228 = vld [vmem:[#allocation10 + $0x538] sm:$0xff]
    %v6229 = vld [vmem:[#allocation10 + $0x540] sm:$0xff]
    %v6230 = vld [vmem:[#allocation10 + $0x548] sm:$0xff]
    %v6231 = vld [vmem:[#allocation10 + $0x550] sm:$0xff]
    %v6232 = vld [vmem:[#allocation10 + $0x558] sm:$0xff]
    %v6233 = vld [vmem:[#allocation10 + $0x560] sm:$0xff]
    %v6234 = vld [vmem:[#allocation10 + $0x568] sm:$0xff]
    %v6235 = vld [vmem:[#allocation10 + $0x570] sm:$0xff]
    %v6236 = vld [vmem:[#allocation10 + $0x578] sm:$0xff]
    %v6237 = vld [vmem:[#allocation10 + $0x580] sm:$0xff]
    %v6238 = vld [vmem:[#allocation10 + $0x588] sm:$0xff]
    %v6239 = vld [vmem:[#allocation10 + $0x590] sm:$0xff]
    %v6240 = vld [vmem:[#allocation10 + $0x598] sm:$0xff]
    %v6241 = vld [vmem:[#allocation10 + $0x5a0] sm:$0xff]
    %v6242 = vld [vmem:[#allocation10 + $0x5a8] sm:$0xff]
    %v6243 = vld [vmem:[#allocation10 + $0x5b0] sm:$0xff]
    %v6244 = vld [vmem:[#allocation10 + $0x5b8] sm:$0xff]
    %v6245 = vld [vmem:[#allocation10 + $0x5c0] sm:$0xff]
    %v6246 = vld [vmem:[#allocation10 + $0x5c8] sm:$0xff]
    %v6247 = vld [vmem:[#allocation10 + $0x5d0] sm:$0xff]
    %v6248 = vld [vmem:[#allocation10 + $0x5d8] sm:$0xff]
    %v6249 = vld [vmem:[#allocation10 + $0x5e0] sm:$0xff]
    %v6250 = vld [vmem:[#allocation10 + $0x5e8] sm:$0xff]
    %v6251 = vld [vmem:[#allocation10 + $0x5f0] sm:$0xff]
    %v6252 = vld [vmem:[#allocation10 + $0x5f8] sm:$0xff]
    %v6253 = vld [vmem:[#allocation10 + $0x600] sm:$0xff]
    %v6254 = vld [vmem:[#allocation10 + $0x608] sm:$0xff]
    %v6255 = vld [vmem:[#allocation10 + $0x610] sm:$0xff]
    %v6256 = vld [vmem:[#allocation10 + $0x618] sm:$0xff]
    %v6257 = vld [vmem:[#allocation10 + $0x620] sm:$0xff]
    %v6258 = vld [vmem:[#allocation10 + $0x628] sm:$0xff]
    %v6259 = vld [vmem:[#allocation10 + $0x630] sm:$0xff]
    %v6260 = vld [vmem:[#allocation10 + $0x638] sm:$0xff]
    %v6261 = vld [vmem:[#allocation10 + $0x640] sm:$0xff]
    %v6262 = vld [vmem:[#allocation10 + $0x648] sm:$0xff]
    %v6263 = vld [vmem:[#allocation10 + $0x650] sm:$0xff]
    %v6264 = vld [vmem:[#allocation10 + $0x658] sm:$0xff]
    %v6265 = vld [vmem:[#allocation10 + $0x660] sm:$0xff]
    %v6266 = vld [vmem:[#allocation10 + $0x668] sm:$0xff]
    %v6267 = vld [vmem:[#allocation10 + $0x670] sm:$0xff]
    %v6268 = vld [vmem:[#allocation10 + $0x678] sm:$0xff]
    %v6269 = vld [vmem:[#allocation10 + $0x680] sm:$0xff]
    %v6270 = vld [vmem:[#allocation10 + $0x688] sm:$0xff]
    %v6271 = vld [vmem:[#allocation10 + $0x690] sm:$0xff]
    %v6272 = vld [vmem:[#allocation10 + $0x698] sm:$0xff]
    %v6273 = vld [vmem:[#allocation10 + $0x6a0] sm:$0xff]
    %v6274 = vld [vmem:[#allocation10 + $0x6a8] sm:$0xff]
    %v6275 = vld [vmem:[#allocation10 + $0x6b0] sm:$0xff]
    %v6276 = vld [vmem:[#allocation10 + $0x6b8] sm:$0xff]
    %v6277 = vld [vmem:[#allocation10 + $0x6c0] sm:$0xff]
    %v6278 = vld [vmem:[#allocation10 + $0x6c8] sm:$0xff]
    %v6279 = vld [vmem:[#allocation10 + $0x6d0] sm:$0xff]
    %v6280 = vld [vmem:[#allocation10 + $0x6d8] sm:$0xff]
    %v6281 = vld [vmem:[#allocation10 + $0x6e0] sm:$0xff]
    %v6282 = vld [vmem:[#allocation10 + $0x6e8] sm:$0xff]
    %v6283 = vld [vmem:[#allocation10 + $0x6f0] sm:$0xff]
    %v6284 = vld [vmem:[#allocation10 + $0x6f8] sm:$0xff]
    %v6285 = vld [vmem:[#allocation10 + $0x700] sm:$0xff]
    %v6286 = vld [vmem:[#allocation10 + $0x708] sm:$0xff]
    %v6287 = vld [vmem:[#allocation10 + $0x710] sm:$0xff]
    %v6288 = vld [vmem:[#allocation10 + $0x718] sm:$0xff]
    %v6289 = vld [vmem:[#allocation10 + $0x720] sm:$0xff]
    %v6290 = vld [vmem:[#allocation10 + $0x728] sm:$0xff]
    %v6291 = vld [vmem:[#allocation10 + $0x730] sm:$0xff]
    %v6292 = vld [vmem:[#allocation10 + $0x738] sm:$0xff]
    %v6293 = vld [vmem:[#allocation10 + $0x740] sm:$0xff]
    %v6294 = vld [vmem:[#allocation10 + $0x748] sm:$0xff]
    %v6295 = vld [vmem:[#allocation10 + $0x750] sm:$0xff]
    %v6296 = vld [vmem:[#allocation10 + $0x758] sm:$0xff]
    %v6297 = vld [vmem:[#allocation10 + $0x760] sm:$0xff]
    %v6298 = vld [vmem:[#allocation10 + $0x768] sm:$0xff]
    %v6299 = vld [vmem:[#allocation10 + $0x770] sm:$0xff]
    %v6300 = vld [vmem:[#allocation10 + $0x778] sm:$0xff]
    %v6301 = vld [vmem:[#allocation10 + $0x780] sm:$0xff]
    %v6302 = vld [vmem:[#allocation10 + $0x788] sm:$0xff]
    %v6303 = vld [vmem:[#allocation10 + $0x790] sm:$0xff]
    %v6304 = vld [vmem:[#allocation10 + $0x798] sm:$0xff]
    %v6305 = vld [vmem:[#allocation10 + $0x7a0] sm:$0xff]
    %v6306 = vld [vmem:[#allocation10 + $0x7a8] sm:$0xff]
    %v6307 = vld [vmem:[#allocation10 + $0x7b0] sm:$0xff]
    %v6308 = vld [vmem:[#allocation10 + $0x7b8] sm:$0xff]
    %v6309 = vld [vmem:[#allocation10 + $0x7c0] sm:$0xff]
    %v6310 = vld [vmem:[#allocation10 + $0x7c8] sm:$0xff]
    %v6311 = vld [vmem:[#allocation10 + $0x7d0] sm:$0xff]
    %v6312 = vld [vmem:[#allocation10 + $0x7d8] sm:$0xff]
    %v6313 = vld [vmem:[#allocation10 + $0x7e0] sm:$0xff]
    %v6314 = vld [vmem:[#allocation10 + $0x7e8] sm:$0xff]
    %v6315 = vld [vmem:[#allocation10 + $0x7f0] sm:$0xff]
    %v6316 = vld [vmem:[#allocation10 + $0x7f8] sm:$0xff]
    %v6573 = vunpack.c.l.b16 %v6061
    %v6574 = vunpack.c.h.b16 %v6061
    %v6575 = vunpack.c.l.b16 %v6062
    %v6576 = vunpack.c.h.b16 %v6062
    %v6577 = vunpack.c.l.b16 %v6063
    %v6578 = vunpack.c.h.b16 %v6063
    %v6579 = vunpack.c.l.b16 %v6064
    %v6580 = vunpack.c.h.b16 %v6064
    %v6581 = vunpack.c.l.b16 %v6065
    %v6582 = vunpack.c.h.b16 %v6065
    %v6583 = vunpack.c.l.b16 %v6066
    %v6584 = vunpack.c.h.b16 %v6066
    %v6585 = vunpack.c.l.b16 %v6067
    %v6586 = vunpack.c.h.b16 %v6067
    %v6587 = vunpack.c.l.b16 %v6068
    %v6588 = vunpack.c.h.b16 %v6068
    %v6589 = vunpack.c.l.b16 %v6069
    %v6590 = vunpack.c.h.b16 %v6069
    %v6591 = vunpack.c.l.b16 %v6070
    %v6592 = vunpack.c.h.b16 %v6070
    %v6593 = vunpack.c.l.b16 %v6071
    %v6594 = vunpack.c.h.b16 %v6071
    %v6595 = vunpack.c.l.b16 %v6072
    %v6596 = vunpack.c.h.b16 %v6072
    %v6597 = vunpack.c.l.b16 %v6073
    %v6598 = vunpack.c.h.b16 %v6073
    %v6599 = vunpack.c.l.b16 %v6074
    %v6600 = vunpack.c.h.b16 %v6074
    %v6601 = vunpack.c.l.b16 %v6075
    %v6602 = vunpack.c.h.b16 %v6075
    %v6603 = vunpack.c.l.b16 %v6076
    %v6604 = vunpack.c.h.b16 %v6076
    %v6605 = vunpack.c.l.b16 %v6077
    %v6606 = vunpack.c.h.b16 %v6077
    %v6607 = vunpack.c.l.b16 %v6078
    %v6608 = vunpack.c.h.b16 %v6078
    %v6609 = vunpack.c.l.b16 %v6079
    %v6610 = vunpack.c.h.b16 %v6079
    %v6611 = vunpack.c.l.b16 %v6080
    %v6612 = vunpack.c.h.b16 %v6080
    %v6613 = vunpack.c.l.b16 %v6081
    %v6614 = vunpack.c.h.b16 %v6081
    %v6615 = vunpack.c.l.b16 %v6082
    %v6616 = vunpack.c.h.b16 %v6082
    %v6617 = vunpack.c.l.b16 %v6083
    %v6618 = vunpack.c.h.b16 %v6083
    %v6619 = vunpack.c.l.b16 %v6084
    %v6620 = vunpack.c.h.b16 %v6084
    %v6621 = vunpack.c.l.b16 %v6085
    %v6622 = vunpack.c.h.b16 %v6085
    %v6623 = vunpack.c.l.b16 %v6086
    %v6624 = vunpack.c.h.b16 %v6086
    %v6625 = vunpack.c.l.b16 %v6087
    %v6626 = vunpack.c.h.b16 %v6087
    %v6627 = vunpack.c.l.b16 %v6088
    %v6628 = vunpack.c.h.b16 %v6088
    %v6629 = vunpack.c.l.b16 %v6089
    %v6630 = vunpack.c.h.b16 %v6089
    %v6631 = vunpack.c.l.b16 %v6090
    %v6632 = vunpack.c.h.b16 %v6090
    %v6633 = vunpack.c.l.b16 %v6091
    %v6634 = vunpack.c.h.b16 %v6091
    %v6635 = vunpack.c.l.b16 %v6092
    %v6636 = vunpack.c.h.b16 %v6092
    %v6637 = vunpack.c.l.b16 %v6093
    %v6638 = vunpack.c.h.b16 %v6093
    %v6639 = vunpack.c.l.b16 %v6094
    %v6640 = vunpack.c.h.b16 %v6094
    %v6641 = vunpack.c.l.b16 %v6095
    %v6642 = vunpack.c.h.b16 %v6095
    %v6643 = vunpack.c.l.b16 %v6096
    %v6644 = vunpack.c.h.b16 %v6096
    %v6645 = vunpack.c.l.b16 %v6097
    %v6646 = vunpack.c.h.b16 %v6097
    %v6647 = vunpack.c.l.b16 %v6098
    %v6648 = vunpack.c.h.b16 %v6098
    %v6649 = vunpack.c.l.b16 %v6099
    %v6650 = vunpack.c.h.b16 %v6099
    %v6651 = vunpack.c.l.b16 %v6100
    %v6652 = vunpack.c.h.b16 %v6100
    %v6653 = vunpack.c.l.b16 %v6101
    %v6654 = vunpack.c.h.b16 %v6101
    %v6655 = vunpack.c.l.b16 %v6102
    %v6656 = vunpack.c.h.b16 %v6102
    %v6657 = vunpack.c.l.b16 %v6103
    %v6658 = vunpack.c.h.b16 %v6103
    %v6659 = vunpack.c.l.b16 %v6104
    %v6660 = vunpack.c.h.b16 %v6104
    %v6661 = vunpack.c.l.b16 %v6105
    %v6662 = vunpack.c.h.b16 %v6105
    %v6663 = vunpack.c.l.b16 %v6106
    %v6664 = vunpack.c.h.b16 %v6106
    %v6665 = vunpack.c.l.b16 %v6107
    %v6666 = vunpack.c.h.b16 %v6107
    %v6667 = vunpack.c.l.b16 %v6108
    %v6668 = vunpack.c.h.b16 %v6108
    %v6669 = vunpack.c.l.b16 %v6109
    %v6670 = vunpack.c.h.b16 %v6109
    %v6671 = vunpack.c.l.b16 %v6110
    %v6672 = vunpack.c.h.b16 %v6110
    %v6673 = vunpack.c.l.b16 %v6111
    %v6674 = vunpack.c.h.b16 %v6111
    %v6675 = vunpack.c.l.b16 %v6112
    %v6676 = vunpack.c.h.b16 %v6112
    %v6677 = vunpack.c.l.b16 %v6113
    %v6678 = vunpack.c.h.b16 %v6113
    %v6679 = vunpack.c.l.b16 %v6114
    %v6680 = vunpack.c.h.b16 %v6114
    %v6681 = vunpack.c.l.b16 %v6115
    %v6682 = vunpack.c.h.b16 %v6115
    %v6683 = vunpack.c.l.b16 %v6116
    %v6684 = vunpack.c.h.b16 %v6116
    %v6685 = vunpack.c.l.b16 %v6117
    %v6686 = vunpack.c.h.b16 %v6117
    %v6687 = vunpack.c.l.b16 %v6118
    %v6688 = vunpack.c.h.b16 %v6118
    %v6689 = vunpack.c.l.b16 %v6119
    %v6690 = vunpack.c.h.b16 %v6119
    %v6691 = vunpack.c.l.b16 %v6120
    %v6692 = vunpack.c.h.b16 %v6120
    %v6693 = vunpack.c.l.b16 %v6121
    %v6694 = vunpack.c.h.b16 %v6121
    %v6695 = vunpack.c.l.b16 %v6122
    %v6696 = vunpack.c.h.b16 %v6122
    %v6697 = vunpack.c.l.b16 %v6123
    %v6698 = vunpack.c.h.b16 %v6123
    %v6699 = vunpack.c.l.b16 %v6124
    %v6700 = vunpack.c.h.b16 %v6124
    %v6701 = vunpack.c.l.b16 %v6125
    %v6702 = vunpack.c.h.b16 %v6125
    %v6703 = vunpack.c.l.b16 %v6126
    %v6704 = vunpack.c.h.b16 %v6126
    %v6705 = vunpack.c.l.b16 %v6127
    %v6706 = vunpack.c.h.b16 %v6127
    %v6707 = vunpack.c.l.b16 %v6128
    %v6708 = vunpack.c.h.b16 %v6128
    %v6709 = vunpack.c.l.b16 %v6129
    %v6710 = vunpack.c.h.b16 %v6129
    %v6711 = vunpack.c.l.b16 %v6130
    %v6712 = vunpack.c.h.b16 %v6130
    %v6713 = vunpack.c.l.b16 %v6131
    %v6714 = vunpack.c.h.b16 %v6131
    %v6715 = vunpack.c.l.b16 %v6132
    %v6716 = vunpack.c.h.b16 %v6132
    %v6717 = vunpack.c.l.b16 %v6133
    %v6718 = vunpack.c.h.b16 %v6133
    %v6719 = vunpack.c.l.b16 %v6134
    %v6720 = vunpack.c.h.b16 %v6134
    %v6721 = vunpack.c.l.b16 %v6135
    %v6722 = vunpack.c.h.b16 %v6135
    %v6723 = vunpack.c.l.b16 %v6136
    %v6724 = vunpack.c.h.b16 %v6136
    %v6725 = vunpack.c.l.b16 %v6137
    %v6726 = vunpack.c.h.b16 %v6137
    %v6727 = vunpack.c.l.b16 %v6138
    %v6728 = vunpack.c.h.b16 %v6138
    %v6729 = vunpack.c.l.b16 %v6139
    %v6730 = vunpack.c.h.b16 %v6139
    %v6731 = vunpack.c.l.b16 %v6140
    %v6732 = vunpack.c.h.b16 %v6140
    %v6733 = vunpack.c.l.b16 %v6141
    %v6734 = vunpack.c.h.b16 %v6141
    %v6735 = vunpack.c.l.b16 %v6142
    %v6736 = vunpack.c.h.b16 %v6142
    %v6737 = vunpack.c.l.b16 %v6143
    %v6738 = vunpack.c.h.b16 %v6143
    %v6739 = vunpack.c.l.b16 %v6144
    %v6740 = vunpack.c.h.b16 %v6144
    %v6741 = vunpack.c.l.b16 %v6145
    %v6742 = vunpack.c.h.b16 %v6145
    %v6743 = vunpack.c.l.b16 %v6146
    %v6744 = vunpack.c.h.b16 %v6146
    %v6745 = vunpack.c.l.b16 %v6147
    %v6746 = vunpack.c.h.b16 %v6147
    %v6747 = vunpack.c.l.b16 %v6148
    %v6748 = vunpack.c.h.b16 %v6148
    %v6749 = vunpack.c.l.b16 %v6149
    %v6750 = vunpack.c.h.b16 %v6149
    %v6751 = vunpack.c.l.b16 %v6150
    %v6752 = vunpack.c.h.b16 %v6150
    %v6753 = vunpack.c.l.b16 %v6151
    %v6754 = vunpack.c.h.b16 %v6151
    %v6755 = vunpack.c.l.b16 %v6152
    %v6756 = vunpack.c.h.b16 %v6152
    %v6757 = vunpack.c.l.b16 %v6153
    %v6758 = vunpack.c.h.b16 %v6153
    %v6759 = vunpack.c.l.b16 %v6154
    %v6760 = vunpack.c.h.b16 %v6154
    %v6761 = vunpack.c.l.b16 %v6155
    %v6762 = vunpack.c.h.b16 %v6155
    %v6763 = vunpack.c.l.b16 %v6156
    %v6764 = vunpack.c.h.b16 %v6156
    %v6765 = vunpack.c.l.b16 %v6157
    %v6766 = vunpack.c.h.b16 %v6157
    %v6767 = vunpack.c.l.b16 %v6158
    %v6768 = vunpack.c.h.b16 %v6158
    %v6769 = vunpack.c.l.b16 %v6159
    %v6770 = vunpack.c.h.b16 %v6159
    %v6771 = vunpack.c.l.b16 %v6160
    %v6772 = vunpack.c.h.b16 %v6160
    %v6773 = vunpack.c.l.b16 %v6161
    %v6774 = vunpack.c.h.b16 %v6161
    %v6775 = vunpack.c.l.b16 %v6162
    %v6776 = vunpack.c.h.b16 %v6162
    %v6777 = vunpack.c.l.b16 %v6163
    %v6778 = vunpack.c.h.b16 %v6163
    %v6779 = vunpack.c.l.b16 %v6164
    %v6780 = vunpack.c.h.b16 %v6164
    %v6781 = vunpack.c.l.b16 %v6165
    %v6782 = vunpack.c.h.b16 %v6165
    %v6783 = vunpack.c.l.b16 %v6166
    %v6784 = vunpack.c.h.b16 %v6166
    %v6785 = vunpack.c.l.b16 %v6167
    %v6786 = vunpack.c.h.b16 %v6167
    %v6787 = vunpack.c.l.b16 %v6168
    %v6788 = vunpack.c.h.b16 %v6168
    %v6789 = vunpack.c.l.b16 %v6169
    %v6790 = vunpack.c.h.b16 %v6169
    %v6791 = vunpack.c.l.b16 %v6170
    %v6792 = vunpack.c.h.b16 %v6170
    %v6793 = vunpack.c.l.b16 %v6171
    %v6794 = vunpack.c.h.b16 %v6171
    %v6795 = vunpack.c.l.b16 %v6172
    %v6796 = vunpack.c.h.b16 %v6172
    %v6797 = vunpack.c.l.b16 %v6173
    %v6798 = vunpack.c.h.b16 %v6173
    %v6799 = vunpack.c.l.b16 %v6174
    %v6800 = vunpack.c.h.b16 %v6174
    %v6801 = vunpack.c.l.b16 %v6175
    %v6802 = vunpack.c.h.b16 %v6175
    %v6803 = vunpack.c.l.b16 %v6176
    %v6804 = vunpack.c.h.b16 %v6176
    %v6805 = vunpack.c.l.b16 %v6177
    %v6806 = vunpack.c.h.b16 %v6177
    %v6807 = vunpack.c.l.b16 %v6178
    %v6808 = vunpack.c.h.b16 %v6178
    %v6809 = vunpack.c.l.b16 %v6179
    %v6810 = vunpack.c.h.b16 %v6179
    %v6811 = vunpack.c.l.b16 %v6180
    %v6812 = vunpack.c.h.b16 %v6180
    %v6813 = vunpack.c.l.b16 %v6181
    %v6814 = vunpack.c.h.b16 %v6181
    %v6815 = vunpack.c.l.b16 %v6182
    %v6816 = vunpack.c.h.b16 %v6182
    %v6817 = vunpack.c.l.b16 %v6183
    %v6818 = vunpack.c.h.b16 %v6183
    %v6819 = vunpack.c.l.b16 %v6184
    %v6820 = vunpack.c.h.b16 %v6184
    %v6821 = vunpack.c.l.b16 %v6185
    %v6822 = vunpack.c.h.b16 %v6185
    %v6823 = vunpack.c.l.b16 %v6186
    %v6824 = vunpack.c.h.b16 %v6186
    %v6825 = vunpack.c.l.b16 %v6187
    %v6826 = vunpack.c.h.b16 %v6187
    %v6827 = vunpack.c.l.b16 %v6188
    %v6828 = vunpack.c.h.b16 %v6188
    %v6829 = vunpack.c.l.b16 %v6189
    %v6830 = vunpack.c.h.b16 %v6189
    %v6831 = vunpack.c.l.b16 %v6190
    %v6832 = vunpack.c.h.b16 %v6190
    %v6833 = vunpack.c.l.b16 %v6191
    %v6834 = vunpack.c.h.b16 %v6191
    %v6835 = vunpack.c.l.b16 %v6192
    %v6836 = vunpack.c.h.b16 %v6192
    %v6837 = vunpack.c.l.b16 %v6193
    %v6838 = vunpack.c.h.b16 %v6193
    %v6839 = vunpack.c.l.b16 %v6194
    %v6840 = vunpack.c.h.b16 %v6194
    %v6841 = vunpack.c.l.b16 %v6195
    %v6842 = vunpack.c.h.b16 %v6195
    %v6843 = vunpack.c.l.b16 %v6196
    %v6844 = vunpack.c.h.b16 %v6196
    %v6845 = vunpack.c.l.b16 %v6197
    %v6846 = vunpack.c.h.b16 %v6197
    %v6847 = vunpack.c.l.b16 %v6198
    %v6848 = vunpack.c.h.b16 %v6198
    %v6849 = vunpack.c.l.b16 %v6199
    %v6850 = vunpack.c.h.b16 %v6199
    %v6851 = vunpack.c.l.b16 %v6200
    %v6852 = vunpack.c.h.b16 %v6200
    %v6853 = vunpack.c.l.b16 %v6201
    %v6854 = vunpack.c.h.b16 %v6201
    %v6855 = vunpack.c.l.b16 %v6202
    %v6856 = vunpack.c.h.b16 %v6202
    %v6857 = vunpack.c.l.b16 %v6203
    %v6858 = vunpack.c.h.b16 %v6203
    %v6859 = vunpack.c.l.b16 %v6204
    %v6860 = vunpack.c.h.b16 %v6204
    %v6861 = vunpack.c.l.b16 %v6205
    %v6862 = vunpack.c.h.b16 %v6205
    %v6863 = vunpack.c.l.b16 %v6206
    %v6864 = vunpack.c.h.b16 %v6206
    %v6865 = vunpack.c.l.b16 %v6207
    %v6866 = vunpack.c.h.b16 %v6207
    %v6867 = vunpack.c.l.b16 %v6208
    %v6868 = vunpack.c.h.b16 %v6208
    %v6869 = vunpack.c.l.b16 %v6209
    %v6870 = vunpack.c.h.b16 %v6209
    %v6871 = vunpack.c.l.b16 %v6210
    %v6872 = vunpack.c.h.b16 %v6210
    %v6873 = vunpack.c.l.b16 %v6211
    %v6874 = vunpack.c.h.b16 %v6211
    %v6875 = vunpack.c.l.b16 %v6212
    %v6876 = vunpack.c.h.b16 %v6212
    %v6877 = vunpack.c.l.b16 %v6213
    %v6878 = vunpack.c.h.b16 %v6213
    %v6879 = vunpack.c.l.b16 %v6214
    %v6880 = vunpack.c.h.b16 %v6214
    %v6881 = vunpack.c.l.b16 %v6215
    %v6882 = vunpack.c.h.b16 %v6215
    %v6883 = vunpack.c.l.b16 %v6216
    %v6884 = vunpack.c.h.b16 %v6216
    %v6885 = vunpack.c.l.b16 %v6217
    %v6886 = vunpack.c.h.b16 %v6217
    %v6887 = vunpack.c.l.b16 %v6218
    %v6888 = vunpack.c.h.b16 %v6218
    %v6889 = vunpack.c.l.b16 %v6219
    %v6890 = vunpack.c.h.b16 %v6219
    %v6891 = vunpack.c.l.b16 %v6220
    %v6892 = vunpack.c.h.b16 %v6220
    %v6893 = vunpack.c.l.b16 %v6221
    %v6894 = vunpack.c.h.b16 %v6221
    %v6895 = vunpack.c.l.b16 %v6222
    %v6896 = vunpack.c.h.b16 %v6222
    %v6897 = vunpack.c.l.b16 %v6223
    %v6898 = vunpack.c.h.b16 %v6223
    %v6899 = vunpack.c.l.b16 %v6224
    %v6900 = vunpack.c.h.b16 %v6224
    %v6901 = vunpack.c.l.b16 %v6225
    %v6902 = vunpack.c.h.b16 %v6225
    %v6903 = vunpack.c.l.b16 %v6226
    %v6904 = vunpack.c.h.b16 %v6226
    %v6905 = vunpack.c.l.b16 %v6227
    %v6906 = vunpack.c.h.b16 %v6227
    %v6907 = vunpack.c.l.b16 %v6228
    %v6908 = vunpack.c.h.b16 %v6228
    %v6909 = vunpack.c.l.b16 %v6229
    %v6910 = vunpack.c.h.b16 %v6229
    %v6911 = vunpack.c.l.b16 %v6230
    %v6912 = vunpack.c.h.b16 %v6230
    %v6913 = vunpack.c.l.b16 %v6231
    %v6914 = vunpack.c.h.b16 %v6231
    %v6915 = vunpack.c.l.b16 %v6232
    %v6916 = vunpack.c.h.b16 %v6232
    %v6917 = vunpack.c.l.b16 %v6233
    %v6918 = vunpack.c.h.b16 %v6233
    %v6919 = vunpack.c.l.b16 %v6234
    %v6920 = vunpack.c.h.b16 %v6234
    %v6921 = vunpack.c.l.b16 %v6235
    %v6922 = vunpack.c.h.b16 %v6235
    %v6923 = vunpack.c.l.b16 %v6236
    %v6924 = vunpack.c.h.b16 %v6236
    %v6925 = vunpack.c.l.b16 %v6237
    %v6926 = vunpack.c.h.b16 %v6237
    %v6927 = vunpack.c.l.b16 %v6238
    %v6928 = vunpack.c.h.b16 %v6238
    %v6929 = vunpack.c.l.b16 %v6239
    %v6930 = vunpack.c.h.b16 %v6239
    %v6931 = vunpack.c.l.b16 %v6240
    %v6932 = vunpack.c.h.b16 %v6240
    %v6933 = vunpack.c.l.b16 %v6241
    %v6934 = vunpack.c.h.b16 %v6241
    %v6935 = vunpack.c.l.b16 %v6242
    %v6936 = vunpack.c.h.b16 %v6242
    %v6937 = vunpack.c.l.b16 %v6243
    %v6938 = vunpack.c.h.b16 %v6243
    %v6939 = vunpack.c.l.b16 %v6244
    %v6940 = vunpack.c.h.b16 %v6244
    %v6941 = vunpack.c.l.b16 %v6245
    %v6942 = vunpack.c.h.b16 %v6245
    %v6943 = vunpack.c.l.b16 %v6246
    %v6944 = vunpack.c.h.b16 %v6246
    %v6945 = vunpack.c.l.b16 %v6247
    %v6946 = vunpack.c.h.b16 %v6247
    %v6947 = vunpack.c.l.b16 %v6248
    %v6948 = vunpack.c.h.b16 %v6248
    %v6949 = vunpack.c.l.b16 %v6249
    %v6950 = vunpack.c.h.b16 %v6249
    %v6951 = vunpack.c.l.b16 %v6250
    %v6952 = vunpack.c.h.b16 %v6250
    %v6953 = vunpack.c.l.b16 %v6251
    %v6954 = vunpack.c.h.b16 %v6251
    %v6955 = vunpack.c.l.b16 %v6252
    %v6956 = vunpack.c.h.b16 %v6252
    %v6957 = vunpack.c.l.b16 %v6253
    %v6958 = vunpack.c.h.b16 %v6253
    %v6959 = vunpack.c.l.b16 %v6254
    %v6960 = vunpack.c.h.b16 %v6254
    %v6961 = vunpack.c.l.b16 %v6255
    %v6962 = vunpack.c.h.b16 %v6255
    %v6963 = vunpack.c.l.b16 %v6256
    %v6964 = vunpack.c.h.b16 %v6256
    %v6965 = vunpack.c.l.b16 %v6257
    %v6966 = vunpack.c.h.b16 %v6257
    %v6967 = vunpack.c.l.b16 %v6258
    %v6968 = vunpack.c.h.b16 %v6258
    %v6969 = vunpack.c.l.b16 %v6259
    %v6970 = vunpack.c.h.b16 %v6259
    %v6971 = vunpack.c.l.b16 %v6260
    %v6972 = vunpack.c.h.b16 %v6260
    %v6973 = vunpack.c.l.b16 %v6261
    %v6974 = vunpack.c.h.b16 %v6261
    %v6975 = vunpack.c.l.b16 %v6262
    %v6976 = vunpack.c.h.b16 %v6262
    %v6977 = vunpack.c.l.b16 %v6263
    %v6978 = vunpack.c.h.b16 %v6263
    %v6979 = vunpack.c.l.b16 %v6264
    %v6980 = vunpack.c.h.b16 %v6264
    %v6981 = vunpack.c.l.b16 %v6265
    %v6982 = vunpack.c.h.b16 %v6265
    %v6983 = vunpack.c.l.b16 %v6266
    %v6984 = vunpack.c.h.b16 %v6266
    %v6985 = vunpack.c.l.b16 %v6267
    %v6986 = vunpack.c.h.b16 %v6267
    %v6987 = vunpack.c.l.b16 %v6268
    %v6988 = vunpack.c.h.b16 %v6268
    %v6989 = vunpack.c.l.b16 %v6269
    %v6990 = vunpack.c.h.b16 %v6269
    %v6991 = vunpack.c.l.b16 %v6270
    %v6992 = vunpack.c.h.b16 %v6270
    %v6993 = vunpack.c.l.b16 %v6271
    %v6994 = vunpack.c.h.b16 %v6271
    %v6995 = vunpack.c.l.b16 %v6272
    %v6996 = vunpack.c.h.b16 %v6272
    %v6997 = vunpack.c.l.b16 %v6273
    %v6998 = vunpack.c.h.b16 %v6273
    %v6999 = vunpack.c.l.b16 %v6274
    %v7000 = vunpack.c.h.b16 %v6274
    %v7001 = vunpack.c.l.b16 %v6275
    %v7002 = vunpack.c.h.b16 %v6275
    %v7003 = vunpack.c.l.b16 %v6276
    %v7004 = vunpack.c.h.b16 %v6276
    %v7005 = vunpack.c.l.b16 %v6277
    %v7006 = vunpack.c.h.b16 %v6277
    %v7007 = vunpack.c.l.b16 %v6278
    %v7008 = vunpack.c.h.b16 %v6278
    %v7009 = vunpack.c.l.b16 %v6279
    %v7010 = vunpack.c.h.b16 %v6279
    %v7011 = vunpack.c.l.b16 %v6280
    %v7012 = vunpack.c.h.b16 %v6280
    %v7013 = vunpack.c.l.b16 %v6281
    %v7014 = vunpack.c.h.b16 %v6281
    %v7015 = vunpack.c.l.b16 %v6282
    %v7016 = vunpack.c.h.b16 %v6282
    %v7017 = vunpack.c.l.b16 %v6283
    %v7018 = vunpack.c.h.b16 %v6283
    %v7019 = vunpack.c.l.b16 %v6284
    %v7020 = vunpack.c.h.b16 %v6284
    %v7021 = vunpack.c.l.b16 %v6285
    %v7022 = vunpack.c.h.b16 %v6285
    %v7023 = vunpack.c.l.b16 %v6286
    %v7024 = vunpack.c.h.b16 %v6286
    %v7025 = vunpack.c.l.b16 %v6287
    %v7026 = vunpack.c.h.b16 %v6287
    %v7027 = vunpack.c.l.b16 %v6288
    %v7028 = vunpack.c.h.b16 %v6288
    %v7029 = vunpack.c.l.b16 %v6289
    %v7030 = vunpack.c.h.b16 %v6289
    %v7031 = vunpack.c.l.b16 %v6290
    %v7032 = vunpack.c.h.b16 %v6290
    %v7033 = vunpack.c.l.b16 %v6291
    %v7034 = vunpack.c.h.b16 %v6291
    %v7035 = vunpack.c.l.b16 %v6292
    %v7036 = vunpack.c.h.b16 %v6292
    %v7037 = vunpack.c.l.b16 %v6293
    %v7038 = vunpack.c.h.b16 %v6293
    %v7039 = vunpack.c.l.b16 %v6294
    %v7040 = vunpack.c.h.b16 %v6294
    %v7041 = vunpack.c.l.b16 %v6295
    %v7042 = vunpack.c.h.b16 %v6295
    %v7043 = vunpack.c.l.b16 %v6296
    %v7044 = vunpack.c.h.b16 %v6296
    %v7045 = vunpack.c.l.b16 %v6297
    %v7046 = vunpack.c.h.b16 %v6297
    %v7047 = vunpack.c.l.b16 %v6298
    %v7048 = vunpack.c.h.b16 %v6298
    %v7049 = vunpack.c.l.b16 %v6299
    %v7050 = vunpack.c.h.b16 %v6299
    %v7051 = vunpack.c.l.b16 %v6300
    %v7052 = vunpack.c.h.b16 %v6300
    %v7053 = vunpack.c.l.b16 %v6301
    %v7054 = vunpack.c.h.b16 %v6301
    %v7055 = vunpack.c.l.b16 %v6302
    %v7056 = vunpack.c.h.b16 %v6302
    %v7057 = vunpack.c.l.b16 %v6303
    %v7058 = vunpack.c.h.b16 %v6303
    %v7059 = vunpack.c.l.b16 %v6304
    %v7060 = vunpack.c.h.b16 %v6304
    %v7061 = vunpack.c.l.b16 %v6305
    %v7062 = vunpack.c.h.b16 %v6305
    %v7063 = vunpack.c.l.b16 %v6306
    %v7064 = vunpack.c.h.b16 %v6306
    %v7065 = vunpack.c.l.b16 %v6307
    %v7066 = vunpack.c.h.b16 %v6307
    %v7067 = vunpack.c.l.b16 %v6308
    %v7068 = vunpack.c.h.b16 %v6308
    %v7069 = vunpack.c.l.b16 %v6309
    %v7070 = vunpack.c.h.b16 %v6309
    %v7071 = vunpack.c.l.b16 %v6310
    %v7072 = vunpack.c.h.b16 %v6310
    %v7073 = vunpack.c.l.b16 %v6311
    %v7074 = vunpack.c.h.b16 %v6311
    %v7075 = vunpack.c.l.b16 %v6312
    %v7076 = vunpack.c.h.b16 %v6312
    %v7077 = vunpack.c.l.b16 %v6313
    %v7078 = vunpack.c.h.b16 %v6313
    %v7079 = vunpack.c.l.b16 %v6314
    %v7080 = vunpack.c.h.b16 %v6314
    %v7081 = vunpack.c.l.b16 %v6315
    %v7082 = vunpack.c.h.b16 %v6315
    %v7083 = vunpack.c.l.b16 %v6316
    %v7084 = vunpack.c.h.b16 %v6316
    %v7085 = vpack.c.b16 %v6605, %v6573
    %v7086 = vpack.c.b16 %v6606, %v6574
    %v7087 = vpack.c.b16 %v6607, %v6575
    %v7088 = vpack.c.b16 %v6608, %v6576
    %v7089 = vpack.c.b16 %v6609, %v6577
    %v7090 = vpack.c.b16 %v6610, %v6578
    %v7091 = vpack.c.b16 %v6611, %v6579
    %v7092 = vpack.c.b16 %v6612, %v6580
    %v7093 = vpack.c.b16 %v6613, %v6581
    %v7094 = vpack.c.b16 %v6614, %v6582
    %v7095 = vpack.c.b16 %v6615, %v6583
    %v7096 = vpack.c.b16 %v6616, %v6584
    %v7097 = vpack.c.b16 %v6617, %v6585
    %v7098 = vpack.c.b16 %v6618, %v6586
    %v7099 = vpack.c.b16 %v6619, %v6587
    %v7100 = vpack.c.b16 %v6620, %v6588
    %v7101 = vpack.c.b16 %v6621, %v6589
    %v7102 = vpack.c.b16 %v6622, %v6590
    %v7103 = vpack.c.b16 %v6623, %v6591
    %v7104 = vpack.c.b16 %v6624, %v6592
    %v7105 = vpack.c.b16 %v6625, %v6593
    %v7106 = vpack.c.b16 %v6626, %v6594
    %v7107 = vpack.c.b16 %v6627, %v6595
    %v7108 = vpack.c.b16 %v6628, %v6596
    %v7109 = vpack.c.b16 %v6629, %v6597
    %v7110 = vpack.c.b16 %v6630, %v6598
    %v7111 = vpack.c.b16 %v6631, %v6599
    %v7112 = vpack.c.b16 %v6632, %v6600
    %v7113 = vpack.c.b16 %v6633, %v6601
    %v7114 = vpack.c.b16 %v6634, %v6602
    %v7115 = vpack.c.b16 %v6635, %v6603
    %v7116 = vpack.c.b16 %v6636, %v6604
    %v7117 = vpack.c.b16 %v6669, %v6637
    %v7118 = vpack.c.b16 %v6670, %v6638
    %v7119 = vpack.c.b16 %v6671, %v6639
    %v7120 = vpack.c.b16 %v6672, %v6640
    %v7121 = vpack.c.b16 %v6673, %v6641
    %v7122 = vpack.c.b16 %v6674, %v6642
    %v7123 = vpack.c.b16 %v6675, %v6643
    %v7124 = vpack.c.b16 %v6676, %v6644
    %v7125 = vpack.c.b16 %v6677, %v6645
    %v7126 = vpack.c.b16 %v6678, %v6646
    %v7127 = vpack.c.b16 %v6679, %v6647
    %v7128 = vpack.c.b16 %v6680, %v6648
    %v7129 = vpack.c.b16 %v6681, %v6649
    %v7130 = vpack.c.b16 %v6682, %v6650
    %v7131 = vpack.c.b16 %v6683, %v6651
    %v7132 = vpack.c.b16 %v6684, %v6652
    %v7133 = vpack.c.b16 %v6685, %v6653
    %v7134 = vpack.c.b16 %v6686, %v6654
    %v7135 = vpack.c.b16 %v6687, %v6655
    %v7136 = vpack.c.b16 %v6688, %v6656
    %v7137 = vpack.c.b16 %v6689, %v6657
    %v7138 = vpack.c.b16 %v6690, %v6658
    %v7139 = vpack.c.b16 %v6691, %v6659
    %v7140 = vpack.c.b16 %v6692, %v6660
    %v7141 = vpack.c.b16 %v6693, %v6661
    %v7142 = vpack.c.b16 %v6694, %v6662
    %v7143 = vpack.c.b16 %v6695, %v6663
    %v7144 = vpack.c.b16 %v6696, %v6664
    %v7145 = vpack.c.b16 %v6697, %v6665
    %v7146 = vpack.c.b16 %v6698, %v6666
    %v7147 = vpack.c.b16 %v6699, %v6667
    %v7148 = vpack.c.b16 %v6700, %v6668
    %v7149 = vpack.c.b16 %v6733, %v6701
    %v7150 = vpack.c.b16 %v6734, %v6702
    %v7151 = vpack.c.b16 %v6735, %v6703
    %v7152 = vpack.c.b16 %v6736, %v6704
    %v7153 = vpack.c.b16 %v6737, %v6705
    %v7154 = vpack.c.b16 %v6738, %v6706
    %v7155 = vpack.c.b16 %v6739, %v6707
    %v7156 = vpack.c.b16 %v6740, %v6708
    %v7157 = vpack.c.b16 %v6741, %v6709
    %v7158 = vpack.c.b16 %v6742, %v6710
    %v7159 = vpack.c.b16 %v6743, %v6711
    %v7160 = vpack.c.b16 %v6744, %v6712
    %v7161 = vpack.c.b16 %v6745, %v6713
    %v7162 = vpack.c.b16 %v6746, %v6714
    %v7163 = vpack.c.b16 %v6747, %v6715
    %v7164 = vpack.c.b16 %v6748, %v6716
    %v7165 = vpack.c.b16 %v6749, %v6717
    %v7166 = vpack.c.b16 %v6750, %v6718
    %v7167 = vpack.c.b16 %v6751, %v6719
    %v7168 = vpack.c.b16 %v6752, %v6720
    %v7169 = vpack.c.b16 %v6753, %v6721
    %v7170 = vpack.c.b16 %v6754, %v6722
    %v7171 = vpack.c.b16 %v6755, %v6723
    %v7172 = vpack.c.b16 %v6756, %v6724
    %v7173 = vpack.c.b16 %v6757, %v6725
    %v7174 = vpack.c.b16 %v6758, %v6726
    %v7175 = vpack.c.b16 %v6759, %v6727
    %v7176 = vpack.c.b16 %v6760, %v6728
    %v7177 = vpack.c.b16 %v6761, %v6729
    %v7178 = vpack.c.b16 %v6762, %v6730
    %v7179 = vpack.c.b16 %v6763, %v6731
    %v7180 = vpack.c.b16 %v6764, %v6732
    %v7181 = vpack.c.b16 %v6797, %v6765
    %v7182 = vpack.c.b16 %v6798, %v6766
    %v7183 = vpack.c.b16 %v6799, %v6767
    %v7184 = vpack.c.b16 %v6800, %v6768
    %v7185 = vpack.c.b16 %v6801, %v6769
    %v7186 = vpack.c.b16 %v6802, %v6770
    %v7187 = vpack.c.b16 %v6803, %v6771
    %v7188 = vpack.c.b16 %v6804, %v6772
    %v7189 = vpack.c.b16 %v6805, %v6773
    %v7190 = vpack.c.b16 %v6806, %v6774
    %v7191 = vpack.c.b16 %v6807, %v6775
    %v7192 = vpack.c.b16 %v6808, %v6776
    %v7193 = vpack.c.b16 %v6809, %v6777
    %v7194 = vpack.c.b16 %v6810, %v6778
    %v7195 = vpack.c.b16 %v6811, %v6779
    %v7196 = vpack.c.b16 %v6812, %v6780
    %v7197 = vpack.c.b16 %v6813, %v6781
    %v7198 = vpack.c.b16 %v6814, %v6782
    %v7199 = vpack.c.b16 %v6815, %v6783
    %v7200 = vpack.c.b16 %v6816, %v6784
    %v7201 = vpack.c.b16 %v6817, %v6785
    %v7202 = vpack.c.b16 %v6818, %v6786
    %v7203 = vpack.c.b16 %v6819, %v6787
    %v7204 = vpack.c.b16 %v6820, %v6788
    %v7205 = vpack.c.b16 %v6821, %v6789
    %v7206 = vpack.c.b16 %v6822, %v6790
    %v7207 = vpack.c.b16 %v6823, %v6791
    %v7208 = vpack.c.b16 %v6824, %v6792
    %v7209 = vpack.c.b16 %v6825, %v6793
    %v7210 = vpack.c.b16 %v6826, %v6794
    %v7211 = vpack.c.b16 %v6827, %v6795
    %v7212 = vpack.c.b16 %v6828, %v6796
    %v7213 = vpack.c.b16 %v6861, %v6829
    %v7214 = vpack.c.b16 %v6862, %v6830
    %v7215 = vpack.c.b16 %v6863, %v6831
    %v7216 = vpack.c.b16 %v6864, %v6832
    %v7217 = vpack.c.b16 %v6865, %v6833
    %v7218 = vpack.c.b16 %v6866, %v6834
    %v7219 = vpack.c.b16 %v6867, %v6835
    %v7220 = vpack.c.b16 %v6868, %v6836
    %v7221 = vpack.c.b16 %v6869, %v6837
    %v7222 = vpack.c.b16 %v6870, %v6838
    %v7223 = vpack.c.b16 %v6871, %v6839
    %v7224 = vpack.c.b16 %v6872, %v6840
    %v7225 = vpack.c.b16 %v6873, %v6841
    %v7226 = vpack.c.b16 %v6874, %v6842
    %v7227 = vpack.c.b16 %v6875, %v6843
    %v7228 = vpack.c.b16 %v6876, %v6844
    %v7229 = vpack.c.b16 %v6877, %v6845
    %v7230 = vpack.c.b16 %v6878, %v6846
    %v7231 = vpack.c.b16 %v6879, %v6847
    %v7232 = vpack.c.b16 %v6880, %v6848
    %v7233 = vpack.c.b16 %v6881, %v6849
    %v7234 = vpack.c.b16 %v6882, %v6850
    %v7235 = vpack.c.b16 %v6883, %v6851
    %v7236 = vpack.c.b16 %v6884, %v6852
    %v7237 = vpack.c.b16 %v6885, %v6853
    %v7238 = vpack.c.b16 %v6886, %v6854
    %v7239 = vpack.c.b16 %v6887, %v6855
    %v7240 = vpack.c.b16 %v6888, %v6856
    %v7241 = vpack.c.b16 %v6889, %v6857
    %v7242 = vpack.c.b16 %v6890, %v6858
    %v7243 = vpack.c.b16 %v6891, %v6859
    %v7244 = vpack.c.b16 %v6892, %v6860
    %v7245 = vpack.c.b16 %v6925, %v6893
    %v7246 = vpack.c.b16 %v6926, %v6894
    %v7247 = vpack.c.b16 %v6927, %v6895
    %v7248 = vpack.c.b16 %v6928, %v6896
    %v7249 = vpack.c.b16 %v6929, %v6897
    %v7250 = vpack.c.b16 %v6930, %v6898
    %v7251 = vpack.c.b16 %v6931, %v6899
    %v7252 = vpack.c.b16 %v6932, %v6900
    %v7253 = vpack.c.b16 %v6933, %v6901
    %v7254 = vpack.c.b16 %v6934, %v6902
    %v7255 = vpack.c.b16 %v6935, %v6903
    %v7256 = vpack.c.b16 %v6936, %v6904
    %v7257 = vpack.c.b16 %v6937, %v6905
    %v7258 = vpack.c.b16 %v6938, %v6906
    %v7259 = vpack.c.b16 %v6939, %v6907
    %v7260 = vpack.c.b16 %v6940, %v6908
    %v7261 = vpack.c.b16 %v6941, %v6909
    %v7262 = vpack.c.b16 %v6942, %v6910
    %v7263 = vpack.c.b16 %v6943, %v6911
    %v7264 = vpack.c.b16 %v6944, %v6912
    %v7265 = vpack.c.b16 %v6945, %v6913
    %v7266 = vpack.c.b16 %v6946, %v6914
    %v7267 = vpack.c.b16 %v6947, %v6915
    %v7268 = vpack.c.b16 %v6948, %v6916
    %v7269 = vpack.c.b16 %v6949, %v6917
    %v7270 = vpack.c.b16 %v6950, %v6918
    %v7271 = vpack.c.b16 %v6951, %v6919
    %v7272 = vpack.c.b16 %v6952, %v6920
    %v7273 = vpack.c.b16 %v6953, %v6921
    %v7274 = vpack.c.b16 %v6954, %v6922
    %v7275 = vpack.c.b16 %v6955, %v6923
    %v7276 = vpack.c.b16 %v6956, %v6924
    %v7277 = vpack.c.b16 %v6989, %v6957
    %v7278 = vpack.c.b16 %v6990, %v6958
    %v7279 = vpack.c.b16 %v6991, %v6959
    %v7280 = vpack.c.b16 %v6992, %v6960
    %v7281 = vpack.c.b16 %v6993, %v6961
    %v7282 = vpack.c.b16 %v6994, %v6962
    %v7283 = vpack.c.b16 %v6995, %v6963
    %v7284 = vpack.c.b16 %v6996, %v6964
    %v7285 = vpack.c.b16 %v6997, %v6965
    %v7286 = vpack.c.b16 %v6998, %v6966
    %v7287 = vpack.c.b16 %v6999, %v6967
    %v7288 = vpack.c.b16 %v7000, %v6968
    %v7289 = vpack.c.b16 %v7001, %v6969
    %v7290 = vpack.c.b16 %v7002, %v6970
    %v7291 = vpack.c.b16 %v7003, %v6971
    %v7292 = vpack.c.b16 %v7004, %v6972
    %v7293 = vpack.c.b16 %v7005, %v6973
    %v7294 = vpack.c.b16 %v7006, %v6974
    %v7295 = vpack.c.b16 %v7007, %v6975
    %v7296 = vpack.c.b16 %v7008, %v6976
    %v7297 = vpack.c.b16 %v7009, %v6977
    %v7298 = vpack.c.b16 %v7010, %v6978
    %v7299 = vpack.c.b16 %v7011, %v6979
    %v7300 = vpack.c.b16 %v7012, %v6980
    %v7301 = vpack.c.b16 %v7013, %v6981
    %v7302 = vpack.c.b16 %v7014, %v6982
    %v7303 = vpack.c.b16 %v7015, %v6983
    %v7304 = vpack.c.b16 %v7016, %v6984
    %v7305 = vpack.c.b16 %v7017, %v6985
    %v7306 = vpack.c.b16 %v7018, %v6986
    %v7307 = vpack.c.b16 %v7019, %v6987
    %v7308 = vpack.c.b16 %v7020, %v6988
    %v7309 = vpack.c.b16 %v7053, %v7021
    %v7310 = vpack.c.b16 %v7054, %v7022
    %v7311 = vpack.c.b16 %v7055, %v7023
    %v7312 = vpack.c.b16 %v7056, %v7024
    %v7313 = vpack.c.b16 %v7057, %v7025
    %v7314 = vpack.c.b16 %v7058, %v7026
    %v7315 = vpack.c.b16 %v7059, %v7027
    %v7316 = vpack.c.b16 %v7060, %v7028
    %v7317 = vpack.c.b16 %v7061, %v7029
    %v7318 = vpack.c.b16 %v7062, %v7030
    %v7319 = vpack.c.b16 %v7063, %v7031
    %v7320 = vpack.c.b16 %v7064, %v7032
    %v7321 = vpack.c.b16 %v7065, %v7033
    %v7322 = vpack.c.b16 %v7066, %v7034
    %v7323 = vpack.c.b16 %v7067, %v7035
    %v7324 = vpack.c.b16 %v7068, %v7036
    %v7325 = vpack.c.b16 %v7069, %v7037
    %v7326 = vpack.c.b16 %v7070, %v7038
    %v7327 = vpack.c.b16 %v7071, %v7039
    %v7328 = vpack.c.b16 %v7072, %v7040
    %v7329 = vpack.c.b16 %v7073, %v7041
    %v7330 = vpack.c.b16 %v7074, %v7042
    %v7331 = vpack.c.b16 %v7075, %v7043
    %v7332 = vpack.c.b16 %v7076, %v7044
    %v7333 = vpack.c.b16 %v7077, %v7045
    %v7334 = vpack.c.b16 %v7078, %v7046
    %v7335 = vpack.c.b16 %v7079, %v7047
    %v7336 = vpack.c.b16 %v7080, %v7048
    %v7337 = vpack.c.b16 %v7081, %v7049
    %v7338 = vpack.c.b16 %v7082, %v7050
    %v7339 = vpack.c.b16 %v7083, %v7051
    %v7340 = vpack.c.b16 %v7084, %v7052
    %7597 = vmatprep.subr.bf16.mxu0 %v7086
    %7598 = vmatpush1.bf16.msra.mxu0 %v7085
    %7599 = vmatprep.subr.bf16.mxu0 %v7118
    %7600 = vmatpush1.bf16.msra.mxu0 %v7117
    %7601 = vmatprep.subr.bf16.mxu0 %v7150
    %7602 = vmatpush1.bf16.msra.mxu0 %v7149
    %7603 = vmatprep.subr.bf16.mxu0 %v7182
    %7604 = vmatpush1.bf16.msra.mxu0 %v7181
    %7605 = vmatprep.subr.bf16.mxu0 %v7214
    %7606 = vmatpush1.bf16.msra.mxu0 %v7213
    %7607 = vmatprep.subr.bf16.mxu0 %v7246
    %7608 = vmatpush1.bf16.msra.mxu0 %v7245
    %7609 = vmatprep.subr.bf16.mxu0 %v7278
    %7610 = vmatpush1.bf16.msra.mxu0 %v7277
    %7611 = vmatprep.subr.bf16.mxu0 %v7310
    %7612 = vmatpush1.bf16.msra.mxu0 %v7309
    %7613 = vmatprep.subr.bf16.mxu0 0
    %7614 = vmatpush1.bf16.msra.mxu0 0
    %7615 = vmatprep.subr.bf16.mxu0 0
    %7616 = vmatpush1.bf16.msra.mxu0 0
    %7617 = vmatprep.subr.bf16.mxu0 0
    %7618 = vmatpush1.bf16.msra.mxu0 0
    %7619 = vmatprep.subr.bf16.mxu0 0
    %7620 = vmatpush1.bf16.msra.mxu0 0
    %7621 = vmatprep.subr.bf16.mxu0 0
    %7622 = vmatpush1.bf16.msra.mxu0 0
    %7623 = vmatprep.subr.bf16.mxu0 0
    %7624 = vmatpush1.bf16.msra.mxu0 0
    %7625 = vmatprep.subr.bf16.mxu0 0
    %7626 = vmatpush1.bf16.msra.mxu0 0
    %7627 = vmatprep.subr.bf16.mxu0 0
    %7628 = vmatpush1.bf16.msra.mxu0 0
    %7629 = vmatprep.mubr.bf16.mxu0 0
    %7630 = vmatmul.mubr.bf16.gmra.mrb[0].mxu0 %v6060
    %v7631 = vpop.f32.mrb[0].mxu0
    %v7632 = vadd.f32 0.0, %v7631
    %v7633 = vpop.f32.mrb[0].mxu0
    %v7634 = vadd.f32 0.0, %v7633
    %v7635 = vpop.f32.mrb[0].mxu0
    %v7636 = vpop.f32.mrb[0].mxu0
    %7637 = vdwg.mxu0
    %7638 = vmatprep.subr.bf16.mxu0 %v7088
    %7639 = vmatpush1.bf16.msra.mxu0 %v7087
    %7640 = vmatprep.subr.bf16.mxu0 %v7120
    %7641 = vmatpush1.bf16.msra.mxu0 %v7119
    %7642 = vmatprep.subr.bf16.mxu0 %v7152
    %7643 = vmatpush1.bf16.msra.mxu0 %v7151
    %7644 = vmatprep.subr.bf16.mxu0 %v7184
    %7645 = vmatpush1.bf16.msra.mxu0 %v7183
    %7646 = vmatprep.subr.bf16.mxu0 %v7216
    %7647 = vmatpush1.bf16.msra.mxu0 %v7215
    %7648 = vmatprep.subr.bf16.mxu0 %v7248
    %7649 = vmatpush1.bf16.msra.mxu0 %v7247
    %7650 = vmatprep.subr.bf16.mxu0 %v7280
    %7651 = vmatpush1.bf16.msra.mxu0 %v7279
    %7652 = vmatprep.subr.bf16.mxu0 %v7312
    %7653 = vmatpush1.bf16.msra.mxu0 %v7311
    %7654 = vmatprep.subr.bf16.mxu0 0
    %7655 = vmatpush1.bf16.msra.mxu0 0
    %7656 = vmatprep.subr.bf16.mxu0 0
    %7657 = vmatpush1.bf16.msra.mxu0 0
    %7658 = vmatprep.subr.bf16.mxu0 0
    %7659 = vmatpush1.bf16.msra.mxu0 0
    %7660 = vmatprep.subr.bf16.mxu0 0
    %7661 = vmatpush1.bf16.msra.mxu0 0
    %7662 = vmatprep.subr.bf16.mxu0 0
    %7663 = vmatpush1.bf16.msra.mxu0 0
    %7664 = vmatprep.subr.bf16.mxu0 0
    %7665 = vmatpush1.bf16.msra.mxu0 0
    %7666 = vmatprep.subr.bf16.mxu0 0
    %7667 = vmatpush1.bf16.msra.mxu0 0
    %7668 = vmatprep.subr.bf16.mxu0 0
    %7669 = vmatpush1.bf16.msra.mxu0 0
    %7670 = vmatprep.mubr.bf16.mxu0 0
    %7671 = vmatmul.mubr.bf16.gmra.mrb[0].mxu0 %v6060
    %v7672 = vpop.f32.mrb[0].mxu0
    %v7673 = vadd.f32 0.0, %v7672
    %v7674 = vpop.f32.mrb[0].mxu0
    %v7675 = vadd.f32 0.0, %v7674
    %v7676 = vpop.f32.mrb[0].mxu0
    %v7677 = vpop.f32.mrb[0].mxu0
    %7678 = vdwg.mxu0
    %7679 = vmatprep.subr.bf16.mxu0 %v7090
    %7680 = vmatpush1.bf16.msra.mxu0 %v7089
    %7681 = vmatprep.subr.bf16.mxu0 %v7122
    %7682 = vmatpush1.bf16.msra.mxu0 %v7121
    %7683 = vmatprep.subr.bf16.mxu0 %v7154
    %7684 = vmatpush1.bf16.msra.mxu0 %v7153
    %7685 = vmatprep.subr.bf16.mxu0 %v7186
    %7686 = vmatpush1.bf16.msra.mxu0 %v7185
    %7687 = vmatprep.subr.bf16.mxu0 %v7218
    %7688 = vmatpush1.bf16.msra.mxu0 %v7217
    %7689 = vmatprep.subr.bf16.mxu0 %v7250
    %7690 = vmatpush1.bf16.msra.mxu0 %v7249
    %7691 = vmatprep.subr.bf16.mxu0 %v7282
    %7692 = vmatpush1.bf16.msra.mxu0 %v7281
    %7693 = vmatprep.subr.bf16.mxu0 %v7314
    %7694 = vmatpush1.bf16.msra.mxu0 %v7313
    %7695 = vmatprep.subr.bf16.mxu0 0
    %7696 = vmatpush1.bf16.msra.mxu0 0
    %7697 = vmatprep.subr.bf16.mxu0 0
    %7698 = vmatpush1.bf16.msra.mxu0 0
    %7699 = vmatprep.subr.bf16.mxu0 0
    %7700 = vmatpush1.bf16.msra.mxu0 0
    %7701 = vmatprep.subr.bf16.mxu0 0
    %7702 = vmatpush1.bf16.msra.mxu0 0
    %7703 = vmatprep.subr.bf16.mxu0 0
    %7704 = vmatpush1.bf16.msra.mxu0 0
    %7705 = vmatprep.subr.bf16.mxu0 0
    %7706 = vmatpush1.bf16.msra.mxu0 0
    %7707 = vmatprep.subr.bf16.mxu0 0
    %7708 = vmatpush1.bf16.msra.mxu0 0
    %7709 = vmatprep.subr.bf16.mxu0 0
    %7710 = vmatpush1.bf16.msra.mxu0 0
    %7711 = vmatprep.mubr.bf16.mxu0 0
    %7712 = vmatmul.mubr.bf16.gmra.mrb[0].mxu0 %v6060
    %v7713 = vpop.f32.mrb[0].mxu0
    %v7714 = vadd.f32 0.0, %v7713
    %v7715 = vpop.f32.mrb[0].mxu0
    %v7716 = vadd.f32 0.0, %v7715
    %v7717 = vpop.f32.mrb[0].mxu0
    %v7718 = vpop.f32.mrb[0].mxu0
    %7719 = vdwg.mxu0
    %7720 = vmatprep.subr.bf16.mxu0 %v7092
    %7721 = vmatpush1.bf16.msra.mxu0 %v7091
    %7722 = vmatprep.subr.bf16.mxu0 %v7124
    %7723 = vmatpush1.bf16.msra.mxu0 %v7123
    %7724 = vmatprep.subr.bf16.mxu0 %v7156
    %7725 = vmatpush1.bf16.msra.mxu0 %v7155
    %7726 = vmatprep.subr.bf16.mxu0 %v7188
    %7727 = vmatpush1.bf16.msra.mxu0 %v7187
    %7728 = vmatprep.subr.bf16.mxu0 %v7220
    %7729 = vmatpush1.bf16.msra.mxu0 %v7219
    %7730 = vmatprep.subr.bf16.mxu0 %v7252
    %7731 = vmatpush1.bf16.msra.mxu0 %v7251
    %7732 = vmatprep.subr.bf16.mxu0 %v7284
    %7733 = vmatpush1.bf16.msra.mxu0 %v7283
    %7734 = vmatprep.subr.bf16.mxu0 %v7316
    %7735 = vmatpush1.bf16.msra.mxu0 %v7315
    %7736 = vmatprep.subr.bf16.mxu0 0
    %7737 = vmatpush1.bf16.msra.mxu0 0
    %7738 = vmatprep.subr.bf16.mxu0 0
    %7739 = vmatpush1.bf16.msra.mxu0 0
    %7740 = vmatprep.subr.bf16.mxu0 0
    %7741 = vmatpush1.bf16.msra.mxu0 0
    %7742 = vmatprep.subr.bf16.mxu0 0
    %7743 = vmatpush1.bf16.msra.mxu0 0
    %7744 = vmatprep.subr.bf16.mxu0 0
    %7745 = vmatpush1.bf16.msra.mxu0 0
    %7746 = vmatprep.subr.bf16.mxu0 0
    %7747 = vmatpush1.bf16.msra.mxu0 0
    %7748 = vmatprep.subr.bf16.mxu0 0
    %7749 = vmatpush1.bf16.msra.mxu0 0
    %7750 = vmatprep.subr.bf16.mxu0 0
    %7751 = vmatpush1.bf16.msra.mxu0 0
    %7752 = vmatprep.mubr.bf16.mxu0 0
    %7753 = vmatmul.mubr.bf16.gmra.mrb[0].mxu0 %v6060
    %v7754 = vpop.f32.mrb[0].mxu0
    %v7755 = vadd.f32 0.0, %v7754
    %v7756 = vpop.f32.mrb[0].mxu0
    %v7757 = vadd.f32 0.0, %v7756
    %v7758 = vpop.f32.mrb[0].mxu0
    %v7759 = vpop.f32.mrb[0].mxu0
    %7760 = vdwg.mxu0
    %7761 = vmatprep.subr.bf16.mxu0 %v7094
    %7762 = vmatpush1.bf16.msra.mxu0 %v7093
    %7763 = vmatprep.subr.bf16.mxu0 %v7126
    %7764 = vmatpush1.bf16.msra.mxu0 %v7125
    %7765 = vmatprep.subr.bf16.mxu0 %v7158
    %7766 = vmatpush1.bf16.msra.mxu0 %v7157
    %7767 = vmatprep.subr.bf16.mxu0 %v7190
    %7768 = vmatpush1.bf16.msra.mxu0 %v7189
    %7769 = vmatprep.subr.bf16.mxu0 %v7222
    %7770 = vmatpush1.bf16.msra.mxu0 %v7221
    %7771 = vmatprep.subr.bf16.mxu0 %v7254
    %7772 = vmatpush1.bf16.msra.mxu0 %v7253
    %7773 = vmatprep.subr.bf16.mxu0 %v7286
    %7774 = vmatpush1.bf16.msra.mxu0 %v7285
    %7775 = vmatprep.subr.bf16.mxu0 %v7318
    %7776 = vmatpush1.bf16.msra.mxu0 %v7317
    %7777 = vmatprep.subr.bf16.mxu0 0
    %7778 = vmatpush1.bf16.msra.mxu0 0
    %7779 = vmatprep.subr.bf16.mxu0 0
    %7780 = vmatpush1.bf16.msra.mxu0 0
    %7781 = vmatprep.subr.bf16.mxu0 0
    %7782 = vmatpush1.bf16.msra.mxu0 0
    %7783 = vmatprep.subr.bf16.mxu0 0
    %7784 = vmatpush1.bf16.msra.mxu0 0
    %7785 = vmatprep.subr.bf16.mxu0 0
    %7786 = vmatpush1.bf16.msra.mxu0 0
    %7787 = vmatprep.subr.bf16.mxu0 0
    %7788 = vmatpush1.bf16.msra.mxu0 0
    %7789 = vmatprep.subr.bf16.mxu0 0
    %7790 = vmatpush1.bf16.msra.mxu0 0
    %7791 = vmatprep.subr.bf16.mxu0 0
    %7792 = vmatpush1.bf16.msra.mxu0 0
    %7793 = vmatprep.mubr.bf16.mxu0 0
    %7794 = vmatmul.mubr.bf16.gmra.mrb[0].mxu0 %v6060
    %v7795 = vpop.f32.mrb[0].mxu0
    %v7796 = vadd.f32 0.0, %v7795
    %v7797 = vpop.f32.mrb[0].mxu0
    %v7798 = vadd.f32 0.0, %v7797
    %v7799 = vpop.f32.mrb[0].mxu0
    %v7800 = vpop.f32.mrb[0].mxu0
    %7801 = vdwg.mxu0
    %7802 = vmatprep.subr.bf16.mxu0 %v7096
    %7803 = vmatpush1.bf16.msra.mxu0 %v7095
    %7804 = vmatprep.subr.bf16.mxu0 %v7128
    %7805 = vmatpush1.bf16.msra.mxu0 %v7127
    %7806 = vmatprep.subr.bf16.mxu0 %v7160
    %7807 = vmatpush1.bf16.msra.mxu0 %v7159
    %7808 = vmatprep.subr.bf16.mxu0 %v7192
    %7809 = vmatpush1.bf16.msra.mxu0 %v7191
    %7810 = vmatprep.subr.bf16.mxu0 %v7224
    %7811 = vmatpush1.bf16.msra.mxu0 %v7223
    %7812 = vmatprep.subr.bf16.mxu0 %v7256
    %7813 = vmatpush1.bf16.msra.mxu0 %v7255
    %7814 = vmatprep.subr.bf16.mxu0 %v7288
    %7815 = vmatpush1.bf16.msra.mxu0 %v7287
    %7816 = vmatprep.subr.bf16.mxu0 %v7320
    %7817 = vmatpush1.bf16.msra.mxu0 %v7319
    %7818 = vmatprep.subr.bf16.mxu0 0
    %7819 = vmatpush1.bf16.msra.mxu0 0
    %7820 = vmatprep.subr.bf16.mxu0 0
    %7821 = vmatpush1.bf16.msra.mxu0 0
    %7822 = vmatprep.subr.bf16.mxu0 0
    %7823 = vmatpush1.bf16.msra.mxu0 0
    %7824 = vmatprep.subr.bf16.mxu0 0
    %7825 = vmatpush1.bf16.msra.mxu0 0
    %7826 = vmatprep.subr.bf16.mxu0 0
    %7827 = vmatpush1.bf16.msra.mxu0 0
    %7828 = vmatprep.subr.bf16.mxu0 0
    %7829 = vmatpush1.bf16.msra.mxu0 0
    %7830 = vmatprep.subr.bf16.mxu0 0
    %7831 = vmatpush1.bf16.msra.mxu0 0
    %7832 = vmatprep.subr.bf16.mxu0 0
    %7833 = vmatpush1.bf16.msra.mxu0 0
    %7834 = vmatprep.mubr.bf16.mxu0 0
    %7835 = vmatmul.mubr.bf16.gmra.mrb[0].mxu0 %v6060
    %v7836 = vpop.f32.mrb[0].mxu0
    %v7837 = vadd.f32 0.0, %v7836
    %v7838 = vpop.f32.mrb[0].mxu0
    %v7839 = vadd.f32 0.0, %v7838
    %v7840 = vpop.f32.mrb[0].mxu0
    %v7841 = vpop.f32.mrb[0].mxu0
    %7842 = vdwg.mxu0
    %7843 = vmatprep.subr.bf16.mxu0 %v7098
    %7844 = vmatpush1.bf16.msra.mxu0 %v7097
    %7845 = vmatprep.subr.bf16.mxu0 %v7130
    %7846 = vmatpush1.bf16.msra.mxu0 %v7129
    %7847 = vmatprep.subr.bf16.mxu0 %v7162
    %7848 = vmatpush1.bf16.msra.mxu0 %v7161
    %7849 = vmatprep.subr.bf16.mxu0 %v7194
    %7850 = vmatpush1.bf16.msra.mxu0 %v7193
    %7851 = vmatprep.subr.bf16.mxu0 %v7226
    %7852 = vmatpush1.bf16.msra.mxu0 %v7225
    %7853 = vmatprep.subr.bf16.mxu0 %v7258
    %7854 = vmatpush1.bf16.msra.mxu0 %v7257
    %7855 = vmatprep.subr.bf16.mxu0 %v7290
    %7856 = vmatpush1.bf16.msra.mxu0 %v7289
    %7857 = vmatprep.subr.bf16.mxu0 %v7322
    %7858 = vmatpush1.bf16.msra.mxu0 %v7321
    %7859 = vmatprep.subr.bf16.mxu0 0
    %7860 = vmatpush1.bf16.msra.mxu0 0
    %7861 = vmatprep.subr.bf16.mxu0 0
    %7862 = vmatpush1.bf16.msra.mxu0 0
    %7863 = vmatprep.subr.bf16.mxu0 0
    %7864 = vmatpush1.bf16.msra.mxu0 0
    %7865 = vmatprep.subr.bf16.mxu0 0
    %7866 = vmatpush1.bf16.msra.mxu0 0
    %7867 = vmatprep.subr.bf16.mxu0 0
    %7868 = vmatpush1.bf16.msra.mxu0 0
    %7869 = vmatprep.subr.bf16.mxu0 0
    %7870 = vmatpush1.bf16.msra.mxu0 0
    %7871 = vmatprep.subr.bf16.mxu0 0
    %7872 = vmatpush1.bf16.msra.mxu0 0
    %7873 = vmatprep.subr.bf16.mxu0 0
    %7874 = vmatpush1.bf16.msra.mxu0 0
    %7875 = vmatprep.mubr.bf16.mxu0 0
    %7876 = vmatmul.mubr.bf16.gmra.mrb[0].mxu0 %v6060
    %v7877 = vpop.f32.mrb[0].mxu0
    %v7878 = vadd.f32 0.0, %v7877
    %v7879 = vpop.f32.mrb[0].mxu0
    %v7880 = vadd.f32 0.0, %v7879
    %v7881 = vpop.f32.mrb[0].mxu0
    %v7882 = vpop.f32.mrb[0].mxu0
    %7883 = vdwg.mxu0
    %7884 = vmatprep.subr.bf16.mxu0 %v7100
    %7885 = vmatpush1.bf16.msra.mxu0 %v7099
    %7886 = vmatprep.subr.bf16.mxu0 %v7132
    %7887 = vmatpush1.bf16.msra.mxu0 %v7131
    %7888 = vmatprep.subr.bf16.mxu0 %v7164
    %7889 = vmatpush1.bf16.msra.mxu0 %v7163
    %7890 = vmatprep.subr.bf16.mxu0 %v7196
    %7891 = vmatpush1.bf16.msra.mxu0 %v7195
    %7892 = vmatprep.subr.bf16.mxu0 %v7228
    %7893 = vmatpush1.bf16.msra.mxu0 %v7227
    %7894 = vmatprep.subr.bf16.mxu0 %v7260
    %7895 = vmatpush1.bf16.msra.mxu0 %v7259
    %7896 = vmatprep.subr.bf16.mxu0 %v7292
    %7897 = vmatpush1.bf16.msra.mxu0 %v7291
    %7898 = vmatprep.subr.bf16.mxu0 %v7324
    %7899 = vmatpush1.bf16.msra.mxu0 %v7323
    %7900 = vmatprep.subr.bf16.mxu0 0
    %7901 = vmatpush1.bf16.msra.mxu0 0
    %7902 = vmatprep.subr.bf16.mxu0 0
    %7903 = vmatpush1.bf16.msra.mxu0 0
    %7904 = vmatprep.subr.bf16.mxu0 0
    %7905 = vmatpush1.bf16.msra.mxu0 0
    %7906 = vmatprep.subr.bf16.mxu0 0
    %7907 = vmatpush1.bf16.msra.mxu0 0
    %7908 = vmatprep.subr.bf16.mxu0 0
    %7909 = vmatpush1.bf16.msra.mxu0 0
    %7910 = vmatprep.subr.bf16.mxu0 0
    %7911 = vmatpush1.bf16.msra.mxu0 0
    %7912 = vmatprep.subr.bf16.mxu0 0
    %7913 = vmatpush1.bf16.msra.mxu0 0
    %7914 = vmatprep.subr.bf16.mxu0 0
    %7915 = vmatpush1.bf16.msra.mxu0 0
    %7916 = vmatprep.mubr.bf16.mxu0 0
    %7917 = vmatmul.mubr.bf16.gmra.mrb[0].mxu0 %v6060
    %v7918 = vpop.f32.mrb[0].mxu0
    %v7919 = vadd.f32 0.0, %v7918
    %v7920 = vpop.f32.mrb[0].mxu0
    %v7921 = vadd.f32 0.0, %v7920
    %v7922 = vpop.f32.mrb[0].mxu0
    %v7923 = vpop.f32.mrb[0].mxu0
    %7924 = vdwg.mxu0
    %7925 = vmatprep.subr.bf16.mxu0 %v7102
    %7926 = vmatpush1.bf16.msra.mxu0 %v7101
    %7927 = vmatprep.subr.bf16.mxu0 %v7134
    %7928 = vmatpush1.bf16.msra.mxu0 %v7133
    %7929 = vmatprep.subr.bf16.mxu0 %v7166
    %7930 = vmatpush1.bf16.msra.mxu0 %v7165
    %7931 = vmatprep.subr.bf16.mxu0 %v7198
    %7932 = vmatpush1.bf16.msra.mxu0 %v7197
    %7933 = vmatprep.subr.bf16.mxu0 %v7230
    %7934 = vmatpush1.bf16.msra.mxu0 %v7229
    %7935 = vmatprep.subr.bf16.mxu0 %v7262
    %7936 = vmatpush1.bf16.msra.mxu0 %v7261
    %7937 = vmatprep.subr.bf16.mxu0 %v7294
    %7938 = vmatpush1.bf16.msra.mxu0 %v7293
    %7939 = vmatprep.subr.bf16.mxu0 %v7326
    %7940 = vmatpush1.bf16.msra.mxu0 %v7325
    %7941 = vmatprep.subr.bf16.mxu0 0
    %7942 = vmatpush1.bf16.msra.mxu0 0
    %7943 = vmatprep.subr.bf16.mxu0 0
    %7944 = vmatpush1.bf16.msra.mxu0 0
    %7945 = vmatprep.subr.bf16.mxu0 0
    %7946 = vmatpush1.bf16.msra.mxu0 0
    %7947 = vmatprep.subr.bf16.mxu0 0
    %7948 = vmatpush1.bf16.msra.mxu0 0
    %7949 = vmatprep.subr.bf16.mxu0 0
    %7950 = vmatpush1.bf16.msra.mxu0 0
    %7951 = vmatprep.subr.bf16.mxu0 0
    %7952 = vmatpush1.bf16.msra.mxu0 0
    %7953 = vmatprep.subr.bf16.mxu0 0
    %7954 = vmatpush1.bf16.msra.mxu0 0
    %7955 = vmatprep.subr.bf16.mxu0 0
    %7956 = vmatpush1.bf16.msra.mxu0 0
    %7957 = vmatprep.mubr.bf16.mxu0 0
    %7958 = vmatmul.mubr.bf16.gmra.mrb[0].mxu0 %v6060
    %v7959 = vpop.f32.mrb[0].mxu0
    %v7960 = vadd.f32 0.0, %v7959
    %v7961 = vpop.f32.mrb[0].mxu0
    %v7962 = vadd.f32 0.0, %v7961
    %v7963 = vpop.f32.mrb[0].mxu0
    %v7964 = vpop.f32.mrb[0].mxu0
    %7965 = vdwg.mxu0
    %7966 = vmatprep.subr.bf16.mxu0 %v7104
    %7967 = vmatpush1.bf16.msra.mxu0 %v7103
    %7968 = vmatprep.subr.bf16.mxu0 %v7136
    %7969 = vmatpush1.bf16.msra.mxu0 %v7135
    %7970 = vmatprep.subr.bf16.mxu0 %v7168
    %7971 = vmatpush1.bf16.msra.mxu0 %v7167
    %7972 = vmatprep.subr.bf16.mxu0 %v7200
    %7973 = vmatpush1.bf16.msra.mxu0 %v7199
    %7974 = vmatprep.subr.bf16.mxu0 %v7232
    %7975 = vmatpush1.bf16.msra.mxu0 %v7231
    %7976 = vmatprep.subr.bf16.mxu0 %v7264
    %7977 = vmatpush1.bf16.msra.mxu0 %v7263
    %7978 = vmatprep.subr.bf16.mxu0 %v7296
    %7979 = vmatpush1.bf16.msra.mxu0 %v7295
    %7980 = vmatprep.subr.bf16.mxu0 %v7328
    %7981 = vmatpush1.bf16.msra.mxu0 %v7327
    %7982 = vmatprep.subr.bf16.mxu0 0
    %7983 = vmatpush1.bf16.msra.mxu0 0
    %7984 = vmatprep.subr.bf16.mxu0 0
    %7985 = vmatpush1.bf16.msra.mxu0 0
    %7986 = vmatprep.subr.bf16.mxu0 0
    %7987 = vmatpush1.bf16.msra.mxu0 0
    %7988 = vmatprep.subr.bf16.mxu0 0
    %7989 = vmatpush1.bf16.msra.mxu0 0
    %7990 = vmatprep.subr.bf16.mxu0 0
    %7991 = vmatpush1.bf16.msra.mxu0 0
    %7992 = vmatprep.subr.bf16.mxu0 0
    %7993 = vmatpush1.bf16.msra.mxu0 0
    %7994 = vmatprep.subr.bf16.mxu0 0
    %7995 = vmatpush1.bf16.msra.mxu0 0
    %7996 = vmatprep.subr.bf16.mxu0 0
    %7997 = vmatpush1.bf16.msra.mxu0 0
    %7998 = vmatprep.mubr.bf16.mxu0 0
    %7999 = vmatmul.mubr.bf16.gmra.mrb[0].mxu0 %v6060
    %v8000 = vpop.f32.mrb[0].mxu0
    %v8001 = vadd.f32 0.0, %v8000
    %v8002 = vpop.f32.mrb[0].mxu0
    %v8003 = vadd.f32 0.0, %v8002
    %v8004 = vpop.f32.mrb[0].mxu0
    %v8005 = vpop.f32.mrb[0].mxu0
    %8006 = vdwg.mxu0
    %8007 = vmatprep.subr.bf16.mxu0 %v7106
    %8008 = vmatpush1.bf16.msra.mxu0 %v7105
    %8009 = vmatprep.subr.bf16.mxu0 %v7138
    %8010 = vmatpush1.bf16.msra.mxu0 %v7137
    %8011 = vmatprep.subr.bf16.mxu0 %v7170
    %8012 = vmatpush1.bf16.msra.mxu0 %v7169
    %8013 = vmatprep.subr.bf16.mxu0 %v7202
    %8014 = vmatpush1.bf16.msra.mxu0 %v7201
    %8015 = vmatprep.subr.bf16.mxu0 %v7234
    %8016 = vmatpush1.bf16.msra.mxu0 %v7233
    %8017 = vmatprep.subr.bf16.mxu0 %v7266
    %8018 = vmatpush1.bf16.msra.mxu0 %v7265
    %8019 = vmatprep.subr.bf16.mxu0 %v7298
    %8020 = vmatpush1.bf16.msra.mxu0 %v7297
    %8021 = vmatprep.subr.bf16.mxu0 %v7330
    %8022 = vmatpush1.bf16.msra.mxu0 %v7329
    %8023 = vmatprep.subr.bf16.mxu0 0
    %8024 = vmatpush1.bf16.msra.mxu0 0
    %8025 = vmatprep.subr.bf16.mxu0 0
    %8026 = vmatpush1.bf16.msra.mxu0 0
    %8027 = vmatprep.subr.bf16.mxu0 0
    %8028 = vmatpush1.bf16.msra.mxu0 0
    %8029 = vmatprep.subr.bf16.mxu0 0
    %8030 = vmatpush1.bf16.msra.mxu0 0
    %8031 = vmatprep.subr.bf16.mxu0 0
    %8032 = vmatpush1.bf16.msra.mxu0 0
    %8033 = vmatprep.subr.bf16.mxu0 0
    %8034 = vmatpush1.bf16.msra.mxu0 0
    %8035 = vmatprep.subr.bf16.mxu0 0
    %8036 = vmatpush1.bf16.msra.mxu0 0
    %8037 = vmatprep.subr.bf16.mxu0 0
    %8038 = vmatpush1.bf16.msra.mxu0 0
    %8039 = vmatprep.mubr.bf16.mxu0 0
    %8040 = vmatmul.mubr.bf16.gmra.mrb[0].mxu0 %v6060
    %v8041 = vpop.f32.mrb[0].mxu0
    %v8042 = vadd.f32 0.0, %v8041
    %v8043 = vpop.f32.mrb[0].mxu0
    %v8044 = vadd.f32 0.0, %v8043
    %v8045 = vpop.f32.mrb[0].mxu0
    %v8046 = vpop.f32.mrb[0].mxu0
    %8047 = vdwg.mxu0
    %8048 = vmatprep.subr.bf16.mxu0 %v7108
    %8049 = vmatpush1.bf16.msra.mxu0 %v7107
    %8050 = vmatprep.subr.bf16.mxu0 %v7140
    %8051 = vmatpush1.bf16.msra.mxu0 %v7139
    %8052 = vmatprep.subr.bf16.mxu0 %v7172
    %8053 = vmatpush1.bf16.msra.mxu0 %v7171
    %8054 = vmatprep.subr.bf16.mxu0 %v7204
    %8055 = vmatpush1.bf16.msra.mxu0 %v7203
    %8056 = vmatprep.subr.bf16.mxu0 %v7236
    %8057 = vmatpush1.bf16.msra.mxu0 %v7235
    %8058 = vmatprep.subr.bf16.mxu0 %v7268
    %8059 = vmatpush1.bf16.msra.mxu0 %v7267
    %8060 = vmatprep.subr.bf16.mxu0 %v7300
    %8061 = vmatpush1.bf16.msra.mxu0 %v7299
    %8062 = vmatprep.subr.bf16.mxu0 %v7332
    %8063 = vmatpush1.bf16.msra.mxu0 %v7331
    %8064 = vmatprep.subr.bf16.mxu0 0
    %8065 = vmatpush1.bf16.msra.mxu0 0
    %8066 = vmatprep.subr.bf16.mxu0 0
    %8067 = vmatpush1.bf16.msra.mxu0 0
    %8068 = vmatprep.subr.bf16.mxu0 0
    %8069 = vmatpush1.bf16.msra.mxu0 0
    %8070 = vmatprep.subr.bf16.mxu0 0
    %8071 = vmatpush1.bf16.msra.mxu0 0
    %8072 = vmatprep.subr.bf16.mxu0 0
    %8073 = vmatpush1.bf16.msra.mxu0 0
    %8074 = vmatprep.subr.bf16.mxu0 0
    %8075 = vmatpush1.bf16.msra.mxu0 0
    %8076 = vmatprep.subr.bf16.mxu0 0
    %8077 = vmatpush1.bf16.msra.mxu0 0
    %8078 = vmatprep.subr.bf16.mxu0 0
    %8079 = vmatpush1.bf16.msra.mxu0 0
    %8080 = vmatprep.mubr.bf16.mxu0 0
    %8081 = vmatmul.mubr.bf16.gmra.mrb[0].mxu0 %v6060
    %v8082 = vpop.f32.mrb[0].mxu0
    %v8083 = vadd.f32 0.0, %v8082
    %v8084 = vpop.f32.mrb[0].mxu0
    %v8085 = vadd.f32 0.0, %v8084
    %v8086 = vpop.f32.mrb[0].mxu0
    %v8087 = vpop.f32.mrb[0].mxu0
    %8088 = vdwg.mxu0
    %8089 = vmatprep.subr.bf16.mxu0 %v7110
    %8090 = vmatpush1.bf16.msra.mxu0 %v7109
    %8091 = vmatprep.subr.bf16.mxu0 %v7142
    %8092 = vmatpush1.bf16.msra.mxu0 %v7141
    %8093 = vmatprep.subr.bf16.mxu0 %v7174
    %8094 = vmatpush1.bf16.msra.mxu0 %v7173
    %8095 = vmatprep.subr.bf16.mxu0 %v7206
    %8096 = vmatpush1.bf16.msra.mxu0 %v7205
    %8097 = vmatprep.subr.bf16.mxu0 %v7238
    %8098 = vmatpush1.bf16.msra.mxu0 %v7237
    %8099 = vmatprep.subr.bf16.mxu0 %v7270
    %8100 = vmatpush1.bf16.msra.mxu0 %v7269
    %8101 = vmatprep.subr.bf16.mxu0 %v7302
    %8102 = vmatpush1.bf16.msra.mxu0 %v7301
    %8103 = vmatprep.subr.bf16.mxu0 %v7334
    %8104 = vmatpush1.bf16.msra.mxu0 %v7333
    %8105 = vmatprep.subr.bf16.mxu0 0
    %8106 = vmatpush1.bf16.msra.mxu0 0
    %8107 = vmatprep.subr.bf16.mxu0 0
    %8108 = vmatpush1.bf16.msra.mxu0 0
    %8109 = vmatprep.subr.bf16.mxu0 0
    %8110 = vmatpush1.bf16.msra.mxu0 0
    %8111 = vmatprep.subr.bf16.mxu0 0
    %8112 = vmatpush1.bf16.msra.mxu0 0
    %8113 = vmatprep.subr.bf16.mxu0 0
    %8114 = vmatpush1.bf16.msra.mxu0 0
    %8115 = vmatprep.subr.bf16.mxu0 0
    %8116 = vmatpush1.bf16.msra.mxu0 0
    %8117 = vmatprep.subr.bf16.mxu0 0
    %8118 = vmatpush1.bf16.msra.mxu0 0
    %8119 = vmatprep.subr.bf16.mxu0 0
    %8120 = vmatpush1.bf16.msra.mxu0 0
    %8121 = vmatprep.mubr.bf16.mxu0 0
    %8122 = vmatmul.mubr.bf16.gmra.mrb[0].mxu0 %v6060
    %v8123 = vpop.f32.mrb[0].mxu0
    %v8124 = vadd.f32 0.0, %v8123
    %v8125 = vpop.f32.mrb[0].mxu0
    %v8126 = vadd.f32 0.0, %v8125
    %v8127 = vpop.f32.mrb[0].mxu0
    %v8128 = vpop.f32.mrb[0].mxu0
    %8129 = vdwg.mxu0
    %8130 = vmatprep.subr.bf16.mxu0 %v7112
    %8131 = vmatpush1.bf16.msra.mxu0 %v7111
    %8132 = vmatprep.subr.bf16.mxu0 %v7144
    %8133 = vmatpush1.bf16.msra.mxu0 %v7143
    %8134 = vmatprep.subr.bf16.mxu0 %v7176
    %8135 = vmatpush1.bf16.msra.mxu0 %v7175
    %8136 = vmatprep.subr.bf16.mxu0 %v7208
    %8137 = vmatpush1.bf16.msra.mxu0 %v7207
    %8138 = vmatprep.subr.bf16.mxu0 %v7240
    %8139 = vmatpush1.bf16.msra.mxu0 %v7239
    %8140 = vmatprep.subr.bf16.mxu0 %v7272
    %8141 = vmatpush1.bf16.msra.mxu0 %v7271
    %8142 = vmatprep.subr.bf16.mxu0 %v7304
    %8143 = vmatpush1.bf16.msra.mxu0 %v7303
    %8144 = vmatprep.subr.bf16.mxu0 %v7336
    %8145 = vmatpush1.bf16.msra.mxu0 %v7335
    %8146 = vmatprep.subr.bf16.mxu0 0
    %8147 = vmatpush1.bf16.msra.mxu0 0
    %8148 = vmatprep.subr.bf16.mxu0 0
    %8149 = vmatpush1.bf16.msra.mxu0 0
    %8150 = vmatprep.subr.bf16.mxu0 0
    %8151 = vmatpush1.bf16.msra.mxu0 0
    %8152 = vmatprep.subr.bf16.mxu0 0
    %8153 = vmatpush1.bf16.msra.mxu0 0
    %8154 = vmatprep.subr.bf16.mxu0 0
    %8155 = vmatpush1.bf16.msra.mxu0 0
    %8156 = vmatprep.subr.bf16.mxu0 0
    %8157 = vmatpush1.bf16.msra.mxu0 0
    %8158 = vmatprep.subr.bf16.mxu0 0
    %8159 = vmatpush1.bf16.msra.mxu0 0
    %8160 = vmatprep.subr.bf16.mxu0 0
    %8161 = vmatpush1.bf16.msra.mxu0 0
    %8162 = vmatprep.mubr.bf16.mxu0 0
    %8163 = vmatmul.mubr.bf16.gmra.mrb[0].mxu0 %v6060
    %v8164 = vpop.f32.mrb[0].mxu0
    %v8165 = vadd.f32 0.0, %v8164
    %v8166 = vpop.f32.mrb[0].mxu0
    %v8167 = vadd.f32 0.0, %v8166
    %v8168 = vpop.f32.mrb[0].mxu0
    %v8169 = vpop.f32.mrb[0].mxu0
    %8170 = vdwg.mxu0
    %8171 = vmatprep.subr.bf16.mxu0 %v7114
    %8172 = vmatpush1.bf16.msra.mxu0 %v7113
    %8173 = vmatprep.subr.bf16.mxu0 %v7146
    %8174 = vmatpush1.bf16.msra.mxu0 %v7145
    %8175 = vmatprep.subr.bf16.mxu0 %v7178
    %8176 = vmatpush1.bf16.msra.mxu0 %v7177
    %8177 = vmatprep.subr.bf16.mxu0 %v7210
    %8178 = vmatpush1.bf16.msra.mxu0 %v7209
    %8179 = vmatprep.subr.bf16.mxu0 %v7242
    %8180 = vmatpush1.bf16.msra.mxu0 %v7241
    %8181 = vmatprep.subr.bf16.mxu0 %v7274
    %8182 = vmatpush1.bf16.msra.mxu0 %v7273
    %8183 = vmatprep.subr.bf16.mxu0 %v7306
    %8184 = vmatpush1.bf16.msra.mxu0 %v7305
    %8185 = vmatprep.subr.bf16.mxu0 %v7338
    %8186 = vmatpush1.bf16.msra.mxu0 %v7337
    %8187 = vmatprep.subr.bf16.mxu0 0
    %8188 = vmatpush1.bf16.msra.mxu0 0
    %8189 = vmatprep.subr.bf16.mxu0 0
    %8190 = vmatpush1.bf16.msra.mxu0 0
    %8191 = vmatprep.subr.bf16.mxu0 0
    %8192 = vmatpush1.bf16.msra.mxu0 0
    %8193 = vmatprep.subr.bf16.mxu0 0
    %8194 = vmatpush1.bf16.msra.mxu0 0
    %8195 = vmatprep.subr.bf16.mxu0 0
    %8196 = vmatpush1.bf16.msra.mxu0 0
    %8197 = vmatprep.subr.bf16.mxu0 0
    %8198 = vmatpush1.bf16.msra.mxu0 0
    %8199 = vmatprep.subr.bf16.mxu0 0
    %8200 = vmatpush1.bf16.msra.mxu0 0
    %8201 = vmatprep.subr.bf16.mxu0 0
    %8202 = vmatpush1.bf16.msra.mxu0 0
    %8203 = vmatprep.mubr.bf16.mxu0 0
    %8204 = vmatmul.mubr.bf16.gmra.mrb[0].mxu0 %v6060
    %v8205 = vpop.f32.mrb[0].mxu0
    %v8206 = vadd.f32 0.0, %v8205
    %v8207 = vpop.f32.mrb[0].mxu0
    %v8208 = vadd.f32 0.0, %v8207
    %v8209 = vpop.f32.mrb[0].mxu0
    %v8210 = vpop.f32.mrb[0].mxu0
    %8211 = vdwg.mxu0
    %8212 = vmatprep.subr.bf16.mxu0 %v7116
    %8213 = vmatpush1.bf16.msra.mxu0 %v7115
    %8214 = vmatprep.subr.bf16.mxu0 %v7148
    %8215 = vmatpush1.bf16.msra.mxu0 %v7147
    %8216 = vmatprep.subr.bf16.mxu0 %v7180
    %8217 = vmatpush1.bf16.msra.mxu0 %v7179
    %8218 = vmatprep.subr.bf16.mxu0 %v7212
    %8219 = vmatpush1.bf16.msra.mxu0 %v7211
    %8220 = vmatprep.subr.bf16.mxu0 %v7244
    %8221 = vmatpush1.bf16.msra.mxu0 %v7243
    %8222 = vmatprep.subr.bf16.mxu0 %v7276
    %8223 = vmatpush1.bf16.msra.mxu0 %v7275
    %8224 = vmatprep.subr.bf16.mxu0 %v7308
    %8225 = vmatpush1.bf16.msra.mxu0 %v7307
    %8226 = vmatprep.subr.bf16.mxu0 %v7340
    %8227 = vmatpush1.bf16.msra.mxu0 %v7339
    %8228 = vmatprep.subr.bf16.mxu0 0
    %8229 = vmatpush1.bf16.msra.mxu0 0
    %8230 = vmatprep.subr.bf16.mxu0 0
    %8231 = vmatpush1.bf16.msra.mxu0 0
    %8232 = vmatprep.subr.bf16.mxu0 0
    %8233 = vmatpush1.bf16.msra.mxu0 0
    %8234 = vmatprep.subr.bf16.mxu0 0
    %8235 = vmatpush1.bf16.msra.mxu0 0
    %8236 = vmatprep.subr.bf16.mxu0 0
    %8237 = vmatpush1.bf16.msra.mxu0 0
    %8238 = vmatprep.subr.bf16.mxu0 0
    %8239 = vmatpush1.bf16.msra.mxu0 0
    %8240 = vmatprep.subr.bf16.mxu0 0
    %8241 = vmatpush1.bf16.msra.mxu0 0
    %8242 = vmatprep.subr.bf16.mxu0 0
    %8243 = vmatpush1.bf16.msra.mxu0 0
    %8244 = vmatprep.mubr.bf16.mxu0 0
    %8245 = vmatmul.mubr.bf16.gmra.mrb[0].mxu0 %v6060
    %v8246 = vpop.f32.mrb[0].mxu0
    %v8247 = vadd.f32 0.0, %v8246
    %v8248 = vpop.f32.mrb[0].mxu0
    %v8249 = vadd.f32 0.0, %v8248
    %v8250 = vpop.f32.mrb[0].mxu0
    %v8251 = vpop.f32.mrb[0].mxu0
    %8252 = vdwg.mxu0
    %v8253 = vld [vmem:[%s11] sm:$0x3]
    %s8254 = scalar_lea.vmem %s11, 2
    %v8255 = vld [vmem:[%s8254] sm:$0x3]
    %vm8256 = vcmask 64512
    %v8258 = vsel %vm8256, %v8255, 0
    %8260 = vmatprep.subr.mxu0 %v7675
    %8261 = vmatpush1.msra.mxu0 %v7673
    %8262 = vmatprep.subr.mxu0 0.0
    %8263 = vmatpush1.msra.mxu0 0.0
    %8264 = vmatprep.subr.mxu0 0.0
    %8265 = vmatpush1.msra.mxu0 0.0
    %8266 = vmatprep.subr.mxu0 0.0
    %8267 = vmatpush1.msra.mxu0 0.0
    %8268 = vmatprep.subr.mxu0 0.0
    %8269 = vmatpush1.msra.mxu0 0.0
    %8270 = vmatprep.subr.mxu0 0.0
    %8271 = vmatpush1.msra.mxu0 0.0
    %8272 = vmatprep.subr.mxu0 0.0
    %8273 = vmatpush1.msra.mxu0 0.0
    %8274 = vmatprep.subr.mxu0 0.0
    %8275 = vmatpush1.msra.mxu0 0.0
    %8276 = vmatprep.subr.mxu0 0.0
    %8277 = vmatpush1.msra.mxu0 0.0
    %8278 = vmatprep.subr.mxu0 0.0
    %8279 = vmatpush1.msra.mxu0 0.0
    %8280 = vmatprep.subr.mxu0 0.0
    %8281 = vmatpush1.msra.mxu0 0.0
    %8282 = vmatprep.subr.mxu0 0.0
    %8283 = vmatpush1.msra.mxu0 0.0
    %8284 = vmatprep.subr.mxu0 0.0
    %8285 = vmatpush1.msra.mxu0 0.0
    %8286 = vmatprep.subr.mxu0 0.0
    %8287 = vmatpush1.msra.mxu0 0.0
    %8288 = vmatprep.subr.mxu0 0.0
    %8289 = vmatpush1.msra.mxu0 0.0
    %8290 = vmatprep.subr.mxu0 0.0
    %8291 = vmatpush1.msra.mxu0 0.0
    %8292 = vmatprep.subr.mxu0 0.0
    %8293 = vmatpush1.msra.mxu0 0.0
    %8294 = vmatprep.subr.mxu0 0.0
    %8295 = vmatpush1.msra.mxu0 0.0
    %8296 = vmatprep.subr.mxu0 0.0
    %8297 = vmatpush1.msra.mxu0 0.0
    %8298 = vmatprep.subr.mxu0 0.0
    %8299 = vmatpush1.msra.mxu0 0.0
    %8300 = vmatprep.subr.mxu0 0.0
    %8301 = vmatpush1.msra.mxu0 0.0
    %8302 = vmatprep.subr.mxu0 0.0
    %8303 = vmatpush1.msra.mxu0 0.0
    %8304 = vmatprep.subr.mxu0 0.0
    %8305 = vmatpush1.msra.mxu0 0.0
    %8306 = vmatprep.subr.mxu0 0.0
    %8307 = vmatpush1.msra.mxu0 0.0
    %8308 = vmatprep.subr.mxu0 0.0
    %8309 = vmatpush1.msra.mxu0 0.0
    %8310 = vmatprep.subr.mxu0 0.0
    %8311 = vmatpush1.msra.mxu0 0.0
    %8312 = vmatprep.subr.mxu0 0.0
    %8313 = vmatpush1.msra.mxu0 0.0
    %8314 = vmatprep.subr.mxu0 0.0
    %8315 = vmatpush1.msra.mxu0 0.0
    %8316 = vmatprep.subr.mxu0 0.0
    %8317 = vmatpush1.msra.mxu0 0.0
    %8318 = vmatprep.subr.mxu0 0.0
    %8319 = vmatpush1.msra.mxu0 0.0
    %8320 = vmatprep.subr.mxu0 0.0
    %8321 = vmatpush1.msra.mxu0 0.0
    %8322 = vmatprep.subr.mxu0 0.0
    %8323 = vmatpush1.msra.mxu0 0.0
    %8324 = vmatprep.mubr.f32.mxu0 0.0
    %8325 = vmatmul.mubr.f32.gmra.mrb[0].mxu0 %v8258
    %v8326 = vpop.f32.mrb[0].mxu0
    %v8327 = vadd.f32 0.0, %v8326
    %v8328 = vpop.f32.mrb[0].mxu0
    %v8329 = vadd.f32 0.0, %v8328
    %8330 = vdwg.mxu0
    %v8332 = vsel %vm8256, %v8253, 0
    %8334 = vmatprep.subr.mxu0 %v7634
    %8335 = vmatpush1.msra.mxu0 %v7632
    %8336 = vmatprep.subr.mxu0 0.0
    %8337 = vmatpush1.msra.mxu0 0.0
    %8338 = vmatprep.subr.mxu0 0.0
    %8339 = vmatpush1.msra.mxu0 0.0
    %8340 = vmatprep.subr.mxu0 0.0
    %8341 = vmatpush1.msra.mxu0 0.0
    %8342 = vmatprep.subr.mxu0 0.0
    %8343 = vmatpush1.msra.mxu0 0.0
    %8344 = vmatprep.subr.mxu0 0.0
    %8345 = vmatpush1.msra.mxu0 0.0
    %8346 = vmatprep.subr.mxu0 0.0
    %8347 = vmatpush1.msra.mxu0 0.0
    %8348 = vmatprep.subr.mxu0 0.0
    %8349 = vmatpush1.msra.mxu0 0.0
    %8350 = vmatprep.subr.mxu0 0.0
    %8351 = vmatpush1.msra.mxu0 0.0
    %8352 = vmatprep.subr.mxu0 0.0
    %8353 = vmatpush1.msra.mxu0 0.0
    %8354 = vmatprep.subr.mxu0 0.0
    %8355 = vmatpush1.msra.mxu0 0.0
    %8356 = vmatprep.subr.mxu0 0.0
    %8357 = vmatpush1.msra.mxu0 0.0
    %8358 = vmatprep.subr.mxu0 0.0
    %8359 = vmatpush1.msra.mxu0 0.0
    %8360 = vmatprep.subr.mxu0 0.0
    %8361 = vmatpush1.msra.mxu0 0.0
    %8362 = vmatprep.subr.mxu0 0.0
    %8363 = vmatpush1.msra.mxu0 0.0
    %8364 = vmatprep.subr.mxu0 0.0
    %8365 = vmatpush1.msra.mxu0 0.0
    %8366 = vmatprep.subr.mxu0 0.0
    %8367 = vmatpush1.msra.mxu0 0.0
    %8368 = vmatprep.subr.mxu0 0.0
    %8369 = vmatpush1.msra.mxu0 0.0
    %8370 = vmatprep.subr.mxu0 0.0
    %8371 = vmatpush1.msra.mxu0 0.0
    %8372 = vmatprep.subr.mxu0 0.0
    %8373 = vmatpush1.msra.mxu0 0.0
    %8374 = vmatprep.subr.mxu0 0.0
    %8375 = vmatpush1.msra.mxu0 0.0
    %8376 = vmatprep.subr.mxu0 0.0
    %8377 = vmatpush1.msra.mxu0 0.0
    %8378 = vmatprep.subr.mxu0 0.0
    %8379 = vmatpush1.msra.mxu0 0.0
    %8380 = vmatprep.subr.mxu0 0.0
    %8381 = vmatpush1.msra.mxu0 0.0
    %8382 = vmatprep.subr.mxu0 0.0
    %8383 = vmatpush1.msra.mxu0 0.0
    %8384 = vmatprep.subr.mxu0 0.0
    %8385 = vmatpush1.msra.mxu0 0.0
    %8386 = vmatprep.subr.mxu0 0.0
    %8387 = vmatpush1.msra.mxu0 0.0
    %8388 = vmatprep.subr.mxu0 0.0
    %8389 = vmatpush1.msra.mxu0 0.0
    %8390 = vmatprep.subr.mxu0 0.0
    %8391 = vmatpush1.msra.mxu0 0.0
    %8392 = vmatprep.subr.mxu0 0.0
    %8393 = vmatpush1.msra.mxu0 0.0
    %8394 = vmatprep.subr.mxu0 0.0
    %8395 = vmatpush1.msra.mxu0 0.0
    %8396 = vmatprep.subr.mxu0 0.0
    %8397 = vmatpush1.msra.mxu0 0.0
    %8398 = vmatprep.mubr.f32.mxu0 0.0
    %8399 = vmatmul.mubr.f32.gmra.mrb[0].mxu0 %v8332
    %v8400 = vpop.f32.mrb[0].mxu0
    %v8401 = vadd.f32 %v8327, %v8400
    %v8402 = vpop.f32.mrb[0].mxu0
    %v8403 = vadd.f32 %v8329, %v8402
    %8404 = vdwg.mxu0
    %s8405 = scalar_lea.vmem %s11, 4
    %v8406 = vld [vmem:[%s8405] sm:$0x3]
    %v8408 = vsel %vm8256, %v8406, 0
    %8410 = vmatprep.subr.mxu0 %v7716
    %8411 = vmatpush1.msra.mxu0 %v7714
    %8412 = vmatprep.subr.mxu0 0.0
    %8413 = vmatpush1.msra.mxu0 0.0
    %8414 = vmatprep.subr.mxu0 0.0
    %8415 = vmatpush1.msra.mxu0 0.0
    %8416 = vmatprep.subr.mxu0 0.0
    %8417 = vmatpush1.msra.mxu0 0.0
    %8418 = vmatprep.subr.mxu0 0.0
    %8419 = vmatpush1.msra.mxu0 0.0
    %8420 = vmatprep.subr.mxu0 0.0
    %8421 = vmatpush1.msra.mxu0 0.0
    %8422 = vmatprep.subr.mxu0 0.0
    %8423 = vmatpush1.msra.mxu0 0.0
    %8424 = vmatprep.subr.mxu0 0.0
    %8425 = vmatpush1.msra.mxu0 0.0
    %8426 = vmatprep.subr.mxu0 0.0
    %8427 = vmatpush1.msra.mxu0 0.0
    %8428 = vmatprep.subr.mxu0 0.0
    %8429 = vmatpush1.msra.mxu0 0.0
    %8430 = vmatprep.subr.mxu0 0.0
    %8431 = vmatpush1.msra.mxu0 0.0
    %8432 = vmatprep.subr.mxu0 0.0
    %8433 = vmatpush1.msra.mxu0 0.0
    %8434 = vmatprep.subr.mxu0 0.0
    %8435 = vmatpush1.msra.mxu0 0.0
    %8436 = vmatprep.subr.mxu0 0.0
    %8437 = vmatpush1.msra.mxu0 0.0
    %8438 = vmatprep.subr.mxu0 0.0
    %8439 = vmatpush1.msra.mxu0 0.0
    %8440 = vmatprep.subr.mxu0 0.0
    %8441 = vmatpush1.msra.mxu0 0.0
    %8442 = vmatprep.subr.mxu0 0.0
    %8443 = vmatpush1.msra.mxu0 0.0
    %8444 = vmatprep.subr.mxu0 0.0
    %8445 = vmatpush1.msra.mxu0 0.0
    %8446 = vmatprep.subr.mxu0 0.0
    %8447 = vmatpush1.msra.mxu0 0.0
    %8448 = vmatprep.subr.mxu0 0.0
    %8449 = vmatpush1.msra.mxu0 0.0
    %8450 = vmatprep.subr.mxu0 0.0
    %8451 = vmatpush1.msra.mxu0 0.0
    %8452 = vmatprep.subr.mxu0 0.0
    %8453 = vmatpush1.msra.mxu0 0.0
    %8454 = vmatprep.subr.mxu0 0.0
    %8455 = vmatpush1.msra.mxu0 0.0
    %8456 = vmatprep.subr.mxu0 0.0
    %8457 = vmatpush1.msra.mxu0 0.0
    %8458 = vmatprep.subr.mxu0 0.0
    %8459 = vmatpush1.msra.mxu0 0.0
    %8460 = vmatprep.subr.mxu0 0.0
    %8461 = vmatpush1.msra.mxu0 0.0
    %8462 = vmatprep.subr.mxu0 0.0
    %8463 = vmatpush1.msra.mxu0 0.0
    %8464 = vmatprep.subr.mxu0 0.0
    %8465 = vmatpush1.msra.mxu0 0.0
    %8466 = vmatprep.subr.mxu0 0.0
    %8467 = vmatpush1.msra.mxu0 0.0
    %8468 = vmatprep.subr.mxu0 0.0
    %8469 = vmatpush1.msra.mxu0 0.0
    %8470 = vmatprep.subr.mxu0 0.0
    %8471 = vmatpush1.msra.mxu0 0.0
    %8472 = vmatprep.subr.mxu0 0.0
    %8473 = vmatpush1.msra.mxu0 0.0
    %8474 = vmatprep.mubr.f32.mxu0 0.0
    %8475 = vmatmul.mubr.f32.gmra.mrb[0].mxu0 %v8408
    %v8476 = vpop.f32.mrb[0].mxu0
    %v8477 = vadd.f32 0.0, %v8476
    %v8478 = vpop.f32.mrb[0].mxu0
    %v8479 = vadd.f32 0.0, %v8478
    %8480 = vdwg.mxu0
    %v8481 = vadd.f32 %v8401, %v8477
    %v8482 = vadd.f32 %v8403, %v8479
    %s8483 = scalar_lea.vmem %s11, 6
    %v8484 = vld [vmem:[%s8483] sm:$0x3]
    %v8486 = vsel %vm8256, %v8484, 0
    %8488 = vmatprep.subr.mxu0 %v7757
    %8489 = vmatpush1.msra.mxu0 %v7755
    %8490 = vmatprep.subr.mxu0 0.0
    %8491 = vmatpush1.msra.mxu0 0.0
    %8492 = vmatprep.subr.mxu0 0.0
    %8493 = vmatpush1.msra.mxu0 0.0
    %8494 = vmatprep.subr.mxu0 0.0
    %8495 = vmatpush1.msra.mxu0 0.0
    %8496 = vmatprep.subr.mxu0 0.0
    %8497 = vmatpush1.msra.mxu0 0.0
    %8498 = vmatprep.subr.mxu0 0.0
    %8499 = vmatpush1.msra.mxu0 0.0
    %8500 = vmatprep.subr.mxu0 0.0
    %8501 = vmatpush1.msra.mxu0 0.0
    %8502 = vmatprep.subr.mxu0 0.0
    %8503 = vmatpush1.msra.mxu0 0.0
    %8504 = vmatprep.subr.mxu0 0.0
    %8505 = vmatpush1.msra.mxu0 0.0
    %8506 = vmatprep.subr.mxu0 0.0
    %8507 = vmatpush1.msra.mxu0 0.0
    %8508 = vmatprep.subr.mxu0 0.0
    %8509 = vmatpush1.msra.mxu0 0.0
    %8510 = vmatprep.subr.mxu0 0.0
    %8511 = vmatpush1.msra.mxu0 0.0
    %8512 = vmatprep.subr.mxu0 0.0
    %8513 = vmatpush1.msra.mxu0 0.0
    %8514 = vmatprep.subr.mxu0 0.0
    %8515 = vmatpush1.msra.mxu0 0.0
    %8516 = vmatprep.subr.mxu0 0.0
    %8517 = vmatpush1.msra.mxu0 0.0
    %8518 = vmatprep.subr.mxu0 0.0
    %8519 = vmatpush1.msra.mxu0 0.0
    %8520 = vmatprep.subr.mxu0 0.0
    %8521 = vmatpush1.msra.mxu0 0.0
    %8522 = vmatprep.subr.mxu0 0.0
    %8523 = vmatpush1.msra.mxu0 0.0
    %8524 = vmatprep.subr.mxu0 0.0
    %8525 = vmatpush1.msra.mxu0 0.0
    %8526 = vmatprep.subr.mxu0 0.0
    %8527 = vmatpush1.msra.mxu0 0.0
    %8528 = vmatprep.subr.mxu0 0.0
    %8529 = vmatpush1.msra.mxu0 0.0
    %8530 = vmatprep.subr.mxu0 0.0
    %8531 = vmatpush1.msra.mxu0 0.0
    %8532 = vmatprep.subr.mxu0 0.0
    %8533 = vmatpush1.msra.mxu0 0.0
    %8534 = vmatprep.subr.mxu0 0.0
    %8535 = vmatpush1.msra.mxu0 0.0
    %8536 = vmatprep.subr.mxu0 0.0
    %8537 = vmatpush1.msra.mxu0 0.0
    %8538 = vmatprep.subr.mxu0 0.0
    %8539 = vmatpush1.msra.mxu0 0.0
    %8540 = vmatprep.subr.mxu0 0.0
    %8541 = vmatpush1.msra.mxu0 0.0
    %8542 = vmatprep.subr.mxu0 0.0
    %8543 = vmatpush1.msra.mxu0 0.0
    %8544 = vmatprep.subr.mxu0 0.0
    %8545 = vmatpush1.msra.mxu0 0.0
    %8546 = vmatprep.subr.mxu0 0.0
    %8547 = vmatpush1.msra.mxu0 0.0
    %8548 = vmatprep.subr.mxu0 0.0
    %8549 = vmatpush1.msra.mxu0 0.0
    %8550 = vmatprep.subr.mxu0 0.0
    %8551 = vmatpush1.msra.mxu0 0.0
    %8552 = vmatprep.mubr.f32.mxu0 0.0
    %8553 = vmatmul.mubr.f32.gmra.mrb[0].mxu0 %v8486
    %v8554 = vpop.f32.mrb[0].mxu0
    %v8555 = vadd.f32 0.0, %v8554
    %v8556 = vpop.f32.mrb[0].mxu0
    %v8557 = vadd.f32 0.0, %v8556
    %8558 = vdwg.mxu0
    %v8559 = vadd.f32 %v8481, %v8555
    %v8560 = vadd.f32 %v8482, %v8557
    %s8561 = scalar_lea.vmem %s11, 8
    %v8562 = vld [vmem:[%s8561] sm:$0x3]
    %v8564 = vsel %vm8256, %v8562, 0
    %8566 = vmatprep.subr.mxu0 %v7798
    %8567 = vmatpush1.msra.mxu0 %v7796
    %8568 = vmatprep.subr.mxu0 0.0
    %8569 = vmatpush1.msra.mxu0 0.0
    %8570 = vmatprep.subr.mxu0 0.0
    %8571 = vmatpush1.msra.mxu0 0.0
    %8572 = vmatprep.subr.mxu0 0.0
    %8573 = vmatpush1.msra.mxu0 0.0
    %8574 = vmatprep.subr.mxu0 0.0
    %8575 = vmatpush1.msra.mxu0 0.0
    %8576 = vmatprep.subr.mxu0 0.0
    %8577 = vmatpush1.msra.mxu0 0.0
    %8578 = vmatprep.subr.mxu0 0.0
    %8579 = vmatpush1.msra.mxu0 0.0
    %8580 = vmatprep.subr.mxu0 0.0
    %8581 = vmatpush1.msra.mxu0 0.0
    %8582 = vmatprep.subr.mxu0 0.0
    %8583 = vmatpush1.msra.mxu0 0.0
    %8584 = vmatprep.subr.mxu0 0.0
    %8585 = vmatpush1.msra.mxu0 0.0
    %8586 = vmatprep.subr.mxu0 0.0
    %8587 = vmatpush1.msra.mxu0 0.0
    %8588 = vmatprep.subr.mxu0 0.0
    %8589 = vmatpush1.msra.mxu0 0.0
    %8590 = vmatprep.subr.mxu0 0.0
    %8591 = vmatpush1.msra.mxu0 0.0
    %8592 = vmatprep.subr.mxu0 0.0
    %8593 = vmatpush1.msra.mxu0 0.0
    %8594 = vmatprep.subr.mxu0 0.0
    %8595 = vmatpush1.msra.mxu0 0.0
    %8596 = vmatprep.subr.mxu0 0.0
    %8597 = vmatpush1.msra.mxu0 0.0
    %8598 = vmatprep.subr.mxu0 0.0
    %8599 = vmatpush1.msra.mxu0 0.0
    %8600 = vmatprep.subr.mxu0 0.0
    %8601 = vmatpush1.msra.mxu0 0.0
    %8602 = vmatprep.subr.mxu0 0.0
    %8603 = vmatpush1.msra.mxu0 0.0
    %8604 = vmatprep.subr.mxu0 0.0
    %8605 = vmatpush1.msra.mxu0 0.0
    %8606 = vmatprep.subr.mxu0 0.0
    %8607 = vmatpush1.msra.mxu0 0.0
    %8608 = vmatprep.subr.mxu0 0.0
    %8609 = vmatpush1.msra.mxu0 0.0
    %8610 = vmatprep.subr.mxu0 0.0
    %8611 = vmatpush1.msra.mxu0 0.0
    %8612 = vmatprep.subr.mxu0 0.0
    %8613 = vmatpush1.msra.mxu0 0.0
    %8614 = vmatprep.subr.mxu0 0.0
    %8615 = vmatpush1.msra.mxu0 0.0
    %8616 = vmatprep.subr.mxu0 0.0
    %8617 = vmatpush1.msra.mxu0 0.0
    %8618 = vmatprep.subr.mxu0 0.0
    %8619 = vmatpush1.msra.mxu0 0.0
    %8620 = vmatprep.subr.mxu0 0.0
    %8621 = vmatpush1.msra.mxu0 0.0
    %8622 = vmatprep.subr.mxu0 0.0
    %8623 = vmatpush1.msra.mxu0 0.0
    %8624 = vmatprep.subr.mxu0 0.0
    %8625 = vmatpush1.msra.mxu0 0.0
    %8626 = vmatprep.subr.mxu0 0.0
    %8627 = vmatpush1.msra.mxu0 0.0
    %8628 = vmatprep.subr.mxu0 0.0
    %8629 = vmatpush1.msra.mxu0 0.0
    %8630 = vmatprep.mubr.f32.mxu0 0.0
    %8631 = vmatmul.mubr.f32.gmra.mrb[0].mxu0 %v8564
    %v8632 = vpop.f32.mrb[0].mxu0
    %v8633 = vadd.f32 0.0, %v8632
    %v8634 = vpop.f32.mrb[0].mxu0
    %v8635 = vadd.f32 0.0, %v8634
    %8636 = vdwg.mxu0
    %v8637 = vadd.f32 %v8559, %v8633
    %v8638 = vadd.f32 %v8560, %v8635
    %s8639 = scalar_lea.vmem %s11, 10
    %v8640 = vld [vmem:[%s8639] sm:$0x3]
    %v8642 = vsel %vm8256, %v8640, 0
    %8644 = vmatprep.subr.mxu0 %v7839
    %8645 = vmatpush1.msra.mxu0 %v7837
    %8646 = vmatprep.subr.mxu0 0.0
    %8647 = vmatpush1.msra.mxu0 0.0
    %8648 = vmatprep.subr.mxu0 0.0
    %8649 = vmatpush1.msra.mxu0 0.0
    %8650 = vmatprep.subr.mxu0 0.0
    %8651 = vmatpush1.msra.mxu0 0.0
    %8652 = vmatprep.subr.mxu0 0.0
    %8653 = vmatpush1.msra.mxu0 0.0
    %8654 = vmatprep.subr.mxu0 0.0
    %8655 = vmatpush1.msra.mxu0 0.0
    %8656 = vmatprep.subr.mxu0 0.0
    %8657 = vmatpush1.msra.mxu0 0.0
    %8658 = vmatprep.subr.mxu0 0.0
    %8659 = vmatpush1.msra.mxu0 0.0
    %8660 = vmatprep.subr.mxu0 0.0
    %8661 = vmatpush1.msra.mxu0 0.0
    %8662 = vmatprep.subr.mxu0 0.0
    %8663 = vmatpush1.msra.mxu0 0.0
    %8664 = vmatprep.subr.mxu0 0.0
    %8665 = vmatpush1.msra.mxu0 0.0
    %8666 = vmatprep.subr.mxu0 0.0
    %8667 = vmatpush1.msra.mxu0 0.0
    %8668 = vmatprep.subr.mxu0 0.0
    %8669 = vmatpush1.msra.mxu0 0.0
    %8670 = vmatprep.subr.mxu0 0.0
    %8671 = vmatpush1.msra.mxu0 0.0
    %8672 = vmatprep.subr.mxu0 0.0
    %8673 = vmatpush1.msra.mxu0 0.0
    %8674 = vmatprep.subr.mxu0 0.0
    %8675 = vmatpush1.msra.mxu0 0.0
    %8676 = vmatprep.subr.mxu0 0.0
    %8677 = vmatpush1.msra.mxu0 0.0
    %8678 = vmatprep.subr.mxu0 0.0
    %8679 = vmatpush1.msra.mxu0 0.0
    %8680 = vmatprep.subr.mxu0 0.0
    %8681 = vmatpush1.msra.mxu0 0.0
    %8682 = vmatprep.subr.mxu0 0.0
    %8683 = vmatpush1.msra.mxu0 0.0
    %8684 = vmatprep.subr.mxu0 0.0
    %8685 = vmatpush1.msra.mxu0 0.0
    %8686 = vmatprep.subr.mxu0 0.0
    %8687 = vmatpush1.msra.mxu0 0.0
    %8688 = vmatprep.subr.mxu0 0.0
    %8689 = vmatpush1.msra.mxu0 0.0
    %8690 = vmatprep.subr.mxu0 0.0
    %8691 = vmatpush1.msra.mxu0 0.0
    %8692 = vmatprep.subr.mxu0 0.0
    %8693 = vmatpush1.msra.mxu0 0.0
    %8694 = vmatprep.subr.mxu0 0.0
    %8695 = vmatpush1.msra.mxu0 0.0
    %8696 = vmatprep.subr.mxu0 0.0
    %8697 = vmatpush1.msra.mxu0 0.0
    %8698 = vmatprep.subr.mxu0 0.0
    %8699 = vmatpush1.msra.mxu0 0.0
    %8700 = vmatprep.subr.mxu0 0.0
    %8701 = vmatpush1.msra.mxu0 0.0
    %8702 = vmatprep.subr.mxu0 0.0
    %8703 = vmatpush1.msra.mxu0 0.0
    %8704 = vmatprep.subr.mxu0 0.0
    %8705 = vmatpush1.msra.mxu0 0.0
    %8706 = vmatprep.subr.mxu0 0.0
    %8707 = vmatpush1.msra.mxu0 0.0
    %8708 = vmatprep.mubr.f32.mxu0 0.0
    %8709 = vmatmul.mubr.f32.gmra.mrb[0].mxu0 %v8642
    %v8710 = vpop.f32.mrb[0].mxu0
    %v8711 = vadd.f32 0.0, %v8710
    %v8712 = vpop.f32.mrb[0].mxu0
    %v8713 = vadd.f32 0.0, %v8712
    %8714 = vdwg.mxu0
    %v8715 = vadd.f32 %v8637, %v8711
    %v8716 = vadd.f32 %v8638, %v8713
    %s8717 = scalar_lea.vmem %s11, 12
    %v8718 = vld [vmem:[%s8717] sm:$0x3]
    %v8720 = vsel %vm8256, %v8718, 0
    %8722 = vmatprep.subr.mxu0 %v7880
    %8723 = vmatpush1.msra.mxu0 %v7878
    %8724 = vmatprep.subr.mxu0 0.0
    %8725 = vmatpush1.msra.mxu0 0.0
    %8726 = vmatprep.subr.mxu0 0.0
    %8727 = vmatpush1.msra.mxu0 0.0
    %8728 = vmatprep.subr.mxu0 0.0
    %8729 = vmatpush1.msra.mxu0 0.0
    %8730 = vmatprep.subr.mxu0 0.0
    %8731 = vmatpush1.msra.mxu0 0.0
    %8732 = vmatprep.subr.mxu0 0.0
    %8733 = vmatpush1.msra.mxu0 0.0
    %8734 = vmatprep.subr.mxu0 0.0
    %8735 = vmatpush1.msra.mxu0 0.0
    %8736 = vmatprep.subr.mxu0 0.0
    %8737 = vmatpush1.msra.mxu0 0.0
    %8738 = vmatprep.subr.mxu0 0.0
    %8739 = vmatpush1.msra.mxu0 0.0
    %8740 = vmatprep.subr.mxu0 0.0
    %8741 = vmatpush1.msra.mxu0 0.0
    %8742 = vmatprep.subr.mxu0 0.0
    %8743 = vmatpush1.msra.mxu0 0.0
    %8744 = vmatprep.subr.mxu0 0.0
    %8745 = vmatpush1.msra.mxu0 0.0
    %8746 = vmatprep.subr.mxu0 0.0
    %8747 = vmatpush1.msra.mxu0 0.0
    %8748 = vmatprep.subr.mxu0 0.0
    %8749 = vmatpush1.msra.mxu0 0.0
    %8750 = vmatprep.subr.mxu0 0.0
    %8751 = vmatpush1.msra.mxu0 0.0
    %8752 = vmatprep.subr.mxu0 0.0
    %8753 = vmatpush1.msra.mxu0 0.0
    %8754 = vmatprep.subr.mxu0 0.0
    %8755 = vmatpush1.msra.mxu0 0.0
    %8756 = vmatprep.subr.mxu0 0.0
    %8757 = vmatpush1.msra.mxu0 0.0
    %8758 = vmatprep.subr.mxu0 0.0
    %8759 = vmatpush1.msra.mxu0 0.0
    %8760 = vmatprep.subr.mxu0 0.0
    %8761 = vmatpush1.msra.mxu0 0.0
    %8762 = vmatprep.subr.mxu0 0.0
    %8763 = vmatpush1.msra.mxu0 0.0
    %8764 = vmatprep.subr.mxu0 0.0
    %8765 = vmatpush1.msra.mxu0 0.0
    %8766 = vmatprep.subr.mxu0 0.0
    %8767 = vmatpush1.msra.mxu0 0.0
    %8768 = vmatprep.subr.mxu0 0.0
    %8769 = vmatpush1.msra.mxu0 0.0
    %8770 = vmatprep.subr.mxu0 0.0
    %8771 = vmatpush1.msra.mxu0 0.0
    %8772 = vmatprep.subr.mxu0 0.0
    %8773 = vmatpush1.msra.mxu0 0.0
    %8774 = vmatprep.subr.mxu0 0.0
    %8775 = vmatpush1.msra.mxu0 0.0
    %8776 = vmatprep.subr.mxu0 0.0
    %8777 = vmatpush1.msra.mxu0 0.0
    %8778 = vmatprep.subr.mxu0 0.0
    %8779 = vmatpush1.msra.mxu0 0.0
    %8780 = vmatprep.subr.mxu0 0.0
    %8781 = vmatpush1.msra.mxu0 0.0
    %8782 = vmatprep.subr.mxu0 0.0
    %8783 = vmatpush1.msra.mxu0 0.0
    %8784 = vmatprep.subr.mxu0 0.0
    %8785 = vmatpush1.msra.mxu0 0.0
    %8786 = vmatprep.mubr.f32.mxu0 0.0
    %8787 = vmatmul.mubr.f32.gmra.mrb[0].mxu0 %v8720
    %v8788 = vpop.f32.mrb[0].mxu0
    %v8789 = vadd.f32 0.0, %v8788
    %v8790 = vpop.f32.mrb[0].mxu0
    %v8791 = vadd.f32 0.0, %v8790
    %8792 = vdwg.mxu0
    %v8793 = vadd.f32 %v8715, %v8789
    %v8794 = vadd.f32 %v8716, %v8791
    %s8795 = scalar_lea.vmem %s11, 14
    %v8796 = vld [vmem:[%s8795] sm:$0x3]
    %v8798 = vsel %vm8256, %v8796, 0
    %8800 = vmatprep.subr.mxu0 %v7921
    %8801 = vmatpush1.msra.mxu0 %v7919
    %8802 = vmatprep.subr.mxu0 0.0
    %8803 = vmatpush1.msra.mxu0 0.0
    %8804 = vmatprep.subr.mxu0 0.0
    %8805 = vmatpush1.msra.mxu0 0.0
    %8806 = vmatprep.subr.mxu0 0.0
    %8807 = vmatpush1.msra.mxu0 0.0
    %8808 = vmatprep.subr.mxu0 0.0
    %8809 = vmatpush1.msra.mxu0 0.0
    %8810 = vmatprep.subr.mxu0 0.0
    %8811 = vmatpush1.msra.mxu0 0.0
    %8812 = vmatprep.subr.mxu0 0.0
    %8813 = vmatpush1.msra.mxu0 0.0
    %8814 = vmatprep.subr.mxu0 0.0
    %8815 = vmatpush1.msra.mxu0 0.0
    %8816 = vmatprep.subr.mxu0 0.0
    %8817 = vmatpush1.msra.mxu0 0.0
    %8818 = vmatprep.subr.mxu0 0.0
    %8819 = vmatpush1.msra.mxu0 0.0
    %8820 = vmatprep.subr.mxu0 0.0
    %8821 = vmatpush1.msra.mxu0 0.0
    %8822 = vmatprep.subr.mxu0 0.0
    %8823 = vmatpush1.msra.mxu0 0.0
    %8824 = vmatprep.subr.mxu0 0.0
    %8825 = vmatpush1.msra.mxu0 0.0
    %8826 = vmatprep.subr.mxu0 0.0
    %8827 = vmatpush1.msra.mxu0 0.0
    %8828 = vmatprep.subr.mxu0 0.0
    %8829 = vmatpush1.msra.mxu0 0.0
    %8830 = vmatprep.subr.mxu0 0.0
    %8831 = vmatpush1.msra.mxu0 0.0
    %8832 = vmatprep.subr.mxu0 0.0
    %8833 = vmatpush1.msra.mxu0 0.0
    %8834 = vmatprep.subr.mxu0 0.0
    %8835 = vmatpush1.msra.mxu0 0.0
    %8836 = vmatprep.subr.mxu0 0.0
    %8837 = vmatpush1.msra.mxu0 0.0
    %8838 = vmatprep.subr.mxu0 0.0
    %8839 = vmatpush1.msra.mxu0 0.0
    %8840 = vmatprep.subr.mxu0 0.0
    %8841 = vmatpush1.msra.mxu0 0.0
    %8842 = vmatprep.subr.mxu0 0.0
    %8843 = vmatpush1.msra.mxu0 0.0
    %8844 = vmatprep.subr.mxu0 0.0
    %8845 = vmatpush1.msra.mxu0 0.0
    %8846 = vmatprep.subr.mxu0 0.0
    %8847 = vmatpush1.msra.mxu0 0.0
    %8848 = vmatprep.subr.mxu0 0.0
    %8849 = vmatpush1.msra.mxu0 0.0
    %8850 = vmatprep.subr.mxu0 0.0
    %8851 = vmatpush1.msra.mxu0 0.0
    %8852 = vmatprep.subr.mxu0 0.0
    %8853 = vmatpush1.msra.mxu0 0.0
    %8854 = vmatprep.subr.mxu0 0.0
    %8855 = vmatpush1.msra.mxu0 0.0
    %8856 = vmatprep.subr.mxu0 0.0
    %8857 = vmatpush1.msra.mxu0 0.0
    %8858 = vmatprep.subr.mxu0 0.0
    %8859 = vmatpush1.msra.mxu0 0.0
    %8860 = vmatprep.subr.mxu0 0.0
    %8861 = vmatpush1.msra.mxu0 0.0
    %8862 = vmatprep.subr.mxu0 0.0
    %8863 = vmatpush1.msra.mxu0 0.0
    %8864 = vmatprep.mubr.f32.mxu0 0.0
    %8865 = vmatmul.mubr.f32.gmra.mrb[0].mxu0 %v8798
    %v8866 = vpop.f32.mrb[0].mxu0
    %v8867 = vadd.f32 0.0, %v8866
    %v8868 = vpop.f32.mrb[0].mxu0
    %v8869 = vadd.f32 0.0, %v8868
    %8870 = vdwg.mxu0
    %v8871 = vadd.f32 %v8793, %v8867
    %v8872 = vadd.f32 %v8794, %v8869
    %s8873 = scalar_lea.vmem %s11, 16
    %v8874 = vld [vmem:[%s8873] sm:$0x3]
    %v8876 = vsel %vm8256, %v8874, 0
    %8878 = vmatprep.subr.mxu0 %v7962
    %8879 = vmatpush1.msra.mxu0 %v7960
    %8880 = vmatprep.subr.mxu0 0.0
    %8881 = vmatpush1.msra.mxu0 0.0
    %8882 = vmatprep.subr.mxu0 0.0
    %8883 = vmatpush1.msra.mxu0 0.0
    %8884 = vmatprep.subr.mxu0 0.0
    %8885 = vmatpush1.msra.mxu0 0.0
    %8886 = vmatprep.subr.mxu0 0.0
    %8887 = vmatpush1.msra.mxu0 0.0
    %8888 = vmatprep.subr.mxu0 0.0
    %8889 = vmatpush1.msra.mxu0 0.0
    %8890 = vmatprep.subr.mxu0 0.0
    %8891 = vmatpush1.msra.mxu0 0.0
    %8892 = vmatprep.subr.mxu0 0.0
    %8893 = vmatpush1.msra.mxu0 0.0
    %8894 = vmatprep.subr.mxu0 0.0
    %8895 = vmatpush1.msra.mxu0 0.0
    %8896 = vmatprep.subr.mxu0 0.0
    %8897 = vmatpush1.msra.mxu0 0.0
    %8898 = vmatprep.subr.mxu0 0.0
    %8899 = vmatpush1.msra.mxu0 0.0
    %8900 = vmatprep.subr.mxu0 0.0
    %8901 = vmatpush1.msra.mxu0 0.0
    %8902 = vmatprep.subr.mxu0 0.0
    %8903 = vmatpush1.msra.mxu0 0.0
    %8904 = vmatprep.subr.mxu0 0.0
    %8905 = vmatpush1.msra.mxu0 0.0
    %8906 = vmatprep.subr.mxu0 0.0
    %8907 = vmatpush1.msra.mxu0 0.0
    %8908 = vmatprep.subr.mxu0 0.0
    %8909 = vmatpush1.msra.mxu0 0.0
    %8910 = vmatprep.subr.mxu0 0.0
    %8911 = vmatpush1.msra.mxu0 0.0
    %8912 = vmatprep.subr.mxu0 0.0
    %8913 = vmatpush1.msra.mxu0 0.0
    %8914 = vmatprep.subr.mxu0 0.0
    %8915 = vmatpush1.msra.mxu0 0.0
    %8916 = vmatprep.subr.mxu0 0.0
    %8917 = vmatpush1.msra.mxu0 0.0
    %8918 = vmatprep.subr.mxu0 0.0
    %8919 = vmatpush1.msra.mxu0 0.0
    %8920 = vmatprep.subr.mxu0 0.0
    %8921 = vmatpush1.msra.mxu0 0.0
    %8922 = vmatprep.subr.mxu0 0.0
    %8923 = vmatpush1.msra.mxu0 0.0
    %8924 = vmatprep.subr.mxu0 0.0
    %8925 = vmatpush1.msra.mxu0 0.0
    %8926 = vmatprep.subr.mxu0 0.0
    %8927 = vmatpush1.msra.mxu0 0.0
    %8928 = vmatprep.subr.mxu0 0.0
    %8929 = vmatpush1.msra.mxu0 0.0
    %8930 = vmatprep.subr.mxu0 0.0
    %8931 = vmatpush1.msra.mxu0 0.0
    %8932 = vmatprep.subr.mxu0 0.0
    %8933 = vmatpush1.msra.mxu0 0.0
    %8934 = vmatprep.subr.mxu0 0.0
    %8935 = vmatpush1.msra.mxu0 0.0
    %8936 = vmatprep.subr.mxu0 0.0
    %8937 = vmatpush1.msra.mxu0 0.0
    %8938 = vmatprep.subr.mxu0 0.0
    %8939 = vmatpush1.msra.mxu0 0.0
    %8940 = vmatprep.subr.mxu0 0.0
    %8941 = vmatpush1.msra.mxu0 0.0
    %8942 = vmatprep.mubr.f32.mxu0 0.0
    %8943 = vmatmul.mubr.f32.gmra.mrb[0].mxu0 %v8876
    %v8944 = vpop.f32.mrb[0].mxu0
    %v8945 = vadd.f32 0.0, %v8944
    %v8946 = vpop.f32.mrb[0].mxu0
    %v8947 = vadd.f32 0.0, %v8946
    %8948 = vdwg.mxu0
    %v8949 = vadd.f32 %v8871, %v8945
    %v8950 = vadd.f32 %v8872, %v8947
    %s8951 = scalar_lea.vmem %s11, 18
    %v8952 = vld [vmem:[%s8951] sm:$0x3]
    %v8954 = vsel %vm8256, %v8952, 0
    %8956 = vmatprep.subr.mxu0 %v8003
    %8957 = vmatpush1.msra.mxu0 %v8001
    %8958 = vmatprep.subr.mxu0 0.0
    %8959 = vmatpush1.msra.mxu0 0.0
    %8960 = vmatprep.subr.mxu0 0.0
    %8961 = vmatpush1.msra.mxu0 0.0
    %8962 = vmatprep.subr.mxu0 0.0
    %8963 = vmatpush1.msra.mxu0 0.0
    %8964 = vmatprep.subr.mxu0 0.0
    %8965 = vmatpush1.msra.mxu0 0.0
    %8966 = vmatprep.subr.mxu0 0.0
    %8967 = vmatpush1.msra.mxu0 0.0
    %8968 = vmatprep.subr.mxu0 0.0
    %8969 = vmatpush1.msra.mxu0 0.0
    %8970 = vmatprep.subr.mxu0 0.0
    %8971 = vmatpush1.msra.mxu0 0.0
    %8972 = vmatprep.subr.mxu0 0.0
    %8973 = vmatpush1.msra.mxu0 0.0
    %8974 = vmatprep.subr.mxu0 0.0
    %8975 = vmatpush1.msra.mxu0 0.0
    %8976 = vmatprep.subr.mxu0 0.0
    %8977 = vmatpush1.msra.mxu0 0.0
    %8978 = vmatprep.subr.mxu0 0.0
    %8979 = vmatpush1.msra.mxu0 0.0
    %8980 = vmatprep.subr.mxu0 0.0
    %8981 = vmatpush1.msra.mxu0 0.0
    %8982 = vmatprep.subr.mxu0 0.0
    %8983 = vmatpush1.msra.mxu0 0.0
    %8984 = vmatprep.subr.mxu0 0.0
    %8985 = vmatpush1.msra.mxu0 0.0
    %8986 = vmatprep.subr.mxu0 0.0
    %8987 = vmatpush1.msra.mxu0 0.0
    %8988 = vmatprep.subr.mxu0 0.0
    %8989 = vmatpush1.msra.mxu0 0.0
    %8990 = vmatprep.subr.mxu0 0.0
    %8991 = vmatpush1.msra.mxu0 0.0
    %8992 = vmatprep.subr.mxu0 0.0
    %8993 = vmatpush1.msra.mxu0 0.0
    %8994 = vmatprep.subr.mxu0 0.0
    %8995 = vmatpush1.msra.mxu0 0.0
    %8996 = vmatprep.subr.mxu0 0.0
    %8997 = vmatpush1.msra.mxu0 0.0
    %8998 = vmatprep.subr.mxu0 0.0
    %8999 = vmatpush1.msra.mxu0 0.0
    %9000 = vmatprep.subr.mxu0 0.0
    %9001 = vmatpush1.msra.mxu0 0.0
    %9002 = vmatprep.subr.mxu0 0.0
    %9003 = vmatpush1.msra.mxu0 0.0
    %9004 = vmatprep.subr.mxu0 0.0
    %9005 = vmatpush1.msra.mxu0 0.0
    %9006 = vmatprep.subr.mxu0 0.0
    %9007 = vmatpush1.msra.mxu0 0.0
    %9008 = vmatprep.subr.mxu0 0.0
    %9009 = vmatpush1.msra.mxu0 0.0
    %9010 = vmatprep.subr.mxu0 0.0
    %9011 = vmatpush1.msra.mxu0 0.0
    %9012 = vmatprep.subr.mxu0 0.0
    %9013 = vmatpush1.msra.mxu0 0.0
    %9014 = vmatprep.subr.mxu0 0.0
    %9015 = vmatpush1.msra.mxu0 0.0
    %9016 = vmatprep.subr.mxu0 0.0
    %9017 = vmatpush1.msra.mxu0 0.0
    %9018 = vmatprep.subr.mxu0 0.0
    %9019 = vmatpush1.msra.mxu0 0.0
    %9020 = vmatprep.mubr.f32.mxu0 0.0
    %9021 = vmatmul.mubr.f32.gmra.mrb[0].mxu0 %v8954
    %v9022 = vpop.f32.mrb[0].mxu0
    %v9023 = vadd.f32 0.0, %v9022
    %v9024 = vpop.f32.mrb[0].mxu0
    %v9025 = vadd.f32 0.0, %v9024
    %9026 = vdwg.mxu0
    %v9027 = vadd.f32 %v8949, %v9023
    %v9028 = vadd.f32 %v8950, %v9025
    %s9029 = scalar_lea.vmem %s11, 20
    %v9030 = vld [vmem:[%s9029] sm:$0x3]
    %v9032 = vsel %vm8256, %v9030, 0
    %9034 = vmatprep.subr.mxu0 %v8044
    %9035 = vmatpush1.msra.mxu0 %v8042
    %9036 = vmatprep.subr.mxu0 0.0
    %9037 = vmatpush1.msra.mxu0 0.0
    %9038 = vmatprep.subr.mxu0 0.0
    %9039 = vmatpush1.msra.mxu0 0.0
    %9040 = vmatprep.subr.mxu0 0.0
    %9041 = vmatpush1.msra.mxu0 0.0
    %9042 = vmatprep.subr.mxu0 0.0
    %9043 = vmatpush1.msra.mxu0 0.0
    %9044 = vmatprep.subr.mxu0 0.0
    %9045 = vmatpush1.msra.mxu0 0.0
    %9046 = vmatprep.subr.mxu0 0.0
    %9047 = vmatpush1.msra.mxu0 0.0
    %9048 = vmatprep.subr.mxu0 0.0
    %9049 = vmatpush1.msra.mxu0 0.0
    %9050 = vmatprep.subr.mxu0 0.0
    %9051 = vmatpush1.msra.mxu0 0.0
    %9052 = vmatprep.subr.mxu0 0.0
    %9053 = vmatpush1.msra.mxu0 0.0
    %9054 = vmatprep.subr.mxu0 0.0
    %9055 = vmatpush1.msra.mxu0 0.0
    %9056 = vmatprep.subr.mxu0 0.0
    %9057 = vmatpush1.msra.mxu0 0.0
    %9058 = vmatprep.subr.mxu0 0.0
    %9059 = vmatpush1.msra.mxu0 0.0
    %9060 = vmatprep.subr.mxu0 0.0
    %9061 = vmatpush1.msra.mxu0 0.0
    %9062 = vmatprep.subr.mxu0 0.0
    %9063 = vmatpush1.msra.mxu0 0.0
    %9064 = vmatprep.subr.mxu0 0.0
    %9065 = vmatpush1.msra.mxu0 0.0
    %9066 = vmatprep.subr.mxu0 0.0
    %9067 = vmatpush1.msra.mxu0 0.0
    %9068 = vmatprep.subr.mxu0 0.0
    %9069 = vmatpush1.msra.mxu0 0.0
    %9070 = vmatprep.subr.mxu0 0.0
    %9071 = vmatpush1.msra.mxu0 0.0
    %9072 = vmatprep.subr.mxu0 0.0
    %9073 = vmatpush1.msra.mxu0 0.0
    %9074 = vmatprep.subr.mxu0 0.0
    %9075 = vmatpush1.msra.mxu0 0.0
    %9076 = vmatprep.subr.mxu0 0.0
    %9077 = vmatpush1.msra.mxu0 0.0
    %9078 = vmatprep.subr.mxu0 0.0
    %9079 = vmatpush1.msra.mxu0 0.0
    %9080 = vmatprep.subr.mxu0 0.0
    %9081 = vmatpush1.msra.mxu0 0.0
    %9082 = vmatprep.subr.mxu0 0.0
    %9083 = vmatpush1.msra.mxu0 0.0
    %9084 = vmatprep.subr.mxu0 0.0
    %9085 = vmatpush1.msra.mxu0 0.0
    %9086 = vmatprep.subr.mxu0 0.0
    %9087 = vmatpush1.msra.mxu0 0.0
    %9088 = vmatprep.subr.mxu0 0.0
    %9089 = vmatpush1.msra.mxu0 0.0
    %9090 = vmatprep.subr.mxu0 0.0
    %9091 = vmatpush1.msra.mxu0 0.0
    %9092 = vmatprep.subr.mxu0 0.0
    %9093 = vmatpush1.msra.mxu0 0.0
    %9094 = vmatprep.subr.mxu0 0.0
    %9095 = vmatpush1.msra.mxu0 0.0
    %9096 = vmatprep.subr.mxu0 0.0
    %9097 = vmatpush1.msra.mxu0 0.0
    %9098 = vmatprep.mubr.f32.mxu0 0.0
    %9099 = vmatmul.mubr.f32.gmra.mrb[0].mxu0 %v9032
    %v9100 = vpop.f32.mrb[0].mxu0
    %v9101 = vadd.f32 0.0, %v9100
    %v9102 = vpop.f32.mrb[0].mxu0
    %v9103 = vadd.f32 0.0, %v9102
    %9104 = vdwg.mxu0
    %v9105 = vadd.f32 %v9027, %v9101
    %v9106 = vadd.f32 %v9028, %v9103
    %s9107 = scalar_lea.vmem %s11, 22
    %v9108 = vld [vmem:[%s9107] sm:$0x3]
    %v9110 = vsel %vm8256, %v9108, 0
    %9112 = vmatprep.subr.mxu0 %v8085
    %9113 = vmatpush1.msra.mxu0 %v8083
    %9114 = vmatprep.subr.mxu0 0.0
    %9115 = vmatpush1.msra.mxu0 0.0
    %9116 = vmatprep.subr.mxu0 0.0
    %9117 = vmatpush1.msra.mxu0 0.0
    %9118 = vmatprep.subr.mxu0 0.0
    %9119 = vmatpush1.msra.mxu0 0.0
    %9120 = vmatprep.subr.mxu0 0.0
    %9121 = vmatpush1.msra.mxu0 0.0
    %9122 = vmatprep.subr.mxu0 0.0
    %9123 = vmatpush1.msra.mxu0 0.0
    %9124 = vmatprep.subr.mxu0 0.0
    %9125 = vmatpush1.msra.mxu0 0.0
    %9126 = vmatprep.subr.mxu0 0.0
    %9127 = vmatpush1.msra.mxu0 0.0
    %9128 = vmatprep.subr.mxu0 0.0
    %9129 = vmatpush1.msra.mxu0 0.0
    %9130 = vmatprep.subr.mxu0 0.0
    %9131 = vmatpush1.msra.mxu0 0.0
    %9132 = vmatprep.subr.mxu0 0.0
    %9133 = vmatpush1.msra.mxu0 0.0
    %9134 = vmatprep.subr.mxu0 0.0
    %9135 = vmatpush1.msra.mxu0 0.0
    %9136 = vmatprep.subr.mxu0 0.0
    %9137 = vmatpush1.msra.mxu0 0.0
    %9138 = vmatprep.subr.mxu0 0.0
    %9139 = vmatpush1.msra.mxu0 0.0
    %9140 = vmatprep.subr.mxu0 0.0
    %9141 = vmatpush1.msra.mxu0 0.0
    %9142 = vmatprep.subr.mxu0 0.0
    %9143 = vmatpush1.msra.mxu0 0.0
    %9144 = vmatprep.subr.mxu0 0.0
    %9145 = vmatpush1.msra.mxu0 0.0
    %9146 = vmatprep.subr.mxu0 0.0
    %9147 = vmatpush1.msra.mxu0 0.0
    %9148 = vmatprep.subr.mxu0 0.0
    %9149 = vmatpush1.msra.mxu0 0.0
    %9150 = vmatprep.subr.mxu0 0.0
    %9151 = vmatpush1.msra.mxu0 0.0
    %9152 = vmatprep.subr.mxu0 0.0
    %9153 = vmatpush1.msra.mxu0 0.0
    %9154 = vmatprep.subr.mxu0 0.0
    %9155 = vmatpush1.msra.mxu0 0.0
    %9156 = vmatprep.subr.mxu0 0.0
    %9157 = vmatpush1.msra.mxu0 0.0
    %9158 = vmatprep.subr.mxu0 0.0
    %9159 = vmatpush1.msra.mxu0 0.0
    %9160 = vmatprep.subr.mxu0 0.0
    %9161 = vmatpush1.msra.mxu0 0.0
    %9162 = vmatprep.subr.mxu0 0.0
    %9163 = vmatpush1.msra.mxu0 0.0
    %9164 = vmatprep.subr.mxu0 0.0
    %9165 = vmatpush1.msra.mxu0 0.0
    %9166 = vmatprep.subr.mxu0 0.0
    %9167 = vmatpush1.msra.mxu0 0.0
    %9168 = vmatprep.subr.mxu0 0.0
    %9169 = vmatpush1.msra.mxu0 0.0
    %9170 = vmatprep.subr.mxu0 0.0
    %9171 = vmatpush1.msra.mxu0 0.0
    %9172 = vmatprep.subr.mxu0 0.0
    %9173 = vmatpush1.msra.mxu0 0.0
    %9174 = vmatprep.subr.mxu0 0.0
    %9175 = vmatpush1.msra.mxu0 0.0
    %9176 = vmatprep.mubr.f32.mxu0 0.0
    %9177 = vmatmul.mubr.f32.gmra.mrb[0].mxu0 %v9110
    %v9178 = vpop.f32.mrb[0].mxu0
    %v9179 = vadd.f32 0.0, %v9178
    %v9180 = vpop.f32.mrb[0].mxu0
    %v9181 = vadd.f32 0.0, %v9180
    %9182 = vdwg.mxu0
    %v9183 = vadd.f32 %v9105, %v9179
    %v9184 = vadd.f32 %v9106, %v9181
    %s9185 = scalar_lea.vmem %s11, 24
    %v9186 = vld [vmem:[%s9185] sm:$0x3]
    %v9188 = vsel %vm8256, %v9186, 0
    %9190 = vmatprep.subr.mxu0 %v8126
    %9191 = vmatpush1.msra.mxu0 %v8124
    %9192 = vmatprep.subr.mxu0 0.0
    %9193 = vmatpush1.msra.mxu0 0.0
    %9194 = vmatprep.subr.mxu0 0.0
    %9195 = vmatpush1.msra.mxu0 0.0
    %9196 = vmatprep.subr.mxu0 0.0
    %9197 = vmatpush1.msra.mxu0 0.0
    %9198 = vmatprep.subr.mxu0 0.0
    %9199 = vmatpush1.msra.mxu0 0.0
    %9200 = vmatprep.subr.mxu0 0.0
    %9201 = vmatpush1.msra.mxu0 0.0
    %9202 = vmatprep.subr.mxu0 0.0
    %9203 = vmatpush1.msra.mxu0 0.0
    %9204 = vmatprep.subr.mxu0 0.0
    %9205 = vmatpush1.msra.mxu0 0.0
    %9206 = vmatprep.subr.mxu0 0.0
    %9207 = vmatpush1.msra.mxu0 0.0
    %9208 = vmatprep.subr.mxu0 0.0
    %9209 = vmatpush1.msra.mxu0 0.0
    %9210 = vmatprep.subr.mxu0 0.0
    %9211 = vmatpush1.msra.mxu0 0.0
    %9212 = vmatprep.subr.mxu0 0.0
    %9213 = vmatpush1.msra.mxu0 0.0
    %9214 = vmatprep.subr.mxu0 0.0
    %9215 = vmatpush1.msra.mxu0 0.0
    %9216 = vmatprep.subr.mxu0 0.0
    %9217 = vmatpush1.msra.mxu0 0.0
    %9218 = vmatprep.subr.mxu0 0.0
    %9219 = vmatpush1.msra.mxu0 0.0
    %9220 = vmatprep.subr.mxu0 0.0
    %9221 = vmatpush1.msra.mxu0 0.0
    %9222 = vmatprep.subr.mxu0 0.0
    %9223 = vmatpush1.msra.mxu0 0.0
    %9224 = vmatprep.subr.mxu0 0.0
    %9225 = vmatpush1.msra.mxu0 0.0
    %9226 = vmatprep.subr.mxu0 0.0
    %9227 = vmatpush1.msra.mxu0 0.0
    %9228 = vmatprep.subr.mxu0 0.0
    %9229 = vmatpush1.msra.mxu0 0.0
    %9230 = vmatprep.subr.mxu0 0.0
    %9231 = vmatpush1.msra.mxu0 0.0
    %9232 = vmatprep.subr.mxu0 0.0
    %9233 = vmatpush1.msra.mxu0 0.0
    %9234 = vmatprep.subr.mxu0 0.0
    %9235 = vmatpush1.msra.mxu0 0.0
    %9236 = vmatprep.subr.mxu0 0.0
    %9237 = vmatpush1.msra.mxu0 0.0
    %9238 = vmatprep.subr.mxu0 0.0
    %9239 = vmatpush1.msra.mxu0 0.0
    %9240 = vmatprep.subr.mxu0 0.0
    %9241 = vmatpush1.msra.mxu0 0.0
    %9242 = vmatprep.subr.mxu0 0.0
    %9243 = vmatpush1.msra.mxu0 0.0
    %9244 = vmatprep.subr.mxu0 0.0
    %9245 = vmatpush1.msra.mxu0 0.0
    %9246 = vmatprep.subr.mxu0 0.0
    %9247 = vmatpush1.msra.mxu0 0.0
    %9248 = vmatprep.subr.mxu0 0.0
    %9249 = vmatpush1.msra.mxu0 0.0
    %9250 = vmatprep.subr.mxu0 0.0
    %9251 = vmatpush1.msra.mxu0 0.0
    %9252 = vmatprep.subr.mxu0 0.0
    %9253 = vmatpush1.msra.mxu0 0.0
    %9254 = vmatprep.mubr.f32.mxu0 0.0
    %9255 = vmatmul.mubr.f32.gmra.mrb[0].mxu0 %v9188
    %v9256 = vpop.f32.mrb[0].mxu0
    %v9257 = vadd.f32 0.0, %v9256
    %v9258 = vpop.f32.mrb[0].mxu0
    %v9259 = vadd.f32 0.0, %v9258
    %9260 = vdwg.mxu0
    %v9261 = vadd.f32 %v9183, %v9257
    %v9262 = vadd.f32 %v9184, %v9259
    %s9263 = scalar_lea.vmem %s11, 26
    %v9264 = vld [vmem:[%s9263] sm:$0x3]
    %v9266 = vsel %vm8256, %v9264, 0
    %9268 = vmatprep.subr.mxu0 %v8167
    %9269 = vmatpush1.msra.mxu0 %v8165
    %9270 = vmatprep.subr.mxu0 0.0
    %9271 = vmatpush1.msra.mxu0 0.0
    %9272 = vmatprep.subr.mxu0 0.0
    %9273 = vmatpush1.msra.mxu0 0.0
    %9274 = vmatprep.subr.mxu0 0.0
    %9275 = vmatpush1.msra.mxu0 0.0
    %9276 = vmatprep.subr.mxu0 0.0
    %9277 = vmatpush1.msra.mxu0 0.0
    %9278 = vmatprep.subr.mxu0 0.0
    %9279 = vmatpush1.msra.mxu0 0.0
    %9280 = vmatprep.subr.mxu0 0.0
    %9281 = vmatpush1.msra.mxu0 0.0
    %9282 = vmatprep.subr.mxu0 0.0
    %9283 = vmatpush1.msra.mxu0 0.0
    %9284 = vmatprep.subr.mxu0 0.0
    %9285 = vmatpush1.msra.mxu0 0.0
    %9286 = vmatprep.subr.mxu0 0.0
    %9287 = vmatpush1.msra.mxu0 0.0
    %9288 = vmatprep.subr.mxu0 0.0
    %9289 = vmatpush1.msra.mxu0 0.0
    %9290 = vmatprep.subr.mxu0 0.0
    %9291 = vmatpush1.msra.mxu0 0.0
    %9292 = vmatprep.subr.mxu0 0.0
    %9293 = vmatpush1.msra.mxu0 0.0
    %9294 = vmatprep.subr.mxu0 0.0
    %9295 = vmatpush1.msra.mxu0 0.0
    %9296 = vmatprep.subr.mxu0 0.0
    %9297 = vmatpush1.msra.mxu0 0.0
    %9298 = vmatprep.subr.mxu0 0.0
    %9299 = vmatpush1.msra.mxu0 0.0
    %9300 = vmatprep.subr.mxu0 0.0
    %9301 = vmatpush1.msra.mxu0 0.0
    %9302 = vmatprep.subr.mxu0 0.0
    %9303 = vmatpush1.msra.mxu0 0.0
    %9304 = vmatprep.subr.mxu0 0.0
    %9305 = vmatpush1.msra.mxu0 0.0
    %9306 = vmatprep.subr.mxu0 0.0
    %9307 = vmatpush1.msra.mxu0 0.0
    %9308 = vmatprep.subr.mxu0 0.0
    %9309 = vmatpush1.msra.mxu0 0.0
    %9310 = vmatprep.subr.mxu0 0.0
    %9311 = vmatpush1.msra.mxu0 0.0
    %9312 = vmatprep.subr.mxu0 0.0
    %9313 = vmatpush1.msra.mxu0 0.0
    %9314 = vmatprep.subr.mxu0 0.0
    %9315 = vmatpush1.msra.mxu0 0.0
    %9316 = vmatprep.subr.mxu0 0.0
    %9317 = vmatpush1.msra.mxu0 0.0
    %9318 = vmatprep.subr.mxu0 0.0
    %9319 = vmatpush1.msra.mxu0 0.0
    %9320 = vmatprep.subr.mxu0 0.0
    %9321 = vmatpush1.msra.mxu0 0.0
    %9322 = vmatprep.subr.mxu0 0.0
    %9323 = vmatpush1.msra.mxu0 0.0
    %9324 = vmatprep.subr.mxu0 0.0
    %9325 = vmatpush1.msra.mxu0 0.0
    %9326 = vmatprep.subr.mxu0 0.0
    %9327 = vmatpush1.msra.mxu0 0.0
    %9328 = vmatprep.subr.mxu0 0.0
    %9329 = vmatpush1.msra.mxu0 0.0
    %9330 = vmatprep.subr.mxu0 0.0
    %9331 = vmatpush1.msra.mxu0 0.0
    %9332 = vmatprep.mubr.f32.mxu0 0.0
    %9333 = vmatmul.mubr.f32.gmra.mrb[0].mxu0 %v9266
    %v9334 = vpop.f32.mrb[0].mxu0
    %v9335 = vadd.f32 0.0, %v9334
    %v9336 = vpop.f32.mrb[0].mxu0
    %v9337 = vadd.f32 0.0, %v9336
    %9338 = vdwg.mxu0
    %v9339 = vadd.f32 %v9261, %v9335
    %v9340 = vadd.f32 %v9262, %v9337
    %s9341 = scalar_lea.vmem %s11, 28
    %v9342 = vld [vmem:[%s9341] sm:$0x3]
    %v9344 = vsel %vm8256, %v9342, 0
    %9346 = vmatprep.subr.mxu0 %v8208
    %9347 = vmatpush1.msra.mxu0 %v8206
    %9348 = vmatprep.subr.mxu0 0.0
    %9349 = vmatpush1.msra.mxu0 0.0
    %9350 = vmatprep.subr.mxu0 0.0
    %9351 = vmatpush1.msra.mxu0 0.0
    %9352 = vmatprep.subr.mxu0 0.0
    %9353 = vmatpush1.msra.mxu0 0.0
    %9354 = vmatprep.subr.mxu0 0.0
    %9355 = vmatpush1.msra.mxu0 0.0
    %9356 = vmatprep.subr.mxu0 0.0
    %9357 = vmatpush1.msra.mxu0 0.0
    %9358 = vmatprep.subr.mxu0 0.0
    %9359 = vmatpush1.msra.mxu0 0.0
    %9360 = vmatprep.subr.mxu0 0.0
    %9361 = vmatpush1.msra.mxu0 0.0
    %9362 = vmatprep.subr.mxu0 0.0
    %9363 = vmatpush1.msra.mxu0 0.0
    %9364 = vmatprep.subr.mxu0 0.0
    %9365 = vmatpush1.msra.mxu0 0.0
    %9366 = vmatprep.subr.mxu0 0.0
    %9367 = vmatpush1.msra.mxu0 0.0
    %9368 = vmatprep.subr.mxu0 0.0
    %9369 = vmatpush1.msra.mxu0 0.0
    %9370 = vmatprep.subr.mxu0 0.0
    %9371 = vmatpush1.msra.mxu0 0.0
    %9372 = vmatprep.subr.mxu0 0.0
    %9373 = vmatpush1.msra.mxu0 0.0
    %9374 = vmatprep.subr.mxu0 0.0
    %9375 = vmatpush1.msra.mxu0 0.0
    %9376 = vmatprep.subr.mxu0 0.0
    %9377 = vmatpush1.msra.mxu0 0.0
    %9378 = vmatprep.subr.mxu0 0.0
    %9379 = vmatpush1.msra.mxu0 0.0
    %9380 = vmatprep.subr.mxu0 0.0
    %9381 = vmatpush1.msra.mxu0 0.0
    %9382 = vmatprep.subr.mxu0 0.0
    %9383 = vmatpush1.msra.mxu0 0.0
    %9384 = vmatprep.subr.mxu0 0.0
    %9385 = vmatpush1.msra.mxu0 0.0
    %9386 = vmatprep.subr.mxu0 0.0
    %9387 = vmatpush1.msra.mxu0 0.0
    %9388 = vmatprep.subr.mxu0 0.0
    %9389 = vmatpush1.msra.mxu0 0.0
    %9390 = vmatprep.subr.mxu0 0.0
    %9391 = vmatpush1.msra.mxu0 0.0
    %9392 = vmatprep.subr.mxu0 0.0
    %9393 = vmatpush1.msra.mxu0 0.0
    %9394 = vmatprep.subr.mxu0 0.0
    %9395 = vmatpush1.msra.mxu0 0.0
    %9396 = vmatprep.subr.mxu0 0.0
    %9397 = vmatpush1.msra.mxu0 0.0
    %9398 = vmatprep.subr.mxu0 0.0
    %9399 = vmatpush1.msra.mxu0 0.0
    %9400 = vmatprep.subr.mxu0 0.0
    %9401 = vmatpush1.msra.mxu0 0.0
    %9402 = vmatprep.subr.mxu0 0.0
    %9403 = vmatpush1.msra.mxu0 0.0
    %9404 = vmatprep.subr.mxu0 0.0
    %9405 = vmatpush1.msra.mxu0 0.0
    %9406 = vmatprep.subr.mxu0 0.0
    %9407 = vmatpush1.msra.mxu0 0.0
    %9408 = vmatprep.subr.mxu0 0.0
    %9409 = vmatpush1.msra.mxu0 0.0
    %9410 = vmatprep.mubr.f32.mxu0 0.0
    %9411 = vmatmul.mubr.f32.gmra.mrb[0].mxu0 %v9344
    %v9412 = vpop.f32.mrb[0].mxu0
    %v9413 = vadd.f32 0.0, %v9412
    %v9414 = vpop.f32.mrb[0].mxu0
    %v9415 = vadd.f32 0.0, %v9414
    %9416 = vdwg.mxu0
    %v9417 = vadd.f32 %v9339, %v9413
    %v9418 = vadd.f32 %v9340, %v9415
    %s9419 = scalar_lea.vmem %s11, 30
    %v9420 = vld [vmem:[%s9419] sm:$0x3]
    %v9422 = vsel %vm8256, %v9420, 0
    %9424 = vmatprep.subr.mxu0 %v8249
    %9425 = vmatpush1.msra.mxu0 %v8247
    %9426 = vmatprep.subr.mxu0 0.0
    %9427 = vmatpush1.msra.mxu0 0.0
    %9428 = vmatprep.subr.mxu0 0.0
    %9429 = vmatpush1.msra.mxu0 0.0
    %9430 = vmatprep.subr.mxu0 0.0
    %9431 = vmatpush1.msra.mxu0 0.0
    %9432 = vmatprep.subr.mxu0 0.0
    %9433 = vmatpush1.msra.mxu0 0.0
    %9434 = vmatprep.subr.mxu0 0.0
    %9435 = vmatpush1.msra.mxu0 0.0
    %9436 = vmatprep.subr.mxu0 0.0
    %9437 = vmatpush1.msra.mxu0 0.0
    %9438 = vmatprep.subr.mxu0 0.0
    %9439 = vmatpush1.msra.mxu0 0.0
    %9440 = vmatprep.subr.mxu0 0.0
    %9441 = vmatpush1.msra.mxu0 0.0
    %9442 = vmatprep.subr.mxu0 0.0
    %9443 = vmatpush1.msra.mxu0 0.0
    %9444 = vmatprep.subr.mxu0 0.0
    %9445 = vmatpush1.msra.mxu0 0.0
    %9446 = vmatprep.subr.mxu0 0.0
    %9447 = vmatpush1.msra.mxu0 0.0
    %9448 = vmatprep.subr.mxu0 0.0
    %9449 = vmatpush1.msra.mxu0 0.0
    %9450 = vmatprep.subr.mxu0 0.0
    %9451 = vmatpush1.msra.mxu0 0.0
    %9452 = vmatprep.subr.mxu0 0.0
    %9453 = vmatpush1.msra.mxu0 0.0
    %9454 = vmatprep.subr.mxu0 0.0
    %9455 = vmatpush1.msra.mxu0 0.0
    %9456 = vmatprep.subr.mxu0 0.0
    %9457 = vmatpush1.msra.mxu0 0.0
    %9458 = vmatprep.subr.mxu0 0.0
    %9459 = vmatpush1.msra.mxu0 0.0
    %9460 = vmatprep.subr.mxu0 0.0
    %9461 = vmatpush1.msra.mxu0 0.0
    %9462 = vmatprep.subr.mxu0 0.0
    %9463 = vmatpush1.msra.mxu0 0.0
    %9464 = vmatprep.subr.mxu0 0.0
    %9465 = vmatpush1.msra.mxu0 0.0
    %9466 = vmatprep.subr.mxu0 0.0
    %9467 = vmatpush1.msra.mxu0 0.0
    %9468 = vmatprep.subr.mxu0 0.0
    %9469 = vmatpush1.msra.mxu0 0.0
    %9470 = vmatprep.subr.mxu0 0.0
    %9471 = vmatpush1.msra.mxu0 0.0
    %9472 = vmatprep.subr.mxu0 0.0
    %9473 = vmatpush1.msra.mxu0 0.0
    %9474 = vmatprep.subr.mxu0 0.0
    %9475 = vmatpush1.msra.mxu0 0.0
    %9476 = vmatprep.subr.mxu0 0.0
    %9477 = vmatpush1.msra.mxu0 0.0
    %9478 = vmatprep.subr.mxu0 0.0
    %9479 = vmatpush1.msra.mxu0 0.0
    %9480 = vmatprep.subr.mxu0 0.0
    %9481 = vmatpush1.msra.mxu0 0.0
    %9482 = vmatprep.subr.mxu0 0.0
    %9483 = vmatpush1.msra.mxu0 0.0
    %9484 = vmatprep.subr.mxu0 0.0
    %9485 = vmatpush1.msra.mxu0 0.0
    %9486 = vmatprep.subr.mxu0 0.0
    %9487 = vmatpush1.msra.mxu0 0.0
    %9488 = vmatprep.mubr.f32.mxu0 0.0
    %9489 = vmatmul.mubr.f32.gmra.mrb[0].mxu0 %v9422
    %v9490 = vpop.f32.mrb[0].mxu0
    %v9491 = vadd.f32 0.0, %v9490
    %v9492 = vpop.f32.mrb[0].mxu0
    %v9493 = vadd.f32 0.0, %v9492
    %9494 = vdwg.mxu0
    %v9495 = vadd.f32 %v9417, %v9491
    %v9496 = vadd.f32 %v9418, %v9493
    %vm9497 = vcmask 1041408
    %v9498 = vsel %vm9497, %v9495, 0.0
    %v9499 = vrot.slane %v9498, 4
    %v9500 = vadd.f32 %v9498, %v9499
    %v9501 = vrot.slane %v9500, 2
    %v9502 = vadd.f32 %v9500, %v9501
    %v9503 = vrot.slane %v9502, 1
    %v9504 = vadd.f32 %v9502, %v9503
    %v9505 = vsel %vm9497, %v9496, 0.0
    %v9506 = vrot.slane %v9505, 4
    %v9507 = vadd.f32 %v9505, %v9506
    %v9508 = vrot.slane %v9507, 2
    %v9509 = vadd.f32 %v9507, %v9508
    %v9510 = vrot.slane %v9509, 1
    %v9511 = vadd.f32 %v9509, %v9510
    %v9512 = vrcp.pop 2.0
    %v9513 = vmul.f32 %v9504, %v9512
    %v9514 = vmul.f32 %v9511, %v9512
    %v9515 = vmul.f32 %v9495, %v9495
    %v9516 = vmul.f32 %v9496, %v9496
    %v9517 = vsel %vm9497, %v9515, 0.0
    %v9518 = vrot.slane %v9517, 4
    %v9519 = vadd.f32 %v9517, %v9518
    %v9520 = vrot.slane %v9519, 2
    %v9521 = vadd.f32 %v9519, %v9520
    %v9522 = vrot.slane %v9521, 1
    %v9523 = vadd.f32 %v9521, %v9522
    %v9524 = vsel %vm9497, %v9516, 0.0
    %v9525 = vrot.slane %v9524, 4
    %v9526 = vadd.f32 %v9524, %v9525
    %v9527 = vrot.slane %v9526, 2
    %v9528 = vadd.f32 %v9526, %v9527
    %v9529 = vrot.slane %v9528, 1
    %v9530 = vadd.f32 %v9528, %v9529
    %v9531 = vmul.f32 %v9523, %v9512
    %v9532 = vmul.f32 %v9530, %v9512
    %v9533 = vmul.f32 %v9513, %v9513
    %v9534 = vmul.f32 %v9514, %v9514
    %v9535 = vsub.f32 %v9531, %v9533
    %v9536 = vsub.f32 %v9532, %v9534
    %v9537 = vmax.f32 %v9535, 0.0
    %v9538 = vmax.f32 %v9536, 0.0
    %v9539 = vld [vmem:[%s12] sm:$0x3]
    %v9540 = vadd.f32 %v9537, 1e-05
    %v9541 = vadd.f32 %v9538, 1e-05
    %v9542 = vrsqrt.pop %v9540
    %v9543 = vrsqrt.pop %v9541
    %v9546 = vcombine.low %v9542, %v9543
    %v9548 = vunpack.c.l.s4 1966171168
    %v9549 = vunpack.c.0.s8 %v9548
    %v9550 = vlaneseq
    %v9551 = vshrl.u32 %v9550, 7
    %v9552 = vsub.s32 %v9549, %v9551
    %v9553 = vrot.slane %v9546, %v9552
    %v9555 = vunpack.c.l.s4 1966171168
    %v9556 = vunpack.c.0.s8 %v9555
    %v9557 = vlaneseq
    %v9558 = vshrl.u32 %v9557, 7
    %v9559 = vsub.s32 %v9556, %v9558
    %v9560 = vrot.slane %v9553, %v9559
    %v9562 = vmul.f32 %v9539, %v9560
    %v9563 = vld [vmem:[%s13] sm:$0x3]
    %v9565 = vlaneseq
    %v9566 = vshrl.u32 %v9565, 7
    %v9567 = vsub.s32 0, %v9566
    %v9568 = vrot.slane %v9562, %v9567
    %v9569 = vlaneseq
    %v9570 = vshrl.u32 %v9569, 7
    %v9571 = vsub.s32 1, %v9570
    %v9572 = vrot.slane %v9562, %v9571
    %v9575 = vmul.f32 %v9513, %v9568
    %v9576 = vmul.f32 %v9514, %v9572
    %v9579 = vcombine.low %v9575, %v9576
    %v9581 = vunpack.c.l.s4 1966171168
    %v9582 = vunpack.c.0.s8 %v9581
    %v9583 = vlaneseq
    %v9584 = vshrl.u32 %v9583, 7
    %v9585 = vsub.s32 %v9582, %v9584
    %v9586 = vrot.slane %v9579, %v9585
    %v9588 = vunpack.c.l.s4 1966171168
    %v9589 = vunpack.c.0.s8 %v9588
    %v9590 = vlaneseq
    %v9591 = vshrl.u32 %v9590, 7
    %v9592 = vsub.s32 %v9589, %v9591
    %v9593 = vrot.slane %v9586, %v9592
    %v9595 = vsub.f32 %v9563, %v9593
    %v9596 = vmul.f32 %v9495, %v9568
    %v9597 = vmul.f32 %v9496, %v9572
    %v9599 = vlaneseq
    %v9600 = vshrl.u32 %v9599, 7
    %v9601 = vsub.s32 0, %v9600
    %v9602 = vrot.slane %v9595, %v9601
    %v9603 = vlaneseq
    %v9604 = vshrl.u32 %v9603, 7
    %v9605 = vsub.s32 1, %v9604
    %v9606 = vrot.slane %v9595, %v9605
    %v9609 = vadd.f32 %v9596, %v9602
    %v9610 = vadd.f32 %v9597, %v9606
    %v9611 = vmax.f32 %v9609, 0.0
    %v9612 = vmax.f32 %v9610, 0.0
    %v9613 = vpack.c.bf16 %v9611, %v9611
    %v9614 = vpack.c.bf16 %v9612, %v9612
    %v9615 = vld [vmem:[%s14] sm:$0xf]
    %v9616 = vld [vmem:[%s14 + $0x4] sm:$0xf]
    %v9617 = vld [vmem:[%s14 + $0x8] sm:$0xf]
    %v9618 = vld [vmem:[%s14 + $0xc] sm:$0xf]
    %v9619 = vld [vmem:[%s14 + $0x10] sm:$0xf]
    %v9620 = vld [vmem:[%s14 + $0x14] sm:$0xf]
    %v9621 = vld [vmem:[%s14 + $0x18] sm:$0xf]
    %v9622 = vld [vmem:[%s14 + $0x1c] sm:$0xf]
    %v9623 = vld [vmem:[%s14 + $0x20] sm:$0xf]
    %v9624 = vld [vmem:[%s14 + $0x24] sm:$0xf]
    %v9625 = vld [vmem:[%s14 + $0x28] sm:$0xf]
    %v9626 = vld [vmem:[%s14 + $0x2c] sm:$0xf]
    %v9627 = vld [vmem:[%s14 + $0x30] sm:$0xf]
    %v9628 = vld [vmem:[%s14 + $0x34] sm:$0xf]
    %v9629 = vld [vmem:[%s14 + $0x38] sm:$0xf]
    %v9630 = vld [vmem:[%s14 + $0x3c] sm:$0xf]
    %v9631 = vld [vmem:[%s14 + $0x40] sm:$0xf]
    %v9632 = vld [vmem:[%s14 + $0x44] sm:$0xf]
    %v9633 = vld [vmem:[%s14 + $0x48] sm:$0xf]
    %v9634 = vld [vmem:[%s14 + $0x4c] sm:$0xf]
    %v9635 = vld [vmem:[%s14 + $0x50] sm:$0xf]
    %v9636 = vld [vmem:[%s14 + $0x54] sm:$0xf]
    %v9637 = vld [vmem:[%s14 + $0x58] sm:$0xf]
    %v9638 = vld [vmem:[%s14 + $0x5c] sm:$0xf]
    %v9639 = vld [vmem:[%s14 + $0x60] sm:$0xf]
    %v9640 = vld [vmem:[%s14 + $0x64] sm:$0xf]
    %v9641 = vld [vmem:[%s14 + $0x68] sm:$0xf]
    %v9642 = vld [vmem:[%s14 + $0x6c] sm:$0xf]
    %v9643 = vld [vmem:[%s14 + $0x70] sm:$0xf]
    %v9644 = vld [vmem:[%s14 + $0x74] sm:$0xf]
    %v9645 = vld [vmem:[%s14 + $0x78] sm:$0xf]
    %v9646 = vld [vmem:[%s14 + $0x7c] sm:$0xf]
    %v9647 = vld [vmem:[%s16] sm:$0x1]
    %v9649 = vlaneseq
    %v9650 = vshrl.u32 %v9649, 7
    %v9651 = vsub.s32 0, %v9650
    %v9652 = vrot.slane %v9647, %v9651
    %v9686 = vunpack.c.l.b16 %v9615
    %v9687 = vunpack.c.l.b16 %v9616
    %v9688 = vunpack.c.l.b16 %v9617
    %v9689 = vunpack.c.l.b16 %v9618
    %v9690 = vunpack.c.l.b16 %v9619
    %v9691 = vunpack.c.l.b16 %v9620
    %v9692 = vunpack.c.l.b16 %v9621
    %v9693 = vunpack.c.l.b16 %v9622
    %v9694 = vunpack.c.l.b16 %v9623
    %v9695 = vunpack.c.l.b16 %v9624
    %v9696 = vunpack.c.l.b16 %v9625
    %v9697 = vunpack.c.l.b16 %v9626
    %v9698 = vunpack.c.l.b16 %v9627
    %v9699 = vunpack.c.l.b16 %v9628
    %v9700 = vunpack.c.l.b16 %v9629
    %v9701 = vunpack.c.l.b16 %v9630
    %v9702 = vunpack.c.l.b16 %v9631
    %v9703 = vunpack.c.l.b16 %v9632
    %v9704 = vunpack.c.l.b16 %v9633
    %v9705 = vunpack.c.l.b16 %v9634
    %v9706 = vunpack.c.l.b16 %v9635
    %v9707 = vunpack.c.l.b16 %v9636
    %v9708 = vunpack.c.l.b16 %v9637
    %v9709 = vunpack.c.l.b16 %v9638
    %v9710 = vunpack.c.l.b16 %v9639
    %v9711 = vunpack.c.l.b16 %v9640
    %v9712 = vunpack.c.l.b16 %v9641
    %v9713 = vunpack.c.l.b16 %v9642
    %v9714 = vunpack.c.l.b16 %v9643
    %v9715 = vunpack.c.l.b16 %v9644
    %v9716 = vunpack.c.l.b16 %v9645
    %v9717 = vunpack.c.l.b16 %v9646
    %v9718 = vpack.c.b16 %v9687, %v9686
    %v9719 = vpack.c.b16 %v9689, %v9688
    %v9720 = vpack.c.b16 %v9691, %v9690
    %v9721 = vpack.c.b16 %v9693, %v9692
    %v9722 = vpack.c.b16 %v9695, %v9694
    %v9723 = vpack.c.b16 %v9697, %v9696
    %v9724 = vpack.c.b16 %v9699, %v9698
    %v9725 = vpack.c.b16 %v9701, %v9700
    %v9726 = vpack.c.b16 %v9703, %v9702
    %v9727 = vpack.c.b16 %v9705, %v9704
    %v9728 = vpack.c.b16 %v9707, %v9706
    %v9729 = vpack.c.b16 %v9709, %v9708
    %v9730 = vpack.c.b16 %v9711, %v9710
    %v9731 = vpack.c.b16 %v9713, %v9712
    %v9732 = vpack.c.b16 %v9715, %v9714
    %v9733 = vpack.c.b16 %v9717, %v9716
    %9750 = vmatprep.subr.bf16.mxu0 0
    %9751 = vmatpush1.bf16.msra.mxu0 %v9718
    %9752 = vmatprep.subr.bf16.mxu0 0
    %9753 = vmatpush1.bf16.msra.mxu0 %v9719
    %9754 = vmatprep.subr.bf16.mxu0 0
    %9755 = vmatpush1.bf16.msra.mxu0 %v9720
    %9756 = vmatprep.subr.bf16.mxu0 0
    %9757 = vmatpush1.bf16.msra.mxu0 %v9721
    %9758 = vmatprep.subr.bf16.mxu0 0
    %9759 = vmatpush1.bf16.msra.mxu0 %v9722
    %9760 = vmatprep.subr.bf16.mxu0 0
    %9761 = vmatpush1.bf16.msra.mxu0 %v9723
    %9762 = vmatprep.subr.bf16.mxu0 0
    %9763 = vmatpush1.bf16.msra.mxu0 %v9724
    %9764 = vmatprep.subr.bf16.mxu0 0
    %9765 = vmatpush1.bf16.msra.mxu0 %v9725
    %9766 = vmatprep.subr.bf16.mxu0 0
    %9767 = vmatpush1.bf16.msra.mxu0 %v9726
    %9768 = vmatprep.subr.bf16.mxu0 0
    %9769 = vmatpush1.bf16.msra.mxu0 %v9727
    %9770 = vmatprep.subr.bf16.mxu0 0
    %9771 = vmatpush1.bf16.msra.mxu0 %v9728
    %9772 = vmatprep.subr.bf16.mxu0 0
    %9773 = vmatpush1.bf16.msra.mxu0 %v9729
    %9774 = vmatprep.subr.bf16.mxu0 0
    %9775 = vmatpush1.bf16.msra.mxu0 %v9730
    %9776 = vmatprep.subr.bf16.mxu0 0
    %9777 = vmatpush1.bf16.msra.mxu0 %v9731
    %9778 = vmatprep.subr.bf16.mxu0 0
    %9779 = vmatpush1.bf16.msra.mxu0 %v9732
    %9780 = vmatprep.subr.bf16.mxu0 0
    %9781 = vmatpush1.bf16.msra.mxu0 %v9733
    %9782 = vmatprep.mubr.bf16.mxu0 %v9614
    %9783 = vmatmul.mubr.bf16.gmra.mrb[0].mxu0 %v9613
    %v9784 = vpop.f32.mrb[0].mxu0
    %v9785 = vadd.f32 %v9652, %v9784
    %v9786 = vpop.f32.mrb[0].mxu0
    %v9787 = vpop.f32.mrb[0].mxu0
    %v9788 = vpop.f32.mrb[0].mxu0
    %9789 = vdwg.mxu0
    %v9790 = vld [vmem:[%s15] sm:$0xf]
    %v9791 = vld [vmem:[%s15 + $0x4] sm:$0xf]
    %v9792 = vld [vmem:[%s15 + $0x8] sm:$0xf]
    %v9793 = vld [vmem:[%s15 + $0xc] sm:$0xf]
    %v9794 = vld [vmem:[%s15 + $0x10] sm:$0xf]
    %v9795 = vld [vmem:[%s15 + $0x14] sm:$0xf]
    %v9796 = vld [vmem:[%s15 + $0x18] sm:$0xf]
    %v9797 = vld [vmem:[%s15 + $0x1c] sm:$0xf]
    %v9798 = vld [vmem:[%s15 + $0x20] sm:$0xf]
    %v9799 = vld [vmem:[%s15 + $0x24] sm:$0xf]
    %v9800 = vld [vmem:[%s15 + $0x28] sm:$0xf]
    %v9801 = vld [vmem:[%s15 + $0x2c] sm:$0xf]
    %v9802 = vld [vmem:[%s15 + $0x30] sm:$0xf]
    %v9803 = vld [vmem:[%s15 + $0x34] sm:$0xf]
    %v9804 = vld [vmem:[%s15 + $0x38] sm:$0xf]
    %v9805 = vld [vmem:[%s15 + $0x3c] sm:$0xf]
    %v9806 = vld [vmem:[%s15 + $0x40] sm:$0xf]
    %v9807 = vld [vmem:[%s15 + $0x44] sm:$0xf]
    %v9808 = vld [vmem:[%s15 + $0x48] sm:$0xf]
    %v9809 = vld [vmem:[%s15 + $0x4c] sm:$0xf]
    %v9810 = vld [vmem:[%s15 + $0x50] sm:$0xf]
    %v9811 = vld [vmem:[%s15 + $0x54] sm:$0xf]
    %v9812 = vld [vmem:[%s15 + $0x58] sm:$0xf]
    %v9813 = vld [vmem:[%s15 + $0x5c] sm:$0xf]
    %v9814 = vld [vmem:[%s15 + $0x60] sm:$0xf]
    %v9815 = vld [vmem:[%s15 + $0x64] sm:$0xf]
    %v9816 = vld [vmem:[%s15 + $0x68] sm:$0xf]
    %v9817 = vld [vmem:[%s15 + $0x6c] sm:$0xf]
    %v9818 = vld [vmem:[%s15 + $0x70] sm:$0xf]
    %v9819 = vld [vmem:[%s15 + $0x74] sm:$0xf]
    %v9820 = vld [vmem:[%s15 + $0x78] sm:$0xf]
    %v9821 = vld [vmem:[%s15 + $0x7c] sm:$0xf]
    %v9822 = vld [vmem:[%s17] sm:$0x1]
    %v9824 = vlaneseq
    %v9825 = vshrl.u32 %v9824, 7
    %v9826 = vsub.s32 0, %v9825
    %v9827 = vrot.slane %v9822, %v9826
    %v9861 = vunpack.c.l.b16 %v9790
    %v9862 = vunpack.c.l.b16 %v9791
    %v9863 = vunpack.c.l.b16 %v9792
    %v9864 = vunpack.c.l.b16 %v9793
    %v9865 = vunpack.c.l.b16 %v9794
    %v9866 = vunpack.c.l.b16 %v9795
    %v9867 = vunpack.c.l.b16 %v9796
    %v9868 = vunpack.c.l.b16 %v9797
    %v9869 = vunpack.c.l.b16 %v9798
    %v9870 = vunpack.c.l.b16 %v9799
    %v9871 = vunpack.c.l.b16 %v9800
    %v9872 = vunpack.c.l.b16 %v9801
    %v9873 = vunpack.c.l.b16 %v9802
    %v9874 = vunpack.c.l.b16 %v9803
    %v9875 = vunpack.c.l.b16 %v9804
    %v9876 = vunpack.c.l.b16 %v9805
    %v9877 = vunpack.c.l.b16 %v9806
    %v9878 = vunpack.c.l.b16 %v9807
    %v9879 = vunpack.c.l.b16 %v9808
    %v9880 = vunpack.c.l.b16 %v9809
    %v9881 = vunpack.c.l.b16 %v9810
    %v9882 = vunpack.c.l.b16 %v9811
    %v9883 = vunpack.c.l.b16 %v9812
    %v9884 = vunpack.c.l.b16 %v9813
    %v9885 = vunpack.c.l.b16 %v9814
    %v9886 = vunpack.c.l.b16 %v9815
    %v9887 = vunpack.c.l.b16 %v9816
    %v9888 = vunpack.c.l.b16 %v9817
    %v9889 = vunpack.c.l.b16 %v9818
    %v9890 = vunpack.c.l.b16 %v9819
    %v9891 = vunpack.c.l.b16 %v9820
    %v9892 = vunpack.c.l.b16 %v9821
    %v9893 = vpack.c.b16 %v9862, %v9861
    %v9894 = vpack.c.b16 %v9864, %v9863
    %v9895 = vpack.c.b16 %v9866, %v9865
    %v9896 = vpack.c.b16 %v9868, %v9867
    %v9897 = vpack.c.b16 %v9870, %v9869
    %v9898 = vpack.c.b16 %v9872, %v9871
    %v9899 = vpack.c.b16 %v9874, %v9873
    %v9900 = vpack.c.b16 %v9876, %v9875
    %v9901 = vpack.c.b16 %v9878, %v9877
    %v9902 = vpack.c.b16 %v9880, %v9879
    %v9903 = vpack.c.b16 %v9882, %v9881
    %v9904 = vpack.c.b16 %v9884, %v9883
    %v9905 = vpack.c.b16 %v9886, %v9885
    %v9906 = vpack.c.b16 %v9888, %v9887
    %v9907 = vpack.c.b16 %v9890, %v9889
    %v9908 = vpack.c.b16 %v9892, %v9891
    %9925 = vmatprep.subr.bf16.mxu0 0
    %9926 = vmatpush1.bf16.msra.mxu0 %v9893
    %9927 = vmatprep.subr.bf16.mxu0 0
    %9928 = vmatpush1.bf16.msra.mxu0 %v9894
    %9929 = vmatprep.subr.bf16.mxu0 0
    %9930 = vmatpush1.bf16.msra.mxu0 %v9895
    %9931 = vmatprep.subr.bf16.mxu0 0
    %9932 = vmatpush1.bf16.msra.mxu0 %v9896
    %9933 = vmatprep.subr.bf16.mxu0 0
    %9934 = vmatpush1.bf16.msra.mxu0 %v9897
    %9935 = vmatprep.subr.bf16.mxu0 0
    %9936 = vmatpush1.bf16.msra.mxu0 %v9898
    %9937 = vmatprep.subr.bf16.mxu0 0
    %9938 = vmatpush1.bf16.msra.mxu0 %v9899
    %9939 = vmatprep.subr.bf16.mxu0 0
    %9940 = vmatpush1.bf16.msra.mxu0 %v9900
    %9941 = vmatprep.subr.bf16.mxu0 0
    %9942 = vmatpush1.bf16.msra.mxu0 %v9901
    %9943 = vmatprep.subr.bf16.mxu0 0
    %9944 = vmatpush1.bf16.msra.mxu0 %v9902
    %9945 = vmatprep.subr.bf16.mxu0 0
    %9946 = vmatpush1.bf16.msra.mxu0 %v9903
    %9947 = vmatprep.subr.bf16.mxu0 0
    %9948 = vmatpush1.bf16.msra.mxu0 %v9904
    %9949 = vmatprep.subr.bf16.mxu0 0
    %9950 = vmatpush1.bf16.msra.mxu0 %v9905
    %9951 = vmatprep.subr.bf16.mxu0 0
    %9952 = vmatpush1.bf16.msra.mxu0 %v9906
    %9953 = vmatprep.subr.bf16.mxu0 0
    %9954 = vmatpush1.bf16.msra.mxu0 %v9907
    %9955 = vmatprep.subr.bf16.mxu0 0
    %9956 = vmatpush1.bf16.msra.mxu0 %v9908
    %9957 = vmatprep.mubr.bf16.mxu0 %v9614
    %9958 = vmatmul.mubr.bf16.gmra.mrb[0].mxu0 %v9613
    %v9959 = vpop.f32.mrb[0].mxu0
    %v9960 = vadd.f32 %v9827, %v9959
    %v9961 = vpop.f32.mrb[0].mxu0
    %v9962 = vpop.f32.mrb[0].mxu0
    %v9963 = vpop.f32.mrb[0].mxu0
    %9964 = vdwg.mxu0
    %v9965 = vld [vmem:[%s18] sm:$0x3]
    %v9966 = vmul.f32 %v9960, 0.5
    %v9967 = vmul.f32 %v9966, 1.442695
    %v9968 = vpow.pop %v9967
    %v9969 = vmul.f32 %v9965, %v9968
    %v9970 = vadd.f32 %v9969, %v9785
    %vm9971 = vcmask 58368
    %9972 = vst.msk [vmem:[#allocation11] sm:$0x3] %vm9971, %v9970
    %9973 = vst.msk [vmem:[#allocation12] sm:$0x3] %vm9971, %v9785
    %9974 = vst.msk [vmem:[#allocation14] sm:$0x3] %vm9971, %v9960
    // Predicated region
    $region98: #{random_cnn_encoder_forward.1} parent=1 // pred_check
      _
    $region99: #{random_cnn_encoder_forward.1} parent=1 // pred_check_branch
      %9976 = sbr.rel (0) target = $region101
    $region100: #{random_cnn_encoder_forward.1} parent=1 // pred_region
      %s9978 = ssub.s32 32, 32
      %9979 = vsyncadd [#allocation4], %s9978
      %s9981 = sshll.u32 [#allocation11], 4
      %s9982 = int_to_ptr.vmem [resolvable:$true] %s9981
      %9984 = dma.vmem_to_hbm [thread:$0]  %s9982, 32, %s19, [#allocation4]
    $region101: #{random_cnn_encoder_forward.1} parent=1 // pred_fallthru
      _
    // Predicated region
    $region102: #{random_cnn_encoder_forward.1} parent=1 // pred_check
      _
    $region103: #{random_cnn_encoder_forward.1} parent=1 // pred_check_branch
      %9986 = sbr.rel (0) target = $region105
    $region104: #{random_cnn_encoder_forward.1} parent=1 // pred_region
      %s9988 = ssub.s32 32, 32
      %9989 = vsyncadd [#allocation13], %s9988
      %s9991 = sshll.u32 [#allocation12], 4
      %s9992 = int_to_ptr.vmem [resolvable:$true] %s9991
      %9994 = dma.vmem_to_hbm [thread:$0]  %s9992, 32, %s20, [#allocation13]
    $region105: #{random_cnn_encoder_forward.1} parent=1 // pred_fallthru
      _
    // Predicated region
    $region106: #{random_cnn_encoder_forward.1} parent=1 // pred_check
      _
    $region107: #{random_cnn_encoder_forward.1} parent=1 // pred_check_branch
      %9996 = sbr.rel (0) target = $region109
    $region108: #{random_cnn_encoder_forward.1} parent=1 // pred_region
      %s9998 = ssub.s32 32, 32
      %9999 = vsyncadd [#allocation13], %s9998
      %s10001 = sshll.u32 [#allocation14], 4
      %s10002 = int_to_ptr.vmem [resolvable:$true] %s10001
      %10004 = dma.vmem_to_hbm [thread:$0]  %s10002, 32, %s21, [#allocation13]
    $region109: #{random_cnn_encoder_forward.1} parent=1 // pred_fallthru
      _
    // Predicated region
    $region110: #{random_cnn_encoder_forward.1} parent=1 // pred_check
      _
    $region111: #{random_cnn_encoder_forward.1} parent=1 // pred_check_branch
      %10006 = sbr.rel (0) target = $region113
    $region112: #{random_cnn_encoder_forward.1} parent=1 // pred_region
      %10007 = dma.done [#allocation4], 32
    $region113: #{random_cnn_encoder_forward.1} parent=1 // pred_fallthru
      _
    // Predicated region
    $region114: #{random_cnn_encoder_forward.1} parent=1 // pred_check
      _
    $region115: #{random_cnn_encoder_forward.1} parent=1 // pred_check_branch
      %10009 = sbr.rel (0) target = $region117
    $region116: #{random_cnn_encoder_forward.1} parent=1 // pred_region
      %10010 = dma.done [#allocation13], 32
    $region117: #{random_cnn_encoder_forward.1} parent=1 // pred_fallthru
      _
    // Predicated region
    $region118: #{random_cnn_encoder_forward.1} parent=1 // pred_check
      _
    $region119: #{random_cnn_encoder_forward.1} parent=1 // pred_check_branch
      %10012 = sbr.rel (0) target = $region121
    $region120: #{random_cnn_encoder_forward.1} parent=1 // pred_region
      %10013 = dma.done [#allocation13], 32
    $region121: #{random_cnn_encoder_forward.1} parent=1 // pred_fallthru
      _
    %10014 = vsyncpa [#allocation3], 1
    %10015 = vsyncpa [#allocation6], 1
    %10016 = vsyncpa [#allocation9], 1
    %10017 = vsyncpa [#allocation4], 1
    %10018 = vsyncpa [#allocation13], 1

</llo_original>
